<compile_context>
chip_gen: v7x
topology: tpu7x:2x2x1
jax: 0.10.0
libtpu: 0.0.40
codegen_flags: <defaults>
</compile_context>

<pallas_src>
import functools

import jax
import jax.numpy as jnp
from jax.experimental import pallas as pl
from jax.experimental.pallas import tpu as pltpu

# Module hyper-parameters (PyTorch defaults).
D = 8
W = 256
INPUT_CH = 3
INPUT_CH_VIEWS = 3
IN_CH = INPUT_CH + INPUT_CH_VIEWS
OUTPUT_CH = 4
SKIPS = (4,)
CLASS_DIM = 2
OUT_ROWS = 8      # output rows padded 4 -> 8 (one sublane tile); sliced in the wrapper
TB_MAX = 2048     # default batch-tile cap (fits v7x's 64 MiB VMEM; 4096 is fine on v5e/v6e)


def augnerf_kernel(x_ref, wcat_ref, wh_ref, b_ref, wo_ref, bo_ref, o_ref):
    """One batch tile of the full AugNeRF MLP, feature-major (batch on lanes).

    x_ref   : (6, tb)    f32   raw input columns (pts ++ views; views unused)
    wcat_ref: (2W, 6)    bf16  fused [layer-0 pts | skip-layer pts] weights
    wh_ref  : (D-1,W,W)  bf16  layers 1..D-1 hidden weights (torch (out,in) layout)
    b_ref   : (W, D)     bf16  effective hidden biases (Class one-hot folded in)
    wo_ref  : (8, W)     bf16  output weight (hidden part), row-padded 4 -> 8
    bo_ref  : (8, 1)     f32   effective output bias, row-padded
    o_ref   : (8, tb)    f32   lane-dense output slab
    """
    xb = x_ref[...].astype(jnp.bfloat16)            # (6, tb)
    ball = b_ref[...]                               # (W, D) bf16, hoisted out of the loop

    # One small-K matmul feeds both the layer-0 pre-activation (rows [0,W)) and the
    # skip-layer pts rank-update (rows [W,2W)).  f32 accumulation on the MXU.
    pre = jnp.dot(wcat_ref[...], xb, preferred_element_type=jnp.float32)   # (2W, tb)
    skip_update = pre[W:, :].astype(jnp.bfloat16)   # bf16 right away: short live range

    # layer 0: relu(W0_pts @ pts + b0_eff) -- epilogue in packed bf16 on the VPU.
    h = jnp.maximum(pre[:W, :].astype(jnp.bfloat16) + ball[:, 0:1], 0.0)

    # layers 1 .. D-1 (the layer right after a skip also gets the pts rank-update).
    for li in range(1, D):
        z32 = jnp.dot(wh_ref[li - 1], h, preferred_element_type=jnp.float32)  # (W, tb)
        z = z32.astype(jnp.bfloat16) + ball[:, li:li + 1]
        if (li - 1) in SKIPS:
            z = z + skip_update
        h = jnp.maximum(z, 0.0)

    # Output layer: keep the final bias add in f32.
    out = jnp.dot(wo_ref[...], h, preferred_element_type=jnp.float32) + bo_ref[...]
    o_ref[...] = out.astype(o_ref.dtype)


def init_params(key):
    """Deterministic nn.Linear-style init in the original (torch) layout."""
    def linear(k, fan_in, fan_out):
        k1, k2 = jax.random.split(k)
        bound = 1.0 / jnp.sqrt(jnp.float32(fan_in))
        w = jax.random.uniform(k1, (fan_out, fan_in), jnp.float32, -bound, bound)
        b = jax.random.uniform(k2, (fan_out,), jnp.float32, -bound, bound)
        return w, b

    keys = jax.random.split(key, D + 1)
    pts = [linear(keys[0], INPUT_CH + CLASS_DIM, W)]
    for i in range(D - 1):
        in_dim = W + INPUT_CH + CLASS_DIM if i in SKIPS else W + CLASS_DIM
        pts.append(linear(keys[i + 1], in_dim, W))
    out = linear(keys[D], W + CLASS_DIM, OUTPUT_CH)
    return {"pts": pts, "out": out}


def pack_params(params):
    """Fuse the two pts contractions, fold the Class one-hot [1,0] into effective
    biases, and cast weights + hidden biases to bf16 in the (out, in) orientation."""
    W0, b0 = params["pts"][0]                       # (W, 5)
    # Fused pts weight applied to the raw 6-wide input: rows [0,W) = layer-0 pts
    # part, rows [W,2W) = skip-layer pts part; view columns (3..5) stay zero.
    wcat = jnp.zeros((2 * W, IN_CH), jnp.float32)
    wcat = wcat.at[:W, :INPUT_CH].set(W0[:, :INPUT_CH])
    b_cols = [b0 + W0[:, INPUT_CH]]                 # Class=[1,0] -> fold its column

    wh_list = []
    for i in range(1, D):
        Wi, bi = params["pts"][i]
        if (i - 1) in SKIPS:   # skip layer input = [pts(3), h(W), class(2)]
            wh_list.append(Wi[:, INPUT_CH:INPUT_CH + W])
            wcat = wcat.at[W:, :INPUT_CH].set(Wi[:, :INPUT_CH])
            b_cols.append(bi + Wi[:, INPUT_CH + W])
        else:                  # regular layer input = [h(W), class(2)]
            wh_list.append(Wi[:, :W])
            b_cols.append(bi + Wi[:, W])
    wh = jnp.stack(wh_list, axis=0)                 # (D-1, W, W)
    b = jnp.stack(b_cols, axis=1)                   # (W, D)

    Wo, bo = params["out"]                          # (4, W+2)
    wo = jnp.zeros((OUT_ROWS, W), jnp.float32).at[:OUTPUT_CH, :].set(Wo[:, :W])
    bo_eff = (jnp.zeros((OUT_ROWS, 1), jnp.float32)
              .at[:OUTPUT_CH, 0].set(bo + Wo[:, W]))
    return (wcat.astype(jnp.bfloat16),
            wh.astype(jnp.bfloat16),
            b.astype(jnp.bfloat16),   # hidden biases ride the bf16 epilogue
            wo.astype(jnp.bfloat16),
            bo_eff)                   # output bias stays f32


def _round_up(a, m):
    return (a + m - 1) // m * m


def _pick_tb(n, tb_max=TB_MAX):
    """Lane-dim batch tile: multiple of 128, capped at tb_max, and sized so that the
    grid has >= 2 steps whenever n allows (keeps the 1-D 'parallel' grid shardable
    across the two v7x TensorCores)."""
    half = _round_up(max((n + 1) // 2, 1), 128)
    return int(max(128, min(tb_max, half)))


@functools.partial(jax.jit, static_argnames=("tb",))
def _augnerf_forward(x, packed, tb):
    n = x.shape[0]
    wcat, wh, b, wo, bo = packed

    # Transpose (+ ragged-tail pad) to feature-major: one cheap fused XLA pass over
    # the 24 B/row input; the kernel-side IO win (32 B/row output vs 512 B/row) far
    # outweighs it.
    n_pad = _round_up(n, tb)
    xt = x.T                                        # (6, n)
    if n_pad != n:
        xt = jnp.pad(xt, ((0, 0), (0, n_pad - n)))

    flops_per_col = 2 * IN_CH * (2 * W) + 2 * (D - 1) * W * W + 2 * W * OUT_ROWS
    cost = pl.CostEstimate(
        flops=n_pad * flops_per_col,
        transcendentals=0,
        bytes_accessed=(
            n_pad * IN_CH * 4 + n_pad * OUT_ROWS * 4
            + wcat.size * 2 + wh.size * 2 + b.size * 2 + wo.size * 2 + bo.size * 4
        ),
    )

    # NOTE: weights/biases use constant index maps -> DMA'd once, VMEM-resident
    # across the grid.  Their double-buffer overhead is ~1.3 MiB total, negligible
    # with this layout, so pl.Buffered(1) is intentionally not used.
    out = pl.pallas_call(
        augnerf_kernel,
        out_shape=jax.ShapeDtypeStruct((OUT_ROWS, n_pad), jnp.float32),
        grid=(n_pad // tb,),
        in_specs=[
            pl.BlockSpec((IN_CH, tb), lambda i: (0, i)),
            pl.BlockSpec((2 * W, IN_CH), lambda i: (0, 0)),
            pl.BlockSpec((D - 1, W, W), lambda i: (0, 0, 0)),
            pl.BlockSpec((W, D), lambda i: (0, 0)),
            pl.BlockSpec((OUT_ROWS, W), lambda i: (0, 0)),
            pl.BlockSpec((OUT_ROWS, 1), lambda i: (0, 0)),
        ],
        out_specs=pl.BlockSpec((OUT_ROWS, tb), lambda i: (0, i)),
        compiler_params=pltpu.CompilerParams(
            dimension_semantics=("parallel",),
            vmem_limit_bytes=40 * 1024 * 1024,
        ),
        cost_estimate=cost,
    )(xt, wcat, wh, b, wo, bo)

    # Slice the 4 real output rows / n real batch columns and hand back (n, 4);
    # this pass touches only 16 B/row.
    return out[:OUTPUT_CH, :n].T


def augnerf_forward(x, packed, tb=None):
    if tb is None:
        tb = _pick_tb(x.shape[0])
    return _augnerf_forward(x, packed, tb)


def augnerf_mirror(x, packed):
    """Pure-JAX mirror of the kernel numerics (bf16 operands + packed-bf16 epilogue,
    f32 MXU accumulation).  Structural correctness check."""
    wcat, wh, b, wo, bo = packed
    xb = x.T.astype(jnp.bfloat16)
    pre = jnp.dot(wcat, xb, preferred_element_type=jnp.float32)
    skip_update = pre[W:, :].astype(jnp.bfloat16)
    h = jnp.maximum(pre[:W, :].astype(jnp.bfloat16) + b[:, 0:1], 0.0)
    for li in range(1, D):
        z = jnp.dot(wh[li - 1], h, preferred_element_type=jnp.float32)
        z = z.astype(jnp.bfloat16) + b[:, li:li + 1]
        if (li - 1) in SKIPS:
            z = z + skip_update
        h = jnp.maximum(z, 0.0)
    out = jnp.dot(wo, h, preferred_element_type=jnp.float32) + bo
    return out[:OUTPUT_CH, :].T


def augnerf_ref_f32(x, params):
    """Full-f32 mirror of the PyTorch forward semantics."""
    pts = x[:, :INPUT_CH]
    cls = jnp.zeros((x.shape[0], CLASS_DIM), jnp.float32).at[:, 0].set(1.0)
    h = jnp.concatenate([pts, cls], axis=-1)
    for i in range(D):
        Wi, bi = params["pts"][i]
        h = jnp.maximum(h @ Wi.T + bi, 0.0)
        if i in SKIPS:
            h = jnp.concatenate([pts, h], axis=-1)
        h = jnp.concatenate([h, cls], axis=-1)
    Wo, bo = params["out"]
    return h @ Wo.T + bo


if __name__ == "__main__":
    key = jax.random.PRNGKey(0)
    k_x, k_p = jax.random.split(key)

    N = 1000  # deliberately not a tile multiple: exercises the ragged-tail pad path
    x = jax.random.normal(k_x, (N, IN_CH), jnp.float32)

    params = init_params(k_p)
    packed = pack_params(params)

    # Default auto-picked tile (here tb=512 -> 2 grid steps).
    out = jax.block_until_ready(augnerf_forward(x, packed))
    assert out.shape == (N, OUTPUT_CH), out.shape

    # Re-tilings must agree: smaller tile (4 steps) and the production-size tile
    # (tb=2048, single step) both compile and match.
    out_b = jax.block_until_ready(augnerf_forward(x, packed, tb=256))
    out_c = jax.block_until_ready(augnerf_forward(x, packed, tb=2048))
    assert float(jnp.max(jnp.abs(out - out_b))) < 1e-5
    assert float(jnp.max(jnp.abs(out - out_c))) < 1e-5

    # Structural check against a pure-JAX mirror of the kernel numerics.
    ref_mirror = augnerf_mirror(x, packed)
    err_mirror = float(jnp.max(jnp.abs(out - ref_mirror)))
    assert err_mirror < 3e-2, err_mirror

    # Loose check against full-f32 PyTorch semantics (bf16 operands + bf16 epilogue
    # rounding are the only expected differences).
    ref_f32 = augnerf_ref_f32(x, params)
    scale = float(jnp.max(jnp.abs(ref_f32)))
    err_f32 = float(jnp.max(jnp.abs(out - ref_f32)))
    assert err_f32 < 2e-2 + 1e-1 * scale, (err_f32, scale)

    print("KERNEL_OK")
</pallas_src>

<mosaic_0001>
module attributes {stable_mosaic.version = 11 : i64} {
  func.func @augnerf_kernel(%arg0: i32, %arg1: memref<6x512xf32, #tpu.memory_space<vmem>>, %arg2: memref<512x6xbf16, #tpu.memory_space<vmem>>, %arg3: memref<7x256x256xbf16, #tpu.memory_space<vmem>>, %arg4: memref<256x8xbf16, #tpu.memory_space<vmem>>, %arg5: memref<8x256xbf16, #tpu.memory_space<vmem>>, %arg6: memref<8x1xf32, #tpu.memory_space<vmem>>, %arg7: memref<8x512xf32, #tpu.memory_space<vmem>>) attributes {dimension_semantics = [#tpu.dimension_semantics<parallel>], iteration_bounds = array<i64: 2>, scalar_prefetch = 0 : i64, scratch_operands = 0 : i64, tpu.core_type = #tpu.core_type<tc>, window_params = [{transform_indices = @transform_0, window_bounds = array<i64: 6, 512>}, {pipeline_mode = #tpu.pipeline_mode<synchronous>, transform_indices = @transform_1, window_bounds = array<i64: 512, 6>}, {pipeline_mode = #tpu.pipeline_mode<synchronous>, transform_indices = @transform_2, window_bounds = array<i64: 7, 256, 256>}, {pipeline_mode = #tpu.pipeline_mode<synchronous>, transform_indices = @transform_3, window_bounds = array<i64: 256, 8>}, {pipeline_mode = #tpu.pipeline_mode<synchronous>, transform_indices = @transform_4, window_bounds = array<i64: 8, 256>}, {pipeline_mode = #tpu.pipeline_mode<synchronous>, transform_indices = @transform_5, window_bounds = array<i64: 8, 1>}, {transform_indices = @transform_6, window_bounds = array<i64: 8, 512>}]} {
    %c0 = arith.constant 0 : index
    %c0_0 = arith.constant 0 : index
    %0 = vector.load %arg1[%c0, %c0_0] : memref<6x512xf32, #tpu.memory_space<vmem>>, vector<6x512xf32>
    %1 = arith.truncf %0 : vector<6x512xf32> to vector<6x512xbf16>
    %c0_1 = arith.constant 0 : index
    %c0_2 = arith.constant 0 : index
    %2 = vector.load %arg4[%c0_1, %c0_2] : memref<256x8xbf16, #tpu.memory_space<vmem>>, vector<256x8xbf16>
    %c0_3 = arith.constant 0 : index
    %c0_4 = arith.constant 0 : index
    %3 = vector.load %arg2[%c0_3, %c0_4] : memref<512x6xbf16, #tpu.memory_space<vmem>>, vector<512x6xbf16>
    %cst = arith.constant dense<0.000000e+00> : vector<512x512xf32>
    %4 = tpu.matmul %3, %1, %cst {dimension_numbers = #tpu.dot_dimension_numbers<[1], [0], [0], [1], [0, 0, 1, 1], [], []>} : vector<512x6xbf16>, vector<6x512xbf16>, vector<512x512xf32> -> vector<512x512xf32>
    %5 = vector.extract_strided_slice %4 {offsets = [256, 0], sizes = [256, 512], strides = [1, 1]} : vector<512x512xf32> to vector<256x512xf32>
    %6 = arith.truncf %5 : vector<256x512xf32> to vector<256x512xbf16>
    %7 = vector.extract_strided_slice %4 {offsets = [0, 0], sizes = [256, 512], strides = [1, 1]} : vector<512x512xf32> to vector<256x512xf32>
    %8 = arith.truncf %7 : vector<256x512xf32> to vector<256x512xbf16>
    %9 = vector.extract_strided_slice %2 {offsets = [0, 0], sizes = [256, 1], strides = [1, 1]} : vector<256x8xbf16> to vector<256x1xbf16>
    %10 = vector.broadcast %9 : vector<256x1xbf16> to vector<256x512xbf16>
    %11 = arith.addf %8, %10 : vector<256x512xbf16>
    %cst_5 = arith.constant 0.000000e+00 : bf16
    %12 = vector.broadcast %cst_5 : bf16 to vector<256x512xbf16>
    %13 = arith.maximumf %11, %12 : vector<256x512xbf16>
    %c0_6 = arith.constant 0 : index
    %c0_7 = arith.constant 0 : index
    %c0_8 = arith.constant 0 : index
    %14 = vector.load %arg3[%c0_6, %c0_7, %c0_8] : memref<7x256x256xbf16, #tpu.memory_space<vmem>>, vector<1x256x256xbf16>
    %15 = vector.shape_cast %14 : vector<1x256x256xbf16> to vector<256x256xbf16>
    %cst_9 = arith.constant dense<0.000000e+00> : vector<256x512xf32>
    %16 = tpu.matmul %15, %13, %cst_9 {dimension_numbers = #tpu.dot_dimension_numbers<[1], [0], [0], [1], [0, 0, 1, 1], [], []>} : vector<256x256xbf16>, vector<256x512xbf16>, vector<256x512xf32> -> vector<256x512xf32>
    %17 = arith.truncf %16 : vector<256x512xf32> to vector<256x512xbf16>
    %18 = vector.extract_strided_slice %2 {offsets = [0, 1], sizes = [256, 1], strides = [1, 1]} : vector<256x8xbf16> to vector<256x1xbf16>
    %19 = vector.broadcast %18 : vector<256x1xbf16> to vector<256x512xbf16>
    %20 = arith.addf %17, %19 : vector<256x512xbf16>
    %cst_10 = arith.constant 0.000000e+00 : bf16
    %21 = vector.broadcast %cst_10 : bf16 to vector<256x512xbf16>
    %22 = arith.maximumf %20, %21 : vector<256x512xbf16>
    %c1 = arith.constant 1 : index
    %c0_11 = arith.constant 0 : index
    %c0_12 = arith.constant 0 : index
    %23 = vector.load %arg3[%c1, %c0_11, %c0_12] : memref<7x256x256xbf16, #tpu.memory_space<vmem>>, vector<1x256x256xbf16>
    %24 = vector.shape_cast %23 : vector<1x256x256xbf16> to vector<256x256xbf16>
    %cst_13 = arith.constant dense<0.000000e+00> : vector<256x512xf32>
    %25 = tpu.matmul %24, %22, %cst_13 {dimension_numbers = #tpu.dot_dimension_numbers<[1], [0], [0], [1], [0, 0, 1, 1], [], []>} : vector<256x256xbf16>, vector<256x512xbf16>, vector<256x512xf32> -> vector<256x512xf32>
    %26 = arith.truncf %25 : vector<256x512xf32> to vector<256x512xbf16>
    %27 = vector.extract_strided_slice %2 {offsets = [0, 2], sizes = [256, 1], strides = [1, 1]} : vector<256x8xbf16> to vector<256x1xbf16>
    %28 = vector.broadcast %27 : vector<256x1xbf16> to vector<256x512xbf16>
    %29 = arith.addf %26, %28 : vector<256x512xbf16>
    %cst_14 = arith.constant 0.000000e+00 : bf16
    %30 = vector.broadcast %cst_14 : bf16 to vector<256x512xbf16>
    %31 = arith.maximumf %29, %30 : vector<256x512xbf16>
    %c2 = arith.constant 2 : index
    %c0_15 = arith.constant 0 : index
    %c0_16 = arith.constant 0 : index
    %32 = vector.load %arg3[%c2, %c0_15, %c0_16] : memref<7x256x256xbf16, #tpu.memory_space<vmem>>, vector<1x256x256xbf16>
    %33 = vector.shape_cast %32 : vector<1x256x256xbf16> to vector<256x256xbf16>
    %cst_17 = arith.constant dense<0.000000e+00> : vector<256x512xf32>
    %34 = tpu.matmul %33, %31, %cst_17 {dimension_numbers = #tpu.dot_dimension_numbers<[1], [0], [0], [1], [0, 0, 1, 1], [], []>} : vector<256x256xbf16>, vector<256x512xbf16>, vector<256x512xf32> -> vector<256x512xf32>
    %35 = arith.truncf %34 : vector<256x512xf32> to vector<256x512xbf16>
    %36 = vector.extract_strided_slice %2 {offsets = [0, 3], sizes = [256, 1], strides = [1, 1]} : vector<256x8xbf16> to vector<256x1xbf16>
    %37 = vector.broadcast %36 : vector<256x1xbf16> to vector<256x512xbf16>
    %38 = arith.addf %35, %37 : vector<256x512xbf16>
    %cst_18 = arith.constant 0.000000e+00 : bf16
    %39 = vector.broadcast %cst_18 : bf16 to vector<256x512xbf16>
    %40 = arith.maximumf %38, %39 : vector<256x512xbf16>
    %c3 = arith.constant 3 : index
    %c0_19 = arith.constant 0 : index
    %c0_20 = arith.constant 0 : index
    %41 = vector.load %arg3[%c3, %c0_19, %c0_20] : memref<7x256x256xbf16, #tpu.memory_space<vmem>>, vector<1x256x256xbf16>
    %42 = vector.shape_cast %41 : vector<1x256x256xbf16> to vector<256x256xbf16>
    %cst_21 = arith.constant dense<0.000000e+00> : vector<256x512xf32>
    %43 = tpu.matmul %42, %40, %cst_21 {dimension_numbers = #tpu.dot_dimension_numbers<[1], [0], [0], [1], [0, 0, 1, 1], [], []>} : vector<256x256xbf16>, vector<256x512xbf16>, vector<256x512xf32> -> vector<256x512xf32>
    %44 = arith.truncf %43 : vector<256x512xf32> to vector<256x512xbf16>
    %45 = vector.extract_strided_slice %2 {offsets = [0, 4], sizes = [256, 1], strides = [1, 1]} : vector<256x8xbf16> to vector<256x1xbf16>
    %46 = vector.broadcast %45 : vector<256x1xbf16> to vector<256x512xbf16>
    %47 = arith.addf %44, %46 : vector<256x512xbf16>
    %cst_22 = arith.constant 0.000000e+00 : bf16
    %48 = vector.broadcast %cst_22 : bf16 to vector<256x512xbf16>
    %49 = arith.maximumf %47, %48 : vector<256x512xbf16>
    %c4 = arith.constant 4 : index
    %c0_23 = arith.constant 0 : index
    %c0_24 = arith.constant 0 : index
    %50 = vector.load %arg3[%c4, %c0_23, %c0_24] : memref<7x256x256xbf16, #tpu.memory_space<vmem>>, vector<1x256x256xbf16>
    %51 = vector.shape_cast %50 : vector<1x256x256xbf16> to vector<256x256xbf16>
    %cst_25 = arith.constant dense<0.000000e+00> : vector<256x512xf32>
    %52 = tpu.matmul %51, %49, %cst_25 {dimension_numbers = #tpu.dot_dimension_numbers<[1], [0], [0], [1], [0, 0, 1, 1], [], []>} : vector<256x256xbf16>, vector<256x512xbf16>, vector<256x512xf32> -> vector<256x512xf32>
    %53 = arith.truncf %52 : vector<256x512xf32> to vector<256x512xbf16>
    %54 = vector.extract_strided_slice %2 {offsets = [0, 5], sizes = [256, 1], strides = [1, 1]} : vector<256x8xbf16> to vector<256x1xbf16>
    %55 = vector.broadcast %54 : vector<256x1xbf16> to vector<256x512xbf16>
    %56 = arith.addf %53, %55 : vector<256x512xbf16>
    %57 = arith.addf %56, %6 : vector<256x512xbf16>
    %cst_26 = arith.constant 0.000000e+00 : bf16
    %58 = vector.broadcast %cst_26 : bf16 to vector<256x512xbf16>
    %59 = arith.maximumf %57, %58 : vector<256x512xbf16>
    %c5 = arith.constant 5 : index
    %c0_27 = arith.constant 0 : index
    %c0_28 = arith.constant 0 : index
    %60 = vector.load %arg3[%c5, %c0_27, %c0_28] : memref<7x256x256xbf16, #tpu.memory_space<vmem>>, vector<1x256x256xbf16>
    %61 = vector.shape_cast %60 : vector<1x256x256xbf16> to vector<256x256xbf16>
    %cst_29 = arith.constant dense<0.000000e+00> : vector<256x512xf32>
    %62 = tpu.matmul %61, %59, %cst_29 {dimension_numbers = #tpu.dot_dimension_numbers<[1], [0], [0], [1], [0, 0, 1, 1], [], []>} : vector<256x256xbf16>, vector<256x512xbf16>, vector<256x512xf32> -> vector<256x512xf32>
    %63 = arith.truncf %62 : vector<256x512xf32> to vector<256x512xbf16>
    %64 = vector.extract_strided_slice %2 {offsets = [0, 6], sizes = [256, 1], strides = [1, 1]} : vector<256x8xbf16> to vector<256x1xbf16>
    %65 = vector.broadcast %64 : vector<256x1xbf16> to vector<256x512xbf16>
    %66 = arith.addf %63, %65 : vector<256x512xbf16>
    %cst_30 = arith.constant 0.000000e+00 : bf16
    %67 = vector.broadcast %cst_30 : bf16 to vector<256x512xbf16>
    %68 = arith.maximumf %66, %67 : vector<256x512xbf16>
    %c6 = arith.constant 6 : index
    %c0_31 = arith.constant 0 : index
    %c0_32 = arith.constant 0 : index
    %69 = vector.load %arg3[%c6, %c0_31, %c0_32] : memref<7x256x256xbf16, #tpu.memory_space<vmem>>, vector<1x256x256xbf16>
    %70 = vector.shape_cast %69 : vector<1x256x256xbf16> to vector<256x256xbf16>
    %cst_33 = arith.constant dense<0.000000e+00> : vector<256x512xf32>
    %71 = tpu.matmul %70, %68, %cst_33 {dimension_numbers = #tpu.dot_dimension_numbers<[1], [0], [0], [1], [0, 0, 1, 1], [], []>} : vector<256x256xbf16>, vector<256x512xbf16>, vector<256x512xf32> -> vector<256x512xf32>
    %72 = arith.truncf %71 : vector<256x512xf32> to vector<256x512xbf16>
    %73 = vector.extract_strided_slice %2 {offsets = [0, 7], sizes = [256, 1], strides = [1, 1]} : vector<256x8xbf16> to vector<256x1xbf16>
    %74 = vector.broadcast %73 : vector<256x1xbf16> to vector<256x512xbf16>
    %75 = arith.addf %72, %74 : vector<256x512xbf16>
    %cst_34 = arith.constant 0.000000e+00 : bf16
    %76 = vector.broadcast %cst_34 : bf16 to vector<256x512xbf16>
    %77 = arith.maximumf %75, %76 : vector<256x512xbf16>
    %c0_35 = arith.constant 0 : index
    %c0_36 = arith.constant 0 : index
    %78 = vector.load %arg5[%c0_35, %c0_36] : memref<8x256xbf16, #tpu.memory_space<vmem>>, vector<8x256xbf16>
    %cst_37 = arith.constant dense<0.000000e+00> : vector<8x512xf32>
    %79 = tpu.matmul %78, %77, %cst_37 {dimension_numbers = #tpu.dot_dimension_numbers<[1], [0], [0], [1], [0, 0, 1, 1], [], []>} : vector<8x256xbf16>, vector<256x512xbf16>, vector<8x512xf32> -> vector<8x512xf32>
    %c0_38 = arith.constant 0 : index
    %c0_39 = arith.constant 0 : index
    %80 = vector.load %arg6[%c0_38, %c0_39] : memref<8x1xf32, #tpu.memory_space<vmem>>, vector<8x1xf32>
    %81 = vector.broadcast %80 : vector<8x1xf32> to vector<8x512xf32>
    %82 = arith.addf %79, %81 : vector<8x512xf32>
    %c0_40 = arith.constant 0 : index
    %c0_41 = arith.constant 0 : index
    %83 = vector.load %arg7[%c0_40, %c0_41] : memref<8x512xf32, #tpu.memory_space<vmem>>, vector<8x512xf32>
    tpu.vector_store %arg7[%c0_40, %c0_41], %82 {strides = array<i32>} : memref<8x512xf32, #tpu.memory_space<vmem>>, vector<8x512xf32>,
    return
  }
  func.func @transform_0(%arg0: i32) -> (i32, i32) {
    %c0_i32 = arith.constant 0 : i32
    %c0_i32_0 = arith.constant 0 : i32
    return %c0_i32, %arg0 : i32, i32
  }
  func.func @transform_1(%arg0: i32) -> (i32, i32) {
    %c0_i32 = arith.constant 0 : i32
    %c0_i32_0 = arith.constant 0 : i32
    %c0_i32_1 = arith.constant 0 : i32
    return %c0_i32, %c0_i32_0 : i32, i32
  }
  func.func @transform_2(%arg0: i32) -> (i32, i32, i32) {
    %c0_i32 = arith.constant 0 : i32
    %c0_i32_0 = arith.constant 0 : i32
    %c0_i32_1 = arith.constant 0 : i32
    %c0_i32_2 = arith.constant 0 : i32
    return %c0_i32, %c0_i32_0, %c0_i32_1 : i32, i32, i32
  }
  func.func @transform_3(%arg0: i32) -> (i32, i32) {
    %c0_i32 = arith.constant 0 : i32
    %c0_i32_0 = arith.constant 0 : i32
    %c0_i32_1 = arith.constant 0 : i32
    return %c0_i32, %c0_i32_0 : i32, i32
  }
  func.func @transform_4(%arg0: i32) -> (i32, i32) {
    %c0_i32 = arith.constant 0 : i32
    %c0_i32_0 = arith.constant 0 : i32
    %c0_i32_1 = arith.constant 0 : i32
    return %c0_i32, %c0_i32_0 : i32, i32
  }
  func.func @transform_5(%arg0: i32) -> (i32, i32) {
    %c0_i32 = arith.constant 0 : i32
    %c0_i32_0 = arith.constant 0 : i32
    %c0_i32_1 = arith.constant 0 : i32
    return %c0_i32, %c0_i32_0 : i32, i32
  }
  func.func @transform_6(%arg0: i32) -> (i32, i32) {
    %c0_i32 = arith.constant 0 : i32
    %c0_i32_0 = arith.constant 0 : i32
    return %c0_i32, %arg0 : i32, i32
  }
}

</mosaic_0001>

<llo_original>
// kernel: _augnerf_forward.1
$region0: #{_augnerf_forward.1}
  #allocation0 [shape = 'u32[]', space=smem, size = 0x4, offset = 0x4, fixed_abs, tag = 'smem constant byte address 0x4 - core index']
  #allocation1 [shape = 'u32[144,128]{1,0:T(1,128)}', space=vmem, size = 0x12000, scoped, tag = 'internal scratch']
  %s0 = inlined_call_operand.vmem [shape: f32[6,1024], index: 0, kind: input, shape index: {}]
  %s1 = inlined_call_operand.vmem [shape: bf16[512,6], index: 1, kind: input, shape index: {}]
  %s2 = inlined_call_operand.hbm [shape: bf16[7,256,256], index: 2, kind: input, shape index: {}]
  %s3 = inlined_call_operand.vmem [shape: bf16[256,8], index: 3, kind: input, shape index: {}]
  %s4 = inlined_call_operand.vmem [shape: bf16[8,256], index: 4, kind: input, shape index: {}]
  %s5 = inlined_call_operand.vmem [shape: f32[8,1], index: 5, kind: input, shape index: {}]
  %s6 = inlined_call_operand.vmem [shape: f32[8,1024], index: 6, kind: output, shape index: {}]
  %s7 = sld [smem:[#allocation0]]
  $region61: #{_augnerf_forward.1} parent=0
    _
  %s9 = ssub.s32 1, %s7
  %s10 = scalar_select 0, %s9, %s7
  $region1: #{_augnerf_forward.1} parent=0
    #allocation2 [shape = 'u8[917504]{0}', space=vmem, size = 0xe0000, scoped, tag = 'input window, operand 2, single buffered']
    #allocation3 [shape = 's32[2]{0}', space=sflag, size = 0x8, scoped, tag = 'scoped memory for _augnerf_forward.1']
    %11 = vsyncpa [#allocation3], 0
    loop: start=0, step=1, limit=4
    $region2: #{_augnerf_forward.1} parent=1 // loop_pre_header
      _
    $region3: #{_augnerf_forward.1} parent=1 // loop_header
      %s13 = sphi 0, %s17
      %p14 = scmp.ge.s32.totalorder %s13, 4
      %s23 = sphi 0, %s25
      %s26 = sphi 0, %s23
      %s27 = sphi 0, %s26
      %s43 = sphi 0, %s27
      %s47 = sphi 0, %s47
      %s49 = sphi 0, %s47
      %s50 = sphi 0, %s49
      %s64 = sphi 0, %s50
      %s68 = sphi 0, %s68
      %s70 = sphi 0, %s68
      %s71 = sphi 0, %s70
      %s85 = sphi 0, %s71
      %s89 = sphi 0, %s89
      %s91 = sphi 0, %s89
      %s92 = sphi 0, %s91
      %s106 = sphi 0, %s92
      %s110 = sphi 0, %s110
      %s112 = sphi 0, %s110
      %s113 = sphi 0, %s112
      %s127 = sphi 0, %s113
      %s131 = sphi 0, %s131
      %s133 = sphi 0, %s131
      %s134 = sphi 0, %s133
      %s148 = sphi 0, %s134
      %s154 = sphi 0, %s156
      %s157 = sphi 0, %s154
      %s158 = sphi 0, %s157
      %s174 = sphi 0, %s158
    $region4: #{_augnerf_forward.1} parent=1 // loop_header_branch
      %16 = sbr.rel (%p14) target = $region8
    $region5: #{_augnerf_forward.1} parent=1 // loop_body
      %s18 = ssub.s32 %s13, 1
      %s19 = ssub.s32 %s13, 2
      %s20 = sadd.s32 %s13, 1
      %s21 = ssub.s32 %s13, %s20
      %p22 = scmp.eq.s32.totalorder %s21, 0
      %s24 = sadd.s32 %s23, 1
      %s25 = scalar_select %p22, %s23, %s24
      %p28 = pneg %p22
      %p29 = scmp.eq.s32.totalorder %s13, 1
      %p30 = por %p28, %p29
      %p31 = scmp.ne.s32.totalorder %s23, %s26
      %p32 = scmp.eq.s32.totalorder %s13, 0
      %p33 = por %p31, %p32
      %p34 = scmp.ne.s32.totalorder %s23, %s26
      %p35 = scmp.eq.s32.totalorder %s18, 1
      %p36 = por %p34, %p35
      %p37 = scmp.ne.s32.totalorder %s26, %s27
      %p38 = scmp.eq.s32.totalorder %s18, 0
      %p39 = por %p37, %p38
      %p40 = scmp.ne.s32.totalorder %s26, %s27
      %p41 = scmp.eq.s32.totalorder %s19, 1
      %p42 = por %p40, %p41
      %p44 = scmp.ne.s32.totalorder %s27, %s43
      %p45 = scmp.eq.s32.totalorder %s19, 0
      %p46 = por %p44, %p45
      %s48 = sadd.s32 %s47, 1
      %p51 = scmp.eq.s32.totalorder %s13, 1
      %p52 = scmp.ne.s32.totalorder %s47, %s49
      %p53 = scmp.eq.s32.totalorder %s13, 0
      %p54 = por %p52, %p53
      %p55 = scmp.ne.s32.totalorder %s47, %s49
      %p56 = scmp.eq.s32.totalorder %s18, 1
      %p57 = por %p55, %p56
      %p58 = scmp.ne.s32.totalorder %s49, %s50
      %p59 = scmp.eq.s32.totalorder %s18, 0
      %p60 = por %p58, %p59
      %p61 = scmp.ne.s32.totalorder %s49, %s50
      %p62 = scmp.eq.s32.totalorder %s19, 1
      %p63 = por %p61, %p62
      %p65 = scmp.ne.s32.totalorder %s50, %s64
      %p66 = scmp.eq.s32.totalorder %s19, 0
      %p67 = por %p65, %p66
      %s69 = sadd.s32 %s68, 1
      %p72 = scmp.eq.s32.totalorder %s13, 1
      %p73 = scmp.ne.s32.totalorder %s68, %s70
      %p74 = scmp.eq.s32.totalorder %s13, 0
      %p75 = por %p73, %p74
      %p76 = scmp.ne.s32.totalorder %s68, %s70
      %p77 = scmp.eq.s32.totalorder %s18, 1
      %p78 = por %p76, %p77
      %p79 = scmp.ne.s32.totalorder %s70, %s71
      %p80 = scmp.eq.s32.totalorder %s18, 0
      %p81 = por %p79, %p80
      %p82 = scmp.ne.s32.totalorder %s70, %s71
      %p83 = scmp.eq.s32.totalorder %s19, 1
      %p84 = por %p82, %p83
      %p86 = scmp.ne.s32.totalorder %s71, %s85
      %p87 = scmp.eq.s32.totalorder %s19, 0
      %p88 = por %p86, %p87
      %s90 = sadd.s32 %s89, 1
      %p93 = scmp.eq.s32.totalorder %s13, 1
      %p94 = scmp.ne.s32.totalorder %s89, %s91
      %p95 = scmp.eq.s32.totalorder %s13, 0
      %p96 = por %p94, %p95
      %p97 = scmp.ne.s32.totalorder %s89, %s91
      %p98 = scmp.eq.s32.totalorder %s18, 1
      %p99 = por %p97, %p98
      %p100 = scmp.ne.s32.totalorder %s91, %s92
      %p101 = scmp.eq.s32.totalorder %s18, 0
      %p102 = por %p100, %p101
      %p103 = scmp.ne.s32.totalorder %s91, %s92
      %p104 = scmp.eq.s32.totalorder %s19, 1
      %p105 = por %p103, %p104
      %p107 = scmp.ne.s32.totalorder %s92, %s106
      %p108 = scmp.eq.s32.totalorder %s19, 0
      %p109 = por %p107, %p108
      %s111 = sadd.s32 %s110, 1
      %p114 = scmp.eq.s32.totalorder %s13, 1
      %p115 = scmp.ne.s32.totalorder %s110, %s112
      %p116 = scmp.eq.s32.totalorder %s13, 0
      %p117 = por %p115, %p116
      %p118 = scmp.ne.s32.totalorder %s110, %s112
      %p119 = scmp.eq.s32.totalorder %s18, 1
      %p120 = por %p118, %p119
      %p121 = scmp.ne.s32.totalorder %s112, %s113
      %p122 = scmp.eq.s32.totalorder %s18, 0
      %p123 = por %p121, %p122
      %p124 = scmp.ne.s32.totalorder %s112, %s113
      %p125 = scmp.eq.s32.totalorder %s19, 1
      %p126 = por %p124, %p125
      %p128 = scmp.ne.s32.totalorder %s113, %s127
      %p129 = scmp.eq.s32.totalorder %s19, 0
      %p130 = por %p128, %p129
      %s132 = sadd.s32 %s131, 1
      %p135 = scmp.eq.s32.totalorder %s13, 1
      %p136 = scmp.ne.s32.totalorder %s131, %s133
      %p137 = scmp.eq.s32.totalorder %s13, 0
      %p138 = por %p136, %p137
      %p139 = scmp.ne.s32.totalorder %s131, %s133
      %p140 = scmp.eq.s32.totalorder %s18, 1
      %p141 = por %p139, %p140
      %p142 = scmp.ne.s32.totalorder %s133, %s134
      %p143 = scmp.eq.s32.totalorder %s18, 0
      %p144 = por %p142, %p143
      %p145 = scmp.ne.s32.totalorder %s133, %s134
      %p146 = scmp.eq.s32.totalorder %s19, 1
      %p147 = por %p145, %p146
      %p149 = scmp.ne.s32.totalorder %s134, %s148
      %p150 = scmp.eq.s32.totalorder %s19, 0
      %p151 = por %p149, %p150
      %s152 = ssub.s32 %s13, %s20
      %p153 = scmp.eq.s32.totalorder %s152, 0
      %s155 = sadd.s32 %s154, 1
      %s156 = scalar_select %p153, %s154, %s155
      %p159 = pneg %p153
      %p160 = scmp.eq.s32.totalorder %s13, 1
      %p161 = por %p159, %p160
      %p162 = scmp.ne.s32.totalorder %s154, %s157
      %p163 = scmp.eq.s32.totalorder %s13, 0
      %p164 = por %p162, %p163
      %p165 = scmp.ne.s32.totalorder %s154, %s157
      %p166 = scmp.eq.s32.totalorder %s18, 1
      %p167 = por %p165, %p166
      %p168 = scmp.ne.s32.totalorder %s157, %s158
      %p169 = scmp.eq.s32.totalorder %s18, 0
      %p170 = por %p168, %p169
      %p171 = scmp.ne.s32.totalorder %s157, %s158
      %p172 = scmp.eq.s32.totalorder %s19, 1
      %p173 = por %p171, %p172
      %p175 = scmp.ne.s32.totalorder %s158, %s174
      %p176 = scmp.eq.s32.totalorder %s19, 0
      %p177 = por %p175, %p176
      %p178 = scmp.le.s32.totalorder 1, %s13
      %p179 = scmp.lt.s32.totalorder %s13, 3
      %p180 = pnand %p178, %p179
      %p181 = pneg %p180
      // Predicated region
      $region9: #{_augnerf_forward.1} parent=5 // pred_check
        _
      $region10: #{_augnerf_forward.1} parent=5 // pred_check_branch
        %183 = sbr.rel (%p180) target = $region12
      $region11: #{_augnerf_forward.1} parent=5 // pred_region
        %s184 = ssub.s32 %s13, 1
        // Predicated region
        $region13: #{_augnerf_forward.1} parent=11 // pred_check
          %p185 = pneg %p60
        $region14: #{_augnerf_forward.1} parent=11 // pred_check_branch
          %187 = sbr.rel (%p185) target = $region16
        $region15: #{_augnerf_forward.1} parent=11 // pred_region
          _
        $region16: #{_augnerf_forward.1} parent=11 // pred_fallthru
          _
        // Predicated region
        $region17: #{_augnerf_forward.1} parent=11 // pred_check
          %p188 = pneg %p81
        $region18: #{_augnerf_forward.1} parent=11 // pred_check_branch
          %190 = sbr.rel (%p188) target = $region20
        $region19: #{_augnerf_forward.1} parent=11 // pred_region
          %s192 = ssub.s32 28672, 28672
          %193 = vsyncadd [#allocation3], %s192
          %s194 = sshll.u32 [#allocation2], 4
          %s195 = int_to_ptr.vmem [resolvable:$true] %s194
          %200 = dma.hbm_to_vmem [thread:$0]  %s2, 28672, %s195, [#allocation3], 128, 128, 8
        $region20: #{_augnerf_forward.1} parent=11 // pred_fallthru
          _
        // Predicated region
        $region21: #{_augnerf_forward.1} parent=11 // pred_check
          %p201 = pneg %p102
        $region22: #{_augnerf_forward.1} parent=11 // pred_check_branch
          %203 = sbr.rel (%p201) target = $region24
        $region23: #{_augnerf_forward.1} parent=11 // pred_region
          _
        $region24: #{_augnerf_forward.1} parent=11 // pred_fallthru
          _
        // Predicated region
        $region25: #{_augnerf_forward.1} parent=11 // pred_check
          %p204 = pneg %p123
        $region26: #{_augnerf_forward.1} parent=11 // pred_check_branch
          %206 = sbr.rel (%p204) target = $region28
        $region27: #{_augnerf_forward.1} parent=11 // pred_region
          _
        $region28: #{_augnerf_forward.1} parent=11 // pred_fallthru
          _
        // Predicated region
        $region29: #{_augnerf_forward.1} parent=11 // pred_check
          %p207 = pneg %p144
        $region30: #{_augnerf_forward.1} parent=11 // pred_check_branch
          %209 = sbr.rel (%p207) target = $region32
        $region31: #{_augnerf_forward.1} parent=11 // pred_region
          _
        $region32: #{_augnerf_forward.1} parent=11 // pred_fallthru
          _
      $region12: #{_augnerf_forward.1} parent=5 // pred_fallthru
        _
      %p210 = scmp.lt.s32.totalorder %s13, 2
      // Predicated region
      $region33: #{_augnerf_forward.1} parent=5 // pred_check
        %p211 = pneg %p210
      $region34: #{_augnerf_forward.1} parent=5 // pred_check_branch
        %213 = sbr.rel (%p211) target = $region36
      $region35: #{_augnerf_forward.1} parent=5 // pred_region
        // Predicated region
        $region37: #{_augnerf_forward.1} parent=35 // pred_check
          %p214 = pneg %p33
        $region38: #{_augnerf_forward.1} parent=35 // pred_check_branch
          %216 = sbr.rel (%p214) target = $region40
        $region39: #{_augnerf_forward.1} parent=35 // pred_region
          %s217 = smul.u32 4, %s13
          %p218 = scmp.lt.s32.totalorder %s217, 7
          %s219 = scalar_select %p218, %s217, 7
          %s220 = smul.addr %s219, 8
          %s221 = scalar_lea.vmem %s0, %s220
          %s222 = smul.u32 4, %s13
        $region40: #{_augnerf_forward.1} parent=35 // pred_fallthru
          _
      $region36: #{_augnerf_forward.1} parent=5 // pred_fallthru
        _
      %p223 = scmp.le.s32.totalorder 1, %s13
      %p224 = scmp.lt.s32.totalorder %s13, 3
      %p225 = pnand %p223, %p224
      %p226 = pneg %p225
      // Predicated region
      $region41: #{_augnerf_forward.1} parent=5 // pred_check
        _
      $region42: #{_augnerf_forward.1} parent=5 // pred_check_branch
        %228 = sbr.rel (%p225) target = $region44
      $region43: #{_augnerf_forward.1} parent=5 // pred_region
        %s229 = ssub.s32 %s13, 1
        // Predicated region
        $region45: #{_augnerf_forward.1} parent=43 // pred_check
          %p230 = pneg %p81
        $region46: #{_augnerf_forward.1} parent=43 // pred_check_branch
          %232 = sbr.rel (%p230) target = $region48
        $region47: #{_augnerf_forward.1} parent=43 // pred_region
          %233 = dma.done [#allocation3], 28672
        $region48: #{_augnerf_forward.1} parent=43 // pred_fallthru
          _
        %s234 = smul.u32 4, %s18
        %p235 = scmp.lt.s32.totalorder %s234, 7
        %s236 = scalar_select %p235, %s234, 7
        %s237 = smul.addr %s236, 8
        %s238 = scalar_lea.vmem %s0, %s237
        %p239 = pneg %p39
        %p240 = pneg %p36
        %p241 = pneg %p60
        %p242 = pneg %p57
        %p243 = pneg %p81
        %p244 = pneg %p78
        %p245 = pneg %p102
        %p246 = pneg %p99
        %p247 = pneg %p123
        %p248 = pneg %p120
        %p249 = pneg %p144
        %p250 = pneg %p141
        %p251 = pneg %p170
        %p252 = pneg %p167
        %s253 = smul.u32 4, %s18
        %p254 = scmp.lt.s32.totalorder %s253, 7
        %s255 = scalar_select %p254, %s253, 7
        %s256 = smul.addr %s255, 8
        %s257 = scalar_lea.vmem %s6, %s256
        %s258 = smul.u32 4, %s18
        %p259 = scmp.lt.s32.totalorder %s258, 7
        %s260 = scalar_select %p259, %s258, 7
        %s261 = smul.addr %s260, 8
        %s262 = scalar_lea.vmem %s0, %s261
        %s263 = smul.u32 4, %s18
        %s264 = smul.u32 4, %s18
        %p265 = scmp.lt.s32.totalorder %s264, 7
        %s266 = scalar_select %p265, %s264, 7
        %s267 = smul.addr %s266, 8
        %s268 = scalar_lea.vmem %s6, %s267
        %s269 = smul.u32 4, %s18
        %v271 = vld [vmem:[%s262] sm:$0x3f]
        %v272 = vld [vmem:[%s262 + $0x8] sm:$0x3f]
        %v273 = vld [vmem:[%s262 + $0x10] sm:$0x3f]
        %v274 = vld [vmem:[%s262 + $0x18] sm:$0x3f]
        %v275 = vpack.c.bf16 %v271, %v271
        %v276 = vpack.c.bf16 %v272, %v272
        %v277 = vpack.c.bf16 %v273, %v273
        %v278 = vpack.c.bf16 %v274, %v274
        %v279 = vld [vmem:[%s3] sm:$0xf]
        %v280 = vld [vmem:[%s3 + $0x4] sm:$0xf]
        %v281 = vld [vmem:[%s3 + $0x8] sm:$0xf]
        %v282 = vld [vmem:[%s3 + $0xc] sm:$0xf]
        %v283 = vld [vmem:[%s3 + $0x10] sm:$0xf]
        %v284 = vld [vmem:[%s3 + $0x14] sm:$0xf]
        %v285 = vld [vmem:[%s3 + $0x18] sm:$0xf]
        %v286 = vld [vmem:[%s3 + $0x1c] sm:$0xf]
        %v287 = vld [vmem:[%s3 + $0x20] sm:$0xf]
        %v288 = vld [vmem:[%s3 + $0x24] sm:$0xf]
        %v289 = vld [vmem:[%s3 + $0x28] sm:$0xf]
        %v290 = vld [vmem:[%s3 + $0x2c] sm:$0xf]
        %v291 = vld [vmem:[%s3 + $0x30] sm:$0xf]
        %v292 = vld [vmem:[%s3 + $0x34] sm:$0xf]
        %v293 = vld [vmem:[%s3 + $0x38] sm:$0xf]
        %v294 = vld [vmem:[%s3 + $0x3c] sm:$0xf]
        %v295 = vld [vmem:[%s3 + $0x40] sm:$0xf]
        %v296 = vld [vmem:[%s3 + $0x44] sm:$0xf]
        %v297 = vld [vmem:[%s3 + $0x48] sm:$0xf]
        %v298 = vld [vmem:[%s3 + $0x4c] sm:$0xf]
        %v299 = vld [vmem:[%s3 + $0x50] sm:$0xf]
        %v300 = vld [vmem:[%s3 + $0x54] sm:$0xf]
        %v301 = vld [vmem:[%s3 + $0x58] sm:$0xf]
        %v302 = vld [vmem:[%s3 + $0x5c] sm:$0xf]
        %v303 = vld [vmem:[%s3 + $0x60] sm:$0xf]
        %v304 = vld [vmem:[%s3 + $0x64] sm:$0xf]
        %v305 = vld [vmem:[%s3 + $0x68] sm:$0xf]
        %v306 = vld [vmem:[%s3 + $0x6c] sm:$0xf]
        %v307 = vld [vmem:[%s3 + $0x70] sm:$0xf]
        %v308 = vld [vmem:[%s3 + $0x74] sm:$0xf]
        %v309 = vld [vmem:[%s3 + $0x78] sm:$0xf]
        %v310 = vld [vmem:[%s3 + $0x7c] sm:$0xf]
        %v311 = vld [vmem:[%s1] sm:$0xf]
        %v312 = vld [vmem:[%s1 + $0x4] sm:$0xf]
        %v313 = vld [vmem:[%s1 + $0x8] sm:$0xf]
        %v314 = vld [vmem:[%s1 + $0xc] sm:$0xf]
        %v315 = vld [vmem:[%s1 + $0x10] sm:$0xf]
        %v316 = vld [vmem:[%s1 + $0x14] sm:$0xf]
        %v317 = vld [vmem:[%s1 + $0x18] sm:$0xf]
        %v318 = vld [vmem:[%s1 + $0x1c] sm:$0xf]
        %v319 = vld [vmem:[%s1 + $0x20] sm:$0xf]
        %v320 = vld [vmem:[%s1 + $0x24] sm:$0xf]
        %v321 = vld [vmem:[%s1 + $0x28] sm:$0xf]
        %v322 = vld [vmem:[%s1 + $0x2c] sm:$0xf]
        %v323 = vld [vmem:[%s1 + $0x30] sm:$0xf]
        %v324 = vld [vmem:[%s1 + $0x34] sm:$0xf]
        %v325 = vld [vmem:[%s1 + $0x38] sm:$0xf]
        %v326 = vld [vmem:[%s1 + $0x3c] sm:$0xf]
        %v327 = vld [vmem:[%s1 + $0x40] sm:$0xf]
        %v328 = vld [vmem:[%s1 + $0x44] sm:$0xf]
        %v329 = vld [vmem:[%s1 + $0x48] sm:$0xf]
        %v330 = vld [vmem:[%s1 + $0x4c] sm:$0xf]
        %v331 = vld [vmem:[%s1 + $0x50] sm:$0xf]
        %v332 = vld [vmem:[%s1 + $0x54] sm:$0xf]
        %v333 = vld [vmem:[%s1 + $0x58] sm:$0xf]
        %v334 = vld [vmem:[%s1 + $0x5c] sm:$0xf]
        %v335 = vld [vmem:[%s1 + $0x60] sm:$0xf]
        %v336 = vld [vmem:[%s1 + $0x64] sm:$0xf]
        %v337 = vld [vmem:[%s1 + $0x68] sm:$0xf]
        %v338 = vld [vmem:[%s1 + $0x6c] sm:$0xf]
        %v339 = vld [vmem:[%s1 + $0x70] sm:$0xf]
        %v340 = vld [vmem:[%s1 + $0x74] sm:$0xf]
        %v341 = vld [vmem:[%s1 + $0x78] sm:$0xf]
        %v342 = vld [vmem:[%s1 + $0x7c] sm:$0xf]
        %v343 = vld [vmem:[%s1 + $0x80] sm:$0xf]
        %v344 = vld [vmem:[%s1 + $0x84] sm:$0xf]
        %v345 = vld [vmem:[%s1 + $0x88] sm:$0xf]
        %v346 = vld [vmem:[%s1 + $0x8c] sm:$0xf]
        %v347 = vld [vmem:[%s1 + $0x90] sm:$0xf]
        %v348 = vld [vmem:[%s1 + $0x94] sm:$0xf]
        %v349 = vld [vmem:[%s1 + $0x98] sm:$0xf]
        %v350 = vld [vmem:[%s1 + $0x9c] sm:$0xf]
        %v351 = vld [vmem:[%s1 + $0xa0] sm:$0xf]
        %v352 = vld [vmem:[%s1 + $0xa4] sm:$0xf]
        %v353 = vld [vmem:[%s1 + $0xa8] sm:$0xf]
        %v354 = vld [vmem:[%s1 + $0xac] sm:$0xf]
        %v355 = vld [vmem:[%s1 + $0xb0] sm:$0xf]
        %v356 = vld [vmem:[%s1 + $0xb4] sm:$0xf]
        %v357 = vld [vmem:[%s1 + $0xb8] sm:$0xf]
        %v358 = vld [vmem:[%s1 + $0xbc] sm:$0xf]
        %v359 = vld [vmem:[%s1 + $0xc0] sm:$0xf]
        %v360 = vld [vmem:[%s1 + $0xc4] sm:$0xf]
        %v361 = vld [vmem:[%s1 + $0xc8] sm:$0xf]
        %v362 = vld [vmem:[%s1 + $0xcc] sm:$0xf]
        %v363 = vld [vmem:[%s1 + $0xd0] sm:$0xf]
        %v364 = vld [vmem:[%s1 + $0xd4] sm:$0xf]
        %v365 = vld [vmem:[%s1 + $0xd8] sm:$0xf]
        %v366 = vld [vmem:[%s1 + $0xdc] sm:$0xf]
        %v367 = vld [vmem:[%s1 + $0xe0] sm:$0xf]
        %v368 = vld [vmem:[%s1 + $0xe4] sm:$0xf]
        %v369 = vld [vmem:[%s1 + $0xe8] sm:$0xf]
        %v370 = vld [vmem:[%s1 + $0xec] sm:$0xf]
        %v371 = vld [vmem:[%s1 + $0xf0] sm:$0xf]
        %v372 = vld [vmem:[%s1 + $0xf4] sm:$0xf]
        %v373 = vld [vmem:[%s1 + $0xf8] sm:$0xf]
        %v374 = vld [vmem:[%s1 + $0xfc] sm:$0xf]
        %v439 = vunpack.c.l.b16 %v311
        %v440 = vunpack.c.l.b16 %v312
        %v441 = vunpack.c.l.b16 %v313
        %v442 = vunpack.c.l.b16 %v314
        %v443 = vunpack.c.l.b16 %v315
        %v444 = vunpack.c.l.b16 %v316
        %v445 = vunpack.c.l.b16 %v317
        %v446 = vunpack.c.l.b16 %v318
        %v447 = vunpack.c.l.b16 %v319
        %v448 = vunpack.c.l.b16 %v320
        %v449 = vunpack.c.l.b16 %v321
        %v450 = vunpack.c.l.b16 %v322
        %v451 = vunpack.c.l.b16 %v323
        %v452 = vunpack.c.l.b16 %v324
        %v453 = vunpack.c.l.b16 %v325
        %v454 = vunpack.c.l.b16 %v326
        %v455 = vunpack.c.l.b16 %v327
        %v456 = vunpack.c.l.b16 %v328
        %v457 = vunpack.c.l.b16 %v329
        %v458 = vunpack.c.l.b16 %v330
        %v459 = vunpack.c.l.b16 %v331
        %v460 = vunpack.c.l.b16 %v332
        %v461 = vunpack.c.l.b16 %v333
        %v462 = vunpack.c.l.b16 %v334
        %v463 = vunpack.c.l.b16 %v335
        %v464 = vunpack.c.l.b16 %v336
        %v465 = vunpack.c.l.b16 %v337
        %v466 = vunpack.c.l.b16 %v338
        %v467 = vunpack.c.l.b16 %v339
        %v468 = vunpack.c.l.b16 %v340
        %v469 = vunpack.c.l.b16 %v341
        %v470 = vunpack.c.l.b16 %v342
        %v471 = vunpack.c.l.b16 %v343
        %v472 = vunpack.c.l.b16 %v344
        %v473 = vunpack.c.l.b16 %v345
        %v474 = vunpack.c.l.b16 %v346
        %v475 = vunpack.c.l.b16 %v347
        %v476 = vunpack.c.l.b16 %v348
        %v477 = vunpack.c.l.b16 %v349
        %v478 = vunpack.c.l.b16 %v350
        %v479 = vunpack.c.l.b16 %v351
        %v480 = vunpack.c.l.b16 %v352
        %v481 = vunpack.c.l.b16 %v353
        %v482 = vunpack.c.l.b16 %v354
        %v483 = vunpack.c.l.b16 %v355
        %v484 = vunpack.c.l.b16 %v356
        %v485 = vunpack.c.l.b16 %v357
        %v486 = vunpack.c.l.b16 %v358
        %v487 = vunpack.c.l.b16 %v359
        %v488 = vunpack.c.l.b16 %v360
        %v489 = vunpack.c.l.b16 %v361
        %v490 = vunpack.c.l.b16 %v362
        %v491 = vunpack.c.l.b16 %v363
        %v492 = vunpack.c.l.b16 %v364
        %v493 = vunpack.c.l.b16 %v365
        %v494 = vunpack.c.l.b16 %v366
        %v495 = vunpack.c.l.b16 %v367
        %v496 = vunpack.c.l.b16 %v368
        %v497 = vunpack.c.l.b16 %v369
        %v498 = vunpack.c.l.b16 %v370
        %v499 = vunpack.c.l.b16 %v371
        %v500 = vunpack.c.l.b16 %v372
        %v501 = vunpack.c.l.b16 %v373
        %v502 = vunpack.c.l.b16 %v374
        %v503 = vpack.c.b16 %v440, %v439
        %v504 = vpack.c.b16 %v442, %v441
        %v505 = vpack.c.b16 %v444, %v443
        %v506 = vpack.c.b16 %v446, %v445
        %v507 = vpack.c.b16 %v448, %v447
        %v508 = vpack.c.b16 %v450, %v449
        %v509 = vpack.c.b16 %v452, %v451
        %v510 = vpack.c.b16 %v454, %v453
        %v511 = vpack.c.b16 %v456, %v455
        %v512 = vpack.c.b16 %v458, %v457
        %v513 = vpack.c.b16 %v460, %v459
        %v514 = vpack.c.b16 %v462, %v461
        %v515 = vpack.c.b16 %v464, %v463
        %v516 = vpack.c.b16 %v466, %v465
        %v517 = vpack.c.b16 %v468, %v467
        %v518 = vpack.c.b16 %v470, %v469
        %v519 = vpack.c.b16 %v472, %v471
        %v520 = vpack.c.b16 %v474, %v473
        %v521 = vpack.c.b16 %v476, %v475
        %v522 = vpack.c.b16 %v478, %v477
        %v523 = vpack.c.b16 %v480, %v479
        %v524 = vpack.c.b16 %v482, %v481
        %v525 = vpack.c.b16 %v484, %v483
        %v526 = vpack.c.b16 %v486, %v485
        %v527 = vpack.c.b16 %v488, %v487
        %v528 = vpack.c.b16 %v490, %v489
        %v529 = vpack.c.b16 %v492, %v491
        %v530 = vpack.c.b16 %v494, %v493
        %v531 = vpack.c.b16 %v496, %v495
        %v532 = vpack.c.b16 %v498, %v497
        %v533 = vpack.c.b16 %v500, %v499
        %v534 = vpack.c.b16 %v502, %v501
        %vm535 = vcmask 48128
        %v537 = vsel %vm535, %v503, 0
        %v540 = vsel %vm535, %v504, 0
        %v543 = vsel %vm535, %v505, 0
        %v546 = vsel %vm535, %v506, 0
        %v549 = vsel %vm535, %v507, 0
        %v552 = vsel %vm535, %v508, 0
        %v555 = vsel %vm535, %v509, 0
        %v558 = vsel %vm535, %v510, 0
        %v561 = vsel %vm535, %v511, 0
        %v564 = vsel %vm535, %v512, 0
        %v567 = vsel %vm535, %v513, 0
        %v570 = vsel %vm535, %v514, 0
        %v573 = vsel %vm535, %v515, 0
        %v576 = vsel %vm535, %v516, 0
        %v579 = vsel %vm535, %v517, 0
        %v582 = vsel %vm535, %v518, 0
        %v585 = vsel %vm535, %v519, 0
        %v588 = vsel %vm535, %v520, 0
        %v591 = vsel %vm535, %v521, 0
        %v594 = vsel %vm535, %v522, 0
        %v597 = vsel %vm535, %v523, 0
        %v600 = vsel %vm535, %v524, 0
        %v603 = vsel %vm535, %v525, 0
        %v606 = vsel %vm535, %v526, 0
        %v609 = vsel %vm535, %v527, 0
        %v612 = vsel %vm535, %v528, 0
        %v615 = vsel %vm535, %v529, 0
        %v618 = vsel %vm535, %v530, 0
        %v621 = vsel %vm535, %v531, 0
        %v624 = vsel %vm535, %v532, 0
        %v627 = vsel %vm535, %v533, 0
        %v630 = vsel %vm535, %v534, 0
        %vm632 = vcmask 1042432
        %v634 = vsel %vm632, %v275, 0
        %v637 = vsel %vm632, %v276, 0
        %v640 = vsel %vm632, %v277, 0
        %v643 = vsel %vm632, %v278, 0
        %645 = vmatprep.subr.bf16.mxu0 %v637
        %646 = vmatpush1.bf16.msra.mxu0 %v634
        %647 = vmatprep.subr.bf16.mxu0 0
        %648 = vmatpush1.bf16.msra.mxu0 0
        %649 = vmatprep.subr.bf16.mxu0 0
        %650 = vmatpush1.bf16.msra.mxu0 0
        %651 = vmatprep.subr.bf16.mxu0 0
        %652 = vmatpush1.bf16.msra.mxu0 0
        %653 = vmatprep.subr.bf16.mxu0 0
        %654 = vmatpush1.bf16.msra.mxu0 0
        %655 = vmatprep.subr.bf16.mxu0 0
        %656 = vmatpush1.bf16.msra.mxu0 0
        %657 = vmatprep.subr.bf16.mxu0 0
        %658 = vmatpush1.bf16.msra.mxu0 0
        %659 = vmatprep.subr.bf16.mxu0 0
        %660 = vmatpush1.bf16.msra.mxu0 0
        %661 = vmatprep.subr.bf16.mxu0 0
        %662 = vmatpush1.bf16.msra.mxu0 0
        %663 = vmatprep.subr.bf16.mxu0 0
        %664 = vmatpush1.bf16.msra.mxu0 0
        %665 = vmatprep.subr.bf16.mxu0 0
        %666 = vmatpush1.bf16.msra.mxu0 0
        %667 = vmatprep.subr.bf16.mxu0 0
        %668 = vmatpush1.bf16.msra.mxu0 0
        %669 = vmatprep.subr.bf16.mxu0 0
        %670 = vmatpush1.bf16.msra.mxu0 0
        %671 = vmatprep.subr.bf16.mxu0 0
        %672 = vmatpush1.bf16.msra.mxu0 0
        %673 = vmatprep.subr.bf16.mxu0 0
        %674 = vmatpush1.bf16.msra.mxu0 0
        %675 = vmatprep.subr.bf16.mxu0 0
        %676 = vmatpush1.bf16.msra.mxu0 0
        %677 = vmatprep.mubr.bf16.mxu0 0
        %678 = vmatmul.mubr.bf16.gmra.mrb[0].mxu0 %v537
        %v679 = vpop.f32.mrb[0].mxu0
        %v680 = vadd.f32 0.0, %v679
        %v681 = vpop.f32.mrb[0].mxu0
        %v682 = vadd.f32 0.0, %v681
        %v683 = vpop.f32.mrb[0].mxu0
        %v684 = vadd.f32 0.0, %v683
        %v685 = vpop.f32.mrb[0].mxu0
        %v686 = vadd.f32 0.0, %v685
        %687 = vmatprep.mubr.bf16.mxu0 0
        %688 = vmatmul.mubr.bf16.gmra.mrb[0].mxu0 %v540
        %v689 = vpop.f32.mrb[0].mxu0
        %v690 = vadd.f32 0.0, %v689
        %v691 = vpop.f32.mrb[0].mxu0
        %v692 = vadd.f32 0.0, %v691
        %v693 = vpop.f32.mrb[0].mxu0
        %v694 = vadd.f32 0.0, %v693
        %v695 = vpop.f32.mrb[0].mxu0
        %v696 = vadd.f32 0.0, %v695
        %697 = vmatprep.mubr.bf16.mxu0 0
        %698 = vmatmul.mubr.bf16.gmra.mrb[0].mxu0 %v543
        %v699 = vpop.f32.mrb[0].mxu0
        %v700 = vadd.f32 0.0, %v699
        %v701 = vpop.f32.mrb[0].mxu0
        %v702 = vadd.f32 0.0, %v701
        %v703 = vpop.f32.mrb[0].mxu0
        %v704 = vadd.f32 0.0, %v703
        %v705 = vpop.f32.mrb[0].mxu0
        %v706 = vadd.f32 0.0, %v705
        %707 = vmatprep.mubr.bf16.mxu0 0
        %708 = vmatmul.mubr.bf16.gmra.mrb[0].mxu0 %v546
        %v709 = vpop.f32.mrb[0].mxu0
        %v710 = vadd.f32 0.0, %v709
        %v711 = vpop.f32.mrb[0].mxu0
        %v712 = vadd.f32 0.0, %v711
        %v713 = vpop.f32.mrb[0].mxu0
        %v714 = vadd.f32 0.0, %v713
        %v715 = vpop.f32.mrb[0].mxu0
        %v716 = vadd.f32 0.0, %v715
        %717 = vmatprep.mubr.bf16.mxu0 0
        %718 = vmatmul.mubr.bf16.gmra.mrb[0].mxu0 %v549
        %v719 = vpop.f32.mrb[0].mxu0
        %v720 = vadd.f32 0.0, %v719
        %v721 = vpop.f32.mrb[0].mxu0
        %v722 = vadd.f32 0.0, %v721
        %v723 = vpop.f32.mrb[0].mxu0
        %v724 = vadd.f32 0.0, %v723
        %v725 = vpop.f32.mrb[0].mxu0
        %v726 = vadd.f32 0.0, %v725
        %727 = vmatprep.mubr.bf16.mxu0 0
        %728 = vmatmul.mubr.bf16.gmra.mrb[0].mxu0 %v552
        %v729 = vpop.f32.mrb[0].mxu0
        %v730 = vadd.f32 0.0, %v729
        %v731 = vpop.f32.mrb[0].mxu0
        %v732 = vadd.f32 0.0, %v731
        %v733 = vpop.f32.mrb[0].mxu0
        %v734 = vadd.f32 0.0, %v733
        %v735 = vpop.f32.mrb[0].mxu0
        %v736 = vadd.f32 0.0, %v735
        %737 = vmatprep.mubr.bf16.mxu0 0
        %738 = vmatmul.mubr.bf16.gmra.mrb[0].mxu0 %v555
        %v739 = vpop.f32.mrb[0].mxu0
        %v740 = vadd.f32 0.0, %v739
        %v741 = vpop.f32.mrb[0].mxu0
        %v742 = vadd.f32 0.0, %v741
        %v743 = vpop.f32.mrb[0].mxu0
        %v744 = vadd.f32 0.0, %v743
        %v745 = vpop.f32.mrb[0].mxu0
        %v746 = vadd.f32 0.0, %v745
        %747 = vmatprep.mubr.bf16.mxu0 0
        %748 = vmatmul.mubr.bf16.gmra.mrb[0].mxu0 %v558
        %v749 = vpop.f32.mrb[0].mxu0
        %v750 = vadd.f32 0.0, %v749
        %v751 = vpop.f32.mrb[0].mxu0
        %v752 = vadd.f32 0.0, %v751
        %v753 = vpop.f32.mrb[0].mxu0
        %v754 = vadd.f32 0.0, %v753
        %v755 = vpop.f32.mrb[0].mxu0
        %v756 = vadd.f32 0.0, %v755
        %757 = vmatprep.mubr.bf16.mxu0 0
        %758 = vmatmul.mubr.bf16.gmra.mrb[0].mxu0 %v561
        %v759 = vpop.f32.mrb[0].mxu0
        %v760 = vadd.f32 0.0, %v759
        %v761 = vpop.f32.mrb[0].mxu0
        %v762 = vadd.f32 0.0, %v761
        %v763 = vpop.f32.mrb[0].mxu0
        %v764 = vadd.f32 0.0, %v763
        %v765 = vpop.f32.mrb[0].mxu0
        %v766 = vadd.f32 0.0, %v765
        %767 = vmatprep.mubr.bf16.mxu0 0
        %768 = vmatmul.mubr.bf16.gmra.mrb[0].mxu0 %v564
        %v769 = vpop.f32.mrb[0].mxu0
        %v770 = vadd.f32 0.0, %v769
        %v771 = vpop.f32.mrb[0].mxu0
        %v772 = vadd.f32 0.0, %v771
        %v773 = vpop.f32.mrb[0].mxu0
        %v774 = vadd.f32 0.0, %v773
        %v775 = vpop.f32.mrb[0].mxu0
        %v776 = vadd.f32 0.0, %v775
        %777 = vmatprep.mubr.bf16.mxu0 0
        %778 = vmatmul.mubr.bf16.gmra.mrb[0].mxu0 %v567
        %v779 = vpop.f32.mrb[0].mxu0
        %v780 = vadd.f32 0.0, %v779
        %v781 = vpop.f32.mrb[0].mxu0
        %v782 = vadd.f32 0.0, %v781
        %v783 = vpop.f32.mrb[0].mxu0
        %v784 = vadd.f32 0.0, %v783
        %v785 = vpop.f32.mrb[0].mxu0
        %v786 = vadd.f32 0.0, %v785
        %787 = vmatprep.mubr.bf16.mxu0 0
        %788 = vmatmul.mubr.bf16.gmra.mrb[0].mxu0 %v570
        %v789 = vpop.f32.mrb[0].mxu0
        %v790 = vadd.f32 0.0, %v789
        %v791 = vpop.f32.mrb[0].mxu0
        %v792 = vadd.f32 0.0, %v791
        %v793 = vpop.f32.mrb[0].mxu0
        %v794 = vadd.f32 0.0, %v793
        %v795 = vpop.f32.mrb[0].mxu0
        %v796 = vadd.f32 0.0, %v795
        %797 = vmatprep.mubr.bf16.mxu0 0
        %798 = vmatmul.mubr.bf16.gmra.mrb[0].mxu0 %v573
        %v799 = vpop.f32.mrb[0].mxu0
        %v800 = vadd.f32 0.0, %v799
        %v801 = vpop.f32.mrb[0].mxu0
        %v802 = vadd.f32 0.0, %v801
        %v803 = vpop.f32.mrb[0].mxu0
        %v804 = vadd.f32 0.0, %v803
        %v805 = vpop.f32.mrb[0].mxu0
        %v806 = vadd.f32 0.0, %v805
        %807 = vmatprep.mubr.bf16.mxu0 0
        %808 = vmatmul.mubr.bf16.gmra.mrb[0].mxu0 %v576
        %v809 = vpop.f32.mrb[0].mxu0
        %v810 = vadd.f32 0.0, %v809
        %v811 = vpop.f32.mrb[0].mxu0
        %v812 = vadd.f32 0.0, %v811
        %v813 = vpop.f32.mrb[0].mxu0
        %v814 = vadd.f32 0.0, %v813
        %v815 = vpop.f32.mrb[0].mxu0
        %v816 = vadd.f32 0.0, %v815
        %817 = vmatprep.mubr.bf16.mxu0 0
        %818 = vmatmul.mubr.bf16.gmra.mrb[0].mxu0 %v579
        %v819 = vpop.f32.mrb[0].mxu0
        %v820 = vadd.f32 0.0, %v819
        %v821 = vpop.f32.mrb[0].mxu0
        %v822 = vadd.f32 0.0, %v821
        %v823 = vpop.f32.mrb[0].mxu0
        %v824 = vadd.f32 0.0, %v823
        %v825 = vpop.f32.mrb[0].mxu0
        %v826 = vadd.f32 0.0, %v825
        %827 = vmatprep.mubr.bf16.mxu0 0
        %828 = vmatmul.mubr.bf16.gmra.mrb[0].mxu0 %v582
        %v829 = vpop.f32.mrb[0].mxu0
        %v830 = vadd.f32 0.0, %v829
        %v831 = vpop.f32.mrb[0].mxu0
        %v832 = vadd.f32 0.0, %v831
        %v833 = vpop.f32.mrb[0].mxu0
        %v834 = vadd.f32 0.0, %v833
        %v835 = vpop.f32.mrb[0].mxu0
        %v836 = vadd.f32 0.0, %v835
        %837 = vmatprep.mubr.bf16.mxu0 0
        %838 = vmatmul.mubr.bf16.gmra.mrb[0].mxu0 %v585
        %v839 = vpop.f32.mrb[0].mxu0
        %v840 = vadd.f32 0.0, %v839
        %v841 = vpop.f32.mrb[0].mxu0
        %v842 = vadd.f32 0.0, %v841
        %v843 = vpop.f32.mrb[0].mxu0
        %v844 = vadd.f32 0.0, %v843
        %v845 = vpop.f32.mrb[0].mxu0
        %v846 = vadd.f32 0.0, %v845
        %847 = vmatprep.mubr.bf16.mxu0 0
        %848 = vmatmul.mubr.bf16.gmra.mrb[0].mxu0 %v588
        %v849 = vpop.f32.mrb[0].mxu0
        %v850 = vadd.f32 0.0, %v849
        %v851 = vpop.f32.mrb[0].mxu0
        %v852 = vadd.f32 0.0, %v851
        %v853 = vpop.f32.mrb[0].mxu0
        %v854 = vadd.f32 0.0, %v853
        %v855 = vpop.f32.mrb[0].mxu0
        %v856 = vadd.f32 0.0, %v855
        %857 = vmatprep.mubr.bf16.mxu0 0
        %858 = vmatmul.mubr.bf16.gmra.mrb[0].mxu0 %v591
        %v859 = vpop.f32.mrb[0].mxu0
        %v860 = vadd.f32 0.0, %v859
        %v861 = vpop.f32.mrb[0].mxu0
        %v862 = vadd.f32 0.0, %v861
        %v863 = vpop.f32.mrb[0].mxu0
        %v864 = vadd.f32 0.0, %v863
        %v865 = vpop.f32.mrb[0].mxu0
        %v866 = vadd.f32 0.0, %v865
        %867 = vmatprep.mubr.bf16.mxu0 0
        %868 = vmatmul.mubr.bf16.gmra.mrb[0].mxu0 %v594
        %v869 = vpop.f32.mrb[0].mxu0
        %v870 = vadd.f32 0.0, %v869
        %v871 = vpop.f32.mrb[0].mxu0
        %v872 = vadd.f32 0.0, %v871
        %v873 = vpop.f32.mrb[0].mxu0
        %v874 = vadd.f32 0.0, %v873
        %v875 = vpop.f32.mrb[0].mxu0
        %v876 = vadd.f32 0.0, %v875
        %877 = vmatprep.mubr.bf16.mxu0 0
        %878 = vmatmul.mubr.bf16.gmra.mrb[0].mxu0 %v597
        %v879 = vpop.f32.mrb[0].mxu0
        %v880 = vadd.f32 0.0, %v879
        %v881 = vpop.f32.mrb[0].mxu0
        %v882 = vadd.f32 0.0, %v881
        %v883 = vpop.f32.mrb[0].mxu0
        %v884 = vadd.f32 0.0, %v883
        %v885 = vpop.f32.mrb[0].mxu0
        %v886 = vadd.f32 0.0, %v885
        %887 = vmatprep.mubr.bf16.mxu0 0
        %888 = vmatmul.mubr.bf16.gmra.mrb[0].mxu0 %v600
        %v889 = vpop.f32.mrb[0].mxu0
        %v890 = vadd.f32 0.0, %v889
        %v891 = vpop.f32.mrb[0].mxu0
        %v892 = vadd.f32 0.0, %v891
        %v893 = vpop.f32.mrb[0].mxu0
        %v894 = vadd.f32 0.0, %v893
        %v895 = vpop.f32.mrb[0].mxu0
        %v896 = vadd.f32 0.0, %v895
        %897 = vmatprep.mubr.bf16.mxu0 0
        %898 = vmatmul.mubr.bf16.gmra.mrb[0].mxu0 %v603
        %v899 = vpop.f32.mrb[0].mxu0
        %v900 = vadd.f32 0.0, %v899
        %v901 = vpop.f32.mrb[0].mxu0
        %v902 = vadd.f32 0.0, %v901
        %v903 = vpop.f32.mrb[0].mxu0
        %v904 = vadd.f32 0.0, %v903
        %v905 = vpop.f32.mrb[0].mxu0
        %v906 = vadd.f32 0.0, %v905
        %907 = vmatprep.mubr.bf16.mxu0 0
        %908 = vmatmul.mubr.bf16.gmra.mrb[0].mxu0 %v606
        %v909 = vpop.f32.mrb[0].mxu0
        %v910 = vadd.f32 0.0, %v909
        %v911 = vpop.f32.mrb[0].mxu0
        %v912 = vadd.f32 0.0, %v911
        %v913 = vpop.f32.mrb[0].mxu0
        %v914 = vadd.f32 0.0, %v913
        %v915 = vpop.f32.mrb[0].mxu0
        %v916 = vadd.f32 0.0, %v915
        %917 = vmatprep.mubr.bf16.mxu0 0
        %918 = vmatmul.mubr.bf16.gmra.mrb[0].mxu0 %v609
        %v919 = vpop.f32.mrb[0].mxu0
        %v920 = vadd.f32 0.0, %v919
        %v921 = vpop.f32.mrb[0].mxu0
        %v922 = vadd.f32 0.0, %v921
        %v923 = vpop.f32.mrb[0].mxu0
        %v924 = vadd.f32 0.0, %v923
        %v925 = vpop.f32.mrb[0].mxu0
        %v926 = vadd.f32 0.0, %v925
        %927 = vmatprep.mubr.bf16.mxu0 0
        %928 = vmatmul.mubr.bf16.gmra.mrb[0].mxu0 %v612
        %v929 = vpop.f32.mrb[0].mxu0
        %v930 = vadd.f32 0.0, %v929
        %v931 = vpop.f32.mrb[0].mxu0
        %v932 = vadd.f32 0.0, %v931
        %v933 = vpop.f32.mrb[0].mxu0
        %v934 = vadd.f32 0.0, %v933
        %v935 = vpop.f32.mrb[0].mxu0
        %v936 = vadd.f32 0.0, %v935
        %937 = vmatprep.mubr.bf16.mxu0 0
        %938 = vmatmul.mubr.bf16.gmra.mrb[0].mxu0 %v615
        %v939 = vpop.f32.mrb[0].mxu0
        %v940 = vadd.f32 0.0, %v939
        %v941 = vpop.f32.mrb[0].mxu0
        %v942 = vadd.f32 0.0, %v941
        %v943 = vpop.f32.mrb[0].mxu0
        %v944 = vadd.f32 0.0, %v943
        %v945 = vpop.f32.mrb[0].mxu0
        %v946 = vadd.f32 0.0, %v945
        %947 = vmatprep.mubr.bf16.mxu0 0
        %948 = vmatmul.mubr.bf16.gmra.mrb[0].mxu0 %v618
        %v949 = vpop.f32.mrb[0].mxu0
        %v950 = vadd.f32 0.0, %v949
        %v951 = vpop.f32.mrb[0].mxu0
        %v952 = vadd.f32 0.0, %v951
        %v953 = vpop.f32.mrb[0].mxu0
        %v954 = vadd.f32 0.0, %v953
        %v955 = vpop.f32.mrb[0].mxu0
        %v956 = vadd.f32 0.0, %v955
        %957 = vmatprep.mubr.bf16.mxu0 0
        %958 = vmatmul.mubr.bf16.gmra.mrb[0].mxu0 %v621
        %v959 = vpop.f32.mrb[0].mxu0
        %v960 = vadd.f32 0.0, %v959
        %v961 = vpop.f32.mrb[0].mxu0
        %v962 = vadd.f32 0.0, %v961
        %v963 = vpop.f32.mrb[0].mxu0
        %v964 = vadd.f32 0.0, %v963
        %v965 = vpop.f32.mrb[0].mxu0
        %v966 = vadd.f32 0.0, %v965
        %967 = vmatprep.mubr.bf16.mxu0 0
        %968 = vmatmul.mubr.bf16.gmra.mrb[0].mxu0 %v624
        %v969 = vpop.f32.mrb[0].mxu0
        %v970 = vadd.f32 0.0, %v969
        %v971 = vpop.f32.mrb[0].mxu0
        %v972 = vadd.f32 0.0, %v971
        %v973 = vpop.f32.mrb[0].mxu0
        %v974 = vadd.f32 0.0, %v973
        %v975 = vpop.f32.mrb[0].mxu0
        %v976 = vadd.f32 0.0, %v975
        %977 = vmatprep.mubr.bf16.mxu0 0
        %978 = vmatmul.mubr.bf16.gmra.mrb[0].mxu0 %v627
        %v979 = vpop.f32.mrb[0].mxu0
        %v980 = vadd.f32 0.0, %v979
        %v981 = vpop.f32.mrb[0].mxu0
        %v982 = vadd.f32 0.0, %v981
        %v983 = vpop.f32.mrb[0].mxu0
        %v984 = vadd.f32 0.0, %v983
        %v985 = vpop.f32.mrb[0].mxu0
        %v986 = vadd.f32 0.0, %v985
        %987 = vmatprep.mubr.bf16.mxu0 0
        %988 = vmatmul.mubr.bf16.gmra.mrb[0].mxu0 %v630
        %v989 = vpop.f32.mrb[0].mxu0
        %v990 = vadd.f32 0.0, %v989
        %v991 = vpop.f32.mrb[0].mxu0
        %v992 = vadd.f32 0.0, %v991
        %v993 = vpop.f32.mrb[0].mxu0
        %v994 = vadd.f32 0.0, %v993
        %v995 = vpop.f32.mrb[0].mxu0
        %v996 = vadd.f32 0.0, %v995
        %997 = vdwg.mxu0
        %998 = vmatprep.subr.bf16.mxu0 %v643
        %999 = vmatpush1.bf16.msra.mxu0 %v640
        %1000 = vmatprep.subr.bf16.mxu0 0
        %1001 = vmatpush1.bf16.msra.mxu0 0
        %1002 = vmatprep.subr.bf16.mxu0 0
        %1003 = vmatpush1.bf16.msra.mxu0 0
        %1004 = vmatprep.subr.bf16.mxu0 0
        %1005 = vmatpush1.bf16.msra.mxu0 0
        %1006 = vmatprep.subr.bf16.mxu0 0
        %1007 = vmatpush1.bf16.msra.mxu0 0
        %1008 = vmatprep.subr.bf16.mxu0 0
        %1009 = vmatpush1.bf16.msra.mxu0 0
        %1010 = vmatprep.subr.bf16.mxu0 0
        %1011 = vmatpush1.bf16.msra.mxu0 0
        %1012 = vmatprep.subr.bf16.mxu0 0
        %1013 = vmatpush1.bf16.msra.mxu0 0
        %1014 = vmatprep.subr.bf16.mxu0 0
        %1015 = vmatpush1.bf16.msra.mxu0 0
        %1016 = vmatprep.subr.bf16.mxu0 0
        %1017 = vmatpush1.bf16.msra.mxu0 0
        %1018 = vmatprep.subr.bf16.mxu0 0
        %1019 = vmatpush1.bf16.msra.mxu0 0
        %1020 = vmatprep.subr.bf16.mxu0 0
        %1021 = vmatpush1.bf16.msra.mxu0 0
        %1022 = vmatprep.subr.bf16.mxu0 0
        %1023 = vmatpush1.bf16.msra.mxu0 0
        %1024 = vmatprep.subr.bf16.mxu0 0
        %1025 = vmatpush1.bf16.msra.mxu0 0
        %1026 = vmatprep.subr.bf16.mxu0 0
        %1027 = vmatpush1.bf16.msra.mxu0 0
        %1028 = vmatprep.subr.bf16.mxu0 0
        %1029 = vmatpush1.bf16.msra.mxu0 0
        %1030 = vmatprep.mubr.bf16.mxu0 0
        %1031 = vmatmul.mubr.bf16.gmra.mrb[0].mxu0 %v537
        %v1032 = vpop.f32.mrb[0].mxu0
        %v1033 = vadd.f32 0.0, %v1032
        %v1034 = vpop.f32.mrb[0].mxu0
        %v1035 = vadd.f32 0.0, %v1034
        %v1036 = vpop.f32.mrb[0].mxu0
        %v1037 = vadd.f32 0.0, %v1036
        %v1038 = vpop.f32.mrb[0].mxu0
        %v1039 = vadd.f32 0.0, %v1038
        %1040 = vmatprep.mubr.bf16.mxu0 0
        %1041 = vmatmul.mubr.bf16.gmra.mrb[0].mxu0 %v540
        %v1042 = vpop.f32.mrb[0].mxu0
        %v1043 = vadd.f32 0.0, %v1042
        %v1044 = vpop.f32.mrb[0].mxu0
        %v1045 = vadd.f32 0.0, %v1044
        %v1046 = vpop.f32.mrb[0].mxu0
        %v1047 = vadd.f32 0.0, %v1046
        %v1048 = vpop.f32.mrb[0].mxu0
        %v1049 = vadd.f32 0.0, %v1048
        %1050 = vmatprep.mubr.bf16.mxu0 0
        %1051 = vmatmul.mubr.bf16.gmra.mrb[0].mxu0 %v543
        %v1052 = vpop.f32.mrb[0].mxu0
        %v1053 = vadd.f32 0.0, %v1052
        %v1054 = vpop.f32.mrb[0].mxu0
        %v1055 = vadd.f32 0.0, %v1054
        %v1056 = vpop.f32.mrb[0].mxu0
        %v1057 = vadd.f32 0.0, %v1056
        %v1058 = vpop.f32.mrb[0].mxu0
        %v1059 = vadd.f32 0.0, %v1058
        %1060 = vmatprep.mubr.bf16.mxu0 0
        %1061 = vmatmul.mubr.bf16.gmra.mrb[0].mxu0 %v546
        %v1062 = vpop.f32.mrb[0].mxu0
        %v1063 = vadd.f32 0.0, %v1062
        %v1064 = vpop.f32.mrb[0].mxu0
        %v1065 = vadd.f32 0.0, %v1064
        %v1066 = vpop.f32.mrb[0].mxu0
        %v1067 = vadd.f32 0.0, %v1066
        %v1068 = vpop.f32.mrb[0].mxu0
        %v1069 = vadd.f32 0.0, %v1068
        %1070 = vmatprep.mubr.bf16.mxu0 0
        %1071 = vmatmul.mubr.bf16.gmra.mrb[0].mxu0 %v549
        %v1072 = vpop.f32.mrb[0].mxu0
        %v1073 = vadd.f32 0.0, %v1072
        %v1074 = vpop.f32.mrb[0].mxu0
        %v1075 = vadd.f32 0.0, %v1074
        %v1076 = vpop.f32.mrb[0].mxu0
        %v1077 = vadd.f32 0.0, %v1076
        %v1078 = vpop.f32.mrb[0].mxu0
        %v1079 = vadd.f32 0.0, %v1078
        %1080 = vmatprep.mubr.bf16.mxu0 0
        %1081 = vmatmul.mubr.bf16.gmra.mrb[0].mxu0 %v552
        %v1082 = vpop.f32.mrb[0].mxu0
        %v1083 = vadd.f32 0.0, %v1082
        %v1084 = vpop.f32.mrb[0].mxu0
        %v1085 = vadd.f32 0.0, %v1084
        %v1086 = vpop.f32.mrb[0].mxu0
        %v1087 = vadd.f32 0.0, %v1086
        %v1088 = vpop.f32.mrb[0].mxu0
        %v1089 = vadd.f32 0.0, %v1088
        %1090 = vmatprep.mubr.bf16.mxu0 0
        %1091 = vmatmul.mubr.bf16.gmra.mrb[0].mxu0 %v555
        %v1092 = vpop.f32.mrb[0].mxu0
        %v1093 = vadd.f32 0.0, %v1092
        %v1094 = vpop.f32.mrb[0].mxu0
        %v1095 = vadd.f32 0.0, %v1094
        %v1096 = vpop.f32.mrb[0].mxu0
        %v1097 = vadd.f32 0.0, %v1096
        %v1098 = vpop.f32.mrb[0].mxu0
        %v1099 = vadd.f32 0.0, %v1098
        %1100 = vmatprep.mubr.bf16.mxu0 0
        %1101 = vmatmul.mubr.bf16.gmra.mrb[0].mxu0 %v558
        %v1102 = vpop.f32.mrb[0].mxu0
        %v1103 = vadd.f32 0.0, %v1102
        %v1104 = vpop.f32.mrb[0].mxu0
        %v1105 = vadd.f32 0.0, %v1104
        %v1106 = vpop.f32.mrb[0].mxu0
        %v1107 = vadd.f32 0.0, %v1106
        %v1108 = vpop.f32.mrb[0].mxu0
        %v1109 = vadd.f32 0.0, %v1108
        %1110 = vmatprep.mubr.bf16.mxu0 0
        %1111 = vmatmul.mubr.bf16.gmra.mrb[0].mxu0 %v561
        %v1112 = vpop.f32.mrb[0].mxu0
        %v1113 = vadd.f32 0.0, %v1112
        %v1114 = vpop.f32.mrb[0].mxu0
        %v1115 = vadd.f32 0.0, %v1114
        %v1116 = vpop.f32.mrb[0].mxu0
        %v1117 = vadd.f32 0.0, %v1116
        %v1118 = vpop.f32.mrb[0].mxu0
        %v1119 = vadd.f32 0.0, %v1118
        %1120 = vmatprep.mubr.bf16.mxu0 0
        %1121 = vmatmul.mubr.bf16.gmra.mrb[0].mxu0 %v564
        %v1122 = vpop.f32.mrb[0].mxu0
        %v1123 = vadd.f32 0.0, %v1122
        %v1124 = vpop.f32.mrb[0].mxu0
        %v1125 = vadd.f32 0.0, %v1124
        %v1126 = vpop.f32.mrb[0].mxu0
        %v1127 = vadd.f32 0.0, %v1126
        %v1128 = vpop.f32.mrb[0].mxu0
        %v1129 = vadd.f32 0.0, %v1128
        %1130 = vmatprep.mubr.bf16.mxu0 0
        %1131 = vmatmul.mubr.bf16.gmra.mrb[0].mxu0 %v567
        %v1132 = vpop.f32.mrb[0].mxu0
        %v1133 = vadd.f32 0.0, %v1132
        %v1134 = vpop.f32.mrb[0].mxu0
        %v1135 = vadd.f32 0.0, %v1134
        %v1136 = vpop.f32.mrb[0].mxu0
        %v1137 = vadd.f32 0.0, %v1136
        %v1138 = vpop.f32.mrb[0].mxu0
        %v1139 = vadd.f32 0.0, %v1138
        %1140 = vmatprep.mubr.bf16.mxu0 0
        %1141 = vmatmul.mubr.bf16.gmra.mrb[0].mxu0 %v570
        %v1142 = vpop.f32.mrb[0].mxu0
        %v1143 = vadd.f32 0.0, %v1142
        %v1144 = vpop.f32.mrb[0].mxu0
        %v1145 = vadd.f32 0.0, %v1144
        %v1146 = vpop.f32.mrb[0].mxu0
        %v1147 = vadd.f32 0.0, %v1146
        %v1148 = vpop.f32.mrb[0].mxu0
        %v1149 = vadd.f32 0.0, %v1148
        %1150 = vmatprep.mubr.bf16.mxu0 0
        %1151 = vmatmul.mubr.bf16.gmra.mrb[0].mxu0 %v573
        %v1152 = vpop.f32.mrb[0].mxu0
        %v1153 = vadd.f32 0.0, %v1152
        %v1154 = vpop.f32.mrb[0].mxu0
        %v1155 = vadd.f32 0.0, %v1154
        %v1156 = vpop.f32.mrb[0].mxu0
        %v1157 = vadd.f32 0.0, %v1156
        %v1158 = vpop.f32.mrb[0].mxu0
        %v1159 = vadd.f32 0.0, %v1158
        %1160 = vmatprep.mubr.bf16.mxu0 0
        %1161 = vmatmul.mubr.bf16.gmra.mrb[0].mxu0 %v576
        %v1162 = vpop.f32.mrb[0].mxu0
        %v1163 = vadd.f32 0.0, %v1162
        %v1164 = vpop.f32.mrb[0].mxu0
        %v1165 = vadd.f32 0.0, %v1164
        %v1166 = vpop.f32.mrb[0].mxu0
        %v1167 = vadd.f32 0.0, %v1166
        %v1168 = vpop.f32.mrb[0].mxu0
        %v1169 = vadd.f32 0.0, %v1168
        %1170 = vmatprep.mubr.bf16.mxu0 0
        %1171 = vmatmul.mubr.bf16.gmra.mrb[0].mxu0 %v579
        %v1172 = vpop.f32.mrb[0].mxu0
        %v1173 = vadd.f32 0.0, %v1172
        %v1174 = vpop.f32.mrb[0].mxu0
        %v1175 = vadd.f32 0.0, %v1174
        %v1176 = vpop.f32.mrb[0].mxu0
        %v1177 = vadd.f32 0.0, %v1176
        %v1178 = vpop.f32.mrb[0].mxu0
        %v1179 = vadd.f32 0.0, %v1178
        %1180 = vmatprep.mubr.bf16.mxu0 0
        %1181 = vmatmul.mubr.bf16.gmra.mrb[0].mxu0 %v582
        %v1182 = vpop.f32.mrb[0].mxu0
        %v1183 = vadd.f32 0.0, %v1182
        %v1184 = vpop.f32.mrb[0].mxu0
        %v1185 = vadd.f32 0.0, %v1184
        %v1186 = vpop.f32.mrb[0].mxu0
        %v1187 = vadd.f32 0.0, %v1186
        %v1188 = vpop.f32.mrb[0].mxu0
        %v1189 = vadd.f32 0.0, %v1188
        %1190 = vmatprep.mubr.bf16.mxu0 0
        %1191 = vmatmul.mubr.bf16.gmra.mrb[0].mxu0 %v585
        %v1192 = vpop.f32.mrb[0].mxu0
        %v1193 = vadd.f32 0.0, %v1192
        %v1194 = vpop.f32.mrb[0].mxu0
        %v1195 = vadd.f32 0.0, %v1194
        %v1196 = vpop.f32.mrb[0].mxu0
        %v1197 = vadd.f32 0.0, %v1196
        %v1198 = vpop.f32.mrb[0].mxu0
        %v1199 = vadd.f32 0.0, %v1198
        %1200 = vmatprep.mubr.bf16.mxu0 0
        %1201 = vmatmul.mubr.bf16.gmra.mrb[0].mxu0 %v588
        %v1202 = vpop.f32.mrb[0].mxu0
        %v1203 = vadd.f32 0.0, %v1202
        %v1204 = vpop.f32.mrb[0].mxu0
        %v1205 = vadd.f32 0.0, %v1204
        %v1206 = vpop.f32.mrb[0].mxu0
        %v1207 = vadd.f32 0.0, %v1206
        %v1208 = vpop.f32.mrb[0].mxu0
        %v1209 = vadd.f32 0.0, %v1208
        %1210 = vmatprep.mubr.bf16.mxu0 0
        %1211 = vmatmul.mubr.bf16.gmra.mrb[0].mxu0 %v591
        %v1212 = vpop.f32.mrb[0].mxu0
        %v1213 = vadd.f32 0.0, %v1212
        %v1214 = vpop.f32.mrb[0].mxu0
        %v1215 = vadd.f32 0.0, %v1214
        %v1216 = vpop.f32.mrb[0].mxu0
        %v1217 = vadd.f32 0.0, %v1216
        %v1218 = vpop.f32.mrb[0].mxu0
        %v1219 = vadd.f32 0.0, %v1218
        %1220 = vmatprep.mubr.bf16.mxu0 0
        %1221 = vmatmul.mubr.bf16.gmra.mrb[0].mxu0 %v594
        %v1222 = vpop.f32.mrb[0].mxu0
        %v1223 = vadd.f32 0.0, %v1222
        %v1224 = vpop.f32.mrb[0].mxu0
        %v1225 = vadd.f32 0.0, %v1224
        %v1226 = vpop.f32.mrb[0].mxu0
        %v1227 = vadd.f32 0.0, %v1226
        %v1228 = vpop.f32.mrb[0].mxu0
        %v1229 = vadd.f32 0.0, %v1228
        %1230 = vmatprep.mubr.bf16.mxu0 0
        %1231 = vmatmul.mubr.bf16.gmra.mrb[0].mxu0 %v597
        %v1232 = vpop.f32.mrb[0].mxu0
        %v1233 = vadd.f32 0.0, %v1232
        %v1234 = vpop.f32.mrb[0].mxu0
        %v1235 = vadd.f32 0.0, %v1234
        %v1236 = vpop.f32.mrb[0].mxu0
        %v1237 = vadd.f32 0.0, %v1236
        %v1238 = vpop.f32.mrb[0].mxu0
        %v1239 = vadd.f32 0.0, %v1238
        %1240 = vmatprep.mubr.bf16.mxu0 0
        %1241 = vmatmul.mubr.bf16.gmra.mrb[0].mxu0 %v600
        %v1242 = vpop.f32.mrb[0].mxu0
        %v1243 = vadd.f32 0.0, %v1242
        %v1244 = vpop.f32.mrb[0].mxu0
        %v1245 = vadd.f32 0.0, %v1244
        %v1246 = vpop.f32.mrb[0].mxu0
        %v1247 = vadd.f32 0.0, %v1246
        %v1248 = vpop.f32.mrb[0].mxu0
        %v1249 = vadd.f32 0.0, %v1248
        %1250 = vmatprep.mubr.bf16.mxu0 0
        %1251 = vmatmul.mubr.bf16.gmra.mrb[0].mxu0 %v603
        %v1252 = vpop.f32.mrb[0].mxu0
        %v1253 = vadd.f32 0.0, %v1252
        %v1254 = vpop.f32.mrb[0].mxu0
        %v1255 = vadd.f32 0.0, %v1254
        %v1256 = vpop.f32.mrb[0].mxu0
        %v1257 = vadd.f32 0.0, %v1256
        %v1258 = vpop.f32.mrb[0].mxu0
        %v1259 = vadd.f32 0.0, %v1258
        %1260 = vmatprep.mubr.bf16.mxu0 0
        %1261 = vmatmul.mubr.bf16.gmra.mrb[0].mxu0 %v606
        %v1262 = vpop.f32.mrb[0].mxu0
        %v1263 = vadd.f32 0.0, %v1262
        %v1264 = vpop.f32.mrb[0].mxu0
        %v1265 = vadd.f32 0.0, %v1264
        %v1266 = vpop.f32.mrb[0].mxu0
        %v1267 = vadd.f32 0.0, %v1266
        %v1268 = vpop.f32.mrb[0].mxu0
        %v1269 = vadd.f32 0.0, %v1268
        %1270 = vmatprep.mubr.bf16.mxu0 0
        %1271 = vmatmul.mubr.bf16.gmra.mrb[0].mxu0 %v609
        %v1272 = vpop.f32.mrb[0].mxu0
        %v1273 = vadd.f32 0.0, %v1272
        %v1274 = vpop.f32.mrb[0].mxu0
        %v1275 = vadd.f32 0.0, %v1274
        %v1276 = vpop.f32.mrb[0].mxu0
        %v1277 = vadd.f32 0.0, %v1276
        %v1278 = vpop.f32.mrb[0].mxu0
        %v1279 = vadd.f32 0.0, %v1278
        %1280 = vmatprep.mubr.bf16.mxu0 0
        %1281 = vmatmul.mubr.bf16.gmra.mrb[0].mxu0 %v612
        %v1282 = vpop.f32.mrb[0].mxu0
        %v1283 = vadd.f32 0.0, %v1282
        %v1284 = vpop.f32.mrb[0].mxu0
        %v1285 = vadd.f32 0.0, %v1284
        %v1286 = vpop.f32.mrb[0].mxu0
        %v1287 = vadd.f32 0.0, %v1286
        %v1288 = vpop.f32.mrb[0].mxu0
        %v1289 = vadd.f32 0.0, %v1288
        %1290 = vmatprep.mubr.bf16.mxu0 0
        %1291 = vmatmul.mubr.bf16.gmra.mrb[0].mxu0 %v615
        %v1292 = vpop.f32.mrb[0].mxu0
        %v1293 = vadd.f32 0.0, %v1292
        %v1294 = vpop.f32.mrb[0].mxu0
        %v1295 = vadd.f32 0.0, %v1294
        %v1296 = vpop.f32.mrb[0].mxu0
        %v1297 = vadd.f32 0.0, %v1296
        %v1298 = vpop.f32.mrb[0].mxu0
        %v1299 = vadd.f32 0.0, %v1298
        %1300 = vmatprep.mubr.bf16.mxu0 0
        %1301 = vmatmul.mubr.bf16.gmra.mrb[0].mxu0 %v618
        %v1302 = vpop.f32.mrb[0].mxu0
        %v1303 = vadd.f32 0.0, %v1302
        %v1304 = vpop.f32.mrb[0].mxu0
        %v1305 = vadd.f32 0.0, %v1304
        %v1306 = vpop.f32.mrb[0].mxu0
        %v1307 = vadd.f32 0.0, %v1306
        %v1308 = vpop.f32.mrb[0].mxu0
        %v1309 = vadd.f32 0.0, %v1308
        %1310 = vmatprep.mubr.bf16.mxu0 0
        %1311 = vmatmul.mubr.bf16.gmra.mrb[0].mxu0 %v621
        %v1312 = vpop.f32.mrb[0].mxu0
        %v1313 = vadd.f32 0.0, %v1312
        %v1314 = vpop.f32.mrb[0].mxu0
        %v1315 = vadd.f32 0.0, %v1314
        %v1316 = vpop.f32.mrb[0].mxu0
        %v1317 = vadd.f32 0.0, %v1316
        %v1318 = vpop.f32.mrb[0].mxu0
        %v1319 = vadd.f32 0.0, %v1318
        %1320 = vmatprep.mubr.bf16.mxu0 0
        %1321 = vmatmul.mubr.bf16.gmra.mrb[0].mxu0 %v624
        %v1322 = vpop.f32.mrb[0].mxu0
        %v1323 = vadd.f32 0.0, %v1322
        %v1324 = vpop.f32.mrb[0].mxu0
        %v1325 = vadd.f32 0.0, %v1324
        %v1326 = vpop.f32.mrb[0].mxu0
        %v1327 = vadd.f32 0.0, %v1326
        %v1328 = vpop.f32.mrb[0].mxu0
        %v1329 = vadd.f32 0.0, %v1328
        %1330 = vmatprep.mubr.bf16.mxu0 0
        %1331 = vmatmul.mubr.bf16.gmra.mrb[0].mxu0 %v627
        %v1332 = vpop.f32.mrb[0].mxu0
        %v1333 = vadd.f32 0.0, %v1332
        %v1334 = vpop.f32.mrb[0].mxu0
        %v1335 = vadd.f32 0.0, %v1334
        %v1336 = vpop.f32.mrb[0].mxu0
        %v1337 = vadd.f32 0.0, %v1336
        %v1338 = vpop.f32.mrb[0].mxu0
        %v1339 = vadd.f32 0.0, %v1338
        %1340 = vmatprep.mubr.bf16.mxu0 0
        %1341 = vmatmul.mubr.bf16.gmra.mrb[0].mxu0 %v630
        %v1342 = vpop.f32.mrb[0].mxu0
        %v1343 = vadd.f32 0.0, %v1342
        %v1344 = vpop.f32.mrb[0].mxu0
        %v1345 = vadd.f32 0.0, %v1344
        %v1346 = vpop.f32.mrb[0].mxu0
        %v1347 = vadd.f32 0.0, %v1346
        %v1348 = vpop.f32.mrb[0].mxu0
        %v1349 = vadd.f32 0.0, %v1348
        %1350 = vdwg.mxu0
        %v1351 = vpack.c.bf16 %v844, %v840
        %v1352 = vpack.c.bf16 %v846, %v842
        %v1353 = vpack.c.bf16 %v1197, %v1193
        %v1354 = vpack.c.bf16 %v1199, %v1195
        %v1355 = vpack.c.bf16 %v854, %v850
        %v1356 = vpack.c.bf16 %v856, %v852
        %v1357 = vpack.c.bf16 %v1207, %v1203
        %v1358 = vpack.c.bf16 %v1209, %v1205
        %v1359 = vpack.c.bf16 %v864, %v860
        %v1360 = vpack.c.bf16 %v866, %v862
        %v1361 = vpack.c.bf16 %v1217, %v1213
        %v1362 = vpack.c.bf16 %v1219, %v1215
        %v1363 = vpack.c.bf16 %v874, %v870
        %v1364 = vpack.c.bf16 %v876, %v872
        %v1365 = vpack.c.bf16 %v1227, %v1223
        %v1366 = vpack.c.bf16 %v1229, %v1225
        %v1367 = vpack.c.bf16 %v884, %v880
        %v1368 = vpack.c.bf16 %v886, %v882
        %v1369 = vpack.c.bf16 %v1237, %v1233
        %v1370 = vpack.c.bf16 %v1239, %v1235
        %v1371 = vpack.c.bf16 %v894, %v890
        %v1372 = vpack.c.bf16 %v896, %v892
        %v1373 = vpack.c.bf16 %v1247, %v1243
        %v1374 = vpack.c.bf16 %v1249, %v1245
        %v1375 = vpack.c.bf16 %v904, %v900
        %v1376 = vpack.c.bf16 %v906, %v902
        %v1377 = vpack.c.bf16 %v1257, %v1253
        %v1378 = vpack.c.bf16 %v1259, %v1255
        %v1379 = vpack.c.bf16 %v914, %v910
        %v1380 = vpack.c.bf16 %v916, %v912
        %v1381 = vpack.c.bf16 %v1267, %v1263
        %v1382 = vpack.c.bf16 %v1269, %v1265
        %v1383 = vpack.c.bf16 %v924, %v920
        %v1384 = vpack.c.bf16 %v926, %v922
        %v1385 = vpack.c.bf16 %v1277, %v1273
        %v1386 = vpack.c.bf16 %v1279, %v1275
        %v1387 = vpack.c.bf16 %v934, %v930
        %v1388 = vpack.c.bf16 %v936, %v932
        %v1389 = vpack.c.bf16 %v1287, %v1283
        %v1390 = vpack.c.bf16 %v1289, %v1285
        %v1391 = vpack.c.bf16 %v944, %v940
        %v1392 = vpack.c.bf16 %v946, %v942
        %v1393 = vpack.c.bf16 %v1297, %v1293
        %v1394 = vpack.c.bf16 %v1299, %v1295
        %v1395 = vpack.c.bf16 %v954, %v950
        %v1396 = vpack.c.bf16 %v956, %v952
        %v1397 = vpack.c.bf16 %v1307, %v1303
        %v1398 = vpack.c.bf16 %v1309, %v1305
        %v1399 = vpack.c.bf16 %v964, %v960
        %v1400 = vpack.c.bf16 %v966, %v962
        %v1401 = vpack.c.bf16 %v1317, %v1313
        %v1402 = vpack.c.bf16 %v1319, %v1315
        %v1403 = vpack.c.bf16 %v974, %v970
        %v1404 = vpack.c.bf16 %v976, %v972
        %v1405 = vpack.c.bf16 %v1327, %v1323
        %v1406 = vpack.c.bf16 %v1329, %v1325
        %v1407 = vpack.c.bf16 %v984, %v980
        %v1408 = vpack.c.bf16 %v986, %v982
        %v1409 = vpack.c.bf16 %v1337, %v1333
        %v1410 = vpack.c.bf16 %v1339, %v1335
        %v1411 = vpack.c.bf16 %v994, %v990
        %v1412 = vpack.c.bf16 %v996, %v992
        %v1413 = vpack.c.bf16 %v1347, %v1343
        %v1414 = vpack.c.bf16 %v1349, %v1345
        %v1415 = vpack.c.bf16 %v684, %v680
        %v1416 = vpack.c.bf16 %v686, %v682
        %v1417 = vpack.c.bf16 %v1037, %v1033
        %v1418 = vpack.c.bf16 %v1039, %v1035
        %v1419 = vpack.c.bf16 %v694, %v690
        %v1420 = vpack.c.bf16 %v696, %v692
        %v1421 = vpack.c.bf16 %v1047, %v1043
        %v1422 = vpack.c.bf16 %v1049, %v1045
        %v1423 = vpack.c.bf16 %v704, %v700
        %v1424 = vpack.c.bf16 %v706, %v702
        %v1425 = vpack.c.bf16 %v1057, %v1053
        %v1426 = vpack.c.bf16 %v1059, %v1055
        %v1427 = vpack.c.bf16 %v714, %v710
        %v1428 = vpack.c.bf16 %v716, %v712
        %v1429 = vpack.c.bf16 %v1067, %v1063
        %v1430 = vpack.c.bf16 %v1069, %v1065
        %v1431 = vpack.c.bf16 %v724, %v720
        %v1432 = vpack.c.bf16 %v726, %v722
        %v1433 = vpack.c.bf16 %v1077, %v1073
        %v1434 = vpack.c.bf16 %v1079, %v1075
        %v1435 = vpack.c.bf16 %v734, %v730
        %v1436 = vpack.c.bf16 %v736, %v732
        %v1437 = vpack.c.bf16 %v1087, %v1083
        %v1438 = vpack.c.bf16 %v1089, %v1085
        %v1439 = vpack.c.bf16 %v744, %v740
        %v1440 = vpack.c.bf16 %v746, %v742
        %v1441 = vpack.c.bf16 %v1097, %v1093
        %v1442 = vpack.c.bf16 %v1099, %v1095
        %v1443 = vpack.c.bf16 %v754, %v750
        %v1444 = vpack.c.bf16 %v756, %v752
        %v1445 = vpack.c.bf16 %v1107, %v1103
        %v1446 = vpack.c.bf16 %v1109, %v1105
        %v1447 = vpack.c.bf16 %v764, %v760
        %v1448 = vpack.c.bf16 %v766, %v762
        %v1449 = vpack.c.bf16 %v1117, %v1113
        %v1450 = vpack.c.bf16 %v1119, %v1115
        %v1451 = vpack.c.bf16 %v774, %v770
        %v1452 = vpack.c.bf16 %v776, %v772
        %v1453 = vpack.c.bf16 %v1127, %v1123
        %v1454 = vpack.c.bf16 %v1129, %v1125
        %v1455 = vpack.c.bf16 %v784, %v780
        %v1456 = vpack.c.bf16 %v786, %v782
        %v1457 = vpack.c.bf16 %v1137, %v1133
        %v1458 = vpack.c.bf16 %v1139, %v1135
        %v1459 = vpack.c.bf16 %v794, %v790
        %v1460 = vpack.c.bf16 %v796, %v792
        %v1461 = vpack.c.bf16 %v1147, %v1143
        %v1462 = vpack.c.bf16 %v1149, %v1145
        %v1463 = vpack.c.bf16 %v804, %v800
        %v1464 = vpack.c.bf16 %v806, %v802
        %v1465 = vpack.c.bf16 %v1157, %v1153
        %v1466 = vpack.c.bf16 %v1159, %v1155
        %v1467 = vpack.c.bf16 %v814, %v810
        %v1468 = vpack.c.bf16 %v816, %v812
        %v1469 = vpack.c.bf16 %v1167, %v1163
        %v1470 = vpack.c.bf16 %v1169, %v1165
        %v1471 = vpack.c.bf16 %v824, %v820
        %v1472 = vpack.c.bf16 %v826, %v822
        %v1473 = vpack.c.bf16 %v1177, %v1173
        %v1474 = vpack.c.bf16 %v1179, %v1175
        %v1475 = vpack.c.bf16 %v834, %v830
        %v1476 = vpack.c.bf16 %v836, %v832
        %v1477 = vpack.c.bf16 %v1187, %v1183
        %v1478 = vpack.c.bf16 %v1189, %v1185
        %1480 = vset.pattern.permute.xlu0 0
        %1481 = vperm.xlu0 %1480, %v279
        %v1482 = vpop.permute.xlu0 %1481
        %v1485 = vunpack.c.l.s4 839922192
        %v1486 = vunpack.c.0.s8 %v1485
        %v1487 = vlaneseq
        %v1488 = vshrl.u32 %v1487, 7
        %v1489 = vsub.s32 %v1486, %v1488
        %v1490 = vrot.slane %v1482, %v1489
        %1492 = vset.pattern.permute.xlu0 0
        %1493 = vperm.xlu0 %1492, %v280
        %v1494 = vpop.permute.xlu0 %1493
        %v1497 = vunpack.c.l.s4 839922192
        %v1498 = vunpack.c.0.s8 %v1497
        %v1499 = vlaneseq
        %v1500 = vshrl.u32 %v1499, 7
        %v1501 = vsub.s32 %v1498, %v1500
        %v1502 = vrot.slane %v1494, %v1501
        %1504 = vset.pattern.permute.xlu0 0
        %1505 = vperm.xlu0 %1504, %v281
        %v1506 = vpop.permute.xlu0 %1505
        %v1509 = vunpack.c.l.s4 839922192
        %v1510 = vunpack.c.0.s8 %v1509
        %v1511 = vlaneseq
        %v1512 = vshrl.u32 %v1511, 7
        %v1513 = vsub.s32 %v1510, %v1512
        %v1514 = vrot.slane %v1506, %v1513
        %1516 = vset.pattern.permute.xlu0 0
        %1517 = vperm.xlu0 %1516, %v282
        %v1518 = vpop.permute.xlu0 %1517
        %v1521 = vunpack.c.l.s4 839922192
        %v1522 = vunpack.c.0.s8 %v1521
        %v1523 = vlaneseq
        %v1524 = vshrl.u32 %v1523, 7
        %v1525 = vsub.s32 %v1522, %v1524
        %v1526 = vrot.slane %v1518, %v1525
        %1528 = vset.pattern.permute.xlu0 0
        %1529 = vperm.xlu0 %1528, %v283
        %v1530 = vpop.permute.xlu0 %1529
        %v1533 = vunpack.c.l.s4 839922192
        %v1534 = vunpack.c.0.s8 %v1533
        %v1535 = vlaneseq
        %v1536 = vshrl.u32 %v1535, 7
        %v1537 = vsub.s32 %v1534, %v1536
        %v1538 = vrot.slane %v1530, %v1537
        %1540 = vset.pattern.permute.xlu0 0
        %1541 = vperm.xlu0 %1540, %v284
        %v1542 = vpop.permute.xlu0 %1541
        %v1545 = vunpack.c.l.s4 839922192
        %v1546 = vunpack.c.0.s8 %v1545
        %v1547 = vlaneseq
        %v1548 = vshrl.u32 %v1547, 7
        %v1549 = vsub.s32 %v1546, %v1548
        %v1550 = vrot.slane %v1542, %v1549
        %1552 = vset.pattern.permute.xlu0 0
        %1553 = vperm.xlu0 %1552, %v285
        %v1554 = vpop.permute.xlu0 %1553
        %v1557 = vunpack.c.l.s4 839922192
        %v1558 = vunpack.c.0.s8 %v1557
        %v1559 = vlaneseq
        %v1560 = vshrl.u32 %v1559, 7
        %v1561 = vsub.s32 %v1558, %v1560
        %v1562 = vrot.slane %v1554, %v1561
        %1564 = vset.pattern.permute.xlu0 0
        %1565 = vperm.xlu0 %1564, %v286
        %v1566 = vpop.permute.xlu0 %1565
        %v1569 = vunpack.c.l.s4 839922192
        %v1570 = vunpack.c.0.s8 %v1569
        %v1571 = vlaneseq
        %v1572 = vshrl.u32 %v1571, 7
        %v1573 = vsub.s32 %v1570, %v1572
        %v1574 = vrot.slane %v1566, %v1573
        %1576 = vset.pattern.permute.xlu0 0
        %1577 = vperm.xlu0 %1576, %v287
        %v1578 = vpop.permute.xlu0 %1577
        %v1581 = vunpack.c.l.s4 839922192
        %v1582 = vunpack.c.0.s8 %v1581
        %v1583 = vlaneseq
        %v1584 = vshrl.u32 %v1583, 7
        %v1585 = vsub.s32 %v1582, %v1584
        %v1586 = vrot.slane %v1578, %v1585
        %1588 = vset.pattern.permute.xlu0 0
        %1589 = vperm.xlu0 %1588, %v288
        %v1590 = vpop.permute.xlu0 %1589
        %v1593 = vunpack.c.l.s4 839922192
        %v1594 = vunpack.c.0.s8 %v1593
        %v1595 = vlaneseq
        %v1596 = vshrl.u32 %v1595, 7
        %v1597 = vsub.s32 %v1594, %v1596
        %v1598 = vrot.slane %v1590, %v1597
        %1600 = vset.pattern.permute.xlu0 0
        %1601 = vperm.xlu0 %1600, %v289
        %v1602 = vpop.permute.xlu0 %1601
        %v1605 = vunpack.c.l.s4 839922192
        %v1606 = vunpack.c.0.s8 %v1605
        %v1607 = vlaneseq
        %v1608 = vshrl.u32 %v1607, 7
        %v1609 = vsub.s32 %v1606, %v1608
        %v1610 = vrot.slane %v1602, %v1609
        %1612 = vset.pattern.permute.xlu0 0
        %1613 = vperm.xlu0 %1612, %v290
        %v1614 = vpop.permute.xlu0 %1613
        %v1617 = vunpack.c.l.s4 839922192
        %v1618 = vunpack.c.0.s8 %v1617
        %v1619 = vlaneseq
        %v1620 = vshrl.u32 %v1619, 7
        %v1621 = vsub.s32 %v1618, %v1620
        %v1622 = vrot.slane %v1614, %v1621
        %1624 = vset.pattern.permute.xlu0 0
        %1625 = vperm.xlu0 %1624, %v291
        %v1626 = vpop.permute.xlu0 %1625
        %v1629 = vunpack.c.l.s4 839922192
        %v1630 = vunpack.c.0.s8 %v1629
        %v1631 = vlaneseq
        %v1632 = vshrl.u32 %v1631, 7
        %v1633 = vsub.s32 %v1630, %v1632
        %v1634 = vrot.slane %v1626, %v1633
        %1636 = vset.pattern.permute.xlu0 0
        %1637 = vperm.xlu0 %1636, %v292
        %v1638 = vpop.permute.xlu0 %1637
        %v1641 = vunpack.c.l.s4 839922192
        %v1642 = vunpack.c.0.s8 %v1641
        %v1643 = vlaneseq
        %v1644 = vshrl.u32 %v1643, 7
        %v1645 = vsub.s32 %v1642, %v1644
        %v1646 = vrot.slane %v1638, %v1645
        %1648 = vset.pattern.permute.xlu0 0
        %1649 = vperm.xlu0 %1648, %v293
        %v1650 = vpop.permute.xlu0 %1649
        %v1653 = vunpack.c.l.s4 839922192
        %v1654 = vunpack.c.0.s8 %v1653
        %v1655 = vlaneseq
        %v1656 = vshrl.u32 %v1655, 7
        %v1657 = vsub.s32 %v1654, %v1656
        %v1658 = vrot.slane %v1650, %v1657
        %1660 = vset.pattern.permute.xlu0 0
        %1661 = vperm.xlu0 %1660, %v294
        %v1662 = vpop.permute.xlu0 %1661
        %v1665 = vunpack.c.l.s4 839922192
        %v1666 = vunpack.c.0.s8 %v1665
        %v1667 = vlaneseq
        %v1668 = vshrl.u32 %v1667, 7
        %v1669 = vsub.s32 %v1666, %v1668
        %v1670 = vrot.slane %v1662, %v1669
        %1672 = vset.pattern.permute.xlu0 0
        %1673 = vperm.xlu0 %1672, %v295
        %v1674 = vpop.permute.xlu0 %1673
        %v1677 = vunpack.c.l.s4 839922192
        %v1678 = vunpack.c.0.s8 %v1677
        %v1679 = vlaneseq
        %v1680 = vshrl.u32 %v1679, 7
        %v1681 = vsub.s32 %v1678, %v1680
        %v1682 = vrot.slane %v1674, %v1681
        %1684 = vset.pattern.permute.xlu0 0
        %1685 = vperm.xlu0 %1684, %v296
        %v1686 = vpop.permute.xlu0 %1685
        %v1689 = vunpack.c.l.s4 839922192
        %v1690 = vunpack.c.0.s8 %v1689
        %v1691 = vlaneseq
        %v1692 = vshrl.u32 %v1691, 7
        %v1693 = vsub.s32 %v1690, %v1692
        %v1694 = vrot.slane %v1686, %v1693
        %1696 = vset.pattern.permute.xlu0 0
        %1697 = vperm.xlu0 %1696, %v297
        %v1698 = vpop.permute.xlu0 %1697
        %v1701 = vunpack.c.l.s4 839922192
        %v1702 = vunpack.c.0.s8 %v1701
        %v1703 = vlaneseq
        %v1704 = vshrl.u32 %v1703, 7
        %v1705 = vsub.s32 %v1702, %v1704
        %v1706 = vrot.slane %v1698, %v1705
        %1708 = vset.pattern.permute.xlu0 0
        %1709 = vperm.xlu0 %1708, %v298
        %v1710 = vpop.permute.xlu0 %1709
        %v1713 = vunpack.c.l.s4 839922192
        %v1714 = vunpack.c.0.s8 %v1713
        %v1715 = vlaneseq
        %v1716 = vshrl.u32 %v1715, 7
        %v1717 = vsub.s32 %v1714, %v1716
        %v1718 = vrot.slane %v1710, %v1717
        %1720 = vset.pattern.permute.xlu0 0
        %1721 = vperm.xlu0 %1720, %v299
        %v1722 = vpop.permute.xlu0 %1721
        %v1725 = vunpack.c.l.s4 839922192
        %v1726 = vunpack.c.0.s8 %v1725
        %v1727 = vlaneseq
        %v1728 = vshrl.u32 %v1727, 7
        %v1729 = vsub.s32 %v1726, %v1728
        %v1730 = vrot.slane %v1722, %v1729
        %1732 = vset.pattern.permute.xlu0 0
        %1733 = vperm.xlu0 %1732, %v300
        %v1734 = vpop.permute.xlu0 %1733
        %v1737 = vunpack.c.l.s4 839922192
        %v1738 = vunpack.c.0.s8 %v1737
        %v1739 = vlaneseq
        %v1740 = vshrl.u32 %v1739, 7
        %v1741 = vsub.s32 %v1738, %v1740
        %v1742 = vrot.slane %v1734, %v1741
        %1744 = vset.pattern.permute.xlu0 0
        %1745 = vperm.xlu0 %1744, %v301
        %v1746 = vpop.permute.xlu0 %1745
        %v1749 = vunpack.c.l.s4 839922192
        %v1750 = vunpack.c.0.s8 %v1749
        %v1751 = vlaneseq
        %v1752 = vshrl.u32 %v1751, 7
        %v1753 = vsub.s32 %v1750, %v1752
        %v1754 = vrot.slane %v1746, %v1753
        %1756 = vset.pattern.permute.xlu0 0
        %1757 = vperm.xlu0 %1756, %v302
        %v1758 = vpop.permute.xlu0 %1757
        %v1761 = vunpack.c.l.s4 839922192
        %v1762 = vunpack.c.0.s8 %v1761
        %v1763 = vlaneseq
        %v1764 = vshrl.u32 %v1763, 7
        %v1765 = vsub.s32 %v1762, %v1764
        %v1766 = vrot.slane %v1758, %v1765
        %1768 = vset.pattern.permute.xlu0 0
        %1769 = vperm.xlu0 %1768, %v303
        %v1770 = vpop.permute.xlu0 %1769
        %v1773 = vunpack.c.l.s4 839922192
        %v1774 = vunpack.c.0.s8 %v1773
        %v1775 = vlaneseq
        %v1776 = vshrl.u32 %v1775, 7
        %v1777 = vsub.s32 %v1774, %v1776
        %v1778 = vrot.slane %v1770, %v1777
        %1780 = vset.pattern.permute.xlu0 0
        %1781 = vperm.xlu0 %1780, %v304
        %v1782 = vpop.permute.xlu0 %1781
        %v1785 = vunpack.c.l.s4 839922192
        %v1786 = vunpack.c.0.s8 %v1785
        %v1787 = vlaneseq
        %v1788 = vshrl.u32 %v1787, 7
        %v1789 = vsub.s32 %v1786, %v1788
        %v1790 = vrot.slane %v1782, %v1789
        %1792 = vset.pattern.permute.xlu0 0
        %1793 = vperm.xlu0 %1792, %v305
        %v1794 = vpop.permute.xlu0 %1793
        %v1797 = vunpack.c.l.s4 839922192
        %v1798 = vunpack.c.0.s8 %v1797
        %v1799 = vlaneseq
        %v1800 = vshrl.u32 %v1799, 7
        %v1801 = vsub.s32 %v1798, %v1800
        %v1802 = vrot.slane %v1794, %v1801
        %1804 = vset.pattern.permute.xlu0 0
        %1805 = vperm.xlu0 %1804, %v306
        %v1806 = vpop.permute.xlu0 %1805
        %v1809 = vunpack.c.l.s4 839922192
        %v1810 = vunpack.c.0.s8 %v1809
        %v1811 = vlaneseq
        %v1812 = vshrl.u32 %v1811, 7
        %v1813 = vsub.s32 %v1810, %v1812
        %v1814 = vrot.slane %v1806, %v1813
        %1816 = vset.pattern.permute.xlu0 0
        %1817 = vperm.xlu0 %1816, %v307
        %v1818 = vpop.permute.xlu0 %1817
        %v1821 = vunpack.c.l.s4 839922192
        %v1822 = vunpack.c.0.s8 %v1821
        %v1823 = vlaneseq
        %v1824 = vshrl.u32 %v1823, 7
        %v1825 = vsub.s32 %v1822, %v1824
        %v1826 = vrot.slane %v1818, %v1825
        %1828 = vset.pattern.permute.xlu0 0
        %1829 = vperm.xlu0 %1828, %v308
        %v1830 = vpop.permute.xlu0 %1829
        %v1833 = vunpack.c.l.s4 839922192
        %v1834 = vunpack.c.0.s8 %v1833
        %v1835 = vlaneseq
        %v1836 = vshrl.u32 %v1835, 7
        %v1837 = vsub.s32 %v1834, %v1836
        %v1838 = vrot.slane %v1830, %v1837
        %1840 = vset.pattern.permute.xlu0 0
        %1841 = vperm.xlu0 %1840, %v309
        %v1842 = vpop.permute.xlu0 %1841
        %v1845 = vunpack.c.l.s4 839922192
        %v1846 = vunpack.c.0.s8 %v1845
        %v1847 = vlaneseq
        %v1848 = vshrl.u32 %v1847, 7
        %v1849 = vsub.s32 %v1846, %v1848
        %v1850 = vrot.slane %v1842, %v1849
        %1852 = vset.pattern.permute.xlu0 0
        %1853 = vperm.xlu0 %1852, %v310
        %v1854 = vpop.permute.xlu0 %1853
        %v1857 = vunpack.c.l.s4 839922192
        %v1858 = vunpack.c.0.s8 %v1857
        %v1859 = vlaneseq
        %v1860 = vshrl.u32 %v1859, 7
        %v1861 = vsub.s32 %v1858, %v1860
        %v1862 = vrot.slane %v1854, %v1861
        %v1895 = vunpack.c.l.b16 %v1490
        %v1896 = vunpack.c.l.b16 %v1502
        %v1897 = vunpack.c.l.b16 %v1514
        %v1898 = vunpack.c.l.b16 %v1526
        %v1899 = vunpack.c.l.b16 %v1538
        %v1900 = vunpack.c.l.b16 %v1550
        %v1901 = vunpack.c.l.b16 %v1562
        %v1902 = vunpack.c.l.b16 %v1574
        %v1903 = vunpack.c.l.b16 %v1586
        %v1904 = vunpack.c.l.b16 %v1598
        %v1905 = vunpack.c.l.b16 %v1610
        %v1906 = vunpack.c.l.b16 %v1622
        %v1907 = vunpack.c.l.b16 %v1634
        %v1908 = vunpack.c.l.b16 %v1646
        %v1909 = vunpack.c.l.b16 %v1658
        %v1910 = vunpack.c.l.b16 %v1670
        %v1911 = vunpack.c.l.b16 %v1682
        %v1912 = vunpack.c.l.b16 %v1694
        %v1913 = vunpack.c.l.b16 %v1706
        %v1914 = vunpack.c.l.b16 %v1718
        %v1915 = vunpack.c.l.b16 %v1730
        %v1916 = vunpack.c.l.b16 %v1742
        %v1917 = vunpack.c.l.b16 %v1754
        %v1918 = vunpack.c.l.b16 %v1766
        %v1919 = vunpack.c.l.b16 %v1778
        %v1920 = vunpack.c.l.b16 %v1790
        %v1921 = vunpack.c.l.b16 %v1802
        %v1922 = vunpack.c.l.b16 %v1814
        %v1923 = vunpack.c.l.b16 %v1826
        %v1924 = vunpack.c.l.b16 %v1838
        %v1925 = vunpack.c.l.b16 %v1850
        %v1926 = vunpack.c.l.b16 %v1862
        %v1927 = vpack.c.b16 %v1896, %v1895
        %v1928 = vpack.c.b16 %v1898, %v1897
        %v1929 = vpack.c.b16 %v1900, %v1899
        %v1930 = vpack.c.b16 %v1902, %v1901
        %v1931 = vpack.c.b16 %v1904, %v1903
        %v1932 = vpack.c.b16 %v1906, %v1905
        %v1933 = vpack.c.b16 %v1908, %v1907
        %v1934 = vpack.c.b16 %v1910, %v1909
        %v1935 = vpack.c.b16 %v1912, %v1911
        %v1936 = vpack.c.b16 %v1914, %v1913
        %v1937 = vpack.c.b16 %v1916, %v1915
        %v1938 = vpack.c.b16 %v1918, %v1917
        %v1939 = vpack.c.b16 %v1920, %v1919
        %v1940 = vpack.c.b16 %v1922, %v1921
        %v1941 = vpack.c.b16 %v1924, %v1923
        %v1942 = vpack.c.b16 %v1926, %v1925
        %v1959 = vadd.bf16 %v1415, %v1927
        %v1960 = vadd.bf16 %v1416, %v1927
        %v1961 = vadd.bf16 %v1417, %v1927
        %v1962 = vadd.bf16 %v1418, %v1927
        %v1963 = vadd.bf16 %v1419, %v1928
        %v1964 = vadd.bf16 %v1420, %v1928
        %v1965 = vadd.bf16 %v1421, %v1928
        %v1966 = vadd.bf16 %v1422, %v1928
        %v1967 = vadd.bf16 %v1423, %v1929
        %v1968 = vadd.bf16 %v1424, %v1929
        %v1969 = vadd.bf16 %v1425, %v1929
        %v1970 = vadd.bf16 %v1426, %v1929
        %v1971 = vadd.bf16 %v1427, %v1930
        %v1972 = vadd.bf16 %v1428, %v1930
        %v1973 = vadd.bf16 %v1429, %v1930
        %v1974 = vadd.bf16 %v1430, %v1930
        %v1975 = vadd.bf16 %v1431, %v1931
        %v1976 = vadd.bf16 %v1432, %v1931
        %v1977 = vadd.bf16 %v1433, %v1931
        %v1978 = vadd.bf16 %v1434, %v1931
        %v1979 = vadd.bf16 %v1435, %v1932
        %v1980 = vadd.bf16 %v1436, %v1932
        %v1981 = vadd.bf16 %v1437, %v1932
        %v1982 = vadd.bf16 %v1438, %v1932
        %v1983 = vadd.bf16 %v1439, %v1933
        %v1984 = vadd.bf16 %v1440, %v1933
        %v1985 = vadd.bf16 %v1441, %v1933
        %v1986 = vadd.bf16 %v1442, %v1933
        %v1987 = vadd.bf16 %v1443, %v1934
        %v1988 = vadd.bf16 %v1444, %v1934
        %v1989 = vadd.bf16 %v1445, %v1934
        %v1990 = vadd.bf16 %v1446, %v1934
        %v1991 = vadd.bf16 %v1447, %v1935
        %v1992 = vadd.bf16 %v1448, %v1935
        %v1993 = vadd.bf16 %v1449, %v1935
        %v1994 = vadd.bf16 %v1450, %v1935
        %v1995 = vadd.bf16 %v1451, %v1936
        %v1996 = vadd.bf16 %v1452, %v1936
        %v1997 = vadd.bf16 %v1453, %v1936
        %v1998 = vadd.bf16 %v1454, %v1936
        %v1999 = vadd.bf16 %v1455, %v1937
        %v2000 = vadd.bf16 %v1456, %v1937
        %v2001 = vadd.bf16 %v1457, %v1937
        %v2002 = vadd.bf16 %v1458, %v1937
        %v2003 = vadd.bf16 %v1459, %v1938
        %v2004 = vadd.bf16 %v1460, %v1938
        %v2005 = vadd.bf16 %v1461, %v1938
        %v2006 = vadd.bf16 %v1462, %v1938
        %v2007 = vadd.bf16 %v1463, %v1939
        %v2008 = vadd.bf16 %v1464, %v1939
        %v2009 = vadd.bf16 %v1465, %v1939
        %v2010 = vadd.bf16 %v1466, %v1939
        %v2011 = vadd.bf16 %v1467, %v1940
        %v2012 = vadd.bf16 %v1468, %v1940
        %v2013 = vadd.bf16 %v1469, %v1940
        %v2014 = vadd.bf16 %v1470, %v1940
        %v2015 = vadd.bf16 %v1471, %v1941
        %v2016 = vadd.bf16 %v1472, %v1941
        %v2017 = vadd.bf16 %v1473, %v1941
        %v2018 = vadd.bf16 %v1474, %v1941
        %v2019 = vadd.bf16 %v1475, %v1942
        %v2020 = vadd.bf16 %v1476, %v1942
        %v2021 = vadd.bf16 %v1477, %v1942
        %v2022 = vadd.bf16 %v1478, %v1942
        %v2023 = vmax.bf16 %v1959, 0
        %v2024 = vmax.bf16 %v1960, 0
        %v2025 = vmax.bf16 %v1961, 0
        %v2026 = vmax.bf16 %v1962, 0
        %v2027 = vmax.bf16 %v1963, 0
        %v2028 = vmax.bf16 %v1964, 0
        %v2029 = vmax.bf16 %v1965, 0
        %v2030 = vmax.bf16 %v1966, 0
        %v2031 = vmax.bf16 %v1967, 0
        %v2032 = vmax.bf16 %v1968, 0
        %v2033 = vmax.bf16 %v1969, 0
        %v2034 = vmax.bf16 %v1970, 0
        %v2035 = vmax.bf16 %v1971, 0
        %v2036 = vmax.bf16 %v1972, 0
        %v2037 = vmax.bf16 %v1973, 0
        %v2038 = vmax.bf16 %v1974, 0
        %v2039 = vmax.bf16 %v1975, 0
        %v2040 = vmax.bf16 %v1976, 0
        %v2041 = vmax.bf16 %v1977, 0
        %v2042 = vmax.bf16 %v1978, 0
        %v2043 = vmax.bf16 %v1979, 0
        %v2044 = vmax.bf16 %v1980, 0
        %v2045 = vmax.bf16 %v1981, 0
        %v2046 = vmax.bf16 %v1982, 0
        %v2047 = vmax.bf16 %v1983, 0
        %v2048 = vmax.bf16 %v1984, 0
        %v2049 = vmax.bf16 %v1985, 0
        %v2050 = vmax.bf16 %v1986, 0
        %v2051 = vmax.bf16 %v1987, 0
        %v2052 = vmax.bf16 %v1988, 0
        %v2053 = vmax.bf16 %v1989, 0
        %v2054 = vmax.bf16 %v1990, 0
        %v2055 = vmax.bf16 %v1991, 0
        %v2056 = vmax.bf16 %v1992, 0
        %v2057 = vmax.bf16 %v1993, 0
        %v2058 = vmax.bf16 %v1994, 0
        %v2059 = vmax.bf16 %v1995, 0
        %v2060 = vmax.bf16 %v1996, 0
        %v2061 = vmax.bf16 %v1997, 0
        %v2062 = vmax.bf16 %v1998, 0
        %v2063 = vmax.bf16 %v1999, 0
        %v2064 = vmax.bf16 %v2000, 0
        %v2065 = vmax.bf16 %v2001, 0
        %v2066 = vmax.bf16 %v2002, 0
        %v2067 = vmax.bf16 %v2003, 0
        %v2068 = vmax.bf16 %v2004, 0
        %v2069 = vmax.bf16 %v2005, 0
        %v2070 = vmax.bf16 %v2006, 0
        %v2071 = vmax.bf16 %v2007, 0
        %v2072 = vmax.bf16 %v2008, 0
        %v2073 = vmax.bf16 %v2009, 0
        %v2074 = vmax.bf16 %v2010, 0
        %v2075 = vmax.bf16 %v2011, 0
        %v2076 = vmax.bf16 %v2012, 0
        %v2077 = vmax.bf16 %v2013, 0
        %v2078 = vmax.bf16 %v2014, 0
        %v2079 = vmax.bf16 %v2015, 0
        %v2080 = vmax.bf16 %v2016, 0
        %v2081 = vmax.bf16 %v2017, 0
        %v2082 = vmax.bf16 %v2018, 0
        %v2083 = vmax.bf16 %v2019, 0
        %v2084 = vmax.bf16 %v2020, 0
        %v2085 = vmax.bf16 %v2021, 0
        %v2086 = vmax.bf16 %v2022, 0
        %v2087 = vld [vmem:[#allocation2] sm:$0xff]
        %v2088 = vld [vmem:[#allocation2 + $0x8] sm:$0xff]
        %v2089 = vld [vmem:[#allocation2 + $0x10] sm:$0xff]
        %v2090 = vld [vmem:[#allocation2 + $0x18] sm:$0xff]
        %v2091 = vld [vmem:[#allocation2 + $0x20] sm:$0xff]
        %v2092 = vld [vmem:[#allocation2 + $0x28] sm:$0xff]
        %v2093 = vld [vmem:[#allocation2 + $0x30] sm:$0xff]
        %v2094 = vld [vmem:[#allocation2 + $0x38] sm:$0xff]
        %v2095 = vld [vmem:[#allocation2 + $0x40] sm:$0xff]
        %v2096 = vld [vmem:[#allocation2 + $0x48] sm:$0xff]
        %v2097 = vld [vmem:[#allocation2 + $0x50] sm:$0xff]
        %v2098 = vld [vmem:[#allocation2 + $0x58] sm:$0xff]
        %v2099 = vld [vmem:[#allocation2 + $0x60] sm:$0xff]
        %v2100 = vld [vmem:[#allocation2 + $0x68] sm:$0xff]
        %v2101 = vld [vmem:[#allocation2 + $0x70] sm:$0xff]
        %v2102 = vld [vmem:[#allocation2 + $0x78] sm:$0xff]
        %v2103 = vld [vmem:[#allocation2 + $0x80] sm:$0xff]
        %v2104 = vld [vmem:[#allocation2 + $0x88] sm:$0xff]
        %v2105 = vld [vmem:[#allocation2 + $0x90] sm:$0xff]
        %v2106 = vld [vmem:[#allocation2 + $0x98] sm:$0xff]
        %v2107 = vld [vmem:[#allocation2 + $0xa0] sm:$0xff]
        %v2108 = vld [vmem:[#allocation2 + $0xa8] sm:$0xff]
        %v2109 = vld [vmem:[#allocation2 + $0xb0] sm:$0xff]
        %v2110 = vld [vmem:[#allocation2 + $0xb8] sm:$0xff]
        %v2111 = vld [vmem:[#allocation2 + $0xc0] sm:$0xff]
        %v2112 = vld [vmem:[#allocation2 + $0xc8] sm:$0xff]
        %v2113 = vld [vmem:[#allocation2 + $0xd0] sm:$0xff]
        %v2114 = vld [vmem:[#allocation2 + $0xd8] sm:$0xff]
        %v2115 = vld [vmem:[#allocation2 + $0xe0] sm:$0xff]
        %v2116 = vld [vmem:[#allocation2 + $0xe8] sm:$0xff]
        %v2117 = vld [vmem:[#allocation2 + $0xf0] sm:$0xff]
        %v2118 = vld [vmem:[#allocation2 + $0xf8] sm:$0xff]
        %v2151 = vunpack.c.l.b16 %v2087
        %v2152 = vunpack.c.h.b16 %v2087
        %v2153 = vunpack.c.l.b16 %v2088
        %v2154 = vunpack.c.h.b16 %v2088
        %v2155 = vunpack.c.l.b16 %v2089
        %v2156 = vunpack.c.h.b16 %v2089
        %v2157 = vunpack.c.l.b16 %v2090
        %v2158 = vunpack.c.h.b16 %v2090
        %v2159 = vunpack.c.l.b16 %v2091
        %v2160 = vunpack.c.h.b16 %v2091
        %v2161 = vunpack.c.l.b16 %v2092
        %v2162 = vunpack.c.h.b16 %v2092
        %v2163 = vunpack.c.l.b16 %v2093
        %v2164 = vunpack.c.h.b16 %v2093
        %v2165 = vunpack.c.l.b16 %v2094
        %v2166 = vunpack.c.h.b16 %v2094
        %v2167 = vunpack.c.l.b16 %v2095
        %v2168 = vunpack.c.h.b16 %v2095
        %v2169 = vunpack.c.l.b16 %v2096
        %v2170 = vunpack.c.h.b16 %v2096
        %v2171 = vunpack.c.l.b16 %v2097
        %v2172 = vunpack.c.h.b16 %v2097
        %v2173 = vunpack.c.l.b16 %v2098
        %v2174 = vunpack.c.h.b16 %v2098
        %v2175 = vunpack.c.l.b16 %v2099
        %v2176 = vunpack.c.h.b16 %v2099
        %v2177 = vunpack.c.l.b16 %v2100
        %v2178 = vunpack.c.h.b16 %v2100
        %v2179 = vunpack.c.l.b16 %v2101
        %v2180 = vunpack.c.h.b16 %v2101
        %v2181 = vunpack.c.l.b16 %v2102
        %v2182 = vunpack.c.h.b16 %v2102
        %v2183 = vunpack.c.l.b16 %v2103
        %v2184 = vunpack.c.h.b16 %v2103
        %v2185 = vunpack.c.l.b16 %v2104
        %v2186 = vunpack.c.h.b16 %v2104
        %v2187 = vunpack.c.l.b16 %v2105
        %v2188 = vunpack.c.h.b16 %v2105
        %v2189 = vunpack.c.l.b16 %v2106
        %v2190 = vunpack.c.h.b16 %v2106
        %v2191 = vunpack.c.l.b16 %v2107
        %v2192 = vunpack.c.h.b16 %v2107
        %v2193 = vunpack.c.l.b16 %v2108
        %v2194 = vunpack.c.h.b16 %v2108
        %v2195 = vunpack.c.l.b16 %v2109
        %v2196 = vunpack.c.h.b16 %v2109
        %v2197 = vunpack.c.l.b16 %v2110
        %v2198 = vunpack.c.h.b16 %v2110
        %v2199 = vunpack.c.l.b16 %v2111
        %v2200 = vunpack.c.h.b16 %v2111
        %v2201 = vunpack.c.l.b16 %v2112
        %v2202 = vunpack.c.h.b16 %v2112
        %v2203 = vunpack.c.l.b16 %v2113
        %v2204 = vunpack.c.h.b16 %v2113
        %v2205 = vunpack.c.l.b16 %v2114
        %v2206 = vunpack.c.h.b16 %v2114
        %v2207 = vunpack.c.l.b16 %v2115
        %v2208 = vunpack.c.h.b16 %v2115
        %v2209 = vunpack.c.l.b16 %v2116
        %v2210 = vunpack.c.h.b16 %v2116
        %v2211 = vunpack.c.l.b16 %v2117
        %v2212 = vunpack.c.h.b16 %v2117
        %v2213 = vunpack.c.l.b16 %v2118
        %v2214 = vunpack.c.h.b16 %v2118
        %v2215 = vpack.c.b16 %v2153, %v2151
        %v2216 = vpack.c.b16 %v2154, %v2152
        %v2217 = vpack.c.b16 %v2157, %v2155
        %v2218 = vpack.c.b16 %v2158, %v2156
        %v2219 = vpack.c.b16 %v2161, %v2159
        %v2220 = vpack.c.b16 %v2162, %v2160
        %v2221 = vpack.c.b16 %v2165, %v2163
        %v2222 = vpack.c.b16 %v2166, %v2164
        %v2223 = vpack.c.b16 %v2169, %v2167
        %v2224 = vpack.c.b16 %v2170, %v2168
        %v2225 = vpack.c.b16 %v2173, %v2171
        %v2226 = vpack.c.b16 %v2174, %v2172
        %v2227 = vpack.c.b16 %v2177, %v2175
        %v2228 = vpack.c.b16 %v2178, %v2176
        %v2229 = vpack.c.b16 %v2181, %v2179
        %v2230 = vpack.c.b16 %v2182, %v2180
        %v2231 = vpack.c.b16 %v2185, %v2183
        %v2232 = vpack.c.b16 %v2186, %v2184
        %v2233 = vpack.c.b16 %v2189, %v2187
        %v2234 = vpack.c.b16 %v2190, %v2188
        %v2235 = vpack.c.b16 %v2193, %v2191
        %v2236 = vpack.c.b16 %v2194, %v2192
        %v2237 = vpack.c.b16 %v2197, %v2195
        %v2238 = vpack.c.b16 %v2198, %v2196
        %v2239 = vpack.c.b16 %v2201, %v2199
        %v2240 = vpack.c.b16 %v2202, %v2200
        %v2241 = vpack.c.b16 %v2205, %v2203
        %v2242 = vpack.c.b16 %v2206, %v2204
        %v2243 = vpack.c.b16 %v2209, %v2207
        %v2244 = vpack.c.b16 %v2210, %v2208
        %v2245 = vpack.c.b16 %v2213, %v2211
        %v2246 = vpack.c.b16 %v2214, %v2212
        %2279 = vmatprep.subr.bf16.mxu0 %v2024
        %2280 = vmatpush1.bf16.msra.mxu0 %v2023
        %2281 = vmatprep.subr.bf16.mxu0 %v2028
        %2282 = vmatpush1.bf16.msra.mxu0 %v2027
        %2283 = vmatprep.subr.bf16.mxu0 %v2032
        %2284 = vmatpush1.bf16.msra.mxu0 %v2031
        %2285 = vmatprep.subr.bf16.mxu0 %v2036
        %2286 = vmatpush1.bf16.msra.mxu0 %v2035
        %2287 = vmatprep.subr.bf16.mxu0 %v2040
        %2288 = vmatpush1.bf16.msra.mxu0 %v2039
        %2289 = vmatprep.subr.bf16.mxu0 %v2044
        %2290 = vmatpush1.bf16.msra.mxu0 %v2043
        %2291 = vmatprep.subr.bf16.mxu0 %v2048
        %2292 = vmatpush1.bf16.msra.mxu0 %v2047
        %2293 = vmatprep.subr.bf16.mxu0 %v2052
        %2294 = vmatpush1.bf16.msra.mxu0 %v2051
        %2295 = vmatprep.subr.bf16.mxu0 %v2056
        %2296 = vmatpush1.bf16.msra.mxu0 %v2055
        %2297 = vmatprep.subr.bf16.mxu0 %v2060
        %2298 = vmatpush1.bf16.msra.mxu0 %v2059
        %2299 = vmatprep.subr.bf16.mxu0 %v2064
        %2300 = vmatpush1.bf16.msra.mxu0 %v2063
        %2301 = vmatprep.subr.bf16.mxu0 %v2068
        %2302 = vmatpush1.bf16.msra.mxu0 %v2067
        %2303 = vmatprep.subr.bf16.mxu0 %v2072
        %2304 = vmatpush1.bf16.msra.mxu0 %v2071
        %2305 = vmatprep.subr.bf16.mxu0 %v2076
        %2306 = vmatpush1.bf16.msra.mxu0 %v2075
        %2307 = vmatprep.subr.bf16.mxu0 %v2080
        %2308 = vmatpush1.bf16.msra.mxu0 %v2079
        %2309 = vmatprep.subr.bf16.mxu0 %v2084
        %2310 = vmatpush1.bf16.msra.mxu0 %v2083
        %2311 = vmatprep.mubr.bf16.mxu0 %v2216
        %2312 = vmatmul.mubr.bf16.gmra.mrb[0].mxu0 %v2215
        %v2313 = vpop.f32.mrb[0].mxu0
        %v2314 = vadd.f32 0.0, %v2313
        %v2315 = vpop.f32.mrb[0].mxu0
        %v2316 = vadd.f32 0.0, %v2315
        %v2317 = vpop.f32.mrb[0].mxu0
        %v2318 = vadd.f32 0.0, %v2317
        %v2319 = vpop.f32.mrb[0].mxu0
        %v2320 = vadd.f32 0.0, %v2319
        %2321 = vmatprep.mubr.bf16.mxu0 %v2218
        %2322 = vmatmul.mubr.bf16.gmra.mrb[0].mxu0 %v2217
        %v2323 = vpop.f32.mrb[0].mxu0
        %v2324 = vadd.f32 0.0, %v2323
        %v2325 = vpop.f32.mrb[0].mxu0
        %v2326 = vadd.f32 0.0, %v2325
        %v2327 = vpop.f32.mrb[0].mxu0
        %v2328 = vadd.f32 0.0, %v2327
        %v2329 = vpop.f32.mrb[0].mxu0
        %v2330 = vadd.f32 0.0, %v2329
        %2331 = vmatprep.mubr.bf16.mxu0 %v2220
        %2332 = vmatmul.mubr.bf16.gmra.mrb[0].mxu0 %v2219
        %v2333 = vpop.f32.mrb[0].mxu0
        %v2334 = vadd.f32 0.0, %v2333
        %v2335 = vpop.f32.mrb[0].mxu0
        %v2336 = vadd.f32 0.0, %v2335
        %v2337 = vpop.f32.mrb[0].mxu0
        %v2338 = vadd.f32 0.0, %v2337
        %v2339 = vpop.f32.mrb[0].mxu0
        %v2340 = vadd.f32 0.0, %v2339
        %2341 = vmatprep.mubr.bf16.mxu0 %v2222
        %2342 = vmatmul.mubr.bf16.gmra.mrb[0].mxu0 %v2221
        %v2343 = vpop.f32.mrb[0].mxu0
        %v2344 = vadd.f32 0.0, %v2343
        %v2345 = vpop.f32.mrb[0].mxu0
        %v2346 = vadd.f32 0.0, %v2345
        %v2347 = vpop.f32.mrb[0].mxu0
        %v2348 = vadd.f32 0.0, %v2347
        %v2349 = vpop.f32.mrb[0].mxu0
        %v2350 = vadd.f32 0.0, %v2349
        %2351 = vmatprep.mubr.bf16.mxu0 %v2224
        %2352 = vmatmul.mubr.bf16.gmra.mrb[0].mxu0 %v2223
        %v2353 = vpop.f32.mrb[0].mxu0
        %v2354 = vadd.f32 0.0, %v2353
        %v2355 = vpop.f32.mrb[0].mxu0
        %v2356 = vadd.f32 0.0, %v2355
        %v2357 = vpop.f32.mrb[0].mxu0
        %v2358 = vadd.f32 0.0, %v2357
        %v2359 = vpop.f32.mrb[0].mxu0
        %v2360 = vadd.f32 0.0, %v2359
        %2361 = vmatprep.mubr.bf16.mxu0 %v2226
        %2362 = vmatmul.mubr.bf16.gmra.mrb[0].mxu0 %v2225
        %v2363 = vpop.f32.mrb[0].mxu0
        %v2364 = vadd.f32 0.0, %v2363
        %v2365 = vpop.f32.mrb[0].mxu0
        %v2366 = vadd.f32 0.0, %v2365
        %v2367 = vpop.f32.mrb[0].mxu0
        %v2368 = vadd.f32 0.0, %v2367
        %v2369 = vpop.f32.mrb[0].mxu0
        %v2370 = vadd.f32 0.0, %v2369
        %2371 = vmatprep.mubr.bf16.mxu0 %v2228
        %2372 = vmatmul.mubr.bf16.gmra.mrb[0].mxu0 %v2227
        %v2373 = vpop.f32.mrb[0].mxu0
        %v2374 = vadd.f32 0.0, %v2373
        %v2375 = vpop.f32.mrb[0].mxu0
        %v2376 = vadd.f32 0.0, %v2375
        %v2377 = vpop.f32.mrb[0].mxu0
        %v2378 = vadd.f32 0.0, %v2377
        %v2379 = vpop.f32.mrb[0].mxu0
        %v2380 = vadd.f32 0.0, %v2379
        %2381 = vmatprep.mubr.bf16.mxu0 %v2230
        %2382 = vmatmul.mubr.bf16.gmra.mrb[0].mxu0 %v2229
        %v2383 = vpop.f32.mrb[0].mxu0
        %v2384 = vadd.f32 0.0, %v2383
        %v2385 = vpop.f32.mrb[0].mxu0
        %v2386 = vadd.f32 0.0, %v2385
        %v2387 = vpop.f32.mrb[0].mxu0
        %v2388 = vadd.f32 0.0, %v2387
        %v2389 = vpop.f32.mrb[0].mxu0
        %v2390 = vadd.f32 0.0, %v2389
        %2391 = vmatprep.mubr.bf16.mxu0 %v2232
        %2392 = vmatmul.mubr.bf16.gmra.mrb[0].mxu0 %v2231
        %v2393 = vpop.f32.mrb[0].mxu0
        %v2394 = vadd.f32 0.0, %v2393
        %v2395 = vpop.f32.mrb[0].mxu0
        %v2396 = vadd.f32 0.0, %v2395
        %v2397 = vpop.f32.mrb[0].mxu0
        %v2398 = vadd.f32 0.0, %v2397
        %v2399 = vpop.f32.mrb[0].mxu0
        %v2400 = vadd.f32 0.0, %v2399
        %2401 = vmatprep.mubr.bf16.mxu0 %v2234
        %2402 = vmatmul.mubr.bf16.gmra.mrb[0].mxu0 %v2233
        %v2403 = vpop.f32.mrb[0].mxu0
        %v2404 = vadd.f32 0.0, %v2403
        %v2405 = vpop.f32.mrb[0].mxu0
        %v2406 = vadd.f32 0.0, %v2405
        %v2407 = vpop.f32.mrb[0].mxu0
        %v2408 = vadd.f32 0.0, %v2407
        %v2409 = vpop.f32.mrb[0].mxu0
        %v2410 = vadd.f32 0.0, %v2409
        %2411 = vmatprep.mubr.bf16.mxu0 %v2236
        %2412 = vmatmul.mubr.bf16.gmra.mrb[0].mxu0 %v2235
        %v2413 = vpop.f32.mrb[0].mxu0
        %v2414 = vadd.f32 0.0, %v2413
        %v2415 = vpop.f32.mrb[0].mxu0
        %v2416 = vadd.f32 0.0, %v2415
        %v2417 = vpop.f32.mrb[0].mxu0
        %v2418 = vadd.f32 0.0, %v2417
        %v2419 = vpop.f32.mrb[0].mxu0
        %v2420 = vadd.f32 0.0, %v2419
        %2421 = vmatprep.mubr.bf16.mxu0 %v2238
        %2422 = vmatmul.mubr.bf16.gmra.mrb[0].mxu0 %v2237
        %v2423 = vpop.f32.mrb[0].mxu0
        %v2424 = vadd.f32 0.0, %v2423
        %v2425 = vpop.f32.mrb[0].mxu0
        %v2426 = vadd.f32 0.0, %v2425
        %v2427 = vpop.f32.mrb[0].mxu0
        %v2428 = vadd.f32 0.0, %v2427
        %v2429 = vpop.f32.mrb[0].mxu0
        %v2430 = vadd.f32 0.0, %v2429
        %2431 = vmatprep.mubr.bf16.mxu0 %v2240
        %2432 = vmatmul.mubr.bf16.gmra.mrb[0].mxu0 %v2239
        %v2433 = vpop.f32.mrb[0].mxu0
        %v2434 = vadd.f32 0.0, %v2433
        %v2435 = vpop.f32.mrb[0].mxu0
        %v2436 = vadd.f32 0.0, %v2435
        %v2437 = vpop.f32.mrb[0].mxu0
        %v2438 = vadd.f32 0.0, %v2437
        %v2439 = vpop.f32.mrb[0].mxu0
        %v2440 = vadd.f32 0.0, %v2439
        %2441 = vmatprep.mubr.bf16.mxu0 %v2242
        %2442 = vmatmul.mubr.bf16.gmra.mrb[0].mxu0 %v2241
        %v2443 = vpop.f32.mrb[0].mxu0
        %v2444 = vadd.f32 0.0, %v2443
        %v2445 = vpop.f32.mrb[0].mxu0
        %v2446 = vadd.f32 0.0, %v2445
        %v2447 = vpop.f32.mrb[0].mxu0
        %v2448 = vadd.f32 0.0, %v2447
        %v2449 = vpop.f32.mrb[0].mxu0
        %v2450 = vadd.f32 0.0, %v2449
        %2451 = vmatprep.mubr.bf16.mxu0 %v2244
        %2452 = vmatmul.mubr.bf16.gmra.mrb[0].mxu0 %v2243
        %v2453 = vpop.f32.mrb[0].mxu0
        %v2454 = vadd.f32 0.0, %v2453
        %v2455 = vpop.f32.mrb[0].mxu0
        %v2456 = vadd.f32 0.0, %v2455
        %v2457 = vpop.f32.mrb[0].mxu0
        %v2458 = vadd.f32 0.0, %v2457
        %v2459 = vpop.f32.mrb[0].mxu0
        %v2460 = vadd.f32 0.0, %v2459
        %2461 = vmatprep.mubr.bf16.mxu0 %v2246
        %2462 = vmatmul.mubr.bf16.gmra.mrb[0].mxu0 %v2245
        %v2463 = vpop.f32.mrb[0].mxu0
        %v2464 = vadd.f32 0.0, %v2463
        %v2465 = vpop.f32.mrb[0].mxu0
        %v2466 = vadd.f32 0.0, %v2465
        %v2467 = vpop.f32.mrb[0].mxu0
        %v2468 = vadd.f32 0.0, %v2467
        %v2469 = vpop.f32.mrb[0].mxu0
        %v2470 = vadd.f32 0.0, %v2469
        %2471 = vdwg.mxu0
        %2472 = vmatprep.subr.bf16.mxu0 %v2026
        %2473 = vmatpush1.bf16.msra.mxu0 %v2025
        %2474 = vmatprep.subr.bf16.mxu0 %v2030
        %2475 = vmatpush1.bf16.msra.mxu0 %v2029
        %2476 = vmatprep.subr.bf16.mxu0 %v2034
        %2477 = vmatpush1.bf16.msra.mxu0 %v2033
        %2478 = vmatprep.subr.bf16.mxu0 %v2038
        %2479 = vmatpush1.bf16.msra.mxu0 %v2037
        %2480 = vmatprep.subr.bf16.mxu0 %v2042
        %2481 = vmatpush1.bf16.msra.mxu0 %v2041
        %2482 = vmatprep.subr.bf16.mxu0 %v2046
        %2483 = vmatpush1.bf16.msra.mxu0 %v2045
        %2484 = vmatprep.subr.bf16.mxu0 %v2050
        %2485 = vmatpush1.bf16.msra.mxu0 %v2049
        %2486 = vmatprep.subr.bf16.mxu0 %v2054
        %2487 = vmatpush1.bf16.msra.mxu0 %v2053
        %2488 = vmatprep.subr.bf16.mxu0 %v2058
        %2489 = vmatpush1.bf16.msra.mxu0 %v2057
        %2490 = vmatprep.subr.bf16.mxu0 %v2062
        %2491 = vmatpush1.bf16.msra.mxu0 %v2061
        %2492 = vmatprep.subr.bf16.mxu0 %v2066
        %2493 = vmatpush1.bf16.msra.mxu0 %v2065
        %2494 = vmatprep.subr.bf16.mxu0 %v2070
        %2495 = vmatpush1.bf16.msra.mxu0 %v2069
        %2496 = vmatprep.subr.bf16.mxu0 %v2074
        %2497 = vmatpush1.bf16.msra.mxu0 %v2073
        %2498 = vmatprep.subr.bf16.mxu0 %v2078
        %2499 = vmatpush1.bf16.msra.mxu0 %v2077
        %2500 = vmatprep.subr.bf16.mxu0 %v2082
        %2501 = vmatpush1.bf16.msra.mxu0 %v2081
        %2502 = vmatprep.subr.bf16.mxu0 %v2086
        %2503 = vmatpush1.bf16.msra.mxu0 %v2085
        %2504 = vmatprep.mubr.bf16.mxu0 %v2216
        %2505 = vmatmul.mubr.bf16.gmra.mrb[0].mxu0 %v2215
        %v2506 = vpop.f32.mrb[0].mxu0
        %v2507 = vadd.f32 0.0, %v2506
        %v2508 = vpop.f32.mrb[0].mxu0
        %v2509 = vadd.f32 0.0, %v2508
        %v2510 = vpop.f32.mrb[0].mxu0
        %v2511 = vadd.f32 0.0, %v2510
        %v2512 = vpop.f32.mrb[0].mxu0
        %v2513 = vadd.f32 0.0, %v2512
        %2514 = vmatprep.mubr.bf16.mxu0 %v2218
        %2515 = vmatmul.mubr.bf16.gmra.mrb[0].mxu0 %v2217
        %v2516 = vpop.f32.mrb[0].mxu0
        %v2517 = vadd.f32 0.0, %v2516
        %v2518 = vpop.f32.mrb[0].mxu0
        %v2519 = vadd.f32 0.0, %v2518
        %v2520 = vpop.f32.mrb[0].mxu0
        %v2521 = vadd.f32 0.0, %v2520
        %v2522 = vpop.f32.mrb[0].mxu0
        %v2523 = vadd.f32 0.0, %v2522
        %2524 = vmatprep.mubr.bf16.mxu0 %v2220
        %2525 = vmatmul.mubr.bf16.gmra.mrb[0].mxu0 %v2219
        %v2526 = vpop.f32.mrb[0].mxu0
        %v2527 = vadd.f32 0.0, %v2526
        %v2528 = vpop.f32.mrb[0].mxu0
        %v2529 = vadd.f32 0.0, %v2528
        %v2530 = vpop.f32.mrb[0].mxu0
        %v2531 = vadd.f32 0.0, %v2530
        %v2532 = vpop.f32.mrb[0].mxu0
        %v2533 = vadd.f32 0.0, %v2532
        %2534 = vmatprep.mubr.bf16.mxu0 %v2222
        %2535 = vmatmul.mubr.bf16.gmra.mrb[0].mxu0 %v2221
        %v2536 = vpop.f32.mrb[0].mxu0
        %v2537 = vadd.f32 0.0, %v2536
        %v2538 = vpop.f32.mrb[0].mxu0
        %v2539 = vadd.f32 0.0, %v2538
        %v2540 = vpop.f32.mrb[0].mxu0
        %v2541 = vadd.f32 0.0, %v2540
        %v2542 = vpop.f32.mrb[0].mxu0
        %v2543 = vadd.f32 0.0, %v2542
        %2544 = vmatprep.mubr.bf16.mxu0 %v2224
        %2545 = vmatmul.mubr.bf16.gmra.mrb[0].mxu0 %v2223
        %v2546 = vpop.f32.mrb[0].mxu0
        %v2547 = vadd.f32 0.0, %v2546
        %v2548 = vpop.f32.mrb[0].mxu0
        %v2549 = vadd.f32 0.0, %v2548
        %v2550 = vpop.f32.mrb[0].mxu0
        %v2551 = vadd.f32 0.0, %v2550
        %v2552 = vpop.f32.mrb[0].mxu0
        %v2553 = vadd.f32 0.0, %v2552
        %2554 = vmatprep.mubr.bf16.mxu0 %v2226
        %2555 = vmatmul.mubr.bf16.gmra.mrb[0].mxu0 %v2225
        %v2556 = vpop.f32.mrb[0].mxu0
        %v2557 = vadd.f32 0.0, %v2556
        %v2558 = vpop.f32.mrb[0].mxu0
        %v2559 = vadd.f32 0.0, %v2558
        %v2560 = vpop.f32.mrb[0].mxu0
        %v2561 = vadd.f32 0.0, %v2560
        %v2562 = vpop.f32.mrb[0].mxu0
        %v2563 = vadd.f32 0.0, %v2562
        %2564 = vmatprep.mubr.bf16.mxu0 %v2228
        %2565 = vmatmul.mubr.bf16.gmra.mrb[0].mxu0 %v2227
        %v2566 = vpop.f32.mrb[0].mxu0
        %v2567 = vadd.f32 0.0, %v2566
        %v2568 = vpop.f32.mrb[0].mxu0
        %v2569 = vadd.f32 0.0, %v2568
        %v2570 = vpop.f32.mrb[0].mxu0
        %v2571 = vadd.f32 0.0, %v2570
        %v2572 = vpop.f32.mrb[0].mxu0
        %v2573 = vadd.f32 0.0, %v2572
        %2574 = vmatprep.mubr.bf16.mxu0 %v2230
        %2575 = vmatmul.mubr.bf16.gmra.mrb[0].mxu0 %v2229
        %v2576 = vpop.f32.mrb[0].mxu0
        %v2577 = vadd.f32 0.0, %v2576
        %v2578 = vpop.f32.mrb[0].mxu0
        %v2579 = vadd.f32 0.0, %v2578
        %v2580 = vpop.f32.mrb[0].mxu0
        %v2581 = vadd.f32 0.0, %v2580
        %v2582 = vpop.f32.mrb[0].mxu0
        %v2583 = vadd.f32 0.0, %v2582
        %2584 = vmatprep.mubr.bf16.mxu0 %v2232
        %2585 = vmatmul.mubr.bf16.gmra.mrb[0].mxu0 %v2231
        %v2586 = vpop.f32.mrb[0].mxu0
        %v2587 = vadd.f32 0.0, %v2586
        %v2588 = vpop.f32.mrb[0].mxu0
        %v2589 = vadd.f32 0.0, %v2588
        %v2590 = vpop.f32.mrb[0].mxu0
        %v2591 = vadd.f32 0.0, %v2590
        %v2592 = vpop.f32.mrb[0].mxu0
        %v2593 = vadd.f32 0.0, %v2592
        %2594 = vmatprep.mubr.bf16.mxu0 %v2234
        %2595 = vmatmul.mubr.bf16.gmra.mrb[0].mxu0 %v2233
        %v2596 = vpop.f32.mrb[0].mxu0
        %v2597 = vadd.f32 0.0, %v2596
        %v2598 = vpop.f32.mrb[0].mxu0
        %v2599 = vadd.f32 0.0, %v2598
        %v2600 = vpop.f32.mrb[0].mxu0
        %v2601 = vadd.f32 0.0, %v2600
        %v2602 = vpop.f32.mrb[0].mxu0
        %v2603 = vadd.f32 0.0, %v2602
        %2604 = vmatprep.mubr.bf16.mxu0 %v2236
        %2605 = vmatmul.mubr.bf16.gmra.mrb[0].mxu0 %v2235
        %v2606 = vpop.f32.mrb[0].mxu0
        %v2607 = vadd.f32 0.0, %v2606
        %v2608 = vpop.f32.mrb[0].mxu0
        %v2609 = vadd.f32 0.0, %v2608
        %v2610 = vpop.f32.mrb[0].mxu0
        %v2611 = vadd.f32 0.0, %v2610
        %v2612 = vpop.f32.mrb[0].mxu0
        %v2613 = vadd.f32 0.0, %v2612
        %2614 = vmatprep.mubr.bf16.mxu0 %v2238
        %2615 = vmatmul.mubr.bf16.gmra.mrb[0].mxu0 %v2237
        %v2616 = vpop.f32.mrb[0].mxu0
        %v2617 = vadd.f32 0.0, %v2616
        %v2618 = vpop.f32.mrb[0].mxu0
        %v2619 = vadd.f32 0.0, %v2618
        %v2620 = vpop.f32.mrb[0].mxu0
        %v2621 = vadd.f32 0.0, %v2620
        %v2622 = vpop.f32.mrb[0].mxu0
        %v2623 = vadd.f32 0.0, %v2622
        %2624 = vmatprep.mubr.bf16.mxu0 %v2240
        %2625 = vmatmul.mubr.bf16.gmra.mrb[0].mxu0 %v2239
        %v2626 = vpop.f32.mrb[0].mxu0
        %v2627 = vadd.f32 0.0, %v2626
        %v2628 = vpop.f32.mrb[0].mxu0
        %v2629 = vadd.f32 0.0, %v2628
        %v2630 = vpop.f32.mrb[0].mxu0
        %v2631 = vadd.f32 0.0, %v2630
        %v2632 = vpop.f32.mrb[0].mxu0
        %v2633 = vadd.f32 0.0, %v2632
        %2634 = vmatprep.mubr.bf16.mxu0 %v2242
        %2635 = vmatmul.mubr.bf16.gmra.mrb[0].mxu0 %v2241
        %v2636 = vpop.f32.mrb[0].mxu0
        %v2637 = vadd.f32 0.0, %v2636
        %v2638 = vpop.f32.mrb[0].mxu0
        %v2639 = vadd.f32 0.0, %v2638
        %v2640 = vpop.f32.mrb[0].mxu0
        %v2641 = vadd.f32 0.0, %v2640
        %v2642 = vpop.f32.mrb[0].mxu0
        %v2643 = vadd.f32 0.0, %v2642
        %2644 = vmatprep.mubr.bf16.mxu0 %v2244
        %2645 = vmatmul.mubr.bf16.gmra.mrb[0].mxu0 %v2243
        %v2646 = vpop.f32.mrb[0].mxu0
        %v2647 = vadd.f32 0.0, %v2646
        %v2648 = vpop.f32.mrb[0].mxu0
        %v2649 = vadd.f32 0.0, %v2648
        %v2650 = vpop.f32.mrb[0].mxu0
        %v2651 = vadd.f32 0.0, %v2650
        %v2652 = vpop.f32.mrb[0].mxu0
        %v2653 = vadd.f32 0.0, %v2652
        %2654 = vmatprep.mubr.bf16.mxu0 %v2246
        %2655 = vmatmul.mubr.bf16.gmra.mrb[0].mxu0 %v2245
        %v2656 = vpop.f32.mrb[0].mxu0
        %v2657 = vadd.f32 0.0, %v2656
        %v2658 = vpop.f32.mrb[0].mxu0
        %v2659 = vadd.f32 0.0, %v2658
        %v2660 = vpop.f32.mrb[0].mxu0
        %v2661 = vadd.f32 0.0, %v2660
        %v2662 = vpop.f32.mrb[0].mxu0
        %v2663 = vadd.f32 0.0, %v2662
        %2664 = vdwg.mxu0
        %v2665 = vpack.c.bf16 %v2318, %v2314
        %v2666 = vpack.c.bf16 %v2320, %v2316
        %v2667 = vpack.c.bf16 %v2511, %v2507
        %v2668 = vpack.c.bf16 %v2513, %v2509
        %v2669 = vpack.c.bf16 %v2328, %v2324
        %v2670 = vpack.c.bf16 %v2330, %v2326
        %v2671 = vpack.c.bf16 %v2521, %v2517
        %v2672 = vpack.c.bf16 %v2523, %v2519
        %v2673 = vpack.c.bf16 %v2338, %v2334
        %v2674 = vpack.c.bf16 %v2340, %v2336
        %v2675 = vpack.c.bf16 %v2531, %v2527
        %v2676 = vpack.c.bf16 %v2533, %v2529
        %v2677 = vpack.c.bf16 %v2348, %v2344
        %v2678 = vpack.c.bf16 %v2350, %v2346
        %v2679 = vpack.c.bf16 %v2541, %v2537
        %v2680 = vpack.c.bf16 %v2543, %v2539
        %v2681 = vpack.c.bf16 %v2358, %v2354
        %v2682 = vpack.c.bf16 %v2360, %v2356
        %v2683 = vpack.c.bf16 %v2551, %v2547
        %v2684 = vpack.c.bf16 %v2553, %v2549
        %v2685 = vpack.c.bf16 %v2368, %v2364
        %v2686 = vpack.c.bf16 %v2370, %v2366
        %v2687 = vpack.c.bf16 %v2561, %v2557
        %v2688 = vpack.c.bf16 %v2563, %v2559
        %v2689 = vpack.c.bf16 %v2378, %v2374
        %v2690 = vpack.c.bf16 %v2380, %v2376
        %v2691 = vpack.c.bf16 %v2571, %v2567
        %v2692 = vpack.c.bf16 %v2573, %v2569
        %v2693 = vpack.c.bf16 %v2388, %v2384
        %v2694 = vpack.c.bf16 %v2390, %v2386
        %v2695 = vpack.c.bf16 %v2581, %v2577
        %v2696 = vpack.c.bf16 %v2583, %v2579
        %v2697 = vpack.c.bf16 %v2398, %v2394
        %v2698 = vpack.c.bf16 %v2400, %v2396
        %v2699 = vpack.c.bf16 %v2591, %v2587
        %v2700 = vpack.c.bf16 %v2593, %v2589
        %v2701 = vpack.c.bf16 %v2408, %v2404
        %v2702 = vpack.c.bf16 %v2410, %v2406
        %v2703 = vpack.c.bf16 %v2601, %v2597
        %v2704 = vpack.c.bf16 %v2603, %v2599
        %v2705 = vpack.c.bf16 %v2418, %v2414
        %v2706 = vpack.c.bf16 %v2420, %v2416
        %v2707 = vpack.c.bf16 %v2611, %v2607
        %v2708 = vpack.c.bf16 %v2613, %v2609
        %v2709 = vpack.c.bf16 %v2428, %v2424
        %v2710 = vpack.c.bf16 %v2430, %v2426
        %v2711 = vpack.c.bf16 %v2621, %v2617
        %v2712 = vpack.c.bf16 %v2623, %v2619
        %v2713 = vpack.c.bf16 %v2438, %v2434
        %v2714 = vpack.c.bf16 %v2440, %v2436
        %v2715 = vpack.c.bf16 %v2631, %v2627
        %v2716 = vpack.c.bf16 %v2633, %v2629
        %v2717 = vpack.c.bf16 %v2448, %v2444
        %v2718 = vpack.c.bf16 %v2450, %v2446
        %v2719 = vpack.c.bf16 %v2641, %v2637
        %v2720 = vpack.c.bf16 %v2643, %v2639
        %v2721 = vpack.c.bf16 %v2458, %v2454
        %v2722 = vpack.c.bf16 %v2460, %v2456
        %v2723 = vpack.c.bf16 %v2651, %v2647
        %v2724 = vpack.c.bf16 %v2653, %v2649
        %v2725 = vpack.c.bf16 %v2468, %v2464
        %v2726 = vpack.c.bf16 %v2470, %v2466
        %v2727 = vpack.c.bf16 %v2661, %v2657
        %v2728 = vpack.c.bf16 %v2663, %v2659
        %2729 = vset.pattern.permute.xlu0 1
        %2730 = vperm.xlu0 %2729, %v279
        %v2731 = vpop.permute.xlu0 %2730
        %v2734 = vunpack.c.l.s4 839922192
        %v2735 = vunpack.c.0.s8 %v2734
        %v2736 = vlaneseq
        %v2737 = vshrl.u32 %v2736, 7
        %v2738 = vsub.s32 %v2735, %v2737
        %v2739 = vrot.slane %v2731, %v2738
        %2740 = vset.pattern.permute.xlu0 1
        %2741 = vperm.xlu0 %2740, %v280
        %v2742 = vpop.permute.xlu0 %2741
        %v2745 = vunpack.c.l.s4 839922192
        %v2746 = vunpack.c.0.s8 %v2745
        %v2747 = vlaneseq
        %v2748 = vshrl.u32 %v2747, 7
        %v2749 = vsub.s32 %v2746, %v2748
        %v2750 = vrot.slane %v2742, %v2749
        %2751 = vset.pattern.permute.xlu0 1
        %2752 = vperm.xlu0 %2751, %v281
        %v2753 = vpop.permute.xlu0 %2752
        %v2756 = vunpack.c.l.s4 839922192
        %v2757 = vunpack.c.0.s8 %v2756
        %v2758 = vlaneseq
        %v2759 = vshrl.u32 %v2758, 7
        %v2760 = vsub.s32 %v2757, %v2759
        %v2761 = vrot.slane %v2753, %v2760
        %2762 = vset.pattern.permute.xlu0 1
        %2763 = vperm.xlu0 %2762, %v282
        %v2764 = vpop.permute.xlu0 %2763
        %v2767 = vunpack.c.l.s4 839922192
        %v2768 = vunpack.c.0.s8 %v2767
        %v2769 = vlaneseq
        %v2770 = vshrl.u32 %v2769, 7
        %v2771 = vsub.s32 %v2768, %v2770
        %v2772 = vrot.slane %v2764, %v2771
        %2773 = vset.pattern.permute.xlu0 1
        %2774 = vperm.xlu0 %2773, %v283
        %v2775 = vpop.permute.xlu0 %2774
        %v2778 = vunpack.c.l.s4 839922192
        %v2779 = vunpack.c.0.s8 %v2778
        %v2780 = vlaneseq
        %v2781 = vshrl.u32 %v2780, 7
        %v2782 = vsub.s32 %v2779, %v2781
        %v2783 = vrot.slane %v2775, %v2782
        %2784 = vset.pattern.permute.xlu0 1
        %2785 = vperm.xlu0 %2784, %v284
        %v2786 = vpop.permute.xlu0 %2785
        %v2789 = vunpack.c.l.s4 839922192
        %v2790 = vunpack.c.0.s8 %v2789
        %v2791 = vlaneseq
        %v2792 = vshrl.u32 %v2791, 7
        %v2793 = vsub.s32 %v2790, %v2792
        %v2794 = vrot.slane %v2786, %v2793
        %2795 = vset.pattern.permute.xlu0 1
        %2796 = vperm.xlu0 %2795, %v285
        %v2797 = vpop.permute.xlu0 %2796
        %v2800 = vunpack.c.l.s4 839922192
        %v2801 = vunpack.c.0.s8 %v2800
        %v2802 = vlaneseq
        %v2803 = vshrl.u32 %v2802, 7
        %v2804 = vsub.s32 %v2801, %v2803
        %v2805 = vrot.slane %v2797, %v2804
        %2806 = vset.pattern.permute.xlu0 1
        %2807 = vperm.xlu0 %2806, %v286
        %v2808 = vpop.permute.xlu0 %2807
        %v2811 = vunpack.c.l.s4 839922192
        %v2812 = vunpack.c.0.s8 %v2811
        %v2813 = vlaneseq
        %v2814 = vshrl.u32 %v2813, 7
        %v2815 = vsub.s32 %v2812, %v2814
        %v2816 = vrot.slane %v2808, %v2815
        %2817 = vset.pattern.permute.xlu0 1
        %2818 = vperm.xlu0 %2817, %v287
        %v2819 = vpop.permute.xlu0 %2818
        %v2822 = vunpack.c.l.s4 839922192
        %v2823 = vunpack.c.0.s8 %v2822
        %v2824 = vlaneseq
        %v2825 = vshrl.u32 %v2824, 7
        %v2826 = vsub.s32 %v2823, %v2825
        %v2827 = vrot.slane %v2819, %v2826
        %2828 = vset.pattern.permute.xlu0 1
        %2829 = vperm.xlu0 %2828, %v288
        %v2830 = vpop.permute.xlu0 %2829
        %v2833 = vunpack.c.l.s4 839922192
        %v2834 = vunpack.c.0.s8 %v2833
        %v2835 = vlaneseq
        %v2836 = vshrl.u32 %v2835, 7
        %v2837 = vsub.s32 %v2834, %v2836
        %v2838 = vrot.slane %v2830, %v2837
        %2839 = vset.pattern.permute.xlu0 1
        %2840 = vperm.xlu0 %2839, %v289
        %v2841 = vpop.permute.xlu0 %2840
        %v2844 = vunpack.c.l.s4 839922192
        %v2845 = vunpack.c.0.s8 %v2844
        %v2846 = vlaneseq
        %v2847 = vshrl.u32 %v2846, 7
        %v2848 = vsub.s32 %v2845, %v2847
        %v2849 = vrot.slane %v2841, %v2848
        %2850 = vset.pattern.permute.xlu0 1
        %2851 = vperm.xlu0 %2850, %v290
        %v2852 = vpop.permute.xlu0 %2851
        %v2855 = vunpack.c.l.s4 839922192
        %v2856 = vunpack.c.0.s8 %v2855
        %v2857 = vlaneseq
        %v2858 = vshrl.u32 %v2857, 7
        %v2859 = vsub.s32 %v2856, %v2858
        %v2860 = vrot.slane %v2852, %v2859
        %2861 = vset.pattern.permute.xlu0 1
        %2862 = vperm.xlu0 %2861, %v291
        %v2863 = vpop.permute.xlu0 %2862
        %v2866 = vunpack.c.l.s4 839922192
        %v2867 = vunpack.c.0.s8 %v2866
        %v2868 = vlaneseq
        %v2869 = vshrl.u32 %v2868, 7
        %v2870 = vsub.s32 %v2867, %v2869
        %v2871 = vrot.slane %v2863, %v2870
        %2872 = vset.pattern.permute.xlu0 1
        %2873 = vperm.xlu0 %2872, %v292
        %v2874 = vpop.permute.xlu0 %2873
        %v2877 = vunpack.c.l.s4 839922192
        %v2878 = vunpack.c.0.s8 %v2877
        %v2879 = vlaneseq
        %v2880 = vshrl.u32 %v2879, 7
        %v2881 = vsub.s32 %v2878, %v2880
        %v2882 = vrot.slane %v2874, %v2881
        %2883 = vset.pattern.permute.xlu0 1
        %2884 = vperm.xlu0 %2883, %v293
        %v2885 = vpop.permute.xlu0 %2884
        %v2888 = vunpack.c.l.s4 839922192
        %v2889 = vunpack.c.0.s8 %v2888
        %v2890 = vlaneseq
        %v2891 = vshrl.u32 %v2890, 7
        %v2892 = vsub.s32 %v2889, %v2891
        %v2893 = vrot.slane %v2885, %v2892
        %2894 = vset.pattern.permute.xlu0 1
        %2895 = vperm.xlu0 %2894, %v294
        %v2896 = vpop.permute.xlu0 %2895
        %v2899 = vunpack.c.l.s4 839922192
        %v2900 = vunpack.c.0.s8 %v2899
        %v2901 = vlaneseq
        %v2902 = vshrl.u32 %v2901, 7
        %v2903 = vsub.s32 %v2900, %v2902
        %v2904 = vrot.slane %v2896, %v2903
        %2905 = vset.pattern.permute.xlu0 1
        %2906 = vperm.xlu0 %2905, %v295
        %v2907 = vpop.permute.xlu0 %2906
        %v2910 = vunpack.c.l.s4 839922192
        %v2911 = vunpack.c.0.s8 %v2910
        %v2912 = vlaneseq
        %v2913 = vshrl.u32 %v2912, 7
        %v2914 = vsub.s32 %v2911, %v2913
        %v2915 = vrot.slane %v2907, %v2914
        %2916 = vset.pattern.permute.xlu0 1
        %2917 = vperm.xlu0 %2916, %v296
        %v2918 = vpop.permute.xlu0 %2917
        %v2921 = vunpack.c.l.s4 839922192
        %v2922 = vunpack.c.0.s8 %v2921
        %v2923 = vlaneseq
        %v2924 = vshrl.u32 %v2923, 7
        %v2925 = vsub.s32 %v2922, %v2924
        %v2926 = vrot.slane %v2918, %v2925
        %2927 = vset.pattern.permute.xlu0 1
        %2928 = vperm.xlu0 %2927, %v297
        %v2929 = vpop.permute.xlu0 %2928
        %v2932 = vunpack.c.l.s4 839922192
        %v2933 = vunpack.c.0.s8 %v2932
        %v2934 = vlaneseq
        %v2935 = vshrl.u32 %v2934, 7
        %v2936 = vsub.s32 %v2933, %v2935
        %v2937 = vrot.slane %v2929, %v2936
        %2938 = vset.pattern.permute.xlu0 1
        %2939 = vperm.xlu0 %2938, %v298
        %v2940 = vpop.permute.xlu0 %2939
        %v2943 = vunpack.c.l.s4 839922192
        %v2944 = vunpack.c.0.s8 %v2943
        %v2945 = vlaneseq
        %v2946 = vshrl.u32 %v2945, 7
        %v2947 = vsub.s32 %v2944, %v2946
        %v2948 = vrot.slane %v2940, %v2947
        %2949 = vset.pattern.permute.xlu0 1
        %2950 = vperm.xlu0 %2949, %v299
        %v2951 = vpop.permute.xlu0 %2950
        %v2954 = vunpack.c.l.s4 839922192
        %v2955 = vunpack.c.0.s8 %v2954
        %v2956 = vlaneseq
        %v2957 = vshrl.u32 %v2956, 7
        %v2958 = vsub.s32 %v2955, %v2957
        %v2959 = vrot.slane %v2951, %v2958
        %2960 = vset.pattern.permute.xlu0 1
        %2961 = vperm.xlu0 %2960, %v300
        %v2962 = vpop.permute.xlu0 %2961
        %v2965 = vunpack.c.l.s4 839922192
        %v2966 = vunpack.c.0.s8 %v2965
        %v2967 = vlaneseq
        %v2968 = vshrl.u32 %v2967, 7
        %v2969 = vsub.s32 %v2966, %v2968
        %v2970 = vrot.slane %v2962, %v2969
        %2971 = vset.pattern.permute.xlu0 1
        %2972 = vperm.xlu0 %2971, %v301
        %v2973 = vpop.permute.xlu0 %2972
        %v2976 = vunpack.c.l.s4 839922192
        %v2977 = vunpack.c.0.s8 %v2976
        %v2978 = vlaneseq
        %v2979 = vshrl.u32 %v2978, 7
        %v2980 = vsub.s32 %v2977, %v2979
        %v2981 = vrot.slane %v2973, %v2980
        %2982 = vset.pattern.permute.xlu0 1
        %2983 = vperm.xlu0 %2982, %v302
        %v2984 = vpop.permute.xlu0 %2983
        %v2987 = vunpack.c.l.s4 839922192
        %v2988 = vunpack.c.0.s8 %v2987
        %v2989 = vlaneseq
        %v2990 = vshrl.u32 %v2989, 7
        %v2991 = vsub.s32 %v2988, %v2990
        %v2992 = vrot.slane %v2984, %v2991
        %2993 = vset.pattern.permute.xlu0 1
        %2994 = vperm.xlu0 %2993, %v303
        %v2995 = vpop.permute.xlu0 %2994
        %v2998 = vunpack.c.l.s4 839922192
        %v2999 = vunpack.c.0.s8 %v2998
        %v3000 = vlaneseq
        %v3001 = vshrl.u32 %v3000, 7
        %v3002 = vsub.s32 %v2999, %v3001
        %v3003 = vrot.slane %v2995, %v3002
        %3004 = vset.pattern.permute.xlu0 1
        %3005 = vperm.xlu0 %3004, %v304
        %v3006 = vpop.permute.xlu0 %3005
        %v3009 = vunpack.c.l.s4 839922192
        %v3010 = vunpack.c.0.s8 %v3009
        %v3011 = vlaneseq
        %v3012 = vshrl.u32 %v3011, 7
        %v3013 = vsub.s32 %v3010, %v3012
        %v3014 = vrot.slane %v3006, %v3013
        %3015 = vset.pattern.permute.xlu0 1
        %3016 = vperm.xlu0 %3015, %v305
        %v3017 = vpop.permute.xlu0 %3016
        %v3020 = vunpack.c.l.s4 839922192
        %v3021 = vunpack.c.0.s8 %v3020
        %v3022 = vlaneseq
        %v3023 = vshrl.u32 %v3022, 7
        %v3024 = vsub.s32 %v3021, %v3023
        %v3025 = vrot.slane %v3017, %v3024
        %3026 = vset.pattern.permute.xlu0 1
        %3027 = vperm.xlu0 %3026, %v306
        %v3028 = vpop.permute.xlu0 %3027
        %v3031 = vunpack.c.l.s4 839922192
        %v3032 = vunpack.c.0.s8 %v3031
        %v3033 = vlaneseq
        %v3034 = vshrl.u32 %v3033, 7
        %v3035 = vsub.s32 %v3032, %v3034
        %v3036 = vrot.slane %v3028, %v3035
        %3037 = vset.pattern.permute.xlu0 1
        %3038 = vperm.xlu0 %3037, %v307
        %v3039 = vpop.permute.xlu0 %3038
        %v3042 = vunpack.c.l.s4 839922192
        %v3043 = vunpack.c.0.s8 %v3042
        %v3044 = vlaneseq
        %v3045 = vshrl.u32 %v3044, 7
        %v3046 = vsub.s32 %v3043, %v3045
        %v3047 = vrot.slane %v3039, %v3046
        %3048 = vset.pattern.permute.xlu0 1
        %3049 = vperm.xlu0 %3048, %v308
        %v3050 = vpop.permute.xlu0 %3049
        %v3053 = vunpack.c.l.s4 839922192
        %v3054 = vunpack.c.0.s8 %v3053
        %v3055 = vlaneseq
        %v3056 = vshrl.u32 %v3055, 7
        %v3057 = vsub.s32 %v3054, %v3056
        %v3058 = vrot.slane %v3050, %v3057
        %3059 = vset.pattern.permute.xlu0 1
        %3060 = vperm.xlu0 %3059, %v309
        %v3061 = vpop.permute.xlu0 %3060
        %v3064 = vunpack.c.l.s4 839922192
        %v3065 = vunpack.c.0.s8 %v3064
        %v3066 = vlaneseq
        %v3067 = vshrl.u32 %v3066, 7
        %v3068 = vsub.s32 %v3065, %v3067
        %v3069 = vrot.slane %v3061, %v3068
        %3070 = vset.pattern.permute.xlu0 1
        %3071 = vperm.xlu0 %3070, %v310
        %v3072 = vpop.permute.xlu0 %3071
        %v3075 = vunpack.c.l.s4 839922192
        %v3076 = vunpack.c.0.s8 %v3075
        %v3077 = vlaneseq
        %v3078 = vshrl.u32 %v3077, 7
        %v3079 = vsub.s32 %v3076, %v3078
        %v3080 = vrot.slane %v3072, %v3079
        %v3113 = vunpack.c.l.b16 %v2739
        %v3114 = vunpack.c.l.b16 %v2750
        %v3115 = vunpack.c.l.b16 %v2761
        %v3116 = vunpack.c.l.b16 %v2772
        %v3117 = vunpack.c.l.b16 %v2783
        %v3118 = vunpack.c.l.b16 %v2794
        %v3119 = vunpack.c.l.b16 %v2805
        %v3120 = vunpack.c.l.b16 %v2816
        %v3121 = vunpack.c.l.b16 %v2827
        %v3122 = vunpack.c.l.b16 %v2838
        %v3123 = vunpack.c.l.b16 %v2849
        %v3124 = vunpack.c.l.b16 %v2860
        %v3125 = vunpack.c.l.b16 %v2871
        %v3126 = vunpack.c.l.b16 %v2882
        %v3127 = vunpack.c.l.b16 %v2893
        %v3128 = vunpack.c.l.b16 %v2904
        %v3129 = vunpack.c.l.b16 %v2915
        %v3130 = vunpack.c.l.b16 %v2926
        %v3131 = vunpack.c.l.b16 %v2937
        %v3132 = vunpack.c.l.b16 %v2948
        %v3133 = vunpack.c.l.b16 %v2959
        %v3134 = vunpack.c.l.b16 %v2970
        %v3135 = vunpack.c.l.b16 %v2981
        %v3136 = vunpack.c.l.b16 %v2992
        %v3137 = vunpack.c.l.b16 %v3003
        %v3138 = vunpack.c.l.b16 %v3014
        %v3139 = vunpack.c.l.b16 %v3025
        %v3140 = vunpack.c.l.b16 %v3036
        %v3141 = vunpack.c.l.b16 %v3047
        %v3142 = vunpack.c.l.b16 %v3058
        %v3143 = vunpack.c.l.b16 %v3069
        %v3144 = vunpack.c.l.b16 %v3080
        %v3145 = vpack.c.b16 %v3114, %v3113
        %v3146 = vpack.c.b16 %v3116, %v3115
        %v3147 = vpack.c.b16 %v3118, %v3117
        %v3148 = vpack.c.b16 %v3120, %v3119
        %v3149 = vpack.c.b16 %v3122, %v3121
        %v3150 = vpack.c.b16 %v3124, %v3123
        %v3151 = vpack.c.b16 %v3126, %v3125
        %v3152 = vpack.c.b16 %v3128, %v3127
        %v3153 = vpack.c.b16 %v3130, %v3129
        %v3154 = vpack.c.b16 %v3132, %v3131
        %v3155 = vpack.c.b16 %v3134, %v3133
        %v3156 = vpack.c.b16 %v3136, %v3135
        %v3157 = vpack.c.b16 %v3138, %v3137
        %v3158 = vpack.c.b16 %v3140, %v3139
        %v3159 = vpack.c.b16 %v3142, %v3141
        %v3160 = vpack.c.b16 %v3144, %v3143
        %v3177 = vadd.bf16 %v2665, %v3145
        %v3178 = vadd.bf16 %v2666, %v3145
        %v3179 = vadd.bf16 %v2667, %v3145
        %v3180 = vadd.bf16 %v2668, %v3145
        %v3181 = vadd.bf16 %v2669, %v3146
        %v3182 = vadd.bf16 %v2670, %v3146
        %v3183 = vadd.bf16 %v2671, %v3146
        %v3184 = vadd.bf16 %v2672, %v3146
        %v3185 = vadd.bf16 %v2673, %v3147
        %v3186 = vadd.bf16 %v2674, %v3147
        %v3187 = vadd.bf16 %v2675, %v3147
        %v3188 = vadd.bf16 %v2676, %v3147
        %v3189 = vadd.bf16 %v2677, %v3148
        %v3190 = vadd.bf16 %v2678, %v3148
        %v3191 = vadd.bf16 %v2679, %v3148
        %v3192 = vadd.bf16 %v2680, %v3148
        %v3193 = vadd.bf16 %v2681, %v3149
        %v3194 = vadd.bf16 %v2682, %v3149
        %v3195 = vadd.bf16 %v2683, %v3149
        %v3196 = vadd.bf16 %v2684, %v3149
        %v3197 = vadd.bf16 %v2685, %v3150
        %v3198 = vadd.bf16 %v2686, %v3150
        %v3199 = vadd.bf16 %v2687, %v3150
        %v3200 = vadd.bf16 %v2688, %v3150
        %v3201 = vadd.bf16 %v2689, %v3151
        %v3202 = vadd.bf16 %v2690, %v3151
        %v3203 = vadd.bf16 %v2691, %v3151
        %v3204 = vadd.bf16 %v2692, %v3151
        %v3205 = vadd.bf16 %v2693, %v3152
        %v3206 = vadd.bf16 %v2694, %v3152
        %v3207 = vadd.bf16 %v2695, %v3152
        %v3208 = vadd.bf16 %v2696, %v3152
        %v3209 = vadd.bf16 %v2697, %v3153
        %v3210 = vadd.bf16 %v2698, %v3153
        %v3211 = vadd.bf16 %v2699, %v3153
        %v3212 = vadd.bf16 %v2700, %v3153
        %v3213 = vadd.bf16 %v2701, %v3154
        %v3214 = vadd.bf16 %v2702, %v3154
        %v3215 = vadd.bf16 %v2703, %v3154
        %v3216 = vadd.bf16 %v2704, %v3154
        %v3217 = vadd.bf16 %v2705, %v3155
        %v3218 = vadd.bf16 %v2706, %v3155
        %v3219 = vadd.bf16 %v2707, %v3155
        %v3220 = vadd.bf16 %v2708, %v3155
        %v3221 = vadd.bf16 %v2709, %v3156
        %v3222 = vadd.bf16 %v2710, %v3156
        %v3223 = vadd.bf16 %v2711, %v3156
        %v3224 = vadd.bf16 %v2712, %v3156
        %v3225 = vadd.bf16 %v2713, %v3157
        %v3226 = vadd.bf16 %v2714, %v3157
        %v3227 = vadd.bf16 %v2715, %v3157
        %v3228 = vadd.bf16 %v2716, %v3157
        %v3229 = vadd.bf16 %v2717, %v3158
        %v3230 = vadd.bf16 %v2718, %v3158
        %v3231 = vadd.bf16 %v2719, %v3158
        %v3232 = vadd.bf16 %v2720, %v3158
        %v3233 = vadd.bf16 %v2721, %v3159
        %v3234 = vadd.bf16 %v2722, %v3159
        %v3235 = vadd.bf16 %v2723, %v3159
        %v3236 = vadd.bf16 %v2724, %v3159
        %v3237 = vadd.bf16 %v2725, %v3160
        %v3238 = vadd.bf16 %v2726, %v3160
        %v3239 = vadd.bf16 %v2727, %v3160
        %v3240 = vadd.bf16 %v2728, %v3160
        %v3241 = vmax.bf16 %v3177, 0
        %v3242 = vmax.bf16 %v3178, 0
        %v3243 = vmax.bf16 %v3179, 0
        %v3244 = vmax.bf16 %v3180, 0
        %v3245 = vmax.bf16 %v3181, 0
        %v3246 = vmax.bf16 %v3182, 0
        %v3247 = vmax.bf16 %v3183, 0
        %v3248 = vmax.bf16 %v3184, 0
        %v3249 = vmax.bf16 %v3185, 0
        %v3250 = vmax.bf16 %v3186, 0
        %v3251 = vmax.bf16 %v3187, 0
        %v3252 = vmax.bf16 %v3188, 0
        %v3253 = vmax.bf16 %v3189, 0
        %v3254 = vmax.bf16 %v3190, 0
        %v3255 = vmax.bf16 %v3191, 0
        %v3256 = vmax.bf16 %v3192, 0
        %v3257 = vmax.bf16 %v3193, 0
        %v3258 = vmax.bf16 %v3194, 0
        %v3259 = vmax.bf16 %v3195, 0
        %v3260 = vmax.bf16 %v3196, 0
        %v3261 = vmax.bf16 %v3197, 0
        %v3262 = vmax.bf16 %v3198, 0
        %v3263 = vmax.bf16 %v3199, 0
        %v3264 = vmax.bf16 %v3200, 0
        %v3265 = vmax.bf16 %v3201, 0
        %v3266 = vmax.bf16 %v3202, 0
        %v3267 = vmax.bf16 %v3203, 0
        %v3268 = vmax.bf16 %v3204, 0
        %v3269 = vmax.bf16 %v3205, 0
        %v3270 = vmax.bf16 %v3206, 0
        %v3271 = vmax.bf16 %v3207, 0
        %v3272 = vmax.bf16 %v3208, 0
        %v3273 = vmax.bf16 %v3209, 0
        %v3274 = vmax.bf16 %v3210, 0
        %v3275 = vmax.bf16 %v3211, 0
        %v3276 = vmax.bf16 %v3212, 0
        %v3277 = vmax.bf16 %v3213, 0
        %v3278 = vmax.bf16 %v3214, 0
        %v3279 = vmax.bf16 %v3215, 0
        %v3280 = vmax.bf16 %v3216, 0
        %v3281 = vmax.bf16 %v3217, 0
        %v3282 = vmax.bf16 %v3218, 0
        %v3283 = vmax.bf16 %v3219, 0
        %v3284 = vmax.bf16 %v3220, 0
        %v3285 = vmax.bf16 %v3221, 0
        %v3286 = vmax.bf16 %v3222, 0
        %v3287 = vmax.bf16 %v3223, 0
        %v3288 = vmax.bf16 %v3224, 0
        %v3289 = vmax.bf16 %v3225, 0
        %v3290 = vmax.bf16 %v3226, 0
        %v3291 = vmax.bf16 %v3227, 0
        %v3292 = vmax.bf16 %v3228, 0
        %v3293 = vmax.bf16 %v3229, 0
        %v3294 = vmax.bf16 %v3230, 0
        %v3295 = vmax.bf16 %v3231, 0
        %v3296 = vmax.bf16 %v3232, 0
        %v3297 = vmax.bf16 %v3233, 0
        %v3298 = vmax.bf16 %v3234, 0
        %v3299 = vmax.bf16 %v3235, 0
        %v3300 = vmax.bf16 %v3236, 0
        %v3301 = vmax.bf16 %v3237, 0
        %v3302 = vmax.bf16 %v3238, 0
        %v3303 = vmax.bf16 %v3239, 0
        %v3304 = vmax.bf16 %v3240, 0
        %s3305 = scalar_lea.vmem [#allocation2], 256
        %v3306 = vld [vmem:[%s3305] sm:$0xff]
        %v3307 = vld [vmem:[%s3305 + $0x8] sm:$0xff]
        %v3308 = vld [vmem:[%s3305 + $0x10] sm:$0xff]
        %v3309 = vld [vmem:[%s3305 + $0x18] sm:$0xff]
        %v3310 = vld [vmem:[%s3305 + $0x20] sm:$0xff]
        %v3311 = vld [vmem:[%s3305 + $0x28] sm:$0xff]
        %v3312 = vld [vmem:[%s3305 + $0x30] sm:$0xff]
        %v3313 = vld [vmem:[%s3305 + $0x38] sm:$0xff]
        %v3314 = vld [vmem:[%s3305 + $0x40] sm:$0xff]
        %v3315 = vld [vmem:[%s3305 + $0x48] sm:$0xff]
        %v3316 = vld [vmem:[%s3305 + $0x50] sm:$0xff]
        %v3317 = vld [vmem:[%s3305 + $0x58] sm:$0xff]
        %v3318 = vld [vmem:[%s3305 + $0x60] sm:$0xff]
        %v3319 = vld [vmem:[%s3305 + $0x68] sm:$0xff]
        %v3320 = vld [vmem:[%s3305 + $0x70] sm:$0xff]
        %v3321 = vld [vmem:[%s3305 + $0x78] sm:$0xff]
        %v3322 = vld [vmem:[%s3305 + $0x80] sm:$0xff]
        %v3323 = vld [vmem:[%s3305 + $0x88] sm:$0xff]
        %v3324 = vld [vmem:[%s3305 + $0x90] sm:$0xff]
        %v3325 = vld [vmem:[%s3305 + $0x98] sm:$0xff]
        %v3326 = vld [vmem:[%s3305 + $0xa0] sm:$0xff]
        %v3327 = vld [vmem:[%s3305 + $0xa8] sm:$0xff]
        %v3328 = vld [vmem:[%s3305 + $0xb0] sm:$0xff]
        %v3329 = vld [vmem:[%s3305 + $0xb8] sm:$0xff]
        %v3330 = vld [vmem:[%s3305 + $0xc0] sm:$0xff]
        %v3331 = vld [vmem:[%s3305 + $0xc8] sm:$0xff]
        %v3332 = vld [vmem:[%s3305 + $0xd0] sm:$0xff]
        %v3333 = vld [vmem:[%s3305 + $0xd8] sm:$0xff]
        %v3334 = vld [vmem:[%s3305 + $0xe0] sm:$0xff]
        %v3335 = vld [vmem:[%s3305 + $0xe8] sm:$0xff]
        %v3336 = vld [vmem:[%s3305 + $0xf0] sm:$0xff]
        %v3337 = vld [vmem:[%s3305 + $0xf8] sm:$0xff]
        %v3370 = vunpack.c.l.b16 %v3306
        %v3371 = vunpack.c.h.b16 %v3306
        %v3372 = vunpack.c.l.b16 %v3307
        %v3373 = vunpack.c.h.b16 %v3307
        %v3374 = vunpack.c.l.b16 %v3308
        %v3375 = vunpack.c.h.b16 %v3308
        %v3376 = vunpack.c.l.b16 %v3309
        %v3377 = vunpack.c.h.b16 %v3309
        %v3378 = vunpack.c.l.b16 %v3310
        %v3379 = vunpack.c.h.b16 %v3310
        %v3380 = vunpack.c.l.b16 %v3311
        %v3381 = vunpack.c.h.b16 %v3311
        %v3382 = vunpack.c.l.b16 %v3312
        %v3383 = vunpack.c.h.b16 %v3312
        %v3384 = vunpack.c.l.b16 %v3313
        %v3385 = vunpack.c.h.b16 %v3313
        %v3386 = vunpack.c.l.b16 %v3314
        %v3387 = vunpack.c.h.b16 %v3314
        %v3388 = vunpack.c.l.b16 %v3315
        %v3389 = vunpack.c.h.b16 %v3315
        %v3390 = vunpack.c.l.b16 %v3316
        %v3391 = vunpack.c.h.b16 %v3316
        %v3392 = vunpack.c.l.b16 %v3317
        %v3393 = vunpack.c.h.b16 %v3317
        %v3394 = vunpack.c.l.b16 %v3318
        %v3395 = vunpack.c.h.b16 %v3318
        %v3396 = vunpack.c.l.b16 %v3319
        %v3397 = vunpack.c.h.b16 %v3319
        %v3398 = vunpack.c.l.b16 %v3320
        %v3399 = vunpack.c.h.b16 %v3320
        %v3400 = vunpack.c.l.b16 %v3321
        %v3401 = vunpack.c.h.b16 %v3321
        %v3402 = vunpack.c.l.b16 %v3322
        %v3403 = vunpack.c.h.b16 %v3322
        %v3404 = vunpack.c.l.b16 %v3323
        %v3405 = vunpack.c.h.b16 %v3323
        %v3406 = vunpack.c.l.b16 %v3324
        %v3407 = vunpack.c.h.b16 %v3324
        %v3408 = vunpack.c.l.b16 %v3325
        %v3409 = vunpack.c.h.b16 %v3325
        %v3410 = vunpack.c.l.b16 %v3326
        %v3411 = vunpack.c.h.b16 %v3326
        %v3412 = vunpack.c.l.b16 %v3327
        %v3413 = vunpack.c.h.b16 %v3327
        %v3414 = vunpack.c.l.b16 %v3328
        %v3415 = vunpack.c.h.b16 %v3328
        %v3416 = vunpack.c.l.b16 %v3329
        %v3417 = vunpack.c.h.b16 %v3329
        %v3418 = vunpack.c.l.b16 %v3330
        %v3419 = vunpack.c.h.b16 %v3330
        %v3420 = vunpack.c.l.b16 %v3331
        %v3421 = vunpack.c.h.b16 %v3331
        %v3422 = vunpack.c.l.b16 %v3332
        %v3423 = vunpack.c.h.b16 %v3332
        %v3424 = vunpack.c.l.b16 %v3333
        %v3425 = vunpack.c.h.b16 %v3333
        %v3426 = vunpack.c.l.b16 %v3334
        %v3427 = vunpack.c.h.b16 %v3334
        %v3428 = vunpack.c.l.b16 %v3335
        %v3429 = vunpack.c.h.b16 %v3335
        %v3430 = vunpack.c.l.b16 %v3336
        %v3431 = vunpack.c.h.b16 %v3336
        %v3432 = vunpack.c.l.b16 %v3337
        %v3433 = vunpack.c.h.b16 %v3337
        %v3434 = vpack.c.b16 %v3372, %v3370
        %v3435 = vpack.c.b16 %v3373, %v3371
        %v3436 = vpack.c.b16 %v3376, %v3374
        %v3437 = vpack.c.b16 %v3377, %v3375
        %v3438 = vpack.c.b16 %v3380, %v3378
        %v3439 = vpack.c.b16 %v3381, %v3379
        %v3440 = vpack.c.b16 %v3384, %v3382
        %v3441 = vpack.c.b16 %v3385, %v3383
        %v3442 = vpack.c.b16 %v3388, %v3386
        %v3443 = vpack.c.b16 %v3389, %v3387
        %v3444 = vpack.c.b16 %v3392, %v3390
        %v3445 = vpack.c.b16 %v3393, %v3391
        %v3446 = vpack.c.b16 %v3396, %v3394
        %v3447 = vpack.c.b16 %v3397, %v3395
        %v3448 = vpack.c.b16 %v3400, %v3398
        %v3449 = vpack.c.b16 %v3401, %v3399
        %v3450 = vpack.c.b16 %v3404, %v3402
        %v3451 = vpack.c.b16 %v3405, %v3403
        %v3452 = vpack.c.b16 %v3408, %v3406
        %v3453 = vpack.c.b16 %v3409, %v3407
        %v3454 = vpack.c.b16 %v3412, %v3410
        %v3455 = vpack.c.b16 %v3413, %v3411
        %v3456 = vpack.c.b16 %v3416, %v3414
        %v3457 = vpack.c.b16 %v3417, %v3415
        %v3458 = vpack.c.b16 %v3420, %v3418
        %v3459 = vpack.c.b16 %v3421, %v3419
        %v3460 = vpack.c.b16 %v3424, %v3422
        %v3461 = vpack.c.b16 %v3425, %v3423
        %v3462 = vpack.c.b16 %v3428, %v3426
        %v3463 = vpack.c.b16 %v3429, %v3427
        %v3464 = vpack.c.b16 %v3432, %v3430
        %v3465 = vpack.c.b16 %v3433, %v3431
        %3498 = vmatprep.subr.bf16.mxu0 %v3242
        %3499 = vmatpush1.bf16.msra.mxu0 %v3241
        %3500 = vmatprep.subr.bf16.mxu0 %v3246
        %3501 = vmatpush1.bf16.msra.mxu0 %v3245
        %3502 = vmatprep.subr.bf16.mxu0 %v3250
        %3503 = vmatpush1.bf16.msra.mxu0 %v3249
        %3504 = vmatprep.subr.bf16.mxu0 %v3254
        %3505 = vmatpush1.bf16.msra.mxu0 %v3253
        %3506 = vmatprep.subr.bf16.mxu0 %v3258
        %3507 = vmatpush1.bf16.msra.mxu0 %v3257
        %3508 = vmatprep.subr.bf16.mxu0 %v3262
        %3509 = vmatpush1.bf16.msra.mxu0 %v3261
        %3510 = vmatprep.subr.bf16.mxu0 %v3266
        %3511 = vmatpush1.bf16.msra.mxu0 %v3265
        %3512 = vmatprep.subr.bf16.mxu0 %v3270
        %3513 = vmatpush1.bf16.msra.mxu0 %v3269
        %3514 = vmatprep.subr.bf16.mxu0 %v3274
        %3515 = vmatpush1.bf16.msra.mxu0 %v3273
        %3516 = vmatprep.subr.bf16.mxu0 %v3278
        %3517 = vmatpush1.bf16.msra.mxu0 %v3277
        %3518 = vmatprep.subr.bf16.mxu0 %v3282
        %3519 = vmatpush1.bf16.msra.mxu0 %v3281
        %3520 = vmatprep.subr.bf16.mxu0 %v3286
        %3521 = vmatpush1.bf16.msra.mxu0 %v3285
        %3522 = vmatprep.subr.bf16.mxu0 %v3290
        %3523 = vmatpush1.bf16.msra.mxu0 %v3289
        %3524 = vmatprep.subr.bf16.mxu0 %v3294
        %3525 = vmatpush1.bf16.msra.mxu0 %v3293
        %3526 = vmatprep.subr.bf16.mxu0 %v3298
        %3527 = vmatpush1.bf16.msra.mxu0 %v3297
        %3528 = vmatprep.subr.bf16.mxu0 %v3302
        %3529 = vmatpush1.bf16.msra.mxu0 %v3301
        %3530 = vmatprep.mubr.bf16.mxu0 %v3435
        %3531 = vmatmul.mubr.bf16.gmra.mrb[0].mxu0 %v3434
        %v3532 = vpop.f32.mrb[0].mxu0
        %v3533 = vadd.f32 0.0, %v3532
        %v3534 = vpop.f32.mrb[0].mxu0
        %v3535 = vadd.f32 0.0, %v3534
        %v3536 = vpop.f32.mrb[0].mxu0
        %v3537 = vadd.f32 0.0, %v3536
        %v3538 = vpop.f32.mrb[0].mxu0
        %v3539 = vadd.f32 0.0, %v3538
        %3540 = vmatprep.mubr.bf16.mxu0 %v3437
        %3541 = vmatmul.mubr.bf16.gmra.mrb[0].mxu0 %v3436
        %v3542 = vpop.f32.mrb[0].mxu0
        %v3543 = vadd.f32 0.0, %v3542
        %v3544 = vpop.f32.mrb[0].mxu0
        %v3545 = vadd.f32 0.0, %v3544
        %v3546 = vpop.f32.mrb[0].mxu0
        %v3547 = vadd.f32 0.0, %v3546
        %v3548 = vpop.f32.mrb[0].mxu0
        %v3549 = vadd.f32 0.0, %v3548
        %3550 = vmatprep.mubr.bf16.mxu0 %v3439
        %3551 = vmatmul.mubr.bf16.gmra.mrb[0].mxu0 %v3438
        %v3552 = vpop.f32.mrb[0].mxu0
        %v3553 = vadd.f32 0.0, %v3552
        %v3554 = vpop.f32.mrb[0].mxu0
        %v3555 = vadd.f32 0.0, %v3554
        %v3556 = vpop.f32.mrb[0].mxu0
        %v3557 = vadd.f32 0.0, %v3556
        %v3558 = vpop.f32.mrb[0].mxu0
        %v3559 = vadd.f32 0.0, %v3558
        %3560 = vmatprep.mubr.bf16.mxu0 %v3441
        %3561 = vmatmul.mubr.bf16.gmra.mrb[0].mxu0 %v3440
        %v3562 = vpop.f32.mrb[0].mxu0
        %v3563 = vadd.f32 0.0, %v3562
        %v3564 = vpop.f32.mrb[0].mxu0
        %v3565 = vadd.f32 0.0, %v3564
        %v3566 = vpop.f32.mrb[0].mxu0
        %v3567 = vadd.f32 0.0, %v3566
        %v3568 = vpop.f32.mrb[0].mxu0
        %v3569 = vadd.f32 0.0, %v3568
        %3570 = vmatprep.mubr.bf16.mxu0 %v3443
        %3571 = vmatmul.mubr.bf16.gmra.mrb[0].mxu0 %v3442
        %v3572 = vpop.f32.mrb[0].mxu0
        %v3573 = vadd.f32 0.0, %v3572
        %v3574 = vpop.f32.mrb[0].mxu0
        %v3575 = vadd.f32 0.0, %v3574
        %v3576 = vpop.f32.mrb[0].mxu0
        %v3577 = vadd.f32 0.0, %v3576
        %v3578 = vpop.f32.mrb[0].mxu0
        %v3579 = vadd.f32 0.0, %v3578
        %3580 = vmatprep.mubr.bf16.mxu0 %v3445
        %3581 = vmatmul.mubr.bf16.gmra.mrb[0].mxu0 %v3444
        %v3582 = vpop.f32.mrb[0].mxu0
        %v3583 = vadd.f32 0.0, %v3582
        %v3584 = vpop.f32.mrb[0].mxu0
        %v3585 = vadd.f32 0.0, %v3584
        %v3586 = vpop.f32.mrb[0].mxu0
        %v3587 = vadd.f32 0.0, %v3586
        %v3588 = vpop.f32.mrb[0].mxu0
        %v3589 = vadd.f32 0.0, %v3588
        %3590 = vmatprep.mubr.bf16.mxu0 %v3447
        %3591 = vmatmul.mubr.bf16.gmra.mrb[0].mxu0 %v3446
        %v3592 = vpop.f32.mrb[0].mxu0
        %v3593 = vadd.f32 0.0, %v3592
        %v3594 = vpop.f32.mrb[0].mxu0
        %v3595 = vadd.f32 0.0, %v3594
        %v3596 = vpop.f32.mrb[0].mxu0
        %v3597 = vadd.f32 0.0, %v3596
        %v3598 = vpop.f32.mrb[0].mxu0
        %v3599 = vadd.f32 0.0, %v3598
        %3600 = vmatprep.mubr.bf16.mxu0 %v3449
        %3601 = vmatmul.mubr.bf16.gmra.mrb[0].mxu0 %v3448
        %v3602 = vpop.f32.mrb[0].mxu0
        %v3603 = vadd.f32 0.0, %v3602
        %v3604 = vpop.f32.mrb[0].mxu0
        %v3605 = vadd.f32 0.0, %v3604
        %v3606 = vpop.f32.mrb[0].mxu0
        %v3607 = vadd.f32 0.0, %v3606
        %v3608 = vpop.f32.mrb[0].mxu0
        %v3609 = vadd.f32 0.0, %v3608
        %3610 = vmatprep.mubr.bf16.mxu0 %v3451
        %3611 = vmatmul.mubr.bf16.gmra.mrb[0].mxu0 %v3450
        %v3612 = vpop.f32.mrb[0].mxu0
        %v3613 = vadd.f32 0.0, %v3612
        %v3614 = vpop.f32.mrb[0].mxu0
        %v3615 = vadd.f32 0.0, %v3614
        %v3616 = vpop.f32.mrb[0].mxu0
        %v3617 = vadd.f32 0.0, %v3616
        %v3618 = vpop.f32.mrb[0].mxu0
        %v3619 = vadd.f32 0.0, %v3618
        %3620 = vmatprep.mubr.bf16.mxu0 %v3453
        %3621 = vmatmul.mubr.bf16.gmra.mrb[0].mxu0 %v3452
        %v3622 = vpop.f32.mrb[0].mxu0
        %v3623 = vadd.f32 0.0, %v3622
        %v3624 = vpop.f32.mrb[0].mxu0
        %v3625 = vadd.f32 0.0, %v3624
        %v3626 = vpop.f32.mrb[0].mxu0
        %v3627 = vadd.f32 0.0, %v3626
        %v3628 = vpop.f32.mrb[0].mxu0
        %v3629 = vadd.f32 0.0, %v3628
        %3630 = vmatprep.mubr.bf16.mxu0 %v3455
        %3631 = vmatmul.mubr.bf16.gmra.mrb[0].mxu0 %v3454
        %v3632 = vpop.f32.mrb[0].mxu0
        %v3633 = vadd.f32 0.0, %v3632
        %v3634 = vpop.f32.mrb[0].mxu0
        %v3635 = vadd.f32 0.0, %v3634
        %v3636 = vpop.f32.mrb[0].mxu0
        %v3637 = vadd.f32 0.0, %v3636
        %v3638 = vpop.f32.mrb[0].mxu0
        %v3639 = vadd.f32 0.0, %v3638
        %3640 = vmatprep.mubr.bf16.mxu0 %v3457
        %3641 = vmatmul.mubr.bf16.gmra.mrb[0].mxu0 %v3456
        %v3642 = vpop.f32.mrb[0].mxu0
        %v3643 = vadd.f32 0.0, %v3642
        %v3644 = vpop.f32.mrb[0].mxu0
        %v3645 = vadd.f32 0.0, %v3644
        %v3646 = vpop.f32.mrb[0].mxu0
        %v3647 = vadd.f32 0.0, %v3646
        %v3648 = vpop.f32.mrb[0].mxu0
        %v3649 = vadd.f32 0.0, %v3648
        %3650 = vmatprep.mubr.bf16.mxu0 %v3459
        %3651 = vmatmul.mubr.bf16.gmra.mrb[0].mxu0 %v3458
        %v3652 = vpop.f32.mrb[0].mxu0
        %v3653 = vadd.f32 0.0, %v3652
        %v3654 = vpop.f32.mrb[0].mxu0
        %v3655 = vadd.f32 0.0, %v3654
        %v3656 = vpop.f32.mrb[0].mxu0
        %v3657 = vadd.f32 0.0, %v3656
        %v3658 = vpop.f32.mrb[0].mxu0
        %v3659 = vadd.f32 0.0, %v3658
        %3660 = vmatprep.mubr.bf16.mxu0 %v3461
        %3661 = vmatmul.mubr.bf16.gmra.mrb[0].mxu0 %v3460
        %v3662 = vpop.f32.mrb[0].mxu0
        %v3663 = vadd.f32 0.0, %v3662
        %v3664 = vpop.f32.mrb[0].mxu0
        %v3665 = vadd.f32 0.0, %v3664
        %v3666 = vpop.f32.mrb[0].mxu0
        %v3667 = vadd.f32 0.0, %v3666
        %v3668 = vpop.f32.mrb[0].mxu0
        %v3669 = vadd.f32 0.0, %v3668
        %3670 = vmatprep.mubr.bf16.mxu0 %v3463
        %3671 = vmatmul.mubr.bf16.gmra.mrb[0].mxu0 %v3462
        %v3672 = vpop.f32.mrb[0].mxu0
        %v3673 = vadd.f32 0.0, %v3672
        %v3674 = vpop.f32.mrb[0].mxu0
        %v3675 = vadd.f32 0.0, %v3674
        %v3676 = vpop.f32.mrb[0].mxu0
        %v3677 = vadd.f32 0.0, %v3676
        %v3678 = vpop.f32.mrb[0].mxu0
        %v3679 = vadd.f32 0.0, %v3678
        %3680 = vmatprep.mubr.bf16.mxu0 %v3465
        %3681 = vmatmul.mubr.bf16.gmra.mrb[0].mxu0 %v3464
        %v3682 = vpop.f32.mrb[0].mxu0
        %v3683 = vadd.f32 0.0, %v3682
        %v3684 = vpop.f32.mrb[0].mxu0
        %v3685 = vadd.f32 0.0, %v3684
        %v3686 = vpop.f32.mrb[0].mxu0
        %v3687 = vadd.f32 0.0, %v3686
        %v3688 = vpop.f32.mrb[0].mxu0
        %v3689 = vadd.f32 0.0, %v3688
        %3690 = vdwg.mxu0
        %3691 = vmatprep.subr.bf16.mxu0 %v3244
        %3692 = vmatpush1.bf16.msra.mxu0 %v3243
        %3693 = vmatprep.subr.bf16.mxu0 %v3248
        %3694 = vmatpush1.bf16.msra.mxu0 %v3247
        %3695 = vmatprep.subr.bf16.mxu0 %v3252
        %3696 = vmatpush1.bf16.msra.mxu0 %v3251
        %3697 = vmatprep.subr.bf16.mxu0 %v3256
        %3698 = vmatpush1.bf16.msra.mxu0 %v3255
        %3699 = vmatprep.subr.bf16.mxu0 %v3260
        %3700 = vmatpush1.bf16.msra.mxu0 %v3259
        %3701 = vmatprep.subr.bf16.mxu0 %v3264
        %3702 = vmatpush1.bf16.msra.mxu0 %v3263
        %3703 = vmatprep.subr.bf16.mxu0 %v3268
        %3704 = vmatpush1.bf16.msra.mxu0 %v3267
        %3705 = vmatprep.subr.bf16.mxu0 %v3272
        %3706 = vmatpush1.bf16.msra.mxu0 %v3271
        %3707 = vmatprep.subr.bf16.mxu0 %v3276
        %3708 = vmatpush1.bf16.msra.mxu0 %v3275
        %3709 = vmatprep.subr.bf16.mxu0 %v3280
        %3710 = vmatpush1.bf16.msra.mxu0 %v3279
        %3711 = vmatprep.subr.bf16.mxu0 %v3284
        %3712 = vmatpush1.bf16.msra.mxu0 %v3283
        %3713 = vmatprep.subr.bf16.mxu0 %v3288
        %3714 = vmatpush1.bf16.msra.mxu0 %v3287
        %3715 = vmatprep.subr.bf16.mxu0 %v3292
        %3716 = vmatpush1.bf16.msra.mxu0 %v3291
        %3717 = vmatprep.subr.bf16.mxu0 %v3296
        %3718 = vmatpush1.bf16.msra.mxu0 %v3295
        %3719 = vmatprep.subr.bf16.mxu0 %v3300
        %3720 = vmatpush1.bf16.msra.mxu0 %v3299
        %3721 = vmatprep.subr.bf16.mxu0 %v3304
        %3722 = vmatpush1.bf16.msra.mxu0 %v3303
        %3723 = vmatprep.mubr.bf16.mxu0 %v3435
        %3724 = vmatmul.mubr.bf16.gmra.mrb[0].mxu0 %v3434
        %v3725 = vpop.f32.mrb[0].mxu0
        %v3726 = vadd.f32 0.0, %v3725
        %v3727 = vpop.f32.mrb[0].mxu0
        %v3728 = vadd.f32 0.0, %v3727
        %v3729 = vpop.f32.mrb[0].mxu0
        %v3730 = vadd.f32 0.0, %v3729
        %v3731 = vpop.f32.mrb[0].mxu0
        %v3732 = vadd.f32 0.0, %v3731
        %3733 = vmatprep.mubr.bf16.mxu0 %v3437
        %3734 = vmatmul.mubr.bf16.gmra.mrb[0].mxu0 %v3436
        %v3735 = vpop.f32.mrb[0].mxu0
        %v3736 = vadd.f32 0.0, %v3735
        %v3737 = vpop.f32.mrb[0].mxu0
        %v3738 = vadd.f32 0.0, %v3737
        %v3739 = vpop.f32.mrb[0].mxu0
        %v3740 = vadd.f32 0.0, %v3739
        %v3741 = vpop.f32.mrb[0].mxu0
        %v3742 = vadd.f32 0.0, %v3741
        %3743 = vmatprep.mubr.bf16.mxu0 %v3439
        %3744 = vmatmul.mubr.bf16.gmra.mrb[0].mxu0 %v3438
        %v3745 = vpop.f32.mrb[0].mxu0
        %v3746 = vadd.f32 0.0, %v3745
        %v3747 = vpop.f32.mrb[0].mxu0
        %v3748 = vadd.f32 0.0, %v3747
        %v3749 = vpop.f32.mrb[0].mxu0
        %v3750 = vadd.f32 0.0, %v3749
        %v3751 = vpop.f32.mrb[0].mxu0
        %v3752 = vadd.f32 0.0, %v3751
        %3753 = vmatprep.mubr.bf16.mxu0 %v3441
        %3754 = vmatmul.mubr.bf16.gmra.mrb[0].mxu0 %v3440
        %v3755 = vpop.f32.mrb[0].mxu0
        %v3756 = vadd.f32 0.0, %v3755
        %v3757 = vpop.f32.mrb[0].mxu0
        %v3758 = vadd.f32 0.0, %v3757
        %v3759 = vpop.f32.mrb[0].mxu0
        %v3760 = vadd.f32 0.0, %v3759
        %v3761 = vpop.f32.mrb[0].mxu0
        %v3762 = vadd.f32 0.0, %v3761
        %3763 = vmatprep.mubr.bf16.mxu0 %v3443
        %3764 = vmatmul.mubr.bf16.gmra.mrb[0].mxu0 %v3442
        %v3765 = vpop.f32.mrb[0].mxu0
        %v3766 = vadd.f32 0.0, %v3765
        %v3767 = vpop.f32.mrb[0].mxu0
        %v3768 = vadd.f32 0.0, %v3767
        %v3769 = vpop.f32.mrb[0].mxu0
        %v3770 = vadd.f32 0.0, %v3769
        %v3771 = vpop.f32.mrb[0].mxu0
        %v3772 = vadd.f32 0.0, %v3771
        %3773 = vmatprep.mubr.bf16.mxu0 %v3445
        %3774 = vmatmul.mubr.bf16.gmra.mrb[0].mxu0 %v3444
        %v3775 = vpop.f32.mrb[0].mxu0
        %v3776 = vadd.f32 0.0, %v3775
        %v3777 = vpop.f32.mrb[0].mxu0
        %v3778 = vadd.f32 0.0, %v3777
        %v3779 = vpop.f32.mrb[0].mxu0
        %v3780 = vadd.f32 0.0, %v3779
        %v3781 = vpop.f32.mrb[0].mxu0
        %v3782 = vadd.f32 0.0, %v3781
        %3783 = vmatprep.mubr.bf16.mxu0 %v3447
        %3784 = vmatmul.mubr.bf16.gmra.mrb[0].mxu0 %v3446
        %v3785 = vpop.f32.mrb[0].mxu0
        %v3786 = vadd.f32 0.0, %v3785
        %v3787 = vpop.f32.mrb[0].mxu0
        %v3788 = vadd.f32 0.0, %v3787
        %v3789 = vpop.f32.mrb[0].mxu0
        %v3790 = vadd.f32 0.0, %v3789
        %v3791 = vpop.f32.mrb[0].mxu0
        %v3792 = vadd.f32 0.0, %v3791
        %3793 = vmatprep.mubr.bf16.mxu0 %v3449
        %3794 = vmatmul.mubr.bf16.gmra.mrb[0].mxu0 %v3448
        %v3795 = vpop.f32.mrb[0].mxu0
        %v3796 = vadd.f32 0.0, %v3795
        %v3797 = vpop.f32.mrb[0].mxu0
        %v3798 = vadd.f32 0.0, %v3797
        %v3799 = vpop.f32.mrb[0].mxu0
        %v3800 = vadd.f32 0.0, %v3799
        %v3801 = vpop.f32.mrb[0].mxu0
        %v3802 = vadd.f32 0.0, %v3801
        %3803 = vmatprep.mubr.bf16.mxu0 %v3451
        %3804 = vmatmul.mubr.bf16.gmra.mrb[0].mxu0 %v3450
        %v3805 = vpop.f32.mrb[0].mxu0
        %v3806 = vadd.f32 0.0, %v3805
        %v3807 = vpop.f32.mrb[0].mxu0
        %v3808 = vadd.f32 0.0, %v3807
        %v3809 = vpop.f32.mrb[0].mxu0
        %v3810 = vadd.f32 0.0, %v3809
        %v3811 = vpop.f32.mrb[0].mxu0
        %v3812 = vadd.f32 0.0, %v3811
        %3813 = vmatprep.mubr.bf16.mxu0 %v3453
        %3814 = vmatmul.mubr.bf16.gmra.mrb[0].mxu0 %v3452
        %v3815 = vpop.f32.mrb[0].mxu0
        %v3816 = vadd.f32 0.0, %v3815
        %v3817 = vpop.f32.mrb[0].mxu0
        %v3818 = vadd.f32 0.0, %v3817
        %v3819 = vpop.f32.mrb[0].mxu0
        %v3820 = vadd.f32 0.0, %v3819
        %v3821 = vpop.f32.mrb[0].mxu0
        %v3822 = vadd.f32 0.0, %v3821
        %3823 = vmatprep.mubr.bf16.mxu0 %v3455
        %3824 = vmatmul.mubr.bf16.gmra.mrb[0].mxu0 %v3454
        %v3825 = vpop.f32.mrb[0].mxu0
        %v3826 = vadd.f32 0.0, %v3825
        %v3827 = vpop.f32.mrb[0].mxu0
        %v3828 = vadd.f32 0.0, %v3827
        %v3829 = vpop.f32.mrb[0].mxu0
        %v3830 = vadd.f32 0.0, %v3829
        %v3831 = vpop.f32.mrb[0].mxu0
        %v3832 = vadd.f32 0.0, %v3831
        %3833 = vmatprep.mubr.bf16.mxu0 %v3457
        %3834 = vmatmul.mubr.bf16.gmra.mrb[0].mxu0 %v3456
        %v3835 = vpop.f32.mrb[0].mxu0
        %v3836 = vadd.f32 0.0, %v3835
        %v3837 = vpop.f32.mrb[0].mxu0
        %v3838 = vadd.f32 0.0, %v3837
        %v3839 = vpop.f32.mrb[0].mxu0
        %v3840 = vadd.f32 0.0, %v3839
        %v3841 = vpop.f32.mrb[0].mxu0
        %v3842 = vadd.f32 0.0, %v3841
        %3843 = vmatprep.mubr.bf16.mxu0 %v3459
        %3844 = vmatmul.mubr.bf16.gmra.mrb[0].mxu0 %v3458
        %v3845 = vpop.f32.mrb[0].mxu0
        %v3846 = vadd.f32 0.0, %v3845
        %v3847 = vpop.f32.mrb[0].mxu0
        %v3848 = vadd.f32 0.0, %v3847
        %v3849 = vpop.f32.mrb[0].mxu0
        %v3850 = vadd.f32 0.0, %v3849
        %v3851 = vpop.f32.mrb[0].mxu0
        %v3852 = vadd.f32 0.0, %v3851
        %3853 = vmatprep.mubr.bf16.mxu0 %v3461
        %3854 = vmatmul.mubr.bf16.gmra.mrb[0].mxu0 %v3460
        %v3855 = vpop.f32.mrb[0].mxu0
        %v3856 = vadd.f32 0.0, %v3855
        %v3857 = vpop.f32.mrb[0].mxu0
        %v3858 = vadd.f32 0.0, %v3857
        %v3859 = vpop.f32.mrb[0].mxu0
        %v3860 = vadd.f32 0.0, %v3859
        %v3861 = vpop.f32.mrb[0].mxu0
        %v3862 = vadd.f32 0.0, %v3861
        %3863 = vmatprep.mubr.bf16.mxu0 %v3463
        %3864 = vmatmul.mubr.bf16.gmra.mrb[0].mxu0 %v3462
        %v3865 = vpop.f32.mrb[0].mxu0
        %v3866 = vadd.f32 0.0, %v3865
        %v3867 = vpop.f32.mrb[0].mxu0
        %v3868 = vadd.f32 0.0, %v3867
        %v3869 = vpop.f32.mrb[0].mxu0
        %v3870 = vadd.f32 0.0, %v3869
        %v3871 = vpop.f32.mrb[0].mxu0
        %v3872 = vadd.f32 0.0, %v3871
        %3873 = vmatprep.mubr.bf16.mxu0 %v3465
        %3874 = vmatmul.mubr.bf16.gmra.mrb[0].mxu0 %v3464
        %v3875 = vpop.f32.mrb[0].mxu0
        %v3876 = vadd.f32 0.0, %v3875
        %v3877 = vpop.f32.mrb[0].mxu0
        %v3878 = vadd.f32 0.0, %v3877
        %v3879 = vpop.f32.mrb[0].mxu0
        %v3880 = vadd.f32 0.0, %v3879
        %v3881 = vpop.f32.mrb[0].mxu0
        %v3882 = vadd.f32 0.0, %v3881
        %3883 = vdwg.mxu0
        %v3884 = vpack.c.bf16 %v3537, %v3533
        %v3885 = vpack.c.bf16 %v3539, %v3535
        %v3886 = vpack.c.bf16 %v3730, %v3726
        %v3887 = vpack.c.bf16 %v3732, %v3728
        %v3888 = vpack.c.bf16 %v3547, %v3543
        %v3889 = vpack.c.bf16 %v3549, %v3545
        %v3890 = vpack.c.bf16 %v3740, %v3736
        %v3891 = vpack.c.bf16 %v3742, %v3738
        %v3892 = vpack.c.bf16 %v3557, %v3553
        %v3893 = vpack.c.bf16 %v3559, %v3555
        %v3894 = vpack.c.bf16 %v3750, %v3746
        %v3895 = vpack.c.bf16 %v3752, %v3748
        %v3896 = vpack.c.bf16 %v3567, %v3563
        %v3897 = vpack.c.bf16 %v3569, %v3565
        %v3898 = vpack.c.bf16 %v3760, %v3756
        %v3899 = vpack.c.bf16 %v3762, %v3758
        %v3900 = vpack.c.bf16 %v3577, %v3573
        %v3901 = vpack.c.bf16 %v3579, %v3575
        %v3902 = vpack.c.bf16 %v3770, %v3766
        %v3903 = vpack.c.bf16 %v3772, %v3768
        %v3904 = vpack.c.bf16 %v3587, %v3583
        %v3905 = vpack.c.bf16 %v3589, %v3585
        %v3906 = vpack.c.bf16 %v3780, %v3776
        %v3907 = vpack.c.bf16 %v3782, %v3778
        %v3908 = vpack.c.bf16 %v3597, %v3593
        %v3909 = vpack.c.bf16 %v3599, %v3595
        %v3910 = vpack.c.bf16 %v3790, %v3786
        %v3911 = vpack.c.bf16 %v3792, %v3788
        %v3912 = vpack.c.bf16 %v3607, %v3603
        %v3913 = vpack.c.bf16 %v3609, %v3605
        %v3914 = vpack.c.bf16 %v3800, %v3796
        %v3915 = vpack.c.bf16 %v3802, %v3798
        %v3916 = vpack.c.bf16 %v3617, %v3613
        %v3917 = vpack.c.bf16 %v3619, %v3615
        %v3918 = vpack.c.bf16 %v3810, %v3806
        %v3919 = vpack.c.bf16 %v3812, %v3808
        %v3920 = vpack.c.bf16 %v3627, %v3623
        %v3921 = vpack.c.bf16 %v3629, %v3625
        %v3922 = vpack.c.bf16 %v3820, %v3816
        %v3923 = vpack.c.bf16 %v3822, %v3818
        %v3924 = vpack.c.bf16 %v3637, %v3633
        %v3925 = vpack.c.bf16 %v3639, %v3635
        %v3926 = vpack.c.bf16 %v3830, %v3826
        %v3927 = vpack.c.bf16 %v3832, %v3828
        %v3928 = vpack.c.bf16 %v3647, %v3643
        %v3929 = vpack.c.bf16 %v3649, %v3645
        %v3930 = vpack.c.bf16 %v3840, %v3836
        %v3931 = vpack.c.bf16 %v3842, %v3838
        %v3932 = vpack.c.bf16 %v3657, %v3653
        %v3933 = vpack.c.bf16 %v3659, %v3655
        %v3934 = vpack.c.bf16 %v3850, %v3846
        %v3935 = vpack.c.bf16 %v3852, %v3848
        %v3936 = vpack.c.bf16 %v3667, %v3663
        %v3937 = vpack.c.bf16 %v3669, %v3665
        %v3938 = vpack.c.bf16 %v3860, %v3856
        %v3939 = vpack.c.bf16 %v3862, %v3858
        %v3940 = vpack.c.bf16 %v3677, %v3673
        %v3941 = vpack.c.bf16 %v3679, %v3675
        %v3942 = vpack.c.bf16 %v3870, %v3866
        %v3943 = vpack.c.bf16 %v3872, %v3868
        %v3944 = vpack.c.bf16 %v3687, %v3683
        %v3945 = vpack.c.bf16 %v3689, %v3685
        %v3946 = vpack.c.bf16 %v3880, %v3876
        %v3947 = vpack.c.bf16 %v3882, %v3878
        %3948 = vset.pattern.permute.xlu0 2
        %3949 = vperm.xlu0 %3948, %v279
        %v3950 = vpop.permute.xlu0 %3949
        %v3953 = vunpack.c.l.s4 839922192
        %v3954 = vunpack.c.0.s8 %v3953
        %v3955 = vlaneseq
        %v3956 = vshrl.u32 %v3955, 7
        %v3957 = vsub.s32 %v3954, %v3956
        %v3958 = vrot.slane %v3950, %v3957
        %3959 = vset.pattern.permute.xlu0 2
        %3960 = vperm.xlu0 %3959, %v280
        %v3961 = vpop.permute.xlu0 %3960
        %v3964 = vunpack.c.l.s4 839922192
        %v3965 = vunpack.c.0.s8 %v3964
        %v3966 = vlaneseq
        %v3967 = vshrl.u32 %v3966, 7
        %v3968 = vsub.s32 %v3965, %v3967
        %v3969 = vrot.slane %v3961, %v3968
        %3970 = vset.pattern.permute.xlu0 2
        %3971 = vperm.xlu0 %3970, %v281
        %v3972 = vpop.permute.xlu0 %3971
        %v3975 = vunpack.c.l.s4 839922192
        %v3976 = vunpack.c.0.s8 %v3975
        %v3977 = vlaneseq
        %v3978 = vshrl.u32 %v3977, 7
        %v3979 = vsub.s32 %v3976, %v3978
        %v3980 = vrot.slane %v3972, %v3979
        %3981 = vset.pattern.permute.xlu0 2
        %3982 = vperm.xlu0 %3981, %v282
        %v3983 = vpop.permute.xlu0 %3982
        %v3986 = vunpack.c.l.s4 839922192
        %v3987 = vunpack.c.0.s8 %v3986
        %v3988 = vlaneseq
        %v3989 = vshrl.u32 %v3988, 7
        %v3990 = vsub.s32 %v3987, %v3989
        %v3991 = vrot.slane %v3983, %v3990
        %3992 = vset.pattern.permute.xlu0 2
        %3993 = vperm.xlu0 %3992, %v283
        %v3994 = vpop.permute.xlu0 %3993
        %v3997 = vunpack.c.l.s4 839922192
        %v3998 = vunpack.c.0.s8 %v3997
        %v3999 = vlaneseq
        %v4000 = vshrl.u32 %v3999, 7
        %v4001 = vsub.s32 %v3998, %v4000
        %v4002 = vrot.slane %v3994, %v4001
        %4003 = vset.pattern.permute.xlu0 2
        %4004 = vperm.xlu0 %4003, %v284
        %v4005 = vpop.permute.xlu0 %4004
        %v4008 = vunpack.c.l.s4 839922192
        %v4009 = vunpack.c.0.s8 %v4008
        %v4010 = vlaneseq
        %v4011 = vshrl.u32 %v4010, 7
        %v4012 = vsub.s32 %v4009, %v4011
        %v4013 = vrot.slane %v4005, %v4012
        %4014 = vset.pattern.permute.xlu0 2
        %4015 = vperm.xlu0 %4014, %v285
        %v4016 = vpop.permute.xlu0 %4015
        %v4019 = vunpack.c.l.s4 839922192
        %v4020 = vunpack.c.0.s8 %v4019
        %v4021 = vlaneseq
        %v4022 = vshrl.u32 %v4021, 7
        %v4023 = vsub.s32 %v4020, %v4022
        %v4024 = vrot.slane %v4016, %v4023
        %4025 = vset.pattern.permute.xlu0 2
        %4026 = vperm.xlu0 %4025, %v286
        %v4027 = vpop.permute.xlu0 %4026
        %v4030 = vunpack.c.l.s4 839922192
        %v4031 = vunpack.c.0.s8 %v4030
        %v4032 = vlaneseq
        %v4033 = vshrl.u32 %v4032, 7
        %v4034 = vsub.s32 %v4031, %v4033
        %v4035 = vrot.slane %v4027, %v4034
        %4036 = vset.pattern.permute.xlu0 2
        %4037 = vperm.xlu0 %4036, %v287
        %v4038 = vpop.permute.xlu0 %4037
        %v4041 = vunpack.c.l.s4 839922192
        %v4042 = vunpack.c.0.s8 %v4041
        %v4043 = vlaneseq
        %v4044 = vshrl.u32 %v4043, 7
        %v4045 = vsub.s32 %v4042, %v4044
        %v4046 = vrot.slane %v4038, %v4045
        %4047 = vset.pattern.permute.xlu0 2
        %4048 = vperm.xlu0 %4047, %v288
        %v4049 = vpop.permute.xlu0 %4048
        %v4052 = vunpack.c.l.s4 839922192
        %v4053 = vunpack.c.0.s8 %v4052
        %v4054 = vlaneseq
        %v4055 = vshrl.u32 %v4054, 7
        %v4056 = vsub.s32 %v4053, %v4055
        %v4057 = vrot.slane %v4049, %v4056
        %4058 = vset.pattern.permute.xlu0 2
        %4059 = vperm.xlu0 %4058, %v289
        %v4060 = vpop.permute.xlu0 %4059
        %v4063 = vunpack.c.l.s4 839922192
        %v4064 = vunpack.c.0.s8 %v4063
        %v4065 = vlaneseq
        %v4066 = vshrl.u32 %v4065, 7
        %v4067 = vsub.s32 %v4064, %v4066
        %v4068 = vrot.slane %v4060, %v4067
        %4069 = vset.pattern.permute.xlu0 2
        %4070 = vperm.xlu0 %4069, %v290
        %v4071 = vpop.permute.xlu0 %4070
        %v4074 = vunpack.c.l.s4 839922192
        %v4075 = vunpack.c.0.s8 %v4074
        %v4076 = vlaneseq
        %v4077 = vshrl.u32 %v4076, 7
        %v4078 = vsub.s32 %v4075, %v4077
        %v4079 = vrot.slane %v4071, %v4078
        %4080 = vset.pattern.permute.xlu0 2
        %4081 = vperm.xlu0 %4080, %v291
        %v4082 = vpop.permute.xlu0 %4081
        %v4085 = vunpack.c.l.s4 839922192
        %v4086 = vunpack.c.0.s8 %v4085
        %v4087 = vlaneseq
        %v4088 = vshrl.u32 %v4087, 7
        %v4089 = vsub.s32 %v4086, %v4088
        %v4090 = vrot.slane %v4082, %v4089
        %4091 = vset.pattern.permute.xlu0 2
        %4092 = vperm.xlu0 %4091, %v292
        %v4093 = vpop.permute.xlu0 %4092
        %v4096 = vunpack.c.l.s4 839922192
        %v4097 = vunpack.c.0.s8 %v4096
        %v4098 = vlaneseq
        %v4099 = vshrl.u32 %v4098, 7
        %v4100 = vsub.s32 %v4097, %v4099
        %v4101 = vrot.slane %v4093, %v4100
        %4102 = vset.pattern.permute.xlu0 2
        %4103 = vperm.xlu0 %4102, %v293
        %v4104 = vpop.permute.xlu0 %4103
        %v4107 = vunpack.c.l.s4 839922192
        %v4108 = vunpack.c.0.s8 %v4107
        %v4109 = vlaneseq
        %v4110 = vshrl.u32 %v4109, 7
        %v4111 = vsub.s32 %v4108, %v4110
        %v4112 = vrot.slane %v4104, %v4111
        %4113 = vset.pattern.permute.xlu0 2
        %4114 = vperm.xlu0 %4113, %v294
        %v4115 = vpop.permute.xlu0 %4114
        %v4118 = vunpack.c.l.s4 839922192
        %v4119 = vunpack.c.0.s8 %v4118
        %v4120 = vlaneseq
        %v4121 = vshrl.u32 %v4120, 7
        %v4122 = vsub.s32 %v4119, %v4121
        %v4123 = vrot.slane %v4115, %v4122
        %4124 = vset.pattern.permute.xlu0 2
        %4125 = vperm.xlu0 %4124, %v295
        %v4126 = vpop.permute.xlu0 %4125
        %v4129 = vunpack.c.l.s4 839922192
        %v4130 = vunpack.c.0.s8 %v4129
        %v4131 = vlaneseq
        %v4132 = vshrl.u32 %v4131, 7
        %v4133 = vsub.s32 %v4130, %v4132
        %v4134 = vrot.slane %v4126, %v4133
        %4135 = vset.pattern.permute.xlu0 2
        %4136 = vperm.xlu0 %4135, %v296
        %v4137 = vpop.permute.xlu0 %4136
        %v4140 = vunpack.c.l.s4 839922192
        %v4141 = vunpack.c.0.s8 %v4140
        %v4142 = vlaneseq
        %v4143 = vshrl.u32 %v4142, 7
        %v4144 = vsub.s32 %v4141, %v4143
        %v4145 = vrot.slane %v4137, %v4144
        %4146 = vset.pattern.permute.xlu0 2
        %4147 = vperm.xlu0 %4146, %v297
        %v4148 = vpop.permute.xlu0 %4147
        %v4151 = vunpack.c.l.s4 839922192
        %v4152 = vunpack.c.0.s8 %v4151
        %v4153 = vlaneseq
        %v4154 = vshrl.u32 %v4153, 7
        %v4155 = vsub.s32 %v4152, %v4154
        %v4156 = vrot.slane %v4148, %v4155
        %4157 = vset.pattern.permute.xlu0 2
        %4158 = vperm.xlu0 %4157, %v298
        %v4159 = vpop.permute.xlu0 %4158
        %v4162 = vunpack.c.l.s4 839922192
        %v4163 = vunpack.c.0.s8 %v4162
        %v4164 = vlaneseq
        %v4165 = vshrl.u32 %v4164, 7
        %v4166 = vsub.s32 %v4163, %v4165
        %v4167 = vrot.slane %v4159, %v4166
        %4168 = vset.pattern.permute.xlu0 2
        %4169 = vperm.xlu0 %4168, %v299
        %v4170 = vpop.permute.xlu0 %4169
        %v4173 = vunpack.c.l.s4 839922192
        %v4174 = vunpack.c.0.s8 %v4173
        %v4175 = vlaneseq
        %v4176 = vshrl.u32 %v4175, 7
        %v4177 = vsub.s32 %v4174, %v4176
        %v4178 = vrot.slane %v4170, %v4177
        %4179 = vset.pattern.permute.xlu0 2
        %4180 = vperm.xlu0 %4179, %v300
        %v4181 = vpop.permute.xlu0 %4180
        %v4184 = vunpack.c.l.s4 839922192
        %v4185 = vunpack.c.0.s8 %v4184
        %v4186 = vlaneseq
        %v4187 = vshrl.u32 %v4186, 7
        %v4188 = vsub.s32 %v4185, %v4187
        %v4189 = vrot.slane %v4181, %v4188
        %4190 = vset.pattern.permute.xlu0 2
        %4191 = vperm.xlu0 %4190, %v301
        %v4192 = vpop.permute.xlu0 %4191
        %v4195 = vunpack.c.l.s4 839922192
        %v4196 = vunpack.c.0.s8 %v4195
        %v4197 = vlaneseq
        %v4198 = vshrl.u32 %v4197, 7
        %v4199 = vsub.s32 %v4196, %v4198
        %v4200 = vrot.slane %v4192, %v4199
        %4201 = vset.pattern.permute.xlu0 2
        %4202 = vperm.xlu0 %4201, %v302
        %v4203 = vpop.permute.xlu0 %4202
        %v4206 = vunpack.c.l.s4 839922192
        %v4207 = vunpack.c.0.s8 %v4206
        %v4208 = vlaneseq
        %v4209 = vshrl.u32 %v4208, 7
        %v4210 = vsub.s32 %v4207, %v4209
        %v4211 = vrot.slane %v4203, %v4210
        %4212 = vset.pattern.permute.xlu0 2
        %4213 = vperm.xlu0 %4212, %v303
        %v4214 = vpop.permute.xlu0 %4213
        %v4217 = vunpack.c.l.s4 839922192
        %v4218 = vunpack.c.0.s8 %v4217
        %v4219 = vlaneseq
        %v4220 = vshrl.u32 %v4219, 7
        %v4221 = vsub.s32 %v4218, %v4220
        %v4222 = vrot.slane %v4214, %v4221
        %4223 = vset.pattern.permute.xlu0 2
        %4224 = vperm.xlu0 %4223, %v304
        %v4225 = vpop.permute.xlu0 %4224
        %v4228 = vunpack.c.l.s4 839922192
        %v4229 = vunpack.c.0.s8 %v4228
        %v4230 = vlaneseq
        %v4231 = vshrl.u32 %v4230, 7
        %v4232 = vsub.s32 %v4229, %v4231
        %v4233 = vrot.slane %v4225, %v4232
        %4234 = vset.pattern.permute.xlu0 2
        %4235 = vperm.xlu0 %4234, %v305
        %v4236 = vpop.permute.xlu0 %4235
        %v4239 = vunpack.c.l.s4 839922192
        %v4240 = vunpack.c.0.s8 %v4239
        %v4241 = vlaneseq
        %v4242 = vshrl.u32 %v4241, 7
        %v4243 = vsub.s32 %v4240, %v4242
        %v4244 = vrot.slane %v4236, %v4243
        %4245 = vset.pattern.permute.xlu0 2
        %4246 = vperm.xlu0 %4245, %v306
        %v4247 = vpop.permute.xlu0 %4246
        %v4250 = vunpack.c.l.s4 839922192
        %v4251 = vunpack.c.0.s8 %v4250
        %v4252 = vlaneseq
        %v4253 = vshrl.u32 %v4252, 7
        %v4254 = vsub.s32 %v4251, %v4253
        %v4255 = vrot.slane %v4247, %v4254
        %4256 = vset.pattern.permute.xlu0 2
        %4257 = vperm.xlu0 %4256, %v307
        %v4258 = vpop.permute.xlu0 %4257
        %v4261 = vunpack.c.l.s4 839922192
        %v4262 = vunpack.c.0.s8 %v4261
        %v4263 = vlaneseq
        %v4264 = vshrl.u32 %v4263, 7
        %v4265 = vsub.s32 %v4262, %v4264
        %v4266 = vrot.slane %v4258, %v4265
        %4267 = vset.pattern.permute.xlu0 2
        %4268 = vperm.xlu0 %4267, %v308
        %v4269 = vpop.permute.xlu0 %4268
        %v4272 = vunpack.c.l.s4 839922192
        %v4273 = vunpack.c.0.s8 %v4272
        %v4274 = vlaneseq
        %v4275 = vshrl.u32 %v4274, 7
        %v4276 = vsub.s32 %v4273, %v4275
        %v4277 = vrot.slane %v4269, %v4276
        %4278 = vset.pattern.permute.xlu0 2
        %4279 = vperm.xlu0 %4278, %v309
        %v4280 = vpop.permute.xlu0 %4279
        %v4283 = vunpack.c.l.s4 839922192
        %v4284 = vunpack.c.0.s8 %v4283
        %v4285 = vlaneseq
        %v4286 = vshrl.u32 %v4285, 7
        %v4287 = vsub.s32 %v4284, %v4286
        %v4288 = vrot.slane %v4280, %v4287
        %4289 = vset.pattern.permute.xlu0 2
        %4290 = vperm.xlu0 %4289, %v310
        %v4291 = vpop.permute.xlu0 %4290
        %v4294 = vunpack.c.l.s4 839922192
        %v4295 = vunpack.c.0.s8 %v4294
        %v4296 = vlaneseq
        %v4297 = vshrl.u32 %v4296, 7
        %v4298 = vsub.s32 %v4295, %v4297
        %v4299 = vrot.slane %v4291, %v4298
        %v4332 = vunpack.c.l.b16 %v3958
        %v4333 = vunpack.c.l.b16 %v3969
        %v4334 = vunpack.c.l.b16 %v3980
        %v4335 = vunpack.c.l.b16 %v3991
        %v4336 = vunpack.c.l.b16 %v4002
        %v4337 = vunpack.c.l.b16 %v4013
        %v4338 = vunpack.c.l.b16 %v4024
        %v4339 = vunpack.c.l.b16 %v4035
        %v4340 = vunpack.c.l.b16 %v4046
        %v4341 = vunpack.c.l.b16 %v4057
        %v4342 = vunpack.c.l.b16 %v4068
        %v4343 = vunpack.c.l.b16 %v4079
        %v4344 = vunpack.c.l.b16 %v4090
        %v4345 = vunpack.c.l.b16 %v4101
        %v4346 = vunpack.c.l.b16 %v4112
        %v4347 = vunpack.c.l.b16 %v4123
        %v4348 = vunpack.c.l.b16 %v4134
        %v4349 = vunpack.c.l.b16 %v4145
        %v4350 = vunpack.c.l.b16 %v4156
        %v4351 = vunpack.c.l.b16 %v4167
        %v4352 = vunpack.c.l.b16 %v4178
        %v4353 = vunpack.c.l.b16 %v4189
        %v4354 = vunpack.c.l.b16 %v4200
        %v4355 = vunpack.c.l.b16 %v4211
        %v4356 = vunpack.c.l.b16 %v4222
        %v4357 = vunpack.c.l.b16 %v4233
        %v4358 = vunpack.c.l.b16 %v4244
        %v4359 = vunpack.c.l.b16 %v4255
        %v4360 = vunpack.c.l.b16 %v4266
        %v4361 = vunpack.c.l.b16 %v4277
        %v4362 = vunpack.c.l.b16 %v4288
        %v4363 = vunpack.c.l.b16 %v4299
        %v4364 = vpack.c.b16 %v4333, %v4332
        %v4365 = vpack.c.b16 %v4335, %v4334
        %v4366 = vpack.c.b16 %v4337, %v4336
        %v4367 = vpack.c.b16 %v4339, %v4338
        %v4368 = vpack.c.b16 %v4341, %v4340
        %v4369 = vpack.c.b16 %v4343, %v4342
        %v4370 = vpack.c.b16 %v4345, %v4344
        %v4371 = vpack.c.b16 %v4347, %v4346
        %v4372 = vpack.c.b16 %v4349, %v4348
        %v4373 = vpack.c.b16 %v4351, %v4350
        %v4374 = vpack.c.b16 %v4353, %v4352
        %v4375 = vpack.c.b16 %v4355, %v4354
        %v4376 = vpack.c.b16 %v4357, %v4356
        %v4377 = vpack.c.b16 %v4359, %v4358
        %v4378 = vpack.c.b16 %v4361, %v4360
        %v4379 = vpack.c.b16 %v4363, %v4362
        %v4396 = vadd.bf16 %v3884, %v4364
        %v4397 = vadd.bf16 %v3885, %v4364
        %v4398 = vadd.bf16 %v3886, %v4364
        %v4399 = vadd.bf16 %v3887, %v4364
        %v4400 = vadd.bf16 %v3888, %v4365
        %v4401 = vadd.bf16 %v3889, %v4365
        %v4402 = vadd.bf16 %v3890, %v4365
        %v4403 = vadd.bf16 %v3891, %v4365
        %v4404 = vadd.bf16 %v3892, %v4366
        %v4405 = vadd.bf16 %v3893, %v4366
        %v4406 = vadd.bf16 %v3894, %v4366
        %v4407 = vadd.bf16 %v3895, %v4366
        %v4408 = vadd.bf16 %v3896, %v4367
        %v4409 = vadd.bf16 %v3897, %v4367
        %v4410 = vadd.bf16 %v3898, %v4367
        %v4411 = vadd.bf16 %v3899, %v4367
        %v4412 = vadd.bf16 %v3900, %v4368
        %v4413 = vadd.bf16 %v3901, %v4368
        %v4414 = vadd.bf16 %v3902, %v4368
        %v4415 = vadd.bf16 %v3903, %v4368
        %v4416 = vadd.bf16 %v3904, %v4369
        %v4417 = vadd.bf16 %v3905, %v4369
        %v4418 = vadd.bf16 %v3906, %v4369
        %v4419 = vadd.bf16 %v3907, %v4369
        %v4420 = vadd.bf16 %v3908, %v4370
        %v4421 = vadd.bf16 %v3909, %v4370
        %v4422 = vadd.bf16 %v3910, %v4370
        %v4423 = vadd.bf16 %v3911, %v4370
        %v4424 = vadd.bf16 %v3912, %v4371
        %v4425 = vadd.bf16 %v3913, %v4371
        %v4426 = vadd.bf16 %v3914, %v4371
        %v4427 = vadd.bf16 %v3915, %v4371
        %v4428 = vadd.bf16 %v3916, %v4372
        %v4429 = vadd.bf16 %v3917, %v4372
        %v4430 = vadd.bf16 %v3918, %v4372
        %v4431 = vadd.bf16 %v3919, %v4372
        %v4432 = vadd.bf16 %v3920, %v4373
        %v4433 = vadd.bf16 %v3921, %v4373
        %v4434 = vadd.bf16 %v3922, %v4373
        %v4435 = vadd.bf16 %v3923, %v4373
        %v4436 = vadd.bf16 %v3924, %v4374
        %v4437 = vadd.bf16 %v3925, %v4374
        %v4438 = vadd.bf16 %v3926, %v4374
        %v4439 = vadd.bf16 %v3927, %v4374
        %v4440 = vadd.bf16 %v3928, %v4375
        %v4441 = vadd.bf16 %v3929, %v4375
        %v4442 = vadd.bf16 %v3930, %v4375
        %v4443 = vadd.bf16 %v3931, %v4375
        %v4444 = vadd.bf16 %v3932, %v4376
        %v4445 = vadd.bf16 %v3933, %v4376
        %v4446 = vadd.bf16 %v3934, %v4376
        %v4447 = vadd.bf16 %v3935, %v4376
        %v4448 = vadd.bf16 %v3936, %v4377
        %v4449 = vadd.bf16 %v3937, %v4377
        %v4450 = vadd.bf16 %v3938, %v4377
        %v4451 = vadd.bf16 %v3939, %v4377
        %v4452 = vadd.bf16 %v3940, %v4378
        %v4453 = vadd.bf16 %v3941, %v4378
        %v4454 = vadd.bf16 %v3942, %v4378
        %v4455 = vadd.bf16 %v3943, %v4378
        %v4456 = vadd.bf16 %v3944, %v4379
        %v4457 = vadd.bf16 %v3945, %v4379
        %v4458 = vadd.bf16 %v3946, %v4379
        %v4459 = vadd.bf16 %v3947, %v4379
        %v4460 = vmax.bf16 %v4396, 0
        %v4461 = vmax.bf16 %v4397, 0
        %v4462 = vmax.bf16 %v4398, 0
        %v4463 = vmax.bf16 %v4399, 0
        %v4464 = vmax.bf16 %v4400, 0
        %v4465 = vmax.bf16 %v4401, 0
        %v4466 = vmax.bf16 %v4402, 0
        %v4467 = vmax.bf16 %v4403, 0
        %v4468 = vmax.bf16 %v4404, 0
        %v4469 = vmax.bf16 %v4405, 0
        %v4470 = vmax.bf16 %v4406, 0
        %v4471 = vmax.bf16 %v4407, 0
        %v4472 = vmax.bf16 %v4408, 0
        %v4473 = vmax.bf16 %v4409, 0
        %v4474 = vmax.bf16 %v4410, 0
        %v4475 = vmax.bf16 %v4411, 0
        %v4476 = vmax.bf16 %v4412, 0
        %v4477 = vmax.bf16 %v4413, 0
        %v4478 = vmax.bf16 %v4414, 0
        %v4479 = vmax.bf16 %v4415, 0
        %v4480 = vmax.bf16 %v4416, 0
        %v4481 = vmax.bf16 %v4417, 0
        %v4482 = vmax.bf16 %v4418, 0
        %v4483 = vmax.bf16 %v4419, 0
        %v4484 = vmax.bf16 %v4420, 0
        %v4485 = vmax.bf16 %v4421, 0
        %v4486 = vmax.bf16 %v4422, 0
        %v4487 = vmax.bf16 %v4423, 0
        %v4488 = vmax.bf16 %v4424, 0
        %v4489 = vmax.bf16 %v4425, 0
        %v4490 = vmax.bf16 %v4426, 0
        %v4491 = vmax.bf16 %v4427, 0
        %v4492 = vmax.bf16 %v4428, 0
        %v4493 = vmax.bf16 %v4429, 0
        %v4494 = vmax.bf16 %v4430, 0
        %v4495 = vmax.bf16 %v4431, 0
        %v4496 = vmax.bf16 %v4432, 0
        %v4497 = vmax.bf16 %v4433, 0
        %v4498 = vmax.bf16 %v4434, 0
        %v4499 = vmax.bf16 %v4435, 0
        %v4500 = vmax.bf16 %v4436, 0
        %v4501 = vmax.bf16 %v4437, 0
        %v4502 = vmax.bf16 %v4438, 0
        %v4503 = vmax.bf16 %v4439, 0
        %v4504 = vmax.bf16 %v4440, 0
        %v4505 = vmax.bf16 %v4441, 0
        %v4506 = vmax.bf16 %v4442, 0
        %v4507 = vmax.bf16 %v4443, 0
        %v4508 = vmax.bf16 %v4444, 0
        %v4509 = vmax.bf16 %v4445, 0
        %v4510 = vmax.bf16 %v4446, 0
        %v4511 = vmax.bf16 %v4447, 0
        %v4512 = vmax.bf16 %v4448, 0
        %v4513 = vmax.bf16 %v4449, 0
        %v4514 = vmax.bf16 %v4450, 0
        %v4515 = vmax.bf16 %v4451, 0
        %v4516 = vmax.bf16 %v4452, 0
        %v4517 = vmax.bf16 %v4453, 0
        %v4518 = vmax.bf16 %v4454, 0
        %v4519 = vmax.bf16 %v4455, 0
        %v4520 = vmax.bf16 %v4456, 0
        %v4521 = vmax.bf16 %v4457, 0
        %v4522 = vmax.bf16 %v4458, 0
        %v4523 = vmax.bf16 %v4459, 0
        %s4524 = scalar_lea.vmem [#allocation2], 512
        %v4525 = vld [vmem:[%s4524] sm:$0xff]
        %v4526 = vld [vmem:[%s4524 + $0x8] sm:$0xff]
        %v4527 = vld [vmem:[%s4524 + $0x10] sm:$0xff]
        %v4528 = vld [vmem:[%s4524 + $0x18] sm:$0xff]
        %v4529 = vld [vmem:[%s4524 + $0x20] sm:$0xff]
        %v4530 = vld [vmem:[%s4524 + $0x28] sm:$0xff]
        %v4531 = vld [vmem:[%s4524 + $0x30] sm:$0xff]
        %v4532 = vld [vmem:[%s4524 + $0x38] sm:$0xff]
        %v4533 = vld [vmem:[%s4524 + $0x40] sm:$0xff]
        %v4534 = vld [vmem:[%s4524 + $0x48] sm:$0xff]
        %v4535 = vld [vmem:[%s4524 + $0x50] sm:$0xff]
        %v4536 = vld [vmem:[%s4524 + $0x58] sm:$0xff]
        %v4537 = vld [vmem:[%s4524 + $0x60] sm:$0xff]
        %v4538 = vld [vmem:[%s4524 + $0x68] sm:$0xff]
        %v4539 = vld [vmem:[%s4524 + $0x70] sm:$0xff]
        %v4540 = vld [vmem:[%s4524 + $0x78] sm:$0xff]
        %v4541 = vld [vmem:[%s4524 + $0x80] sm:$0xff]
        %v4542 = vld [vmem:[%s4524 + $0x88] sm:$0xff]
        %v4543 = vld [vmem:[%s4524 + $0x90] sm:$0xff]
        %v4544 = vld [vmem:[%s4524 + $0x98] sm:$0xff]
        %v4545 = vld [vmem:[%s4524 + $0xa0] sm:$0xff]
        %v4546 = vld [vmem:[%s4524 + $0xa8] sm:$0xff]
        %v4547 = vld [vmem:[%s4524 + $0xb0] sm:$0xff]
        %v4548 = vld [vmem:[%s4524 + $0xb8] sm:$0xff]
        %v4549 = vld [vmem:[%s4524 + $0xc0] sm:$0xff]
        %v4550 = vld [vmem:[%s4524 + $0xc8] sm:$0xff]
        %v4551 = vld [vmem:[%s4524 + $0xd0] sm:$0xff]
        %v4552 = vld [vmem:[%s4524 + $0xd8] sm:$0xff]
        %v4553 = vld [vmem:[%s4524 + $0xe0] sm:$0xff]
        %v4554 = vld [vmem:[%s4524 + $0xe8] sm:$0xff]
        %v4555 = vld [vmem:[%s4524 + $0xf0] sm:$0xff]
        %v4556 = vld [vmem:[%s4524 + $0xf8] sm:$0xff]
        %v4589 = vunpack.c.l.b16 %v4525
        %v4590 = vunpack.c.h.b16 %v4525
        %v4591 = vunpack.c.l.b16 %v4526
        %v4592 = vunpack.c.h.b16 %v4526
        %v4593 = vunpack.c.l.b16 %v4527
        %v4594 = vunpack.c.h.b16 %v4527
        %v4595 = vunpack.c.l.b16 %v4528
        %v4596 = vunpack.c.h.b16 %v4528
        %v4597 = vunpack.c.l.b16 %v4529
        %v4598 = vunpack.c.h.b16 %v4529
        %v4599 = vunpack.c.l.b16 %v4530
        %v4600 = vunpack.c.h.b16 %v4530
        %v4601 = vunpack.c.l.b16 %v4531
        %v4602 = vunpack.c.h.b16 %v4531
        %v4603 = vunpack.c.l.b16 %v4532
        %v4604 = vunpack.c.h.b16 %v4532
        %v4605 = vunpack.c.l.b16 %v4533
        %v4606 = vunpack.c.h.b16 %v4533
        %v4607 = vunpack.c.l.b16 %v4534
        %v4608 = vunpack.c.h.b16 %v4534
        %v4609 = vunpack.c.l.b16 %v4535
        %v4610 = vunpack.c.h.b16 %v4535
        %v4611 = vunpack.c.l.b16 %v4536
        %v4612 = vunpack.c.h.b16 %v4536
        %v4613 = vunpack.c.l.b16 %v4537
        %v4614 = vunpack.c.h.b16 %v4537
        %v4615 = vunpack.c.l.b16 %v4538
        %v4616 = vunpack.c.h.b16 %v4538
        %v4617 = vunpack.c.l.b16 %v4539
        %v4618 = vunpack.c.h.b16 %v4539
        %v4619 = vunpack.c.l.b16 %v4540
        %v4620 = vunpack.c.h.b16 %v4540
        %v4621 = vunpack.c.l.b16 %v4541
        %v4622 = vunpack.c.h.b16 %v4541
        %v4623 = vunpack.c.l.b16 %v4542
        %v4624 = vunpack.c.h.b16 %v4542
        %v4625 = vunpack.c.l.b16 %v4543
        %v4626 = vunpack.c.h.b16 %v4543
        %v4627 = vunpack.c.l.b16 %v4544
        %v4628 = vunpack.c.h.b16 %v4544
        %v4629 = vunpack.c.l.b16 %v4545
        %v4630 = vunpack.c.h.b16 %v4545
        %v4631 = vunpack.c.l.b16 %v4546
        %v4632 = vunpack.c.h.b16 %v4546
        %v4633 = vunpack.c.l.b16 %v4547
        %v4634 = vunpack.c.h.b16 %v4547
        %v4635 = vunpack.c.l.b16 %v4548
        %v4636 = vunpack.c.h.b16 %v4548
        %v4637 = vunpack.c.l.b16 %v4549
        %v4638 = vunpack.c.h.b16 %v4549
        %v4639 = vunpack.c.l.b16 %v4550
        %v4640 = vunpack.c.h.b16 %v4550
        %v4641 = vunpack.c.l.b16 %v4551
        %v4642 = vunpack.c.h.b16 %v4551
        %v4643 = vunpack.c.l.b16 %v4552
        %v4644 = vunpack.c.h.b16 %v4552
        %v4645 = vunpack.c.l.b16 %v4553
        %v4646 = vunpack.c.h.b16 %v4553
        %v4647 = vunpack.c.l.b16 %v4554
        %v4648 = vunpack.c.h.b16 %v4554
        %v4649 = vunpack.c.l.b16 %v4555
        %v4650 = vunpack.c.h.b16 %v4555
        %v4651 = vunpack.c.l.b16 %v4556
        %v4652 = vunpack.c.h.b16 %v4556
        %v4653 = vpack.c.b16 %v4591, %v4589
        %v4654 = vpack.c.b16 %v4592, %v4590
        %v4655 = vpack.c.b16 %v4595, %v4593
        %v4656 = vpack.c.b16 %v4596, %v4594
        %v4657 = vpack.c.b16 %v4599, %v4597
        %v4658 = vpack.c.b16 %v4600, %v4598
        %v4659 = vpack.c.b16 %v4603, %v4601
        %v4660 = vpack.c.b16 %v4604, %v4602
        %v4661 = vpack.c.b16 %v4607, %v4605
        %v4662 = vpack.c.b16 %v4608, %v4606
        %v4663 = vpack.c.b16 %v4611, %v4609
        %v4664 = vpack.c.b16 %v4612, %v4610
        %v4665 = vpack.c.b16 %v4615, %v4613
        %v4666 = vpack.c.b16 %v4616, %v4614
        %v4667 = vpack.c.b16 %v4619, %v4617
        %v4668 = vpack.c.b16 %v4620, %v4618
        %v4669 = vpack.c.b16 %v4623, %v4621
        %v4670 = vpack.c.b16 %v4624, %v4622
        %v4671 = vpack.c.b16 %v4627, %v4625
        %v4672 = vpack.c.b16 %v4628, %v4626
        %v4673 = vpack.c.b16 %v4631, %v4629
        %v4674 = vpack.c.b16 %v4632, %v4630
        %v4675 = vpack.c.b16 %v4635, %v4633
        %v4676 = vpack.c.b16 %v4636, %v4634
        %v4677 = vpack.c.b16 %v4639, %v4637
        %v4678 = vpack.c.b16 %v4640, %v4638
        %v4679 = vpack.c.b16 %v4643, %v4641
        %v4680 = vpack.c.b16 %v4644, %v4642
        %v4681 = vpack.c.b16 %v4647, %v4645
        %v4682 = vpack.c.b16 %v4648, %v4646
        %v4683 = vpack.c.b16 %v4651, %v4649
        %v4684 = vpack.c.b16 %v4652, %v4650
        %4717 = vmatprep.subr.bf16.mxu0 %v4461
        %4718 = vmatpush1.bf16.msra.mxu0 %v4460
        %4719 = vmatprep.subr.bf16.mxu0 %v4465
        %4720 = vmatpush1.bf16.msra.mxu0 %v4464
        %4721 = vmatprep.subr.bf16.mxu0 %v4469
        %4722 = vmatpush1.bf16.msra.mxu0 %v4468
        %4723 = vmatprep.subr.bf16.mxu0 %v4473
        %4724 = vmatpush1.bf16.msra.mxu0 %v4472
        %4725 = vmatprep.subr.bf16.mxu0 %v4477
        %4726 = vmatpush1.bf16.msra.mxu0 %v4476
        %4727 = vmatprep.subr.bf16.mxu0 %v4481
        %4728 = vmatpush1.bf16.msra.mxu0 %v4480
        %4729 = vmatprep.subr.bf16.mxu0 %v4485
        %4730 = vmatpush1.bf16.msra.mxu0 %v4484
        %4731 = vmatprep.subr.bf16.mxu0 %v4489
        %4732 = vmatpush1.bf16.msra.mxu0 %v4488
        %4733 = vmatprep.subr.bf16.mxu0 %v4493
        %4734 = vmatpush1.bf16.msra.mxu0 %v4492
        %4735 = vmatprep.subr.bf16.mxu0 %v4497
        %4736 = vmatpush1.bf16.msra.mxu0 %v4496
        %4737 = vmatprep.subr.bf16.mxu0 %v4501
        %4738 = vmatpush1.bf16.msra.mxu0 %v4500
        %4739 = vmatprep.subr.bf16.mxu0 %v4505
        %4740 = vmatpush1.bf16.msra.mxu0 %v4504
        %4741 = vmatprep.subr.bf16.mxu0 %v4509
        %4742 = vmatpush1.bf16.msra.mxu0 %v4508
        %4743 = vmatprep.subr.bf16.mxu0 %v4513
        %4744 = vmatpush1.bf16.msra.mxu0 %v4512
        %4745 = vmatprep.subr.bf16.mxu0 %v4517
        %4746 = vmatpush1.bf16.msra.mxu0 %v4516
        %4747 = vmatprep.subr.bf16.mxu0 %v4521
        %4748 = vmatpush1.bf16.msra.mxu0 %v4520
        %4749 = vmatprep.mubr.bf16.mxu0 %v4654
        %4750 = vmatmul.mubr.bf16.gmra.mrb[0].mxu0 %v4653
        %v4751 = vpop.f32.mrb[0].mxu0
        %v4752 = vadd.f32 0.0, %v4751
        %v4753 = vpop.f32.mrb[0].mxu0
        %v4754 = vadd.f32 0.0, %v4753
        %v4755 = vpop.f32.mrb[0].mxu0
        %v4756 = vadd.f32 0.0, %v4755
        %v4757 = vpop.f32.mrb[0].mxu0
        %v4758 = vadd.f32 0.0, %v4757
        %4759 = vmatprep.mubr.bf16.mxu0 %v4656
        %4760 = vmatmul.mubr.bf16.gmra.mrb[0].mxu0 %v4655
        %v4761 = vpop.f32.mrb[0].mxu0
        %v4762 = vadd.f32 0.0, %v4761
        %v4763 = vpop.f32.mrb[0].mxu0
        %v4764 = vadd.f32 0.0, %v4763
        %v4765 = vpop.f32.mrb[0].mxu0
        %v4766 = vadd.f32 0.0, %v4765
        %v4767 = vpop.f32.mrb[0].mxu0
        %v4768 = vadd.f32 0.0, %v4767
        %4769 = vmatprep.mubr.bf16.mxu0 %v4658
        %4770 = vmatmul.mubr.bf16.gmra.mrb[0].mxu0 %v4657
        %v4771 = vpop.f32.mrb[0].mxu0
        %v4772 = vadd.f32 0.0, %v4771
        %v4773 = vpop.f32.mrb[0].mxu0
        %v4774 = vadd.f32 0.0, %v4773
        %v4775 = vpop.f32.mrb[0].mxu0
        %v4776 = vadd.f32 0.0, %v4775
        %v4777 = vpop.f32.mrb[0].mxu0
        %v4778 = vadd.f32 0.0, %v4777
        %4779 = vmatprep.mubr.bf16.mxu0 %v4660
        %4780 = vmatmul.mubr.bf16.gmra.mrb[0].mxu0 %v4659
        %v4781 = vpop.f32.mrb[0].mxu0
        %v4782 = vadd.f32 0.0, %v4781
        %v4783 = vpop.f32.mrb[0].mxu0
        %v4784 = vadd.f32 0.0, %v4783
        %v4785 = vpop.f32.mrb[0].mxu0
        %v4786 = vadd.f32 0.0, %v4785
        %v4787 = vpop.f32.mrb[0].mxu0
        %v4788 = vadd.f32 0.0, %v4787
        %4789 = vmatprep.mubr.bf16.mxu0 %v4662
        %4790 = vmatmul.mubr.bf16.gmra.mrb[0].mxu0 %v4661
        %v4791 = vpop.f32.mrb[0].mxu0
        %v4792 = vadd.f32 0.0, %v4791
        %v4793 = vpop.f32.mrb[0].mxu0
        %v4794 = vadd.f32 0.0, %v4793
        %v4795 = vpop.f32.mrb[0].mxu0
        %v4796 = vadd.f32 0.0, %v4795
        %v4797 = vpop.f32.mrb[0].mxu0
        %v4798 = vadd.f32 0.0, %v4797
        %4799 = vmatprep.mubr.bf16.mxu0 %v4664
        %4800 = vmatmul.mubr.bf16.gmra.mrb[0].mxu0 %v4663
        %v4801 = vpop.f32.mrb[0].mxu0
        %v4802 = vadd.f32 0.0, %v4801
        %v4803 = vpop.f32.mrb[0].mxu0
        %v4804 = vadd.f32 0.0, %v4803
        %v4805 = vpop.f32.mrb[0].mxu0
        %v4806 = vadd.f32 0.0, %v4805
        %v4807 = vpop.f32.mrb[0].mxu0
        %v4808 = vadd.f32 0.0, %v4807
        %4809 = vmatprep.mubr.bf16.mxu0 %v4666
        %4810 = vmatmul.mubr.bf16.gmra.mrb[0].mxu0 %v4665
        %v4811 = vpop.f32.mrb[0].mxu0
        %v4812 = vadd.f32 0.0, %v4811
        %v4813 = vpop.f32.mrb[0].mxu0
        %v4814 = vadd.f32 0.0, %v4813
        %v4815 = vpop.f32.mrb[0].mxu0
        %v4816 = vadd.f32 0.0, %v4815
        %v4817 = vpop.f32.mrb[0].mxu0
        %v4818 = vadd.f32 0.0, %v4817
        %4819 = vmatprep.mubr.bf16.mxu0 %v4668
        %4820 = vmatmul.mubr.bf16.gmra.mrb[0].mxu0 %v4667
        %v4821 = vpop.f32.mrb[0].mxu0
        %v4822 = vadd.f32 0.0, %v4821
        %v4823 = vpop.f32.mrb[0].mxu0
        %v4824 = vadd.f32 0.0, %v4823
        %v4825 = vpop.f32.mrb[0].mxu0
        %v4826 = vadd.f32 0.0, %v4825
        %v4827 = vpop.f32.mrb[0].mxu0
        %v4828 = vadd.f32 0.0, %v4827
        %4829 = vmatprep.mubr.bf16.mxu0 %v4670
        %4830 = vmatmul.mubr.bf16.gmra.mrb[0].mxu0 %v4669
        %v4831 = vpop.f32.mrb[0].mxu0
        %v4832 = vadd.f32 0.0, %v4831
        %v4833 = vpop.f32.mrb[0].mxu0
        %v4834 = vadd.f32 0.0, %v4833
        %v4835 = vpop.f32.mrb[0].mxu0
        %v4836 = vadd.f32 0.0, %v4835
        %v4837 = vpop.f32.mrb[0].mxu0
        %v4838 = vadd.f32 0.0, %v4837
        %4839 = vmatprep.mubr.bf16.mxu0 %v4672
        %4840 = vmatmul.mubr.bf16.gmra.mrb[0].mxu0 %v4671
        %v4841 = vpop.f32.mrb[0].mxu0
        %v4842 = vadd.f32 0.0, %v4841
        %v4843 = vpop.f32.mrb[0].mxu0
        %v4844 = vadd.f32 0.0, %v4843
        %v4845 = vpop.f32.mrb[0].mxu0
        %v4846 = vadd.f32 0.0, %v4845
        %v4847 = vpop.f32.mrb[0].mxu0
        %v4848 = vadd.f32 0.0, %v4847
        %4849 = vmatprep.mubr.bf16.mxu0 %v4674
        %4850 = vmatmul.mubr.bf16.gmra.mrb[0].mxu0 %v4673
        %v4851 = vpop.f32.mrb[0].mxu0
        %v4852 = vadd.f32 0.0, %v4851
        %v4853 = vpop.f32.mrb[0].mxu0
        %v4854 = vadd.f32 0.0, %v4853
        %v4855 = vpop.f32.mrb[0].mxu0
        %v4856 = vadd.f32 0.0, %v4855
        %v4857 = vpop.f32.mrb[0].mxu0
        %v4858 = vadd.f32 0.0, %v4857
        %4859 = vmatprep.mubr.bf16.mxu0 %v4676
        %4860 = vmatmul.mubr.bf16.gmra.mrb[0].mxu0 %v4675
        %v4861 = vpop.f32.mrb[0].mxu0
        %v4862 = vadd.f32 0.0, %v4861
        %v4863 = vpop.f32.mrb[0].mxu0
        %v4864 = vadd.f32 0.0, %v4863
        %v4865 = vpop.f32.mrb[0].mxu0
        %v4866 = vadd.f32 0.0, %v4865
        %v4867 = vpop.f32.mrb[0].mxu0
        %v4868 = vadd.f32 0.0, %v4867
        %4869 = vmatprep.mubr.bf16.mxu0 %v4678
        %4870 = vmatmul.mubr.bf16.gmra.mrb[0].mxu0 %v4677
        %v4871 = vpop.f32.mrb[0].mxu0
        %v4872 = vadd.f32 0.0, %v4871
        %v4873 = vpop.f32.mrb[0].mxu0
        %v4874 = vadd.f32 0.0, %v4873
        %v4875 = vpop.f32.mrb[0].mxu0
        %v4876 = vadd.f32 0.0, %v4875
        %v4877 = vpop.f32.mrb[0].mxu0
        %v4878 = vadd.f32 0.0, %v4877
        %4879 = vmatprep.mubr.bf16.mxu0 %v4680
        %4880 = vmatmul.mubr.bf16.gmra.mrb[0].mxu0 %v4679
        %v4881 = vpop.f32.mrb[0].mxu0
        %v4882 = vadd.f32 0.0, %v4881
        %v4883 = vpop.f32.mrb[0].mxu0
        %v4884 = vadd.f32 0.0, %v4883
        %v4885 = vpop.f32.mrb[0].mxu0
        %v4886 = vadd.f32 0.0, %v4885
        %v4887 = vpop.f32.mrb[0].mxu0
        %v4888 = vadd.f32 0.0, %v4887
        %4889 = vmatprep.mubr.bf16.mxu0 %v4682
        %4890 = vmatmul.mubr.bf16.gmra.mrb[0].mxu0 %v4681
        %v4891 = vpop.f32.mrb[0].mxu0
        %v4892 = vadd.f32 0.0, %v4891
        %v4893 = vpop.f32.mrb[0].mxu0
        %v4894 = vadd.f32 0.0, %v4893
        %v4895 = vpop.f32.mrb[0].mxu0
        %v4896 = vadd.f32 0.0, %v4895
        %v4897 = vpop.f32.mrb[0].mxu0
        %v4898 = vadd.f32 0.0, %v4897
        %4899 = vmatprep.mubr.bf16.mxu0 %v4684
        %4900 = vmatmul.mubr.bf16.gmra.mrb[0].mxu0 %v4683
        %v4901 = vpop.f32.mrb[0].mxu0
        %v4902 = vadd.f32 0.0, %v4901
        %v4903 = vpop.f32.mrb[0].mxu0
        %v4904 = vadd.f32 0.0, %v4903
        %v4905 = vpop.f32.mrb[0].mxu0
        %v4906 = vadd.f32 0.0, %v4905
        %v4907 = vpop.f32.mrb[0].mxu0
        %v4908 = vadd.f32 0.0, %v4907
        %4909 = vdwg.mxu0
        %4910 = vmatprep.subr.bf16.mxu0 %v4463
        %4911 = vmatpush1.bf16.msra.mxu0 %v4462
        %4912 = vmatprep.subr.bf16.mxu0 %v4467
        %4913 = vmatpush1.bf16.msra.mxu0 %v4466
        %4914 = vmatprep.subr.bf16.mxu0 %v4471
        %4915 = vmatpush1.bf16.msra.mxu0 %v4470
        %4916 = vmatprep.subr.bf16.mxu0 %v4475
        %4917 = vmatpush1.bf16.msra.mxu0 %v4474
        %4918 = vmatprep.subr.bf16.mxu0 %v4479
        %4919 = vmatpush1.bf16.msra.mxu0 %v4478
        %4920 = vmatprep.subr.bf16.mxu0 %v4483
        %4921 = vmatpush1.bf16.msra.mxu0 %v4482
        %4922 = vmatprep.subr.bf16.mxu0 %v4487
        %4923 = vmatpush1.bf16.msra.mxu0 %v4486
        %4924 = vmatprep.subr.bf16.mxu0 %v4491
        %4925 = vmatpush1.bf16.msra.mxu0 %v4490
        %4926 = vmatprep.subr.bf16.mxu0 %v4495
        %4927 = vmatpush1.bf16.msra.mxu0 %v4494
        %4928 = vmatprep.subr.bf16.mxu0 %v4499
        %4929 = vmatpush1.bf16.msra.mxu0 %v4498
        %4930 = vmatprep.subr.bf16.mxu0 %v4503
        %4931 = vmatpush1.bf16.msra.mxu0 %v4502
        %4932 = vmatprep.subr.bf16.mxu0 %v4507
        %4933 = vmatpush1.bf16.msra.mxu0 %v4506
        %4934 = vmatprep.subr.bf16.mxu0 %v4511
        %4935 = vmatpush1.bf16.msra.mxu0 %v4510
        %4936 = vmatprep.subr.bf16.mxu0 %v4515
        %4937 = vmatpush1.bf16.msra.mxu0 %v4514
        %4938 = vmatprep.subr.bf16.mxu0 %v4519
        %4939 = vmatpush1.bf16.msra.mxu0 %v4518
        %4940 = vmatprep.subr.bf16.mxu0 %v4523
        %4941 = vmatpush1.bf16.msra.mxu0 %v4522
        %4942 = vmatprep.mubr.bf16.mxu0 %v4654
        %4943 = vmatmul.mubr.bf16.gmra.mrb[0].mxu0 %v4653
        %v4944 = vpop.f32.mrb[0].mxu0
        %v4945 = vadd.f32 0.0, %v4944
        %v4946 = vpop.f32.mrb[0].mxu0
        %v4947 = vadd.f32 0.0, %v4946
        %v4948 = vpop.f32.mrb[0].mxu0
        %v4949 = vadd.f32 0.0, %v4948
        %v4950 = vpop.f32.mrb[0].mxu0
        %v4951 = vadd.f32 0.0, %v4950
        %4952 = vmatprep.mubr.bf16.mxu0 %v4656
        %4953 = vmatmul.mubr.bf16.gmra.mrb[0].mxu0 %v4655
        %v4954 = vpop.f32.mrb[0].mxu0
        %v4955 = vadd.f32 0.0, %v4954
        %v4956 = vpop.f32.mrb[0].mxu0
        %v4957 = vadd.f32 0.0, %v4956
        %v4958 = vpop.f32.mrb[0].mxu0
        %v4959 = vadd.f32 0.0, %v4958
        %v4960 = vpop.f32.mrb[0].mxu0
        %v4961 = vadd.f32 0.0, %v4960
        %4962 = vmatprep.mubr.bf16.mxu0 %v4658
        %4963 = vmatmul.mubr.bf16.gmra.mrb[0].mxu0 %v4657
        %v4964 = vpop.f32.mrb[0].mxu0
        %v4965 = vadd.f32 0.0, %v4964
        %v4966 = vpop.f32.mrb[0].mxu0
        %v4967 = vadd.f32 0.0, %v4966
        %v4968 = vpop.f32.mrb[0].mxu0
        %v4969 = vadd.f32 0.0, %v4968
        %v4970 = vpop.f32.mrb[0].mxu0
        %v4971 = vadd.f32 0.0, %v4970
        %4972 = vmatprep.mubr.bf16.mxu0 %v4660
        %4973 = vmatmul.mubr.bf16.gmra.mrb[0].mxu0 %v4659
        %v4974 = vpop.f32.mrb[0].mxu0
        %v4975 = vadd.f32 0.0, %v4974
        %v4976 = vpop.f32.mrb[0].mxu0
        %v4977 = vadd.f32 0.0, %v4976
        %v4978 = vpop.f32.mrb[0].mxu0
        %v4979 = vadd.f32 0.0, %v4978
        %v4980 = vpop.f32.mrb[0].mxu0
        %v4981 = vadd.f32 0.0, %v4980
        %4982 = vmatprep.mubr.bf16.mxu0 %v4662
        %4983 = vmatmul.mubr.bf16.gmra.mrb[0].mxu0 %v4661
        %v4984 = vpop.f32.mrb[0].mxu0
        %v4985 = vadd.f32 0.0, %v4984
        %v4986 = vpop.f32.mrb[0].mxu0
        %v4987 = vadd.f32 0.0, %v4986
        %v4988 = vpop.f32.mrb[0].mxu0
        %v4989 = vadd.f32 0.0, %v4988
        %v4990 = vpop.f32.mrb[0].mxu0
        %v4991 = vadd.f32 0.0, %v4990
        %4992 = vmatprep.mubr.bf16.mxu0 %v4664
        %4993 = vmatmul.mubr.bf16.gmra.mrb[0].mxu0 %v4663
        %v4994 = vpop.f32.mrb[0].mxu0
        %v4995 = vadd.f32 0.0, %v4994
        %v4996 = vpop.f32.mrb[0].mxu0
        %v4997 = vadd.f32 0.0, %v4996
        %v4998 = vpop.f32.mrb[0].mxu0
        %v4999 = vadd.f32 0.0, %v4998
        %v5000 = vpop.f32.mrb[0].mxu0
        %v5001 = vadd.f32 0.0, %v5000
        %5002 = vmatprep.mubr.bf16.mxu0 %v4666
        %5003 = vmatmul.mubr.bf16.gmra.mrb[0].mxu0 %v4665
        %v5004 = vpop.f32.mrb[0].mxu0
        %v5005 = vadd.f32 0.0, %v5004
        %v5006 = vpop.f32.mrb[0].mxu0
        %v5007 = vadd.f32 0.0, %v5006
        %v5008 = vpop.f32.mrb[0].mxu0
        %v5009 = vadd.f32 0.0, %v5008
        %v5010 = vpop.f32.mrb[0].mxu0
        %v5011 = vadd.f32 0.0, %v5010
        %5012 = vmatprep.mubr.bf16.mxu0 %v4668
        %5013 = vmatmul.mubr.bf16.gmra.mrb[0].mxu0 %v4667
        %v5014 = vpop.f32.mrb[0].mxu0
        %v5015 = vadd.f32 0.0, %v5014
        %v5016 = vpop.f32.mrb[0].mxu0
        %v5017 = vadd.f32 0.0, %v5016
        %v5018 = vpop.f32.mrb[0].mxu0
        %v5019 = vadd.f32 0.0, %v5018
        %v5020 = vpop.f32.mrb[0].mxu0
        %v5021 = vadd.f32 0.0, %v5020
        %5022 = vmatprep.mubr.bf16.mxu0 %v4670
        %5023 = vmatmul.mubr.bf16.gmra.mrb[0].mxu0 %v4669
        %v5024 = vpop.f32.mrb[0].mxu0
        %v5025 = vadd.f32 0.0, %v5024
        %v5026 = vpop.f32.mrb[0].mxu0
        %v5027 = vadd.f32 0.0, %v5026
        %v5028 = vpop.f32.mrb[0].mxu0
        %v5029 = vadd.f32 0.0, %v5028
        %v5030 = vpop.f32.mrb[0].mxu0
        %v5031 = vadd.f32 0.0, %v5030
        %5032 = vmatprep.mubr.bf16.mxu0 %v4672
        %5033 = vmatmul.mubr.bf16.gmra.mrb[0].mxu0 %v4671
        %v5034 = vpop.f32.mrb[0].mxu0
        %v5035 = vadd.f32 0.0, %v5034
        %v5036 = vpop.f32.mrb[0].mxu0
        %v5037 = vadd.f32 0.0, %v5036
        %v5038 = vpop.f32.mrb[0].mxu0
        %v5039 = vadd.f32 0.0, %v5038
        %v5040 = vpop.f32.mrb[0].mxu0
        %v5041 = vadd.f32 0.0, %v5040
        %5042 = vmatprep.mubr.bf16.mxu0 %v4674
        %5043 = vmatmul.mubr.bf16.gmra.mrb[0].mxu0 %v4673
        %v5044 = vpop.f32.mrb[0].mxu0
        %v5045 = vadd.f32 0.0, %v5044
        %v5046 = vpop.f32.mrb[0].mxu0
        %v5047 = vadd.f32 0.0, %v5046
        %v5048 = vpop.f32.mrb[0].mxu0
        %v5049 = vadd.f32 0.0, %v5048
        %v5050 = vpop.f32.mrb[0].mxu0
        %v5051 = vadd.f32 0.0, %v5050
        %5052 = vmatprep.mubr.bf16.mxu0 %v4676
        %5053 = vmatmul.mubr.bf16.gmra.mrb[0].mxu0 %v4675
        %v5054 = vpop.f32.mrb[0].mxu0
        %v5055 = vadd.f32 0.0, %v5054
        %v5056 = vpop.f32.mrb[0].mxu0
        %v5057 = vadd.f32 0.0, %v5056
        %v5058 = vpop.f32.mrb[0].mxu0
        %v5059 = vadd.f32 0.0, %v5058
        %v5060 = vpop.f32.mrb[0].mxu0
        %v5061 = vadd.f32 0.0, %v5060
        %5062 = vmatprep.mubr.bf16.mxu0 %v4678
        %5063 = vmatmul.mubr.bf16.gmra.mrb[0].mxu0 %v4677
        %v5064 = vpop.f32.mrb[0].mxu0
        %v5065 = vadd.f32 0.0, %v5064
        %v5066 = vpop.f32.mrb[0].mxu0
        %v5067 = vadd.f32 0.0, %v5066
        %v5068 = vpop.f32.mrb[0].mxu0
        %v5069 = vadd.f32 0.0, %v5068
        %v5070 = vpop.f32.mrb[0].mxu0
        %v5071 = vadd.f32 0.0, %v5070
        %5072 = vmatprep.mubr.bf16.mxu0 %v4680
        %5073 = vmatmul.mubr.bf16.gmra.mrb[0].mxu0 %v4679
        %v5074 = vpop.f32.mrb[0].mxu0
        %v5075 = vadd.f32 0.0, %v5074
        %v5076 = vpop.f32.mrb[0].mxu0
        %v5077 = vadd.f32 0.0, %v5076
        %v5078 = vpop.f32.mrb[0].mxu0
        %v5079 = vadd.f32 0.0, %v5078
        %v5080 = vpop.f32.mrb[0].mxu0
        %v5081 = vadd.f32 0.0, %v5080
        %5082 = vmatprep.mubr.bf16.mxu0 %v4682
        %5083 = vmatmul.mubr.bf16.gmra.mrb[0].mxu0 %v4681
        %v5084 = vpop.f32.mrb[0].mxu0
        %v5085 = vadd.f32 0.0, %v5084
        %v5086 = vpop.f32.mrb[0].mxu0
        %v5087 = vadd.f32 0.0, %v5086
        %v5088 = vpop.f32.mrb[0].mxu0
        %v5089 = vadd.f32 0.0, %v5088
        %v5090 = vpop.f32.mrb[0].mxu0
        %v5091 = vadd.f32 0.0, %v5090
        %5092 = vmatprep.mubr.bf16.mxu0 %v4684
        %5093 = vmatmul.mubr.bf16.gmra.mrb[0].mxu0 %v4683
        %v5094 = vpop.f32.mrb[0].mxu0
        %v5095 = vadd.f32 0.0, %v5094
        %v5096 = vpop.f32.mrb[0].mxu0
        %v5097 = vadd.f32 0.0, %v5096
        %v5098 = vpop.f32.mrb[0].mxu0
        %v5099 = vadd.f32 0.0, %v5098
        %v5100 = vpop.f32.mrb[0].mxu0
        %v5101 = vadd.f32 0.0, %v5100
        %5102 = vdwg.mxu0
        %v5103 = vpack.c.bf16 %v4756, %v4752
        %v5104 = vpack.c.bf16 %v4758, %v4754
        %v5105 = vpack.c.bf16 %v4949, %v4945
        %v5106 = vpack.c.bf16 %v4951, %v4947
        %v5107 = vpack.c.bf16 %v4766, %v4762
        %v5108 = vpack.c.bf16 %v4768, %v4764
        %v5109 = vpack.c.bf16 %v4959, %v4955
        %v5110 = vpack.c.bf16 %v4961, %v4957
        %v5111 = vpack.c.bf16 %v4776, %v4772
        %v5112 = vpack.c.bf16 %v4778, %v4774
        %v5113 = vpack.c.bf16 %v4969, %v4965
        %v5114 = vpack.c.bf16 %v4971, %v4967
        %v5115 = vpack.c.bf16 %v4786, %v4782
        %v5116 = vpack.c.bf16 %v4788, %v4784
        %v5117 = vpack.c.bf16 %v4979, %v4975
        %v5118 = vpack.c.bf16 %v4981, %v4977
        %v5119 = vpack.c.bf16 %v4796, %v4792
        %v5120 = vpack.c.bf16 %v4798, %v4794
        %v5121 = vpack.c.bf16 %v4989, %v4985
        %v5122 = vpack.c.bf16 %v4991, %v4987
        %v5123 = vpack.c.bf16 %v4806, %v4802
        %v5124 = vpack.c.bf16 %v4808, %v4804
        %v5125 = vpack.c.bf16 %v4999, %v4995
        %v5126 = vpack.c.bf16 %v5001, %v4997
        %v5127 = vpack.c.bf16 %v4816, %v4812
        %v5128 = vpack.c.bf16 %v4818, %v4814
        %v5129 = vpack.c.bf16 %v5009, %v5005
        %v5130 = vpack.c.bf16 %v5011, %v5007
        %v5131 = vpack.c.bf16 %v4826, %v4822
        %v5132 = vpack.c.bf16 %v4828, %v4824
        %v5133 = vpack.c.bf16 %v5019, %v5015
        %v5134 = vpack.c.bf16 %v5021, %v5017
        %v5135 = vpack.c.bf16 %v4836, %v4832
        %v5136 = vpack.c.bf16 %v4838, %v4834
        %v5137 = vpack.c.bf16 %v5029, %v5025
        %v5138 = vpack.c.bf16 %v5031, %v5027
        %v5139 = vpack.c.bf16 %v4846, %v4842
        %v5140 = vpack.c.bf16 %v4848, %v4844
        %v5141 = vpack.c.bf16 %v5039, %v5035
        %v5142 = vpack.c.bf16 %v5041, %v5037
        %v5143 = vpack.c.bf16 %v4856, %v4852
        %v5144 = vpack.c.bf16 %v4858, %v4854
        %v5145 = vpack.c.bf16 %v5049, %v5045
        %v5146 = vpack.c.bf16 %v5051, %v5047
        %v5147 = vpack.c.bf16 %v4866, %v4862
        %v5148 = vpack.c.bf16 %v4868, %v4864
        %v5149 = vpack.c.bf16 %v5059, %v5055
        %v5150 = vpack.c.bf16 %v5061, %v5057
        %v5151 = vpack.c.bf16 %v4876, %v4872
        %v5152 = vpack.c.bf16 %v4878, %v4874
        %v5153 = vpack.c.bf16 %v5069, %v5065
        %v5154 = vpack.c.bf16 %v5071, %v5067
        %v5155 = vpack.c.bf16 %v4886, %v4882
        %v5156 = vpack.c.bf16 %v4888, %v4884
        %v5157 = vpack.c.bf16 %v5079, %v5075
        %v5158 = vpack.c.bf16 %v5081, %v5077
        %v5159 = vpack.c.bf16 %v4896, %v4892
        %v5160 = vpack.c.bf16 %v4898, %v4894
        %v5161 = vpack.c.bf16 %v5089, %v5085
        %v5162 = vpack.c.bf16 %v5091, %v5087
        %v5163 = vpack.c.bf16 %v4906, %v4902
        %v5164 = vpack.c.bf16 %v4908, %v4904
        %v5165 = vpack.c.bf16 %v5099, %v5095
        %v5166 = vpack.c.bf16 %v5101, %v5097
        %5167 = vset.pattern.permute.xlu0 3
        %5168 = vperm.xlu0 %5167, %v279
        %v5169 = vpop.permute.xlu0 %5168
        %v5172 = vunpack.c.l.s4 839922192
        %v5173 = vunpack.c.0.s8 %v5172
        %v5174 = vlaneseq
        %v5175 = vshrl.u32 %v5174, 7
        %v5176 = vsub.s32 %v5173, %v5175
        %v5177 = vrot.slane %v5169, %v5176
        %5178 = vset.pattern.permute.xlu0 3
        %5179 = vperm.xlu0 %5178, %v280
        %v5180 = vpop.permute.xlu0 %5179
        %v5183 = vunpack.c.l.s4 839922192
        %v5184 = vunpack.c.0.s8 %v5183
        %v5185 = vlaneseq
        %v5186 = vshrl.u32 %v5185, 7
        %v5187 = vsub.s32 %v5184, %v5186
        %v5188 = vrot.slane %v5180, %v5187
        %5189 = vset.pattern.permute.xlu0 3
        %5190 = vperm.xlu0 %5189, %v281
        %v5191 = vpop.permute.xlu0 %5190
        %v5194 = vunpack.c.l.s4 839922192
        %v5195 = vunpack.c.0.s8 %v5194
        %v5196 = vlaneseq
        %v5197 = vshrl.u32 %v5196, 7
        %v5198 = vsub.s32 %v5195, %v5197
        %v5199 = vrot.slane %v5191, %v5198
        %5200 = vset.pattern.permute.xlu0 3
        %5201 = vperm.xlu0 %5200, %v282
        %v5202 = vpop.permute.xlu0 %5201
        %v5205 = vunpack.c.l.s4 839922192
        %v5206 = vunpack.c.0.s8 %v5205
        %v5207 = vlaneseq
        %v5208 = vshrl.u32 %v5207, 7
        %v5209 = vsub.s32 %v5206, %v5208
        %v5210 = vrot.slane %v5202, %v5209
        %5211 = vset.pattern.permute.xlu0 3
        %5212 = vperm.xlu0 %5211, %v283
        %v5213 = vpop.permute.xlu0 %5212
        %v5216 = vunpack.c.l.s4 839922192
        %v5217 = vunpack.c.0.s8 %v5216
        %v5218 = vlaneseq
        %v5219 = vshrl.u32 %v5218, 7
        %v5220 = vsub.s32 %v5217, %v5219
        %v5221 = vrot.slane %v5213, %v5220
        %5222 = vset.pattern.permute.xlu0 3
        %5223 = vperm.xlu0 %5222, %v284
        %v5224 = vpop.permute.xlu0 %5223
        %v5227 = vunpack.c.l.s4 839922192
        %v5228 = vunpack.c.0.s8 %v5227
        %v5229 = vlaneseq
        %v5230 = vshrl.u32 %v5229, 7
        %v5231 = vsub.s32 %v5228, %v5230
        %v5232 = vrot.slane %v5224, %v5231
        %5233 = vset.pattern.permute.xlu0 3
        %5234 = vperm.xlu0 %5233, %v285
        %v5235 = vpop.permute.xlu0 %5234
        %v5238 = vunpack.c.l.s4 839922192
        %v5239 = vunpack.c.0.s8 %v5238
        %v5240 = vlaneseq
        %v5241 = vshrl.u32 %v5240, 7
        %v5242 = vsub.s32 %v5239, %v5241
        %v5243 = vrot.slane %v5235, %v5242
        %5244 = vset.pattern.permute.xlu0 3
        %5245 = vperm.xlu0 %5244, %v286
        %v5246 = vpop.permute.xlu0 %5245
        %v5249 = vunpack.c.l.s4 839922192
        %v5250 = vunpack.c.0.s8 %v5249
        %v5251 = vlaneseq
        %v5252 = vshrl.u32 %v5251, 7
        %v5253 = vsub.s32 %v5250, %v5252
        %v5254 = vrot.slane %v5246, %v5253
        %5255 = vset.pattern.permute.xlu0 3
        %5256 = vperm.xlu0 %5255, %v287
        %v5257 = vpop.permute.xlu0 %5256
        %v5260 = vunpack.c.l.s4 839922192
        %v5261 = vunpack.c.0.s8 %v5260
        %v5262 = vlaneseq
        %v5263 = vshrl.u32 %v5262, 7
        %v5264 = vsub.s32 %v5261, %v5263
        %v5265 = vrot.slane %v5257, %v5264
        %5266 = vset.pattern.permute.xlu0 3
        %5267 = vperm.xlu0 %5266, %v288
        %v5268 = vpop.permute.xlu0 %5267
        %v5271 = vunpack.c.l.s4 839922192
        %v5272 = vunpack.c.0.s8 %v5271
        %v5273 = vlaneseq
        %v5274 = vshrl.u32 %v5273, 7
        %v5275 = vsub.s32 %v5272, %v5274
        %v5276 = vrot.slane %v5268, %v5275
        %5277 = vset.pattern.permute.xlu0 3
        %5278 = vperm.xlu0 %5277, %v289
        %v5279 = vpop.permute.xlu0 %5278
        %v5282 = vunpack.c.l.s4 839922192
        %v5283 = vunpack.c.0.s8 %v5282
        %v5284 = vlaneseq
        %v5285 = vshrl.u32 %v5284, 7
        %v5286 = vsub.s32 %v5283, %v5285
        %v5287 = vrot.slane %v5279, %v5286
        %5288 = vset.pattern.permute.xlu0 3
        %5289 = vperm.xlu0 %5288, %v290
        %v5290 = vpop.permute.xlu0 %5289
        %v5293 = vunpack.c.l.s4 839922192
        %v5294 = vunpack.c.0.s8 %v5293
        %v5295 = vlaneseq
        %v5296 = vshrl.u32 %v5295, 7
        %v5297 = vsub.s32 %v5294, %v5296
        %v5298 = vrot.slane %v5290, %v5297
        %5299 = vset.pattern.permute.xlu0 3
        %5300 = vperm.xlu0 %5299, %v291
        %v5301 = vpop.permute.xlu0 %5300
        %v5304 = vunpack.c.l.s4 839922192
        %v5305 = vunpack.c.0.s8 %v5304
        %v5306 = vlaneseq
        %v5307 = vshrl.u32 %v5306, 7
        %v5308 = vsub.s32 %v5305, %v5307
        %v5309 = vrot.slane %v5301, %v5308
        %5310 = vset.pattern.permute.xlu0 3
        %5311 = vperm.xlu0 %5310, %v292
        %v5312 = vpop.permute.xlu0 %5311
        %v5315 = vunpack.c.l.s4 839922192
        %v5316 = vunpack.c.0.s8 %v5315
        %v5317 = vlaneseq
        %v5318 = vshrl.u32 %v5317, 7
        %v5319 = vsub.s32 %v5316, %v5318
        %v5320 = vrot.slane %v5312, %v5319
        %5321 = vset.pattern.permute.xlu0 3
        %5322 = vperm.xlu0 %5321, %v293
        %v5323 = vpop.permute.xlu0 %5322
        %v5326 = vunpack.c.l.s4 839922192
        %v5327 = vunpack.c.0.s8 %v5326
        %v5328 = vlaneseq
        %v5329 = vshrl.u32 %v5328, 7
        %v5330 = vsub.s32 %v5327, %v5329
        %v5331 = vrot.slane %v5323, %v5330
        %5332 = vset.pattern.permute.xlu0 3
        %5333 = vperm.xlu0 %5332, %v294
        %v5334 = vpop.permute.xlu0 %5333
        %v5337 = vunpack.c.l.s4 839922192
        %v5338 = vunpack.c.0.s8 %v5337
        %v5339 = vlaneseq
        %v5340 = vshrl.u32 %v5339, 7
        %v5341 = vsub.s32 %v5338, %v5340
        %v5342 = vrot.slane %v5334, %v5341
        %5343 = vset.pattern.permute.xlu0 3
        %5344 = vperm.xlu0 %5343, %v295
        %v5345 = vpop.permute.xlu0 %5344
        %v5348 = vunpack.c.l.s4 839922192
        %v5349 = vunpack.c.0.s8 %v5348
        %v5350 = vlaneseq
        %v5351 = vshrl.u32 %v5350, 7
        %v5352 = vsub.s32 %v5349, %v5351
        %v5353 = vrot.slane %v5345, %v5352
        %5354 = vset.pattern.permute.xlu0 3
        %5355 = vperm.xlu0 %5354, %v296
        %v5356 = vpop.permute.xlu0 %5355
        %v5359 = vunpack.c.l.s4 839922192
        %v5360 = vunpack.c.0.s8 %v5359
        %v5361 = vlaneseq
        %v5362 = vshrl.u32 %v5361, 7
        %v5363 = vsub.s32 %v5360, %v5362
        %v5364 = vrot.slane %v5356, %v5363
        %5365 = vset.pattern.permute.xlu0 3
        %5366 = vperm.xlu0 %5365, %v297
        %v5367 = vpop.permute.xlu0 %5366
        %v5370 = vunpack.c.l.s4 839922192
        %v5371 = vunpack.c.0.s8 %v5370
        %v5372 = vlaneseq
        %v5373 = vshrl.u32 %v5372, 7
        %v5374 = vsub.s32 %v5371, %v5373
        %v5375 = vrot.slane %v5367, %v5374
        %5376 = vset.pattern.permute.xlu0 3
        %5377 = vperm.xlu0 %5376, %v298
        %v5378 = vpop.permute.xlu0 %5377
        %v5381 = vunpack.c.l.s4 839922192
        %v5382 = vunpack.c.0.s8 %v5381
        %v5383 = vlaneseq
        %v5384 = vshrl.u32 %v5383, 7
        %v5385 = vsub.s32 %v5382, %v5384
        %v5386 = vrot.slane %v5378, %v5385
        %5387 = vset.pattern.permute.xlu0 3
        %5388 = vperm.xlu0 %5387, %v299
        %v5389 = vpop.permute.xlu0 %5388
        %v5392 = vunpack.c.l.s4 839922192
        %v5393 = vunpack.c.0.s8 %v5392
        %v5394 = vlaneseq
        %v5395 = vshrl.u32 %v5394, 7
        %v5396 = vsub.s32 %v5393, %v5395
        %v5397 = vrot.slane %v5389, %v5396
        %5398 = vset.pattern.permute.xlu0 3
        %5399 = vperm.xlu0 %5398, %v300
        %v5400 = vpop.permute.xlu0 %5399
        %v5403 = vunpack.c.l.s4 839922192
        %v5404 = vunpack.c.0.s8 %v5403
        %v5405 = vlaneseq
        %v5406 = vshrl.u32 %v5405, 7
        %v5407 = vsub.s32 %v5404, %v5406
        %v5408 = vrot.slane %v5400, %v5407
        %5409 = vset.pattern.permute.xlu0 3
        %5410 = vperm.xlu0 %5409, %v301
        %v5411 = vpop.permute.xlu0 %5410
        %v5414 = vunpack.c.l.s4 839922192
        %v5415 = vunpack.c.0.s8 %v5414
        %v5416 = vlaneseq
        %v5417 = vshrl.u32 %v5416, 7
        %v5418 = vsub.s32 %v5415, %v5417
        %v5419 = vrot.slane %v5411, %v5418
        %5420 = vset.pattern.permute.xlu0 3
        %5421 = vperm.xlu0 %5420, %v302
        %v5422 = vpop.permute.xlu0 %5421
        %v5425 = vunpack.c.l.s4 839922192
        %v5426 = vunpack.c.0.s8 %v5425
        %v5427 = vlaneseq
        %v5428 = vshrl.u32 %v5427, 7
        %v5429 = vsub.s32 %v5426, %v5428
        %v5430 = vrot.slane %v5422, %v5429
        %5431 = vset.pattern.permute.xlu0 3
        %5432 = vperm.xlu0 %5431, %v303
        %v5433 = vpop.permute.xlu0 %5432
        %v5436 = vunpack.c.l.s4 839922192
        %v5437 = vunpack.c.0.s8 %v5436
        %v5438 = vlaneseq
        %v5439 = vshrl.u32 %v5438, 7
        %v5440 = vsub.s32 %v5437, %v5439
        %v5441 = vrot.slane %v5433, %v5440
        %5442 = vset.pattern.permute.xlu0 3
        %5443 = vperm.xlu0 %5442, %v304
        %v5444 = vpop.permute.xlu0 %5443
        %v5447 = vunpack.c.l.s4 839922192
        %v5448 = vunpack.c.0.s8 %v5447
        %v5449 = vlaneseq
        %v5450 = vshrl.u32 %v5449, 7
        %v5451 = vsub.s32 %v5448, %v5450
        %v5452 = vrot.slane %v5444, %v5451
        %5453 = vset.pattern.permute.xlu0 3
        %5454 = vperm.xlu0 %5453, %v305
        %v5455 = vpop.permute.xlu0 %5454
        %v5458 = vunpack.c.l.s4 839922192
        %v5459 = vunpack.c.0.s8 %v5458
        %v5460 = vlaneseq
        %v5461 = vshrl.u32 %v5460, 7
        %v5462 = vsub.s32 %v5459, %v5461
        %v5463 = vrot.slane %v5455, %v5462
        %5464 = vset.pattern.permute.xlu0 3
        %5465 = vperm.xlu0 %5464, %v306
        %v5466 = vpop.permute.xlu0 %5465
        %v5469 = vunpack.c.l.s4 839922192
        %v5470 = vunpack.c.0.s8 %v5469
        %v5471 = vlaneseq
        %v5472 = vshrl.u32 %v5471, 7
        %v5473 = vsub.s32 %v5470, %v5472
        %v5474 = vrot.slane %v5466, %v5473
        %5475 = vset.pattern.permute.xlu0 3
        %5476 = vperm.xlu0 %5475, %v307
        %v5477 = vpop.permute.xlu0 %5476
        %v5480 = vunpack.c.l.s4 839922192
        %v5481 = vunpack.c.0.s8 %v5480
        %v5482 = vlaneseq
        %v5483 = vshrl.u32 %v5482, 7
        %v5484 = vsub.s32 %v5481, %v5483
        %v5485 = vrot.slane %v5477, %v5484
        %5486 = vset.pattern.permute.xlu0 3
        %5487 = vperm.xlu0 %5486, %v308
        %v5488 = vpop.permute.xlu0 %5487
        %v5491 = vunpack.c.l.s4 839922192
        %v5492 = vunpack.c.0.s8 %v5491
        %v5493 = vlaneseq
        %v5494 = vshrl.u32 %v5493, 7
        %v5495 = vsub.s32 %v5492, %v5494
        %v5496 = vrot.slane %v5488, %v5495
        %5497 = vset.pattern.permute.xlu0 3
        %5498 = vperm.xlu0 %5497, %v309
        %v5499 = vpop.permute.xlu0 %5498
        %v5502 = vunpack.c.l.s4 839922192
        %v5503 = vunpack.c.0.s8 %v5502
        %v5504 = vlaneseq
        %v5505 = vshrl.u32 %v5504, 7
        %v5506 = vsub.s32 %v5503, %v5505
        %v5507 = vrot.slane %v5499, %v5506
        %5508 = vset.pattern.permute.xlu0 3
        %5509 = vperm.xlu0 %5508, %v310
        %v5510 = vpop.permute.xlu0 %5509
        %v5513 = vunpack.c.l.s4 839922192
        %v5514 = vunpack.c.0.s8 %v5513
        %v5515 = vlaneseq
        %v5516 = vshrl.u32 %v5515, 7
        %v5517 = vsub.s32 %v5514, %v5516
        %v5518 = vrot.slane %v5510, %v5517
        %v5551 = vunpack.c.l.b16 %v5177
        %v5552 = vunpack.c.l.b16 %v5188
        %v5553 = vunpack.c.l.b16 %v5199
        %v5554 = vunpack.c.l.b16 %v5210
        %v5555 = vunpack.c.l.b16 %v5221
        %v5556 = vunpack.c.l.b16 %v5232
        %v5557 = vunpack.c.l.b16 %v5243
        %v5558 = vunpack.c.l.b16 %v5254
        %v5559 = vunpack.c.l.b16 %v5265
        %v5560 = vunpack.c.l.b16 %v5276
        %v5561 = vunpack.c.l.b16 %v5287
        %v5562 = vunpack.c.l.b16 %v5298
        %v5563 = vunpack.c.l.b16 %v5309
        %v5564 = vunpack.c.l.b16 %v5320
        %v5565 = vunpack.c.l.b16 %v5331
        %v5566 = vunpack.c.l.b16 %v5342
        %v5567 = vunpack.c.l.b16 %v5353
        %v5568 = vunpack.c.l.b16 %v5364
        %v5569 = vunpack.c.l.b16 %v5375
        %v5570 = vunpack.c.l.b16 %v5386
        %v5571 = vunpack.c.l.b16 %v5397
        %v5572 = vunpack.c.l.b16 %v5408
        %v5573 = vunpack.c.l.b16 %v5419
        %v5574 = vunpack.c.l.b16 %v5430
        %v5575 = vunpack.c.l.b16 %v5441
        %v5576 = vunpack.c.l.b16 %v5452
        %v5577 = vunpack.c.l.b16 %v5463
        %v5578 = vunpack.c.l.b16 %v5474
        %v5579 = vunpack.c.l.b16 %v5485
        %v5580 = vunpack.c.l.b16 %v5496
        %v5581 = vunpack.c.l.b16 %v5507
        %v5582 = vunpack.c.l.b16 %v5518
        %v5583 = vpack.c.b16 %v5552, %v5551
        %v5584 = vpack.c.b16 %v5554, %v5553
        %v5585 = vpack.c.b16 %v5556, %v5555
        %v5586 = vpack.c.b16 %v5558, %v5557
        %v5587 = vpack.c.b16 %v5560, %v5559
        %v5588 = vpack.c.b16 %v5562, %v5561
        %v5589 = vpack.c.b16 %v5564, %v5563
        %v5590 = vpack.c.b16 %v5566, %v5565
        %v5591 = vpack.c.b16 %v5568, %v5567
        %v5592 = vpack.c.b16 %v5570, %v5569
        %v5593 = vpack.c.b16 %v5572, %v5571
        %v5594 = vpack.c.b16 %v5574, %v5573
        %v5595 = vpack.c.b16 %v5576, %v5575
        %v5596 = vpack.c.b16 %v5578, %v5577
        %v5597 = vpack.c.b16 %v5580, %v5579
        %v5598 = vpack.c.b16 %v5582, %v5581
        %v5615 = vadd.bf16 %v5103, %v5583
        %v5616 = vadd.bf16 %v5104, %v5583
        %v5617 = vadd.bf16 %v5105, %v5583
        %v5618 = vadd.bf16 %v5106, %v5583
        %v5619 = vadd.bf16 %v5107, %v5584
        %v5620 = vadd.bf16 %v5108, %v5584
        %v5621 = vadd.bf16 %v5109, %v5584
        %v5622 = vadd.bf16 %v5110, %v5584
        %v5623 = vadd.bf16 %v5111, %v5585
        %v5624 = vadd.bf16 %v5112, %v5585
        %v5625 = vadd.bf16 %v5113, %v5585
        %v5626 = vadd.bf16 %v5114, %v5585
        %v5627 = vadd.bf16 %v5115, %v5586
        %v5628 = vadd.bf16 %v5116, %v5586
        %v5629 = vadd.bf16 %v5117, %v5586
        %v5630 = vadd.bf16 %v5118, %v5586
        %v5631 = vadd.bf16 %v5119, %v5587
        %v5632 = vadd.bf16 %v5120, %v5587
        %v5633 = vadd.bf16 %v5121, %v5587
        %v5634 = vadd.bf16 %v5122, %v5587
        %v5635 = vadd.bf16 %v5123, %v5588
        %v5636 = vadd.bf16 %v5124, %v5588
        %v5637 = vadd.bf16 %v5125, %v5588
        %v5638 = vadd.bf16 %v5126, %v5588
        %v5639 = vadd.bf16 %v5127, %v5589
        %v5640 = vadd.bf16 %v5128, %v5589
        %v5641 = vadd.bf16 %v5129, %v5589
        %v5642 = vadd.bf16 %v5130, %v5589
        %v5643 = vadd.bf16 %v5131, %v5590
        %v5644 = vadd.bf16 %v5132, %v5590
        %v5645 = vadd.bf16 %v5133, %v5590
        %v5646 = vadd.bf16 %v5134, %v5590
        %v5647 = vadd.bf16 %v5135, %v5591
        %v5648 = vadd.bf16 %v5136, %v5591
        %v5649 = vadd.bf16 %v5137, %v5591
        %v5650 = vadd.bf16 %v5138, %v5591
        %v5651 = vadd.bf16 %v5139, %v5592
        %v5652 = vadd.bf16 %v5140, %v5592
        %v5653 = vadd.bf16 %v5141, %v5592
        %v5654 = vadd.bf16 %v5142, %v5592
        %v5655 = vadd.bf16 %v5143, %v5593
        %v5656 = vadd.bf16 %v5144, %v5593
        %v5657 = vadd.bf16 %v5145, %v5593
        %v5658 = vadd.bf16 %v5146, %v5593
        %v5659 = vadd.bf16 %v5147, %v5594
        %v5660 = vadd.bf16 %v5148, %v5594
        %v5661 = vadd.bf16 %v5149, %v5594
        %v5662 = vadd.bf16 %v5150, %v5594
        %v5663 = vadd.bf16 %v5151, %v5595
        %v5664 = vadd.bf16 %v5152, %v5595
        %v5665 = vadd.bf16 %v5153, %v5595
        %v5666 = vadd.bf16 %v5154, %v5595
        %v5667 = vadd.bf16 %v5155, %v5596
        %v5668 = vadd.bf16 %v5156, %v5596
        %v5669 = vadd.bf16 %v5157, %v5596
        %v5670 = vadd.bf16 %v5158, %v5596
        %v5671 = vadd.bf16 %v5159, %v5597
        %v5672 = vadd.bf16 %v5160, %v5597
        %v5673 = vadd.bf16 %v5161, %v5597
        %v5674 = vadd.bf16 %v5162, %v5597
        %v5675 = vadd.bf16 %v5163, %v5598
        %v5676 = vadd.bf16 %v5164, %v5598
        %v5677 = vadd.bf16 %v5165, %v5598
        %v5678 = vadd.bf16 %v5166, %v5598
        %v5679 = vmax.bf16 %v5615, 0
        %v5680 = vmax.bf16 %v5616, 0
        %v5681 = vmax.bf16 %v5617, 0
        %v5682 = vmax.bf16 %v5618, 0
        %v5683 = vmax.bf16 %v5619, 0
        %v5684 = vmax.bf16 %v5620, 0
        %v5685 = vmax.bf16 %v5621, 0
        %v5686 = vmax.bf16 %v5622, 0
        %v5687 = vmax.bf16 %v5623, 0
        %v5688 = vmax.bf16 %v5624, 0
        %v5689 = vmax.bf16 %v5625, 0
        %v5690 = vmax.bf16 %v5626, 0
        %v5691 = vmax.bf16 %v5627, 0
        %v5692 = vmax.bf16 %v5628, 0
        %v5693 = vmax.bf16 %v5629, 0
        %v5694 = vmax.bf16 %v5630, 0
        %v5695 = vmax.bf16 %v5631, 0
        %v5696 = vmax.bf16 %v5632, 0
        %v5697 = vmax.bf16 %v5633, 0
        %v5698 = vmax.bf16 %v5634, 0
        %v5699 = vmax.bf16 %v5635, 0
        %v5700 = vmax.bf16 %v5636, 0
        %v5701 = vmax.bf16 %v5637, 0
        %v5702 = vmax.bf16 %v5638, 0
        %v5703 = vmax.bf16 %v5639, 0
        %v5704 = vmax.bf16 %v5640, 0
        %v5705 = vmax.bf16 %v5641, 0
        %v5706 = vmax.bf16 %v5642, 0
        %v5707 = vmax.bf16 %v5643, 0
        %v5708 = vmax.bf16 %v5644, 0
        %v5709 = vmax.bf16 %v5645, 0
        %v5710 = vmax.bf16 %v5646, 0
        %v5711 = vmax.bf16 %v5647, 0
        %v5712 = vmax.bf16 %v5648, 0
        %v5713 = vmax.bf16 %v5649, 0
        %v5714 = vmax.bf16 %v5650, 0
        %v5715 = vmax.bf16 %v5651, 0
        %v5716 = vmax.bf16 %v5652, 0
        %v5717 = vmax.bf16 %v5653, 0
        %v5718 = vmax.bf16 %v5654, 0
        %v5719 = vmax.bf16 %v5655, 0
        %v5720 = vmax.bf16 %v5656, 0
        %v5721 = vmax.bf16 %v5657, 0
        %v5722 = vmax.bf16 %v5658, 0
        %v5723 = vmax.bf16 %v5659, 0
        %v5724 = vmax.bf16 %v5660, 0
        %v5725 = vmax.bf16 %v5661, 0
        %v5726 = vmax.bf16 %v5662, 0
        %v5727 = vmax.bf16 %v5663, 0
        %v5728 = vmax.bf16 %v5664, 0
        %v5729 = vmax.bf16 %v5665, 0
        %v5730 = vmax.bf16 %v5666, 0
        %v5731 = vmax.bf16 %v5667, 0
        %v5732 = vmax.bf16 %v5668, 0
        %v5733 = vmax.bf16 %v5669, 0
        %v5734 = vmax.bf16 %v5670, 0
        %v5735 = vmax.bf16 %v5671, 0
        %v5736 = vmax.bf16 %v5672, 0
        %v5737 = vmax.bf16 %v5673, 0
        %v5738 = vmax.bf16 %v5674, 0
        %v5739 = vmax.bf16 %v5675, 0
        %v5740 = vmax.bf16 %v5676, 0
        %v5741 = vmax.bf16 %v5677, 0
        %v5742 = vmax.bf16 %v5678, 0
        %s5743 = scalar_lea.vmem [#allocation2], 768
        %v5744 = vld [vmem:[%s5743] sm:$0xff]
        %v5745 = vld [vmem:[%s5743 + $0x8] sm:$0xff]
        %v5746 = vld [vmem:[%s5743 + $0x10] sm:$0xff]
        %v5747 = vld [vmem:[%s5743 + $0x18] sm:$0xff]
        %v5748 = vld [vmem:[%s5743 + $0x20] sm:$0xff]
        %v5749 = vld [vmem:[%s5743 + $0x28] sm:$0xff]
        %v5750 = vld [vmem:[%s5743 + $0x30] sm:$0xff]
        %v5751 = vld [vmem:[%s5743 + $0x38] sm:$0xff]
        %v5752 = vld [vmem:[%s5743 + $0x40] sm:$0xff]
        %v5753 = vld [vmem:[%s5743 + $0x48] sm:$0xff]
        %v5754 = vld [vmem:[%s5743 + $0x50] sm:$0xff]
        %v5755 = vld [vmem:[%s5743 + $0x58] sm:$0xff]
        %v5756 = vld [vmem:[%s5743 + $0x60] sm:$0xff]
        %v5757 = vld [vmem:[%s5743 + $0x68] sm:$0xff]
        %v5758 = vld [vmem:[%s5743 + $0x70] sm:$0xff]
        %v5759 = vld [vmem:[%s5743 + $0x78] sm:$0xff]
        %v5760 = vld [vmem:[%s5743 + $0x80] sm:$0xff]
        %v5761 = vld [vmem:[%s5743 + $0x88] sm:$0xff]
        %v5762 = vld [vmem:[%s5743 + $0x90] sm:$0xff]
        %v5763 = vld [vmem:[%s5743 + $0x98] sm:$0xff]
        %v5764 = vld [vmem:[%s5743 + $0xa0] sm:$0xff]
        %v5765 = vld [vmem:[%s5743 + $0xa8] sm:$0xff]
        %v5766 = vld [vmem:[%s5743 + $0xb0] sm:$0xff]
        %v5767 = vld [vmem:[%s5743 + $0xb8] sm:$0xff]
        %v5768 = vld [vmem:[%s5743 + $0xc0] sm:$0xff]
        %v5769 = vld [vmem:[%s5743 + $0xc8] sm:$0xff]
        %v5770 = vld [vmem:[%s5743 + $0xd0] sm:$0xff]
        %v5771 = vld [vmem:[%s5743 + $0xd8] sm:$0xff]
        %v5772 = vld [vmem:[%s5743 + $0xe0] sm:$0xff]
        %v5773 = vld [vmem:[%s5743 + $0xe8] sm:$0xff]
        %v5774 = vld [vmem:[%s5743 + $0xf0] sm:$0xff]
        %v5775 = vld [vmem:[%s5743 + $0xf8] sm:$0xff]
        %v5808 = vunpack.c.l.b16 %v5744
        %v5809 = vunpack.c.h.b16 %v5744
        %v5810 = vunpack.c.l.b16 %v5745
        %v5811 = vunpack.c.h.b16 %v5745
        %v5812 = vunpack.c.l.b16 %v5746
        %v5813 = vunpack.c.h.b16 %v5746
        %v5814 = vunpack.c.l.b16 %v5747
        %v5815 = vunpack.c.h.b16 %v5747
        %v5816 = vunpack.c.l.b16 %v5748
        %v5817 = vunpack.c.h.b16 %v5748
        %v5818 = vunpack.c.l.b16 %v5749
        %v5819 = vunpack.c.h.b16 %v5749
        %v5820 = vunpack.c.l.b16 %v5750
        %v5821 = vunpack.c.h.b16 %v5750
        %v5822 = vunpack.c.l.b16 %v5751
        %v5823 = vunpack.c.h.b16 %v5751
        %v5824 = vunpack.c.l.b16 %v5752
        %v5825 = vunpack.c.h.b16 %v5752
        %v5826 = vunpack.c.l.b16 %v5753
        %v5827 = vunpack.c.h.b16 %v5753
        %v5828 = vunpack.c.l.b16 %v5754
        %v5829 = vunpack.c.h.b16 %v5754
        %v5830 = vunpack.c.l.b16 %v5755
        %v5831 = vunpack.c.h.b16 %v5755
        %v5832 = vunpack.c.l.b16 %v5756
        %v5833 = vunpack.c.h.b16 %v5756
        %v5834 = vunpack.c.l.b16 %v5757
        %v5835 = vunpack.c.h.b16 %v5757
        %v5836 = vunpack.c.l.b16 %v5758
        %v5837 = vunpack.c.h.b16 %v5758
        %v5838 = vunpack.c.l.b16 %v5759
        %v5839 = vunpack.c.h.b16 %v5759
        %v5840 = vunpack.c.l.b16 %v5760
        %v5841 = vunpack.c.h.b16 %v5760
        %v5842 = vunpack.c.l.b16 %v5761
        %v5843 = vunpack.c.h.b16 %v5761
        %v5844 = vunpack.c.l.b16 %v5762
        %v5845 = vunpack.c.h.b16 %v5762
        %v5846 = vunpack.c.l.b16 %v5763
        %v5847 = vunpack.c.h.b16 %v5763
        %v5848 = vunpack.c.l.b16 %v5764
        %v5849 = vunpack.c.h.b16 %v5764
        %v5850 = vunpack.c.l.b16 %v5765
        %v5851 = vunpack.c.h.b16 %v5765
        %v5852 = vunpack.c.l.b16 %v5766
        %v5853 = vunpack.c.h.b16 %v5766
        %v5854 = vunpack.c.l.b16 %v5767
        %v5855 = vunpack.c.h.b16 %v5767
        %v5856 = vunpack.c.l.b16 %v5768
        %v5857 = vunpack.c.h.b16 %v5768
        %v5858 = vunpack.c.l.b16 %v5769
        %v5859 = vunpack.c.h.b16 %v5769
        %v5860 = vunpack.c.l.b16 %v5770
        %v5861 = vunpack.c.h.b16 %v5770
        %v5862 = vunpack.c.l.b16 %v5771
        %v5863 = vunpack.c.h.b16 %v5771
        %v5864 = vunpack.c.l.b16 %v5772
        %v5865 = vunpack.c.h.b16 %v5772
        %v5866 = vunpack.c.l.b16 %v5773
        %v5867 = vunpack.c.h.b16 %v5773
        %v5868 = vunpack.c.l.b16 %v5774
        %v5869 = vunpack.c.h.b16 %v5774
        %v5870 = vunpack.c.l.b16 %v5775
        %v5871 = vunpack.c.h.b16 %v5775
        %v5872 = vpack.c.b16 %v5810, %v5808
        %v5873 = vpack.c.b16 %v5811, %v5809
        %v5874 = vpack.c.b16 %v5814, %v5812
        %v5875 = vpack.c.b16 %v5815, %v5813
        %v5876 = vpack.c.b16 %v5818, %v5816
        %v5877 = vpack.c.b16 %v5819, %v5817
        %v5878 = vpack.c.b16 %v5822, %v5820
        %v5879 = vpack.c.b16 %v5823, %v5821
        %v5880 = vpack.c.b16 %v5826, %v5824
        %v5881 = vpack.c.b16 %v5827, %v5825
        %v5882 = vpack.c.b16 %v5830, %v5828
        %v5883 = vpack.c.b16 %v5831, %v5829
        %v5884 = vpack.c.b16 %v5834, %v5832
        %v5885 = vpack.c.b16 %v5835, %v5833
        %v5886 = vpack.c.b16 %v5838, %v5836
        %v5887 = vpack.c.b16 %v5839, %v5837
        %v5888 = vpack.c.b16 %v5842, %v5840
        %v5889 = vpack.c.b16 %v5843, %v5841
        %v5890 = vpack.c.b16 %v5846, %v5844
        %v5891 = vpack.c.b16 %v5847, %v5845
        %v5892 = vpack.c.b16 %v5850, %v5848
        %v5893 = vpack.c.b16 %v5851, %v5849
        %v5894 = vpack.c.b16 %v5854, %v5852
        %v5895 = vpack.c.b16 %v5855, %v5853
        %v5896 = vpack.c.b16 %v5858, %v5856
        %v5897 = vpack.c.b16 %v5859, %v5857
        %v5898 = vpack.c.b16 %v5862, %v5860
        %v5899 = vpack.c.b16 %v5863, %v5861
        %v5900 = vpack.c.b16 %v5866, %v5864
        %v5901 = vpack.c.b16 %v5867, %v5865
        %v5902 = vpack.c.b16 %v5870, %v5868
        %v5903 = vpack.c.b16 %v5871, %v5869
        %5936 = vmatprep.subr.bf16.mxu0 %v5680
        %5937 = vmatpush1.bf16.msra.mxu0 %v5679
        %5938 = vmatprep.subr.bf16.mxu0 %v5684
        %5939 = vmatpush1.bf16.msra.mxu0 %v5683
        %5940 = vmatprep.subr.bf16.mxu0 %v5688
        %5941 = vmatpush1.bf16.msra.mxu0 %v5687
        %5942 = vmatprep.subr.bf16.mxu0 %v5692
        %5943 = vmatpush1.bf16.msra.mxu0 %v5691
        %5944 = vmatprep.subr.bf16.mxu0 %v5696
        %5945 = vmatpush1.bf16.msra.mxu0 %v5695
        %5946 = vmatprep.subr.bf16.mxu0 %v5700
        %5947 = vmatpush1.bf16.msra.mxu0 %v5699
        %5948 = vmatprep.subr.bf16.mxu0 %v5704
        %5949 = vmatpush1.bf16.msra.mxu0 %v5703
        %5950 = vmatprep.subr.bf16.mxu0 %v5708
        %5951 = vmatpush1.bf16.msra.mxu0 %v5707
        %5952 = vmatprep.subr.bf16.mxu0 %v5712
        %5953 = vmatpush1.bf16.msra.mxu0 %v5711
        %5954 = vmatprep.subr.bf16.mxu0 %v5716
        %5955 = vmatpush1.bf16.msra.mxu0 %v5715
        %5956 = vmatprep.subr.bf16.mxu0 %v5720
        %5957 = vmatpush1.bf16.msra.mxu0 %v5719
        %5958 = vmatprep.subr.bf16.mxu0 %v5724
        %5959 = vmatpush1.bf16.msra.mxu0 %v5723
        %5960 = vmatprep.subr.bf16.mxu0 %v5728
        %5961 = vmatpush1.bf16.msra.mxu0 %v5727
        %5962 = vmatprep.subr.bf16.mxu0 %v5732
        %5963 = vmatpush1.bf16.msra.mxu0 %v5731
        %5964 = vmatprep.subr.bf16.mxu0 %v5736
        %5965 = vmatpush1.bf16.msra.mxu0 %v5735
        %5966 = vmatprep.subr.bf16.mxu0 %v5740
        %5967 = vmatpush1.bf16.msra.mxu0 %v5739
        %5968 = vmatprep.mubr.bf16.mxu0 %v5873
        %5969 = vmatmul.mubr.bf16.gmra.mrb[0].mxu0 %v5872
        %v5970 = vpop.f32.mrb[0].mxu0
        %v5971 = vadd.f32 0.0, %v5970
        %v5972 = vpop.f32.mrb[0].mxu0
        %v5973 = vadd.f32 0.0, %v5972
        %v5974 = vpop.f32.mrb[0].mxu0
        %v5975 = vadd.f32 0.0, %v5974
        %v5976 = vpop.f32.mrb[0].mxu0
        %v5977 = vadd.f32 0.0, %v5976
        %5978 = vmatprep.mubr.bf16.mxu0 %v5875
        %5979 = vmatmul.mubr.bf16.gmra.mrb[0].mxu0 %v5874
        %v5980 = vpop.f32.mrb[0].mxu0
        %v5981 = vadd.f32 0.0, %v5980
        %v5982 = vpop.f32.mrb[0].mxu0
        %v5983 = vadd.f32 0.0, %v5982
        %v5984 = vpop.f32.mrb[0].mxu0
        %v5985 = vadd.f32 0.0, %v5984
        %v5986 = vpop.f32.mrb[0].mxu0
        %v5987 = vadd.f32 0.0, %v5986
        %5988 = vmatprep.mubr.bf16.mxu0 %v5877
        %5989 = vmatmul.mubr.bf16.gmra.mrb[0].mxu0 %v5876
        %v5990 = vpop.f32.mrb[0].mxu0
        %v5991 = vadd.f32 0.0, %v5990
        %v5992 = vpop.f32.mrb[0].mxu0
        %v5993 = vadd.f32 0.0, %v5992
        %v5994 = vpop.f32.mrb[0].mxu0
        %v5995 = vadd.f32 0.0, %v5994
        %v5996 = vpop.f32.mrb[0].mxu0
        %v5997 = vadd.f32 0.0, %v5996
        %5998 = vmatprep.mubr.bf16.mxu0 %v5879
        %5999 = vmatmul.mubr.bf16.gmra.mrb[0].mxu0 %v5878
        %v6000 = vpop.f32.mrb[0].mxu0
        %v6001 = vadd.f32 0.0, %v6000
        %v6002 = vpop.f32.mrb[0].mxu0
        %v6003 = vadd.f32 0.0, %v6002
        %v6004 = vpop.f32.mrb[0].mxu0
        %v6005 = vadd.f32 0.0, %v6004
        %v6006 = vpop.f32.mrb[0].mxu0
        %v6007 = vadd.f32 0.0, %v6006
        %6008 = vmatprep.mubr.bf16.mxu0 %v5881
        %6009 = vmatmul.mubr.bf16.gmra.mrb[0].mxu0 %v5880
        %v6010 = vpop.f32.mrb[0].mxu0
        %v6011 = vadd.f32 0.0, %v6010
        %v6012 = vpop.f32.mrb[0].mxu0
        %v6013 = vadd.f32 0.0, %v6012
        %v6014 = vpop.f32.mrb[0].mxu0
        %v6015 = vadd.f32 0.0, %v6014
        %v6016 = vpop.f32.mrb[0].mxu0
        %v6017 = vadd.f32 0.0, %v6016
        %6018 = vmatprep.mubr.bf16.mxu0 %v5883
        %6019 = vmatmul.mubr.bf16.gmra.mrb[0].mxu0 %v5882
        %v6020 = vpop.f32.mrb[0].mxu0
        %v6021 = vadd.f32 0.0, %v6020
        %v6022 = vpop.f32.mrb[0].mxu0
        %v6023 = vadd.f32 0.0, %v6022
        %v6024 = vpop.f32.mrb[0].mxu0
        %v6025 = vadd.f32 0.0, %v6024
        %v6026 = vpop.f32.mrb[0].mxu0
        %v6027 = vadd.f32 0.0, %v6026
        %6028 = vmatprep.mubr.bf16.mxu0 %v5885
        %6029 = vmatmul.mubr.bf16.gmra.mrb[0].mxu0 %v5884
        %v6030 = vpop.f32.mrb[0].mxu0
        %v6031 = vadd.f32 0.0, %v6030
        %v6032 = vpop.f32.mrb[0].mxu0
        %v6033 = vadd.f32 0.0, %v6032
        %v6034 = vpop.f32.mrb[0].mxu0
        %v6035 = vadd.f32 0.0, %v6034
        %v6036 = vpop.f32.mrb[0].mxu0
        %v6037 = vadd.f32 0.0, %v6036
        %6038 = vmatprep.mubr.bf16.mxu0 %v5887
        %6039 = vmatmul.mubr.bf16.gmra.mrb[0].mxu0 %v5886
        %v6040 = vpop.f32.mrb[0].mxu0
        %v6041 = vadd.f32 0.0, %v6040
        %v6042 = vpop.f32.mrb[0].mxu0
        %v6043 = vadd.f32 0.0, %v6042
        %v6044 = vpop.f32.mrb[0].mxu0
        %v6045 = vadd.f32 0.0, %v6044
        %v6046 = vpop.f32.mrb[0].mxu0
        %v6047 = vadd.f32 0.0, %v6046
        %6048 = vmatprep.mubr.bf16.mxu0 %v5889
        %6049 = vmatmul.mubr.bf16.gmra.mrb[0].mxu0 %v5888
        %v6050 = vpop.f32.mrb[0].mxu0
        %v6051 = vadd.f32 0.0, %v6050
        %v6052 = vpop.f32.mrb[0].mxu0
        %v6053 = vadd.f32 0.0, %v6052
        %v6054 = vpop.f32.mrb[0].mxu0
        %v6055 = vadd.f32 0.0, %v6054
        %v6056 = vpop.f32.mrb[0].mxu0
        %v6057 = vadd.f32 0.0, %v6056
        %6058 = vmatprep.mubr.bf16.mxu0 %v5891
        %6059 = vmatmul.mubr.bf16.gmra.mrb[0].mxu0 %v5890
        %v6060 = vpop.f32.mrb[0].mxu0
        %v6061 = vadd.f32 0.0, %v6060
        %v6062 = vpop.f32.mrb[0].mxu0
        %v6063 = vadd.f32 0.0, %v6062
        %v6064 = vpop.f32.mrb[0].mxu0
        %v6065 = vadd.f32 0.0, %v6064
        %v6066 = vpop.f32.mrb[0].mxu0
        %v6067 = vadd.f32 0.0, %v6066
        %6068 = vmatprep.mubr.bf16.mxu0 %v5893
        %6069 = vmatmul.mubr.bf16.gmra.mrb[0].mxu0 %v5892
        %v6070 = vpop.f32.mrb[0].mxu0
        %v6071 = vadd.f32 0.0, %v6070
        %v6072 = vpop.f32.mrb[0].mxu0
        %v6073 = vadd.f32 0.0, %v6072
        %v6074 = vpop.f32.mrb[0].mxu0
        %v6075 = vadd.f32 0.0, %v6074
        %v6076 = vpop.f32.mrb[0].mxu0
        %v6077 = vadd.f32 0.0, %v6076
        %6078 = vmatprep.mubr.bf16.mxu0 %v5895
        %6079 = vmatmul.mubr.bf16.gmra.mrb[0].mxu0 %v5894
        %v6080 = vpop.f32.mrb[0].mxu0
        %v6081 = vadd.f32 0.0, %v6080
        %v6082 = vpop.f32.mrb[0].mxu0
        %v6083 = vadd.f32 0.0, %v6082
        %v6084 = vpop.f32.mrb[0].mxu0
        %v6085 = vadd.f32 0.0, %v6084
        %v6086 = vpop.f32.mrb[0].mxu0
        %v6087 = vadd.f32 0.0, %v6086
        %6088 = vmatprep.mubr.bf16.mxu0 %v5897
        %6089 = vmatmul.mubr.bf16.gmra.mrb[0].mxu0 %v5896
        %v6090 = vpop.f32.mrb[0].mxu0
        %v6091 = vadd.f32 0.0, %v6090
        %v6092 = vpop.f32.mrb[0].mxu0
        %v6093 = vadd.f32 0.0, %v6092
        %v6094 = vpop.f32.mrb[0].mxu0
        %v6095 = vadd.f32 0.0, %v6094
        %v6096 = vpop.f32.mrb[0].mxu0
        %v6097 = vadd.f32 0.0, %v6096
        %6098 = vmatprep.mubr.bf16.mxu0 %v5899
        %6099 = vmatmul.mubr.bf16.gmra.mrb[0].mxu0 %v5898
        %v6100 = vpop.f32.mrb[0].mxu0
        %v6101 = vadd.f32 0.0, %v6100
        %v6102 = vpop.f32.mrb[0].mxu0
        %v6103 = vadd.f32 0.0, %v6102
        %v6104 = vpop.f32.mrb[0].mxu0
        %v6105 = vadd.f32 0.0, %v6104
        %v6106 = vpop.f32.mrb[0].mxu0
        %v6107 = vadd.f32 0.0, %v6106
        %6108 = vmatprep.mubr.bf16.mxu0 %v5901
        %6109 = vmatmul.mubr.bf16.gmra.mrb[0].mxu0 %v5900
        %v6110 = vpop.f32.mrb[0].mxu0
        %v6111 = vadd.f32 0.0, %v6110
        %v6112 = vpop.f32.mrb[0].mxu0
        %v6113 = vadd.f32 0.0, %v6112
        %v6114 = vpop.f32.mrb[0].mxu0
        %v6115 = vadd.f32 0.0, %v6114
        %v6116 = vpop.f32.mrb[0].mxu0
        %v6117 = vadd.f32 0.0, %v6116
        %6118 = vmatprep.mubr.bf16.mxu0 %v5903
        %6119 = vmatmul.mubr.bf16.gmra.mrb[0].mxu0 %v5902
        %v6120 = vpop.f32.mrb[0].mxu0
        %v6121 = vadd.f32 0.0, %v6120
        %v6122 = vpop.f32.mrb[0].mxu0
        %v6123 = vadd.f32 0.0, %v6122
        %v6124 = vpop.f32.mrb[0].mxu0
        %v6125 = vadd.f32 0.0, %v6124
        %v6126 = vpop.f32.mrb[0].mxu0
        %v6127 = vadd.f32 0.0, %v6126
        %6128 = vdwg.mxu0
        %6129 = vmatprep.subr.bf16.mxu0 %v5682
        %6130 = vmatpush1.bf16.msra.mxu0 %v5681
        %6131 = vmatprep.subr.bf16.mxu0 %v5686
        %6132 = vmatpush1.bf16.msra.mxu0 %v5685
        %6133 = vmatprep.subr.bf16.mxu0 %v5690
        %6134 = vmatpush1.bf16.msra.mxu0 %v5689
        %6135 = vmatprep.subr.bf16.mxu0 %v5694
        %6136 = vmatpush1.bf16.msra.mxu0 %v5693
        %6137 = vmatprep.subr.bf16.mxu0 %v5698
        %6138 = vmatpush1.bf16.msra.mxu0 %v5697
        %6139 = vmatprep.subr.bf16.mxu0 %v5702
        %6140 = vmatpush1.bf16.msra.mxu0 %v5701
        %6141 = vmatprep.subr.bf16.mxu0 %v5706
        %6142 = vmatpush1.bf16.msra.mxu0 %v5705
        %6143 = vmatprep.subr.bf16.mxu0 %v5710
        %6144 = vmatpush1.bf16.msra.mxu0 %v5709
        %6145 = vmatprep.subr.bf16.mxu0 %v5714
        %6146 = vmatpush1.bf16.msra.mxu0 %v5713
        %6147 = vmatprep.subr.bf16.mxu0 %v5718
        %6148 = vmatpush1.bf16.msra.mxu0 %v5717
        %6149 = vmatprep.subr.bf16.mxu0 %v5722
        %6150 = vmatpush1.bf16.msra.mxu0 %v5721
        %6151 = vmatprep.subr.bf16.mxu0 %v5726
        %6152 = vmatpush1.bf16.msra.mxu0 %v5725
        %6153 = vmatprep.subr.bf16.mxu0 %v5730
        %6154 = vmatpush1.bf16.msra.mxu0 %v5729
        %6155 = vmatprep.subr.bf16.mxu0 %v5734
        %6156 = vmatpush1.bf16.msra.mxu0 %v5733
        %6157 = vmatprep.subr.bf16.mxu0 %v5738
        %6158 = vmatpush1.bf16.msra.mxu0 %v5737
        %6159 = vmatprep.subr.bf16.mxu0 %v5742
        %6160 = vmatpush1.bf16.msra.mxu0 %v5741
        %6161 = vmatprep.mubr.bf16.mxu0 %v5873
        %6162 = vmatmul.mubr.bf16.gmra.mrb[0].mxu0 %v5872
        %v6163 = vpop.f32.mrb[0].mxu0
        %v6164 = vadd.f32 0.0, %v6163
        %v6165 = vpop.f32.mrb[0].mxu0
        %v6166 = vadd.f32 0.0, %v6165
        %v6167 = vpop.f32.mrb[0].mxu0
        %v6168 = vadd.f32 0.0, %v6167
        %v6169 = vpop.f32.mrb[0].mxu0
        %v6170 = vadd.f32 0.0, %v6169
        %6171 = vmatprep.mubr.bf16.mxu0 %v5875
        %6172 = vmatmul.mubr.bf16.gmra.mrb[0].mxu0 %v5874
        %v6173 = vpop.f32.mrb[0].mxu0
        %v6174 = vadd.f32 0.0, %v6173
        %v6175 = vpop.f32.mrb[0].mxu0
        %v6176 = vadd.f32 0.0, %v6175
        %v6177 = vpop.f32.mrb[0].mxu0
        %v6178 = vadd.f32 0.0, %v6177
        %v6179 = vpop.f32.mrb[0].mxu0
        %v6180 = vadd.f32 0.0, %v6179
        %6181 = vmatprep.mubr.bf16.mxu0 %v5877
        %6182 = vmatmul.mubr.bf16.gmra.mrb[0].mxu0 %v5876
        %v6183 = vpop.f32.mrb[0].mxu0
        %v6184 = vadd.f32 0.0, %v6183
        %v6185 = vpop.f32.mrb[0].mxu0
        %v6186 = vadd.f32 0.0, %v6185
        %v6187 = vpop.f32.mrb[0].mxu0
        %v6188 = vadd.f32 0.0, %v6187
        %v6189 = vpop.f32.mrb[0].mxu0
        %v6190 = vadd.f32 0.0, %v6189
        %6191 = vmatprep.mubr.bf16.mxu0 %v5879
        %6192 = vmatmul.mubr.bf16.gmra.mrb[0].mxu0 %v5878
        %v6193 = vpop.f32.mrb[0].mxu0
        %v6194 = vadd.f32 0.0, %v6193
        %v6195 = vpop.f32.mrb[0].mxu0
        %v6196 = vadd.f32 0.0, %v6195
        %v6197 = vpop.f32.mrb[0].mxu0
        %v6198 = vadd.f32 0.0, %v6197
        %v6199 = vpop.f32.mrb[0].mxu0
        %v6200 = vadd.f32 0.0, %v6199
        %6201 = vmatprep.mubr.bf16.mxu0 %v5881
        %6202 = vmatmul.mubr.bf16.gmra.mrb[0].mxu0 %v5880
        %v6203 = vpop.f32.mrb[0].mxu0
        %v6204 = vadd.f32 0.0, %v6203
        %v6205 = vpop.f32.mrb[0].mxu0
        %v6206 = vadd.f32 0.0, %v6205
        %v6207 = vpop.f32.mrb[0].mxu0
        %v6208 = vadd.f32 0.0, %v6207
        %v6209 = vpop.f32.mrb[0].mxu0
        %v6210 = vadd.f32 0.0, %v6209
        %6211 = vmatprep.mubr.bf16.mxu0 %v5883
        %6212 = vmatmul.mubr.bf16.gmra.mrb[0].mxu0 %v5882
        %v6213 = vpop.f32.mrb[0].mxu0
        %v6214 = vadd.f32 0.0, %v6213
        %v6215 = vpop.f32.mrb[0].mxu0
        %v6216 = vadd.f32 0.0, %v6215
        %v6217 = vpop.f32.mrb[0].mxu0
        %v6218 = vadd.f32 0.0, %v6217
        %v6219 = vpop.f32.mrb[0].mxu0
        %v6220 = vadd.f32 0.0, %v6219
        %6221 = vmatprep.mubr.bf16.mxu0 %v5885
        %6222 = vmatmul.mubr.bf16.gmra.mrb[0].mxu0 %v5884
        %v6223 = vpop.f32.mrb[0].mxu0
        %v6224 = vadd.f32 0.0, %v6223
        %v6225 = vpop.f32.mrb[0].mxu0
        %v6226 = vadd.f32 0.0, %v6225
        %v6227 = vpop.f32.mrb[0].mxu0
        %v6228 = vadd.f32 0.0, %v6227
        %v6229 = vpop.f32.mrb[0].mxu0
        %v6230 = vadd.f32 0.0, %v6229
        %6231 = vmatprep.mubr.bf16.mxu0 %v5887
        %6232 = vmatmul.mubr.bf16.gmra.mrb[0].mxu0 %v5886
        %v6233 = vpop.f32.mrb[0].mxu0
        %v6234 = vadd.f32 0.0, %v6233
        %v6235 = vpop.f32.mrb[0].mxu0
        %v6236 = vadd.f32 0.0, %v6235
        %v6237 = vpop.f32.mrb[0].mxu0
        %v6238 = vadd.f32 0.0, %v6237
        %v6239 = vpop.f32.mrb[0].mxu0
        %v6240 = vadd.f32 0.0, %v6239
        %6241 = vmatprep.mubr.bf16.mxu0 %v5889
        %6242 = vmatmul.mubr.bf16.gmra.mrb[0].mxu0 %v5888
        %v6243 = vpop.f32.mrb[0].mxu0
        %v6244 = vadd.f32 0.0, %v6243
        %v6245 = vpop.f32.mrb[0].mxu0
        %v6246 = vadd.f32 0.0, %v6245
        %v6247 = vpop.f32.mrb[0].mxu0
        %v6248 = vadd.f32 0.0, %v6247
        %v6249 = vpop.f32.mrb[0].mxu0
        %v6250 = vadd.f32 0.0, %v6249
        %6251 = vmatprep.mubr.bf16.mxu0 %v5891
        %6252 = vmatmul.mubr.bf16.gmra.mrb[0].mxu0 %v5890
        %v6253 = vpop.f32.mrb[0].mxu0
        %v6254 = vadd.f32 0.0, %v6253
        %v6255 = vpop.f32.mrb[0].mxu0
        %v6256 = vadd.f32 0.0, %v6255
        %v6257 = vpop.f32.mrb[0].mxu0
        %v6258 = vadd.f32 0.0, %v6257
        %v6259 = vpop.f32.mrb[0].mxu0
        %v6260 = vadd.f32 0.0, %v6259
        %6261 = vmatprep.mubr.bf16.mxu0 %v5893
        %6262 = vmatmul.mubr.bf16.gmra.mrb[0].mxu0 %v5892
        %v6263 = vpop.f32.mrb[0].mxu0
        %v6264 = vadd.f32 0.0, %v6263
        %v6265 = vpop.f32.mrb[0].mxu0
        %v6266 = vadd.f32 0.0, %v6265
        %v6267 = vpop.f32.mrb[0].mxu0
        %v6268 = vadd.f32 0.0, %v6267
        %v6269 = vpop.f32.mrb[0].mxu0
        %v6270 = vadd.f32 0.0, %v6269
        %6271 = vmatprep.mubr.bf16.mxu0 %v5895
        %6272 = vmatmul.mubr.bf16.gmra.mrb[0].mxu0 %v5894
        %v6273 = vpop.f32.mrb[0].mxu0
        %v6274 = vadd.f32 0.0, %v6273
        %v6275 = vpop.f32.mrb[0].mxu0
        %v6276 = vadd.f32 0.0, %v6275
        %v6277 = vpop.f32.mrb[0].mxu0
        %v6278 = vadd.f32 0.0, %v6277
        %v6279 = vpop.f32.mrb[0].mxu0
        %v6280 = vadd.f32 0.0, %v6279
        %6281 = vmatprep.mubr.bf16.mxu0 %v5897
        %6282 = vmatmul.mubr.bf16.gmra.mrb[0].mxu0 %v5896
        %v6283 = vpop.f32.mrb[0].mxu0
        %v6284 = vadd.f32 0.0, %v6283
        %v6285 = vpop.f32.mrb[0].mxu0
        %v6286 = vadd.f32 0.0, %v6285
        %v6287 = vpop.f32.mrb[0].mxu0
        %v6288 = vadd.f32 0.0, %v6287
        %v6289 = vpop.f32.mrb[0].mxu0
        %v6290 = vadd.f32 0.0, %v6289
        %6291 = vmatprep.mubr.bf16.mxu0 %v5899
        %6292 = vmatmul.mubr.bf16.gmra.mrb[0].mxu0 %v5898
        %v6293 = vpop.f32.mrb[0].mxu0
        %v6294 = vadd.f32 0.0, %v6293
        %v6295 = vpop.f32.mrb[0].mxu0
        %v6296 = vadd.f32 0.0, %v6295
        %v6297 = vpop.f32.mrb[0].mxu0
        %v6298 = vadd.f32 0.0, %v6297
        %v6299 = vpop.f32.mrb[0].mxu0
        %v6300 = vadd.f32 0.0, %v6299
        %6301 = vmatprep.mubr.bf16.mxu0 %v5901
        %6302 = vmatmul.mubr.bf16.gmra.mrb[0].mxu0 %v5900
        %v6303 = vpop.f32.mrb[0].mxu0
        %v6304 = vadd.f32 0.0, %v6303
        %v6305 = vpop.f32.mrb[0].mxu0
        %v6306 = vadd.f32 0.0, %v6305
        %v6307 = vpop.f32.mrb[0].mxu0
        %v6308 = vadd.f32 0.0, %v6307
        %v6309 = vpop.f32.mrb[0].mxu0
        %v6310 = vadd.f32 0.0, %v6309
        %6311 = vmatprep.mubr.bf16.mxu0 %v5903
        %6312 = vmatmul.mubr.bf16.gmra.mrb[0].mxu0 %v5902
        %v6313 = vpop.f32.mrb[0].mxu0
        %v6314 = vadd.f32 0.0, %v6313
        %v6315 = vpop.f32.mrb[0].mxu0
        %v6316 = vadd.f32 0.0, %v6315
        %v6317 = vpop.f32.mrb[0].mxu0
        %v6318 = vadd.f32 0.0, %v6317
        %v6319 = vpop.f32.mrb[0].mxu0
        %v6320 = vadd.f32 0.0, %v6319
        %6321 = vdwg.mxu0
        %v6322 = vpack.c.bf16 %v5975, %v5971
        %v6323 = vpack.c.bf16 %v5977, %v5973
        %v6324 = vpack.c.bf16 %v6168, %v6164
        %v6325 = vpack.c.bf16 %v6170, %v6166
        %v6326 = vpack.c.bf16 %v5985, %v5981
        %v6327 = vpack.c.bf16 %v5987, %v5983
        %v6328 = vpack.c.bf16 %v6178, %v6174
        %v6329 = vpack.c.bf16 %v6180, %v6176
        %v6330 = vpack.c.bf16 %v5995, %v5991
        %v6331 = vpack.c.bf16 %v5997, %v5993
        %v6332 = vpack.c.bf16 %v6188, %v6184
        %v6333 = vpack.c.bf16 %v6190, %v6186
        %v6334 = vpack.c.bf16 %v6005, %v6001
        %v6335 = vpack.c.bf16 %v6007, %v6003
        %v6336 = vpack.c.bf16 %v6198, %v6194
        %v6337 = vpack.c.bf16 %v6200, %v6196
        %v6338 = vpack.c.bf16 %v6015, %v6011
        %v6339 = vpack.c.bf16 %v6017, %v6013
        %v6340 = vpack.c.bf16 %v6208, %v6204
        %v6341 = vpack.c.bf16 %v6210, %v6206
        %v6342 = vpack.c.bf16 %v6025, %v6021
        %v6343 = vpack.c.bf16 %v6027, %v6023
        %v6344 = vpack.c.bf16 %v6218, %v6214
        %v6345 = vpack.c.bf16 %v6220, %v6216
        %v6346 = vpack.c.bf16 %v6035, %v6031
        %v6347 = vpack.c.bf16 %v6037, %v6033
        %v6348 = vpack.c.bf16 %v6228, %v6224
        %v6349 = vpack.c.bf16 %v6230, %v6226
        %v6350 = vpack.c.bf16 %v6045, %v6041
        %v6351 = vpack.c.bf16 %v6047, %v6043
        %v6352 = vpack.c.bf16 %v6238, %v6234
        %v6353 = vpack.c.bf16 %v6240, %v6236
        %v6354 = vpack.c.bf16 %v6055, %v6051
        %v6355 = vpack.c.bf16 %v6057, %v6053
        %v6356 = vpack.c.bf16 %v6248, %v6244
        %v6357 = vpack.c.bf16 %v6250, %v6246
        %v6358 = vpack.c.bf16 %v6065, %v6061
        %v6359 = vpack.c.bf16 %v6067, %v6063
        %v6360 = vpack.c.bf16 %v6258, %v6254
        %v6361 = vpack.c.bf16 %v6260, %v6256
        %v6362 = vpack.c.bf16 %v6075, %v6071
        %v6363 = vpack.c.bf16 %v6077, %v6073
        %v6364 = vpack.c.bf16 %v6268, %v6264
        %v6365 = vpack.c.bf16 %v6270, %v6266
        %v6366 = vpack.c.bf16 %v6085, %v6081
        %v6367 = vpack.c.bf16 %v6087, %v6083
        %v6368 = vpack.c.bf16 %v6278, %v6274
        %v6369 = vpack.c.bf16 %v6280, %v6276
        %v6370 = vpack.c.bf16 %v6095, %v6091
        %v6371 = vpack.c.bf16 %v6097, %v6093
        %v6372 = vpack.c.bf16 %v6288, %v6284
        %v6373 = vpack.c.bf16 %v6290, %v6286
        %v6374 = vpack.c.bf16 %v6105, %v6101
        %v6375 = vpack.c.bf16 %v6107, %v6103
        %v6376 = vpack.c.bf16 %v6298, %v6294
        %v6377 = vpack.c.bf16 %v6300, %v6296
        %v6378 = vpack.c.bf16 %v6115, %v6111
        %v6379 = vpack.c.bf16 %v6117, %v6113
        %v6380 = vpack.c.bf16 %v6308, %v6304
        %v6381 = vpack.c.bf16 %v6310, %v6306
        %v6382 = vpack.c.bf16 %v6125, %v6121
        %v6383 = vpack.c.bf16 %v6127, %v6123
        %v6384 = vpack.c.bf16 %v6318, %v6314
        %v6385 = vpack.c.bf16 %v6320, %v6316
        %6386 = vset.pattern.permute.xlu0 4
        %6387 = vperm.xlu0 %6386, %v279
        %v6388 = vpop.permute.xlu0 %6387
        %v6391 = vunpack.c.l.s4 839922192
        %v6392 = vunpack.c.0.s8 %v6391
        %v6393 = vlaneseq
        %v6394 = vshrl.u32 %v6393, 7
        %v6395 = vsub.s32 %v6392, %v6394
        %v6396 = vrot.slane %v6388, %v6395
        %6397 = vset.pattern.permute.xlu0 4
        %6398 = vperm.xlu0 %6397, %v280
        %v6399 = vpop.permute.xlu0 %6398
        %v6402 = vunpack.c.l.s4 839922192
        %v6403 = vunpack.c.0.s8 %v6402
        %v6404 = vlaneseq
        %v6405 = vshrl.u32 %v6404, 7
        %v6406 = vsub.s32 %v6403, %v6405
        %v6407 = vrot.slane %v6399, %v6406
        %6408 = vset.pattern.permute.xlu0 4
        %6409 = vperm.xlu0 %6408, %v281
        %v6410 = vpop.permute.xlu0 %6409
        %v6413 = vunpack.c.l.s4 839922192
        %v6414 = vunpack.c.0.s8 %v6413
        %v6415 = vlaneseq
        %v6416 = vshrl.u32 %v6415, 7
        %v6417 = vsub.s32 %v6414, %v6416
        %v6418 = vrot.slane %v6410, %v6417
        %6419 = vset.pattern.permute.xlu0 4
        %6420 = vperm.xlu0 %6419, %v282
        %v6421 = vpop.permute.xlu0 %6420
        %v6424 = vunpack.c.l.s4 839922192
        %v6425 = vunpack.c.0.s8 %v6424
        %v6426 = vlaneseq
        %v6427 = vshrl.u32 %v6426, 7
        %v6428 = vsub.s32 %v6425, %v6427
        %v6429 = vrot.slane %v6421, %v6428
        %6430 = vset.pattern.permute.xlu0 4
        %6431 = vperm.xlu0 %6430, %v283
        %v6432 = vpop.permute.xlu0 %6431
        %v6435 = vunpack.c.l.s4 839922192
        %v6436 = vunpack.c.0.s8 %v6435
        %v6437 = vlaneseq
        %v6438 = vshrl.u32 %v6437, 7
        %v6439 = vsub.s32 %v6436, %v6438
        %v6440 = vrot.slane %v6432, %v6439
        %6441 = vset.pattern.permute.xlu0 4
        %6442 = vperm.xlu0 %6441, %v284
        %v6443 = vpop.permute.xlu0 %6442
        %v6446 = vunpack.c.l.s4 839922192
        %v6447 = vunpack.c.0.s8 %v6446
        %v6448 = vlaneseq
        %v6449 = vshrl.u32 %v6448, 7
        %v6450 = vsub.s32 %v6447, %v6449
        %v6451 = vrot.slane %v6443, %v6450
        %6452 = vset.pattern.permute.xlu0 4
        %6453 = vperm.xlu0 %6452, %v285
        %v6454 = vpop.permute.xlu0 %6453
        %v6457 = vunpack.c.l.s4 839922192
        %v6458 = vunpack.c.0.s8 %v6457
        %v6459 = vlaneseq
        %v6460 = vshrl.u32 %v6459, 7
        %v6461 = vsub.s32 %v6458, %v6460
        %v6462 = vrot.slane %v6454, %v6461
        %6463 = vset.pattern.permute.xlu0 4
        %6464 = vperm.xlu0 %6463, %v286
        %v6465 = vpop.permute.xlu0 %6464
        %v6468 = vunpack.c.l.s4 839922192
        %v6469 = vunpack.c.0.s8 %v6468
        %v6470 = vlaneseq
        %v6471 = vshrl.u32 %v6470, 7
        %v6472 = vsub.s32 %v6469, %v6471
        %v6473 = vrot.slane %v6465, %v6472
        %6474 = vset.pattern.permute.xlu0 4
        %6475 = vperm.xlu0 %6474, %v287
        %v6476 = vpop.permute.xlu0 %6475
        %v6479 = vunpack.c.l.s4 839922192
        %v6480 = vunpack.c.0.s8 %v6479
        %v6481 = vlaneseq
        %v6482 = vshrl.u32 %v6481, 7
        %v6483 = vsub.s32 %v6480, %v6482
        %v6484 = vrot.slane %v6476, %v6483
        %6485 = vset.pattern.permute.xlu0 4
        %6486 = vperm.xlu0 %6485, %v288
        %v6487 = vpop.permute.xlu0 %6486
        %v6490 = vunpack.c.l.s4 839922192
        %v6491 = vunpack.c.0.s8 %v6490
        %v6492 = vlaneseq
        %v6493 = vshrl.u32 %v6492, 7
        %v6494 = vsub.s32 %v6491, %v6493
        %v6495 = vrot.slane %v6487, %v6494
        %6496 = vset.pattern.permute.xlu0 4
        %6497 = vperm.xlu0 %6496, %v289
        %v6498 = vpop.permute.xlu0 %6497
        %v6501 = vunpack.c.l.s4 839922192
        %v6502 = vunpack.c.0.s8 %v6501
        %v6503 = vlaneseq
        %v6504 = vshrl.u32 %v6503, 7
        %v6505 = vsub.s32 %v6502, %v6504
        %v6506 = vrot.slane %v6498, %v6505
        %6507 = vset.pattern.permute.xlu0 4
        %6508 = vperm.xlu0 %6507, %v290
        %v6509 = vpop.permute.xlu0 %6508
        %v6512 = vunpack.c.l.s4 839922192
        %v6513 = vunpack.c.0.s8 %v6512
        %v6514 = vlaneseq
        %v6515 = vshrl.u32 %v6514, 7
        %v6516 = vsub.s32 %v6513, %v6515
        %v6517 = vrot.slane %v6509, %v6516
        %6518 = vset.pattern.permute.xlu0 4
        %6519 = vperm.xlu0 %6518, %v291
        %v6520 = vpop.permute.xlu0 %6519
        %v6523 = vunpack.c.l.s4 839922192
        %v6524 = vunpack.c.0.s8 %v6523
        %v6525 = vlaneseq
        %v6526 = vshrl.u32 %v6525, 7
        %v6527 = vsub.s32 %v6524, %v6526
        %v6528 = vrot.slane %v6520, %v6527
        %6529 = vset.pattern.permute.xlu0 4
        %6530 = vperm.xlu0 %6529, %v292
        %v6531 = vpop.permute.xlu0 %6530
        %v6534 = vunpack.c.l.s4 839922192
        %v6535 = vunpack.c.0.s8 %v6534
        %v6536 = vlaneseq
        %v6537 = vshrl.u32 %v6536, 7
        %v6538 = vsub.s32 %v6535, %v6537
        %v6539 = vrot.slane %v6531, %v6538
        %6540 = vset.pattern.permute.xlu0 4
        %6541 = vperm.xlu0 %6540, %v293
        %v6542 = vpop.permute.xlu0 %6541
        %v6545 = vunpack.c.l.s4 839922192
        %v6546 = vunpack.c.0.s8 %v6545
        %v6547 = vlaneseq
        %v6548 = vshrl.u32 %v6547, 7
        %v6549 = vsub.s32 %v6546, %v6548
        %v6550 = vrot.slane %v6542, %v6549
        %6551 = vset.pattern.permute.xlu0 4
        %6552 = vperm.xlu0 %6551, %v294
        %v6553 = vpop.permute.xlu0 %6552
        %v6556 = vunpack.c.l.s4 839922192
        %v6557 = vunpack.c.0.s8 %v6556
        %v6558 = vlaneseq
        %v6559 = vshrl.u32 %v6558, 7
        %v6560 = vsub.s32 %v6557, %v6559
        %v6561 = vrot.slane %v6553, %v6560
        %6562 = vset.pattern.permute.xlu0 4
        %6563 = vperm.xlu0 %6562, %v295
        %v6564 = vpop.permute.xlu0 %6563
        %v6567 = vunpack.c.l.s4 839922192
        %v6568 = vunpack.c.0.s8 %v6567
        %v6569 = vlaneseq
        %v6570 = vshrl.u32 %v6569, 7
        %v6571 = vsub.s32 %v6568, %v6570
        %v6572 = vrot.slane %v6564, %v6571
        %6573 = vset.pattern.permute.xlu0 4
        %6574 = vperm.xlu0 %6573, %v296
        %v6575 = vpop.permute.xlu0 %6574
        %v6578 = vunpack.c.l.s4 839922192
        %v6579 = vunpack.c.0.s8 %v6578
        %v6580 = vlaneseq
        %v6581 = vshrl.u32 %v6580, 7
        %v6582 = vsub.s32 %v6579, %v6581
        %v6583 = vrot.slane %v6575, %v6582
        %6584 = vset.pattern.permute.xlu0 4
        %6585 = vperm.xlu0 %6584, %v297
        %v6586 = vpop.permute.xlu0 %6585
        %v6589 = vunpack.c.l.s4 839922192
        %v6590 = vunpack.c.0.s8 %v6589
        %v6591 = vlaneseq
        %v6592 = vshrl.u32 %v6591, 7
        %v6593 = vsub.s32 %v6590, %v6592
        %v6594 = vrot.slane %v6586, %v6593
        %6595 = vset.pattern.permute.xlu0 4
        %6596 = vperm.xlu0 %6595, %v298
        %v6597 = vpop.permute.xlu0 %6596
        %v6600 = vunpack.c.l.s4 839922192
        %v6601 = vunpack.c.0.s8 %v6600
        %v6602 = vlaneseq
        %v6603 = vshrl.u32 %v6602, 7
        %v6604 = vsub.s32 %v6601, %v6603
        %v6605 = vrot.slane %v6597, %v6604
        %6606 = vset.pattern.permute.xlu0 4
        %6607 = vperm.xlu0 %6606, %v299
        %v6608 = vpop.permute.xlu0 %6607
        %v6611 = vunpack.c.l.s4 839922192
        %v6612 = vunpack.c.0.s8 %v6611
        %v6613 = vlaneseq
        %v6614 = vshrl.u32 %v6613, 7
        %v6615 = vsub.s32 %v6612, %v6614
        %v6616 = vrot.slane %v6608, %v6615
        %6617 = vset.pattern.permute.xlu0 4
        %6618 = vperm.xlu0 %6617, %v300
        %v6619 = vpop.permute.xlu0 %6618
        %v6622 = vunpack.c.l.s4 839922192
        %v6623 = vunpack.c.0.s8 %v6622
        %v6624 = vlaneseq
        %v6625 = vshrl.u32 %v6624, 7
        %v6626 = vsub.s32 %v6623, %v6625
        %v6627 = vrot.slane %v6619, %v6626
        %6628 = vset.pattern.permute.xlu0 4
        %6629 = vperm.xlu0 %6628, %v301
        %v6630 = vpop.permute.xlu0 %6629
        %v6633 = vunpack.c.l.s4 839922192
        %v6634 = vunpack.c.0.s8 %v6633
        %v6635 = vlaneseq
        %v6636 = vshrl.u32 %v6635, 7
        %v6637 = vsub.s32 %v6634, %v6636
        %v6638 = vrot.slane %v6630, %v6637
        %6639 = vset.pattern.permute.xlu0 4
        %6640 = vperm.xlu0 %6639, %v302
        %v6641 = vpop.permute.xlu0 %6640
        %v6644 = vunpack.c.l.s4 839922192
        %v6645 = vunpack.c.0.s8 %v6644
        %v6646 = vlaneseq
        %v6647 = vshrl.u32 %v6646, 7
        %v6648 = vsub.s32 %v6645, %v6647
        %v6649 = vrot.slane %v6641, %v6648
        %6650 = vset.pattern.permute.xlu0 4
        %6651 = vperm.xlu0 %6650, %v303
        %v6652 = vpop.permute.xlu0 %6651
        %v6655 = vunpack.c.l.s4 839922192
        %v6656 = vunpack.c.0.s8 %v6655
        %v6657 = vlaneseq
        %v6658 = vshrl.u32 %v6657, 7
        %v6659 = vsub.s32 %v6656, %v6658
        %v6660 = vrot.slane %v6652, %v6659
        %6661 = vset.pattern.permute.xlu0 4
        %6662 = vperm.xlu0 %6661, %v304
        %v6663 = vpop.permute.xlu0 %6662
        %v6666 = vunpack.c.l.s4 839922192
        %v6667 = vunpack.c.0.s8 %v6666
        %v6668 = vlaneseq
        %v6669 = vshrl.u32 %v6668, 7
        %v6670 = vsub.s32 %v6667, %v6669
        %v6671 = vrot.slane %v6663, %v6670
        %6672 = vset.pattern.permute.xlu0 4
        %6673 = vperm.xlu0 %6672, %v305
        %v6674 = vpop.permute.xlu0 %6673
        %v6677 = vunpack.c.l.s4 839922192
        %v6678 = vunpack.c.0.s8 %v6677
        %v6679 = vlaneseq
        %v6680 = vshrl.u32 %v6679, 7
        %v6681 = vsub.s32 %v6678, %v6680
        %v6682 = vrot.slane %v6674, %v6681
        %6683 = vset.pattern.permute.xlu0 4
        %6684 = vperm.xlu0 %6683, %v306
        %v6685 = vpop.permute.xlu0 %6684
        %v6688 = vunpack.c.l.s4 839922192
        %v6689 = vunpack.c.0.s8 %v6688
        %v6690 = vlaneseq
        %v6691 = vshrl.u32 %v6690, 7
        %v6692 = vsub.s32 %v6689, %v6691
        %v6693 = vrot.slane %v6685, %v6692
        %6694 = vset.pattern.permute.xlu0 4
        %6695 = vperm.xlu0 %6694, %v307
        %v6696 = vpop.permute.xlu0 %6695
        %v6699 = vunpack.c.l.s4 839922192
        %v6700 = vunpack.c.0.s8 %v6699
        %v6701 = vlaneseq
        %v6702 = vshrl.u32 %v6701, 7
        %v6703 = vsub.s32 %v6700, %v6702
        %v6704 = vrot.slane %v6696, %v6703
        %6705 = vset.pattern.permute.xlu0 4
        %6706 = vperm.xlu0 %6705, %v308
        %v6707 = vpop.permute.xlu0 %6706
        %v6710 = vunpack.c.l.s4 839922192
        %v6711 = vunpack.c.0.s8 %v6710
        %v6712 = vlaneseq
        %v6713 = vshrl.u32 %v6712, 7
        %v6714 = vsub.s32 %v6711, %v6713
        %v6715 = vrot.slane %v6707, %v6714
        %6716 = vset.pattern.permute.xlu0 4
        %6717 = vperm.xlu0 %6716, %v309
        %v6718 = vpop.permute.xlu0 %6717
        %v6721 = vunpack.c.l.s4 839922192
        %v6722 = vunpack.c.0.s8 %v6721
        %v6723 = vlaneseq
        %v6724 = vshrl.u32 %v6723, 7
        %v6725 = vsub.s32 %v6722, %v6724
        %v6726 = vrot.slane %v6718, %v6725
        %6727 = vset.pattern.permute.xlu0 4
        %6728 = vperm.xlu0 %6727, %v310
        %v6729 = vpop.permute.xlu0 %6728
        %v6732 = vunpack.c.l.s4 839922192
        %v6733 = vunpack.c.0.s8 %v6732
        %v6734 = vlaneseq
        %v6735 = vshrl.u32 %v6734, 7
        %v6736 = vsub.s32 %v6733, %v6735
        %v6737 = vrot.slane %v6729, %v6736
        %v6770 = vunpack.c.l.b16 %v6396
        %v6771 = vunpack.c.l.b16 %v6407
        %v6772 = vunpack.c.l.b16 %v6418
        %v6773 = vunpack.c.l.b16 %v6429
        %v6774 = vunpack.c.l.b16 %v6440
        %v6775 = vunpack.c.l.b16 %v6451
        %v6776 = vunpack.c.l.b16 %v6462
        %v6777 = vunpack.c.l.b16 %v6473
        %v6778 = vunpack.c.l.b16 %v6484
        %v6779 = vunpack.c.l.b16 %v6495
        %v6780 = vunpack.c.l.b16 %v6506
        %v6781 = vunpack.c.l.b16 %v6517
        %v6782 = vunpack.c.l.b16 %v6528
        %v6783 = vunpack.c.l.b16 %v6539
        %v6784 = vunpack.c.l.b16 %v6550
        %v6785 = vunpack.c.l.b16 %v6561
        %v6786 = vunpack.c.l.b16 %v6572
        %v6787 = vunpack.c.l.b16 %v6583
        %v6788 = vunpack.c.l.b16 %v6594
        %v6789 = vunpack.c.l.b16 %v6605
        %v6790 = vunpack.c.l.b16 %v6616
        %v6791 = vunpack.c.l.b16 %v6627
        %v6792 = vunpack.c.l.b16 %v6638
        %v6793 = vunpack.c.l.b16 %v6649
        %v6794 = vunpack.c.l.b16 %v6660
        %v6795 = vunpack.c.l.b16 %v6671
        %v6796 = vunpack.c.l.b16 %v6682
        %v6797 = vunpack.c.l.b16 %v6693
        %v6798 = vunpack.c.l.b16 %v6704
        %v6799 = vunpack.c.l.b16 %v6715
        %v6800 = vunpack.c.l.b16 %v6726
        %v6801 = vunpack.c.l.b16 %v6737
        %v6802 = vpack.c.b16 %v6771, %v6770
        %v6803 = vpack.c.b16 %v6773, %v6772
        %v6804 = vpack.c.b16 %v6775, %v6774
        %v6805 = vpack.c.b16 %v6777, %v6776
        %v6806 = vpack.c.b16 %v6779, %v6778
        %v6807 = vpack.c.b16 %v6781, %v6780
        %v6808 = vpack.c.b16 %v6783, %v6782
        %v6809 = vpack.c.b16 %v6785, %v6784
        %v6810 = vpack.c.b16 %v6787, %v6786
        %v6811 = vpack.c.b16 %v6789, %v6788
        %v6812 = vpack.c.b16 %v6791, %v6790
        %v6813 = vpack.c.b16 %v6793, %v6792
        %v6814 = vpack.c.b16 %v6795, %v6794
        %v6815 = vpack.c.b16 %v6797, %v6796
        %v6816 = vpack.c.b16 %v6799, %v6798
        %v6817 = vpack.c.b16 %v6801, %v6800
        %v6834 = vadd.bf16 %v6322, %v6802
        %v6835 = vadd.bf16 %v6323, %v6802
        %v6836 = vadd.bf16 %v6324, %v6802
        %v6837 = vadd.bf16 %v6325, %v6802
        %v6838 = vadd.bf16 %v6326, %v6803
        %v6839 = vadd.bf16 %v6327, %v6803
        %v6840 = vadd.bf16 %v6328, %v6803
        %v6841 = vadd.bf16 %v6329, %v6803
        %v6842 = vadd.bf16 %v6330, %v6804
        %v6843 = vadd.bf16 %v6331, %v6804
        %v6844 = vadd.bf16 %v6332, %v6804
        %v6845 = vadd.bf16 %v6333, %v6804
        %v6846 = vadd.bf16 %v6334, %v6805
        %v6847 = vadd.bf16 %v6335, %v6805
        %v6848 = vadd.bf16 %v6336, %v6805
        %v6849 = vadd.bf16 %v6337, %v6805
        %v6850 = vadd.bf16 %v6338, %v6806
        %v6851 = vadd.bf16 %v6339, %v6806
        %v6852 = vadd.bf16 %v6340, %v6806
        %v6853 = vadd.bf16 %v6341, %v6806
        %v6854 = vadd.bf16 %v6342, %v6807
        %v6855 = vadd.bf16 %v6343, %v6807
        %v6856 = vadd.bf16 %v6344, %v6807
        %v6857 = vadd.bf16 %v6345, %v6807
        %v6858 = vadd.bf16 %v6346, %v6808
        %v6859 = vadd.bf16 %v6347, %v6808
        %v6860 = vadd.bf16 %v6348, %v6808
        %v6861 = vadd.bf16 %v6349, %v6808
        %v6862 = vadd.bf16 %v6350, %v6809
        %v6863 = vadd.bf16 %v6351, %v6809
        %v6864 = vadd.bf16 %v6352, %v6809
        %v6865 = vadd.bf16 %v6353, %v6809
        %v6866 = vadd.bf16 %v6354, %v6810
        %v6867 = vadd.bf16 %v6355, %v6810
        %v6868 = vadd.bf16 %v6356, %v6810
        %v6869 = vadd.bf16 %v6357, %v6810
        %v6870 = vadd.bf16 %v6358, %v6811
        %v6871 = vadd.bf16 %v6359, %v6811
        %v6872 = vadd.bf16 %v6360, %v6811
        %v6873 = vadd.bf16 %v6361, %v6811
        %v6874 = vadd.bf16 %v6362, %v6812
        %v6875 = vadd.bf16 %v6363, %v6812
        %v6876 = vadd.bf16 %v6364, %v6812
        %v6877 = vadd.bf16 %v6365, %v6812
        %v6878 = vadd.bf16 %v6366, %v6813
        %v6879 = vadd.bf16 %v6367, %v6813
        %v6880 = vadd.bf16 %v6368, %v6813
        %v6881 = vadd.bf16 %v6369, %v6813
        %v6882 = vadd.bf16 %v6370, %v6814
        %v6883 = vadd.bf16 %v6371, %v6814
        %v6884 = vadd.bf16 %v6372, %v6814
        %v6885 = vadd.bf16 %v6373, %v6814
        %v6886 = vadd.bf16 %v6374, %v6815
        %v6887 = vadd.bf16 %v6375, %v6815
        %v6888 = vadd.bf16 %v6376, %v6815
        %v6889 = vadd.bf16 %v6377, %v6815
        %v6890 = vadd.bf16 %v6378, %v6816
        %v6891 = vadd.bf16 %v6379, %v6816
        %v6892 = vadd.bf16 %v6380, %v6816
        %v6893 = vadd.bf16 %v6381, %v6816
        %v6894 = vadd.bf16 %v6382, %v6817
        %v6895 = vadd.bf16 %v6383, %v6817
        %v6896 = vadd.bf16 %v6384, %v6817
        %v6897 = vadd.bf16 %v6385, %v6817
        %v6898 = vmax.bf16 %v6834, 0
        %v6899 = vmax.bf16 %v6835, 0
        %v6900 = vmax.bf16 %v6836, 0
        %v6901 = vmax.bf16 %v6837, 0
        %v6902 = vmax.bf16 %v6838, 0
        %v6903 = vmax.bf16 %v6839, 0
        %v6904 = vmax.bf16 %v6840, 0
        %v6905 = vmax.bf16 %v6841, 0
        %v6906 = vmax.bf16 %v6842, 0
        %v6907 = vmax.bf16 %v6843, 0
        %v6908 = vmax.bf16 %v6844, 0
        %v6909 = vmax.bf16 %v6845, 0
        %v6910 = vmax.bf16 %v6846, 0
        %v6911 = vmax.bf16 %v6847, 0
        %v6912 = vmax.bf16 %v6848, 0
        %v6913 = vmax.bf16 %v6849, 0
        %v6914 = vmax.bf16 %v6850, 0
        %v6915 = vmax.bf16 %v6851, 0
        %v6916 = vmax.bf16 %v6852, 0
        %v6917 = vmax.bf16 %v6853, 0
        %v6918 = vmax.bf16 %v6854, 0
        %v6919 = vmax.bf16 %v6855, 0
        %v6920 = vmax.bf16 %v6856, 0
        %v6921 = vmax.bf16 %v6857, 0
        %v6922 = vmax.bf16 %v6858, 0
        %v6923 = vmax.bf16 %v6859, 0
        %v6924 = vmax.bf16 %v6860, 0
        %v6925 = vmax.bf16 %v6861, 0
        %v6926 = vmax.bf16 %v6862, 0
        %v6927 = vmax.bf16 %v6863, 0
        %v6928 = vmax.bf16 %v6864, 0
        %v6929 = vmax.bf16 %v6865, 0
        %v6930 = vmax.bf16 %v6866, 0
        %v6931 = vmax.bf16 %v6867, 0
        %v6932 = vmax.bf16 %v6868, 0
        %v6933 = vmax.bf16 %v6869, 0
        %v6934 = vmax.bf16 %v6870, 0
        %v6935 = vmax.bf16 %v6871, 0
        %v6936 = vmax.bf16 %v6872, 0
        %v6937 = vmax.bf16 %v6873, 0
        %v6938 = vmax.bf16 %v6874, 0
        %v6939 = vmax.bf16 %v6875, 0
        %v6940 = vmax.bf16 %v6876, 0
        %v6941 = vmax.bf16 %v6877, 0
        %v6942 = vmax.bf16 %v6878, 0
        %v6943 = vmax.bf16 %v6879, 0
        %v6944 = vmax.bf16 %v6880, 0
        %v6945 = vmax.bf16 %v6881, 0
        %v6946 = vmax.bf16 %v6882, 0
        %v6947 = vmax.bf16 %v6883, 0
        %v6948 = vmax.bf16 %v6884, 0
        %v6949 = vmax.bf16 %v6885, 0
        %v6950 = vmax.bf16 %v6886, 0
        %v6951 = vmax.bf16 %v6887, 0
        %v6952 = vmax.bf16 %v6888, 0
        %v6953 = vmax.bf16 %v6889, 0
        %v6954 = vmax.bf16 %v6890, 0
        %v6955 = vmax.bf16 %v6891, 0
        %v6956 = vmax.bf16 %v6892, 0
        %v6957 = vmax.bf16 %v6893, 0
        %v6958 = vmax.bf16 %v6894, 0
        %v6959 = vmax.bf16 %v6895, 0
        %v6960 = vmax.bf16 %v6896, 0
        %v6961 = vmax.bf16 %v6897, 0
        %s6962 = scalar_lea.vmem [#allocation2], 1024
        %v6963 = vld [vmem:[%s6962] sm:$0xff]
        %v6964 = vld [vmem:[%s6962 + $0x8] sm:$0xff]
        %v6965 = vld [vmem:[%s6962 + $0x10] sm:$0xff]
        %v6966 = vld [vmem:[%s6962 + $0x18] sm:$0xff]
        %v6967 = vld [vmem:[%s6962 + $0x20] sm:$0xff]
        %v6968 = vld [vmem:[%s6962 + $0x28] sm:$0xff]
        %v6969 = vld [vmem:[%s6962 + $0x30] sm:$0xff]
        %v6970 = vld [vmem:[%s6962 + $0x38] sm:$0xff]
        %v6971 = vld [vmem:[%s6962 + $0x40] sm:$0xff]
        %v6972 = vld [vmem:[%s6962 + $0x48] sm:$0xff]
        %v6973 = vld [vmem:[%s6962 + $0x50] sm:$0xff]
        %v6974 = vld [vmem:[%s6962 + $0x58] sm:$0xff]
        %v6975 = vld [vmem:[%s6962 + $0x60] sm:$0xff]
        %v6976 = vld [vmem:[%s6962 + $0x68] sm:$0xff]
        %v6977 = vld [vmem:[%s6962 + $0x70] sm:$0xff]
        %v6978 = vld [vmem:[%s6962 + $0x78] sm:$0xff]
        %v6979 = vld [vmem:[%s6962 + $0x80] sm:$0xff]
        %v6980 = vld [vmem:[%s6962 + $0x88] sm:$0xff]
        %v6981 = vld [vmem:[%s6962 + $0x90] sm:$0xff]
        %v6982 = vld [vmem:[%s6962 + $0x98] sm:$0xff]
        %v6983 = vld [vmem:[%s6962 + $0xa0] sm:$0xff]
        %v6984 = vld [vmem:[%s6962 + $0xa8] sm:$0xff]
        %v6985 = vld [vmem:[%s6962 + $0xb0] sm:$0xff]
        %v6986 = vld [vmem:[%s6962 + $0xb8] sm:$0xff]
        %v6987 = vld [vmem:[%s6962 + $0xc0] sm:$0xff]
        %v6988 = vld [vmem:[%s6962 + $0xc8] sm:$0xff]
        %v6989 = vld [vmem:[%s6962 + $0xd0] sm:$0xff]
        %v6990 = vld [vmem:[%s6962 + $0xd8] sm:$0xff]
        %v6991 = vld [vmem:[%s6962 + $0xe0] sm:$0xff]
        %v6992 = vld [vmem:[%s6962 + $0xe8] sm:$0xff]
        %v6993 = vld [vmem:[%s6962 + $0xf0] sm:$0xff]
        %v6994 = vld [vmem:[%s6962 + $0xf8] sm:$0xff]
        %v7027 = vunpack.c.l.b16 %v6963
        %v7028 = vunpack.c.h.b16 %v6963
        %v7029 = vunpack.c.l.b16 %v6964
        %v7030 = vunpack.c.h.b16 %v6964
        %v7031 = vunpack.c.l.b16 %v6965
        %v7032 = vunpack.c.h.b16 %v6965
        %v7033 = vunpack.c.l.b16 %v6966
        %v7034 = vunpack.c.h.b16 %v6966
        %v7035 = vunpack.c.l.b16 %v6967
        %v7036 = vunpack.c.h.b16 %v6967
        %v7037 = vunpack.c.l.b16 %v6968
        %v7038 = vunpack.c.h.b16 %v6968
        %v7039 = vunpack.c.l.b16 %v6969
        %v7040 = vunpack.c.h.b16 %v6969
        %v7041 = vunpack.c.l.b16 %v6970
        %v7042 = vunpack.c.h.b16 %v6970
        %v7043 = vunpack.c.l.b16 %v6971
        %v7044 = vunpack.c.h.b16 %v6971
        %v7045 = vunpack.c.l.b16 %v6972
        %v7046 = vunpack.c.h.b16 %v6972
        %v7047 = vunpack.c.l.b16 %v6973
        %v7048 = vunpack.c.h.b16 %v6973
        %v7049 = vunpack.c.l.b16 %v6974
        %v7050 = vunpack.c.h.b16 %v6974
        %v7051 = vunpack.c.l.b16 %v6975
        %v7052 = vunpack.c.h.b16 %v6975
        %v7053 = vunpack.c.l.b16 %v6976
        %v7054 = vunpack.c.h.b16 %v6976
        %v7055 = vunpack.c.l.b16 %v6977
        %v7056 = vunpack.c.h.b16 %v6977
        %v7057 = vunpack.c.l.b16 %v6978
        %v7058 = vunpack.c.h.b16 %v6978
        %v7059 = vunpack.c.l.b16 %v6979
        %v7060 = vunpack.c.h.b16 %v6979
        %v7061 = vunpack.c.l.b16 %v6980
        %v7062 = vunpack.c.h.b16 %v6980
        %v7063 = vunpack.c.l.b16 %v6981
        %v7064 = vunpack.c.h.b16 %v6981
        %v7065 = vunpack.c.l.b16 %v6982
        %v7066 = vunpack.c.h.b16 %v6982
        %v7067 = vunpack.c.l.b16 %v6983
        %v7068 = vunpack.c.h.b16 %v6983
        %v7069 = vunpack.c.l.b16 %v6984
        %v7070 = vunpack.c.h.b16 %v6984
        %v7071 = vunpack.c.l.b16 %v6985
        %v7072 = vunpack.c.h.b16 %v6985
        %v7073 = vunpack.c.l.b16 %v6986
        %v7074 = vunpack.c.h.b16 %v6986
        %v7075 = vunpack.c.l.b16 %v6987
        %v7076 = vunpack.c.h.b16 %v6987
        %v7077 = vunpack.c.l.b16 %v6988
        %v7078 = vunpack.c.h.b16 %v6988
        %v7079 = vunpack.c.l.b16 %v6989
        %v7080 = vunpack.c.h.b16 %v6989
        %v7081 = vunpack.c.l.b16 %v6990
        %v7082 = vunpack.c.h.b16 %v6990
        %v7083 = vunpack.c.l.b16 %v6991
        %v7084 = vunpack.c.h.b16 %v6991
        %v7085 = vunpack.c.l.b16 %v6992
        %v7086 = vunpack.c.h.b16 %v6992
        %v7087 = vunpack.c.l.b16 %v6993
        %v7088 = vunpack.c.h.b16 %v6993
        %v7089 = vunpack.c.l.b16 %v6994
        %v7090 = vunpack.c.h.b16 %v6994
        %v7091 = vpack.c.b16 %v7029, %v7027
        %v7092 = vpack.c.b16 %v7030, %v7028
        %v7093 = vpack.c.b16 %v7033, %v7031
        %v7094 = vpack.c.b16 %v7034, %v7032
        %v7095 = vpack.c.b16 %v7037, %v7035
        %v7096 = vpack.c.b16 %v7038, %v7036
        %v7097 = vpack.c.b16 %v7041, %v7039
        %v7098 = vpack.c.b16 %v7042, %v7040
        %v7099 = vpack.c.b16 %v7045, %v7043
        %v7100 = vpack.c.b16 %v7046, %v7044
        %v7101 = vpack.c.b16 %v7049, %v7047
        %v7102 = vpack.c.b16 %v7050, %v7048
        %v7103 = vpack.c.b16 %v7053, %v7051
        %v7104 = vpack.c.b16 %v7054, %v7052
        %v7105 = vpack.c.b16 %v7057, %v7055
        %v7106 = vpack.c.b16 %v7058, %v7056
        %v7107 = vpack.c.b16 %v7061, %v7059
        %v7108 = vpack.c.b16 %v7062, %v7060
        %v7109 = vpack.c.b16 %v7065, %v7063
        %v7110 = vpack.c.b16 %v7066, %v7064
        %v7111 = vpack.c.b16 %v7069, %v7067
        %v7112 = vpack.c.b16 %v7070, %v7068
        %v7113 = vpack.c.b16 %v7073, %v7071
        %v7114 = vpack.c.b16 %v7074, %v7072
        %v7115 = vpack.c.b16 %v7077, %v7075
        %v7116 = vpack.c.b16 %v7078, %v7076
        %v7117 = vpack.c.b16 %v7081, %v7079
        %v7118 = vpack.c.b16 %v7082, %v7080
        %v7119 = vpack.c.b16 %v7085, %v7083
        %v7120 = vpack.c.b16 %v7086, %v7084
        %v7121 = vpack.c.b16 %v7089, %v7087
        %v7122 = vpack.c.b16 %v7090, %v7088
        %7155 = vmatprep.subr.bf16.mxu0 %v6899
        %7156 = vmatpush1.bf16.msra.mxu0 %v6898
        %7157 = vmatprep.subr.bf16.mxu0 %v6903
        %7158 = vmatpush1.bf16.msra.mxu0 %v6902
        %7159 = vmatprep.subr.bf16.mxu0 %v6907
        %7160 = vmatpush1.bf16.msra.mxu0 %v6906
        %7161 = vmatprep.subr.bf16.mxu0 %v6911
        %7162 = vmatpush1.bf16.msra.mxu0 %v6910
        %7163 = vmatprep.subr.bf16.mxu0 %v6915
        %7164 = vmatpush1.bf16.msra.mxu0 %v6914
        %7165 = vmatprep.subr.bf16.mxu0 %v6919
        %7166 = vmatpush1.bf16.msra.mxu0 %v6918
        %7167 = vmatprep.subr.bf16.mxu0 %v6923
        %7168 = vmatpush1.bf16.msra.mxu0 %v6922
        %7169 = vmatprep.subr.bf16.mxu0 %v6927
        %7170 = vmatpush1.bf16.msra.mxu0 %v6926
        %7171 = vmatprep.subr.bf16.mxu0 %v6931
        %7172 = vmatpush1.bf16.msra.mxu0 %v6930
        %7173 = vmatprep.subr.bf16.mxu0 %v6935
        %7174 = vmatpush1.bf16.msra.mxu0 %v6934
        %7175 = vmatprep.subr.bf16.mxu0 %v6939
        %7176 = vmatpush1.bf16.msra.mxu0 %v6938
        %7177 = vmatprep.subr.bf16.mxu0 %v6943
        %7178 = vmatpush1.bf16.msra.mxu0 %v6942
        %7179 = vmatprep.subr.bf16.mxu0 %v6947
        %7180 = vmatpush1.bf16.msra.mxu0 %v6946
        %7181 = vmatprep.subr.bf16.mxu0 %v6951
        %7182 = vmatpush1.bf16.msra.mxu0 %v6950
        %7183 = vmatprep.subr.bf16.mxu0 %v6955
        %7184 = vmatpush1.bf16.msra.mxu0 %v6954
        %7185 = vmatprep.subr.bf16.mxu0 %v6959
        %7186 = vmatpush1.bf16.msra.mxu0 %v6958
        %7187 = vmatprep.mubr.bf16.mxu0 %v7092
        %7188 = vmatmul.mubr.bf16.gmra.mrb[0].mxu0 %v7091
        %v7189 = vpop.f32.mrb[0].mxu0
        %v7190 = vadd.f32 0.0, %v7189
        %v7191 = vpop.f32.mrb[0].mxu0
        %v7192 = vadd.f32 0.0, %v7191
        %v7193 = vpop.f32.mrb[0].mxu0
        %v7194 = vadd.f32 0.0, %v7193
        %v7195 = vpop.f32.mrb[0].mxu0
        %v7196 = vadd.f32 0.0, %v7195
        %7197 = vmatprep.mubr.bf16.mxu0 %v7094
        %7198 = vmatmul.mubr.bf16.gmra.mrb[0].mxu0 %v7093
        %v7199 = vpop.f32.mrb[0].mxu0
        %v7200 = vadd.f32 0.0, %v7199
        %v7201 = vpop.f32.mrb[0].mxu0
        %v7202 = vadd.f32 0.0, %v7201
        %v7203 = vpop.f32.mrb[0].mxu0
        %v7204 = vadd.f32 0.0, %v7203
        %v7205 = vpop.f32.mrb[0].mxu0
        %v7206 = vadd.f32 0.0, %v7205
        %7207 = vmatprep.mubr.bf16.mxu0 %v7096
        %7208 = vmatmul.mubr.bf16.gmra.mrb[0].mxu0 %v7095
        %v7209 = vpop.f32.mrb[0].mxu0
        %v7210 = vadd.f32 0.0, %v7209
        %v7211 = vpop.f32.mrb[0].mxu0
        %v7212 = vadd.f32 0.0, %v7211
        %v7213 = vpop.f32.mrb[0].mxu0
        %v7214 = vadd.f32 0.0, %v7213
        %v7215 = vpop.f32.mrb[0].mxu0
        %v7216 = vadd.f32 0.0, %v7215
        %7217 = vmatprep.mubr.bf16.mxu0 %v7098
        %7218 = vmatmul.mubr.bf16.gmra.mrb[0].mxu0 %v7097
        %v7219 = vpop.f32.mrb[0].mxu0
        %v7220 = vadd.f32 0.0, %v7219
        %v7221 = vpop.f32.mrb[0].mxu0
        %v7222 = vadd.f32 0.0, %v7221
        %v7223 = vpop.f32.mrb[0].mxu0
        %v7224 = vadd.f32 0.0, %v7223
        %v7225 = vpop.f32.mrb[0].mxu0
        %v7226 = vadd.f32 0.0, %v7225
        %7227 = vmatprep.mubr.bf16.mxu0 %v7100
        %7228 = vmatmul.mubr.bf16.gmra.mrb[0].mxu0 %v7099
        %v7229 = vpop.f32.mrb[0].mxu0
        %v7230 = vadd.f32 0.0, %v7229
        %v7231 = vpop.f32.mrb[0].mxu0
        %v7232 = vadd.f32 0.0, %v7231
        %v7233 = vpop.f32.mrb[0].mxu0
        %v7234 = vadd.f32 0.0, %v7233
        %v7235 = vpop.f32.mrb[0].mxu0
        %v7236 = vadd.f32 0.0, %v7235
        %7237 = vmatprep.mubr.bf16.mxu0 %v7102
        %7238 = vmatmul.mubr.bf16.gmra.mrb[0].mxu0 %v7101
        %v7239 = vpop.f32.mrb[0].mxu0
        %v7240 = vadd.f32 0.0, %v7239
        %v7241 = vpop.f32.mrb[0].mxu0
        %v7242 = vadd.f32 0.0, %v7241
        %v7243 = vpop.f32.mrb[0].mxu0
        %v7244 = vadd.f32 0.0, %v7243
        %v7245 = vpop.f32.mrb[0].mxu0
        %v7246 = vadd.f32 0.0, %v7245
        %7247 = vmatprep.mubr.bf16.mxu0 %v7104
        %7248 = vmatmul.mubr.bf16.gmra.mrb[0].mxu0 %v7103
        %v7249 = vpop.f32.mrb[0].mxu0
        %v7250 = vadd.f32 0.0, %v7249
        %v7251 = vpop.f32.mrb[0].mxu0
        %v7252 = vadd.f32 0.0, %v7251
        %v7253 = vpop.f32.mrb[0].mxu0
        %v7254 = vadd.f32 0.0, %v7253
        %v7255 = vpop.f32.mrb[0].mxu0
        %v7256 = vadd.f32 0.0, %v7255
        %7257 = vmatprep.mubr.bf16.mxu0 %v7106
        %7258 = vmatmul.mubr.bf16.gmra.mrb[0].mxu0 %v7105
        %v7259 = vpop.f32.mrb[0].mxu0
        %v7260 = vadd.f32 0.0, %v7259
        %v7261 = vpop.f32.mrb[0].mxu0
        %v7262 = vadd.f32 0.0, %v7261
        %v7263 = vpop.f32.mrb[0].mxu0
        %v7264 = vadd.f32 0.0, %v7263
        %v7265 = vpop.f32.mrb[0].mxu0
        %v7266 = vadd.f32 0.0, %v7265
        %7267 = vmatprep.mubr.bf16.mxu0 %v7108
        %7268 = vmatmul.mubr.bf16.gmra.mrb[0].mxu0 %v7107
        %v7269 = vpop.f32.mrb[0].mxu0
        %v7270 = vadd.f32 0.0, %v7269
        %v7271 = vpop.f32.mrb[0].mxu0
        %v7272 = vadd.f32 0.0, %v7271
        %v7273 = vpop.f32.mrb[0].mxu0
        %v7274 = vadd.f32 0.0, %v7273
        %v7275 = vpop.f32.mrb[0].mxu0
        %v7276 = vadd.f32 0.0, %v7275
        %7277 = vmatprep.mubr.bf16.mxu0 %v7110
        %7278 = vmatmul.mubr.bf16.gmra.mrb[0].mxu0 %v7109
        %v7279 = vpop.f32.mrb[0].mxu0
        %v7280 = vadd.f32 0.0, %v7279
        %v7281 = vpop.f32.mrb[0].mxu0
        %v7282 = vadd.f32 0.0, %v7281
        %v7283 = vpop.f32.mrb[0].mxu0
        %v7284 = vadd.f32 0.0, %v7283
        %v7285 = vpop.f32.mrb[0].mxu0
        %v7286 = vadd.f32 0.0, %v7285
        %7287 = vmatprep.mubr.bf16.mxu0 %v7112
        %7288 = vmatmul.mubr.bf16.gmra.mrb[0].mxu0 %v7111
        %v7289 = vpop.f32.mrb[0].mxu0
        %v7290 = vadd.f32 0.0, %v7289
        %v7291 = vpop.f32.mrb[0].mxu0
        %v7292 = vadd.f32 0.0, %v7291
        %v7293 = vpop.f32.mrb[0].mxu0
        %v7294 = vadd.f32 0.0, %v7293
        %v7295 = vpop.f32.mrb[0].mxu0
        %v7296 = vadd.f32 0.0, %v7295
        %7297 = vmatprep.mubr.bf16.mxu0 %v7114
        %7298 = vmatmul.mubr.bf16.gmra.mrb[0].mxu0 %v7113
        %v7299 = vpop.f32.mrb[0].mxu0
        %v7300 = vadd.f32 0.0, %v7299
        %v7301 = vpop.f32.mrb[0].mxu0
        %v7302 = vadd.f32 0.0, %v7301
        %v7303 = vpop.f32.mrb[0].mxu0
        %v7304 = vadd.f32 0.0, %v7303
        %v7305 = vpop.f32.mrb[0].mxu0
        %v7306 = vadd.f32 0.0, %v7305
        %7307 = vmatprep.mubr.bf16.mxu0 %v7116
        %7308 = vmatmul.mubr.bf16.gmra.mrb[0].mxu0 %v7115
        %v7309 = vpop.f32.mrb[0].mxu0
        %v7310 = vadd.f32 0.0, %v7309
        %v7311 = vpop.f32.mrb[0].mxu0
        %v7312 = vadd.f32 0.0, %v7311
        %v7313 = vpop.f32.mrb[0].mxu0
        %v7314 = vadd.f32 0.0, %v7313
        %v7315 = vpop.f32.mrb[0].mxu0
        %v7316 = vadd.f32 0.0, %v7315
        %7317 = vmatprep.mubr.bf16.mxu0 %v7118
        %7318 = vmatmul.mubr.bf16.gmra.mrb[0].mxu0 %v7117
        %v7319 = vpop.f32.mrb[0].mxu0
        %v7320 = vadd.f32 0.0, %v7319
        %v7321 = vpop.f32.mrb[0].mxu0
        %v7322 = vadd.f32 0.0, %v7321
        %v7323 = vpop.f32.mrb[0].mxu0
        %v7324 = vadd.f32 0.0, %v7323
        %v7325 = vpop.f32.mrb[0].mxu0
        %v7326 = vadd.f32 0.0, %v7325
        %7327 = vmatprep.mubr.bf16.mxu0 %v7120
        %7328 = vmatmul.mubr.bf16.gmra.mrb[0].mxu0 %v7119
        %v7329 = vpop.f32.mrb[0].mxu0
        %v7330 = vadd.f32 0.0, %v7329
        %v7331 = vpop.f32.mrb[0].mxu0
        %v7332 = vadd.f32 0.0, %v7331
        %v7333 = vpop.f32.mrb[0].mxu0
        %v7334 = vadd.f32 0.0, %v7333
        %v7335 = vpop.f32.mrb[0].mxu0
        %v7336 = vadd.f32 0.0, %v7335
        %7337 = vmatprep.mubr.bf16.mxu0 %v7122
        %7338 = vmatmul.mubr.bf16.gmra.mrb[0].mxu0 %v7121
        %v7339 = vpop.f32.mrb[0].mxu0
        %v7340 = vadd.f32 0.0, %v7339
        %v7341 = vpop.f32.mrb[0].mxu0
        %v7342 = vadd.f32 0.0, %v7341
        %v7343 = vpop.f32.mrb[0].mxu0
        %v7344 = vadd.f32 0.0, %v7343
        %v7345 = vpop.f32.mrb[0].mxu0
        %v7346 = vadd.f32 0.0, %v7345
        %7347 = vdwg.mxu0
        %7348 = vmatprep.subr.bf16.mxu0 %v6901
        %7349 = vmatpush1.bf16.msra.mxu0 %v6900
        %7350 = vmatprep.subr.bf16.mxu0 %v6905
        %7351 = vmatpush1.bf16.msra.mxu0 %v6904
        %7352 = vmatprep.subr.bf16.mxu0 %v6909
        %7353 = vmatpush1.bf16.msra.mxu0 %v6908
        %7354 = vmatprep.subr.bf16.mxu0 %v6913
        %7355 = vmatpush1.bf16.msra.mxu0 %v6912
        %7356 = vmatprep.subr.bf16.mxu0 %v6917
        %7357 = vmatpush1.bf16.msra.mxu0 %v6916
        %7358 = vmatprep.subr.bf16.mxu0 %v6921
        %7359 = vmatpush1.bf16.msra.mxu0 %v6920
        %7360 = vmatprep.subr.bf16.mxu0 %v6925
        %7361 = vmatpush1.bf16.msra.mxu0 %v6924
        %7362 = vmatprep.subr.bf16.mxu0 %v6929
        %7363 = vmatpush1.bf16.msra.mxu0 %v6928
        %7364 = vmatprep.subr.bf16.mxu0 %v6933
        %7365 = vmatpush1.bf16.msra.mxu0 %v6932
        %7366 = vmatprep.subr.bf16.mxu0 %v6937
        %7367 = vmatpush1.bf16.msra.mxu0 %v6936
        %7368 = vmatprep.subr.bf16.mxu0 %v6941
        %7369 = vmatpush1.bf16.msra.mxu0 %v6940
        %7370 = vmatprep.subr.bf16.mxu0 %v6945
        %7371 = vmatpush1.bf16.msra.mxu0 %v6944
        %7372 = vmatprep.subr.bf16.mxu0 %v6949
        %7373 = vmatpush1.bf16.msra.mxu0 %v6948
        %7374 = vmatprep.subr.bf16.mxu0 %v6953
        %7375 = vmatpush1.bf16.msra.mxu0 %v6952
        %7376 = vmatprep.subr.bf16.mxu0 %v6957
        %7377 = vmatpush1.bf16.msra.mxu0 %v6956
        %7378 = vmatprep.subr.bf16.mxu0 %v6961
        %7379 = vmatpush1.bf16.msra.mxu0 %v6960
        %7380 = vmatprep.mubr.bf16.mxu0 %v7092
        %7381 = vmatmul.mubr.bf16.gmra.mrb[0].mxu0 %v7091
        %v7382 = vpop.f32.mrb[0].mxu0
        %v7383 = vadd.f32 0.0, %v7382
        %v7384 = vpop.f32.mrb[0].mxu0
        %v7385 = vadd.f32 0.0, %v7384
        %v7386 = vpop.f32.mrb[0].mxu0
        %v7387 = vadd.f32 0.0, %v7386
        %v7388 = vpop.f32.mrb[0].mxu0
        %v7389 = vadd.f32 0.0, %v7388
        %7390 = vmatprep.mubr.bf16.mxu0 %v7094
        %7391 = vmatmul.mubr.bf16.gmra.mrb[0].mxu0 %v7093
        %v7392 = vpop.f32.mrb[0].mxu0
        %v7393 = vadd.f32 0.0, %v7392
        %v7394 = vpop.f32.mrb[0].mxu0
        %v7395 = vadd.f32 0.0, %v7394
        %v7396 = vpop.f32.mrb[0].mxu0
        %v7397 = vadd.f32 0.0, %v7396
        %v7398 = vpop.f32.mrb[0].mxu0
        %v7399 = vadd.f32 0.0, %v7398
        %7400 = vmatprep.mubr.bf16.mxu0 %v7096
        %7401 = vmatmul.mubr.bf16.gmra.mrb[0].mxu0 %v7095
        %v7402 = vpop.f32.mrb[0].mxu0
        %v7403 = vadd.f32 0.0, %v7402
        %v7404 = vpop.f32.mrb[0].mxu0
        %v7405 = vadd.f32 0.0, %v7404
        %v7406 = vpop.f32.mrb[0].mxu0
        %v7407 = vadd.f32 0.0, %v7406
        %v7408 = vpop.f32.mrb[0].mxu0
        %v7409 = vadd.f32 0.0, %v7408
        %7410 = vmatprep.mubr.bf16.mxu0 %v7098
        %7411 = vmatmul.mubr.bf16.gmra.mrb[0].mxu0 %v7097
        %v7412 = vpop.f32.mrb[0].mxu0
        %v7413 = vadd.f32 0.0, %v7412
        %v7414 = vpop.f32.mrb[0].mxu0
        %v7415 = vadd.f32 0.0, %v7414
        %v7416 = vpop.f32.mrb[0].mxu0
        %v7417 = vadd.f32 0.0, %v7416
        %v7418 = vpop.f32.mrb[0].mxu0
        %v7419 = vadd.f32 0.0, %v7418
        %7420 = vmatprep.mubr.bf16.mxu0 %v7100
        %7421 = vmatmul.mubr.bf16.gmra.mrb[0].mxu0 %v7099
        %v7422 = vpop.f32.mrb[0].mxu0
        %v7423 = vadd.f32 0.0, %v7422
        %v7424 = vpop.f32.mrb[0].mxu0
        %v7425 = vadd.f32 0.0, %v7424
        %v7426 = vpop.f32.mrb[0].mxu0
        %v7427 = vadd.f32 0.0, %v7426
        %v7428 = vpop.f32.mrb[0].mxu0
        %v7429 = vadd.f32 0.0, %v7428
        %7430 = vmatprep.mubr.bf16.mxu0 %v7102
        %7431 = vmatmul.mubr.bf16.gmra.mrb[0].mxu0 %v7101
        %v7432 = vpop.f32.mrb[0].mxu0
        %v7433 = vadd.f32 0.0, %v7432
        %v7434 = vpop.f32.mrb[0].mxu0
        %v7435 = vadd.f32 0.0, %v7434
        %v7436 = vpop.f32.mrb[0].mxu0
        %v7437 = vadd.f32 0.0, %v7436
        %v7438 = vpop.f32.mrb[0].mxu0
        %v7439 = vadd.f32 0.0, %v7438
        %7440 = vmatprep.mubr.bf16.mxu0 %v7104
        %7441 = vmatmul.mubr.bf16.gmra.mrb[0].mxu0 %v7103
        %v7442 = vpop.f32.mrb[0].mxu0
        %v7443 = vadd.f32 0.0, %v7442
        %v7444 = vpop.f32.mrb[0].mxu0
        %v7445 = vadd.f32 0.0, %v7444
        %v7446 = vpop.f32.mrb[0].mxu0
        %v7447 = vadd.f32 0.0, %v7446
        %v7448 = vpop.f32.mrb[0].mxu0
        %v7449 = vadd.f32 0.0, %v7448
        %7450 = vmatprep.mubr.bf16.mxu0 %v7106
        %7451 = vmatmul.mubr.bf16.gmra.mrb[0].mxu0 %v7105
        %v7452 = vpop.f32.mrb[0].mxu0
        %v7453 = vadd.f32 0.0, %v7452
        %v7454 = vpop.f32.mrb[0].mxu0
        %v7455 = vadd.f32 0.0, %v7454
        %v7456 = vpop.f32.mrb[0].mxu0
        %v7457 = vadd.f32 0.0, %v7456
        %v7458 = vpop.f32.mrb[0].mxu0
        %v7459 = vadd.f32 0.0, %v7458
        %7460 = vmatprep.mubr.bf16.mxu0 %v7108
        %7461 = vmatmul.mubr.bf16.gmra.mrb[0].mxu0 %v7107
        %v7462 = vpop.f32.mrb[0].mxu0
        %v7463 = vadd.f32 0.0, %v7462
        %v7464 = vpop.f32.mrb[0].mxu0
        %v7465 = vadd.f32 0.0, %v7464
        %v7466 = vpop.f32.mrb[0].mxu0
        %v7467 = vadd.f32 0.0, %v7466
        %v7468 = vpop.f32.mrb[0].mxu0
        %v7469 = vadd.f32 0.0, %v7468
        %7470 = vmatprep.mubr.bf16.mxu0 %v7110
        %7471 = vmatmul.mubr.bf16.gmra.mrb[0].mxu0 %v7109
        %v7472 = vpop.f32.mrb[0].mxu0
        %v7473 = vadd.f32 0.0, %v7472
        %v7474 = vpop.f32.mrb[0].mxu0
        %v7475 = vadd.f32 0.0, %v7474
        %v7476 = vpop.f32.mrb[0].mxu0
        %v7477 = vadd.f32 0.0, %v7476
        %v7478 = vpop.f32.mrb[0].mxu0
        %v7479 = vadd.f32 0.0, %v7478
        %7480 = vmatprep.mubr.bf16.mxu0 %v7112
        %7481 = vmatmul.mubr.bf16.gmra.mrb[0].mxu0 %v7111
        %v7482 = vpop.f32.mrb[0].mxu0
        %v7483 = vadd.f32 0.0, %v7482
        %v7484 = vpop.f32.mrb[0].mxu0
        %v7485 = vadd.f32 0.0, %v7484
        %v7486 = vpop.f32.mrb[0].mxu0
        %v7487 = vadd.f32 0.0, %v7486
        %v7488 = vpop.f32.mrb[0].mxu0
        %v7489 = vadd.f32 0.0, %v7488
        %7490 = vmatprep.mubr.bf16.mxu0 %v7114
        %7491 = vmatmul.mubr.bf16.gmra.mrb[0].mxu0 %v7113
        %v7492 = vpop.f32.mrb[0].mxu0
        %v7493 = vadd.f32 0.0, %v7492
        %v7494 = vpop.f32.mrb[0].mxu0
        %v7495 = vadd.f32 0.0, %v7494
        %v7496 = vpop.f32.mrb[0].mxu0
        %v7497 = vadd.f32 0.0, %v7496
        %v7498 = vpop.f32.mrb[0].mxu0
        %v7499 = vadd.f32 0.0, %v7498
        %7500 = vmatprep.mubr.bf16.mxu0 %v7116
        %7501 = vmatmul.mubr.bf16.gmra.mrb[0].mxu0 %v7115
        %v7502 = vpop.f32.mrb[0].mxu0
        %v7503 = vadd.f32 0.0, %v7502
        %v7504 = vpop.f32.mrb[0].mxu0
        %v7505 = vadd.f32 0.0, %v7504
        %v7506 = vpop.f32.mrb[0].mxu0
        %v7507 = vadd.f32 0.0, %v7506
        %v7508 = vpop.f32.mrb[0].mxu0
        %v7509 = vadd.f32 0.0, %v7508
        %7510 = vmatprep.mubr.bf16.mxu0 %v7118
        %7511 = vmatmul.mubr.bf16.gmra.mrb[0].mxu0 %v7117
        %v7512 = vpop.f32.mrb[0].mxu0
        %v7513 = vadd.f32 0.0, %v7512
        %v7514 = vpop.f32.mrb[0].mxu0
        %v7515 = vadd.f32 0.0, %v7514
        %v7516 = vpop.f32.mrb[0].mxu0
        %v7517 = vadd.f32 0.0, %v7516
        %v7518 = vpop.f32.mrb[0].mxu0
        %v7519 = vadd.f32 0.0, %v7518
        %7520 = vmatprep.mubr.bf16.mxu0 %v7120
        %7521 = vmatmul.mubr.bf16.gmra.mrb[0].mxu0 %v7119
        %v7522 = vpop.f32.mrb[0].mxu0
        %v7523 = vadd.f32 0.0, %v7522
        %v7524 = vpop.f32.mrb[0].mxu0
        %v7525 = vadd.f32 0.0, %v7524
        %v7526 = vpop.f32.mrb[0].mxu0
        %v7527 = vadd.f32 0.0, %v7526
        %v7528 = vpop.f32.mrb[0].mxu0
        %v7529 = vadd.f32 0.0, %v7528
        %7530 = vmatprep.mubr.bf16.mxu0 %v7122
        %7531 = vmatmul.mubr.bf16.gmra.mrb[0].mxu0 %v7121
        %v7532 = vpop.f32.mrb[0].mxu0
        %v7533 = vadd.f32 0.0, %v7532
        %v7534 = vpop.f32.mrb[0].mxu0
        %v7535 = vadd.f32 0.0, %v7534
        %v7536 = vpop.f32.mrb[0].mxu0
        %v7537 = vadd.f32 0.0, %v7536
        %v7538 = vpop.f32.mrb[0].mxu0
        %v7539 = vadd.f32 0.0, %v7538
        %7540 = vdwg.mxu0
        %v7541 = vpack.c.bf16 %v7194, %v7190
        %v7542 = vpack.c.bf16 %v7196, %v7192
        %v7543 = vpack.c.bf16 %v7387, %v7383
        %v7544 = vpack.c.bf16 %v7389, %v7385
        %v7545 = vpack.c.bf16 %v7204, %v7200
        %v7546 = vpack.c.bf16 %v7206, %v7202
        %v7547 = vpack.c.bf16 %v7397, %v7393
        %v7548 = vpack.c.bf16 %v7399, %v7395
        %v7549 = vpack.c.bf16 %v7214, %v7210
        %v7550 = vpack.c.bf16 %v7216, %v7212
        %v7551 = vpack.c.bf16 %v7407, %v7403
        %v7552 = vpack.c.bf16 %v7409, %v7405
        %v7553 = vpack.c.bf16 %v7224, %v7220
        %v7554 = vpack.c.bf16 %v7226, %v7222
        %v7555 = vpack.c.bf16 %v7417, %v7413
        %v7556 = vpack.c.bf16 %v7419, %v7415
        %v7557 = vpack.c.bf16 %v7234, %v7230
        %v7558 = vpack.c.bf16 %v7236, %v7232
        %v7559 = vpack.c.bf16 %v7427, %v7423
        %v7560 = vpack.c.bf16 %v7429, %v7425
        %v7561 = vpack.c.bf16 %v7244, %v7240
        %v7562 = vpack.c.bf16 %v7246, %v7242
        %v7563 = vpack.c.bf16 %v7437, %v7433
        %v7564 = vpack.c.bf16 %v7439, %v7435
        %v7565 = vpack.c.bf16 %v7254, %v7250
        %v7566 = vpack.c.bf16 %v7256, %v7252
        %v7567 = vpack.c.bf16 %v7447, %v7443
        %v7568 = vpack.c.bf16 %v7449, %v7445
        %v7569 = vpack.c.bf16 %v7264, %v7260
        %v7570 = vpack.c.bf16 %v7266, %v7262
        %v7571 = vpack.c.bf16 %v7457, %v7453
        %v7572 = vpack.c.bf16 %v7459, %v7455
        %v7573 = vpack.c.bf16 %v7274, %v7270
        %v7574 = vpack.c.bf16 %v7276, %v7272
        %v7575 = vpack.c.bf16 %v7467, %v7463
        %v7576 = vpack.c.bf16 %v7469, %v7465
        %v7577 = vpack.c.bf16 %v7284, %v7280
        %v7578 = vpack.c.bf16 %v7286, %v7282
        %v7579 = vpack.c.bf16 %v7477, %v7473
        %v7580 = vpack.c.bf16 %v7479, %v7475
        %v7581 = vpack.c.bf16 %v7294, %v7290
        %v7582 = vpack.c.bf16 %v7296, %v7292
        %v7583 = vpack.c.bf16 %v7487, %v7483
        %v7584 = vpack.c.bf16 %v7489, %v7485
        %v7585 = vpack.c.bf16 %v7304, %v7300
        %v7586 = vpack.c.bf16 %v7306, %v7302
        %v7587 = vpack.c.bf16 %v7497, %v7493
        %v7588 = vpack.c.bf16 %v7499, %v7495
        %v7589 = vpack.c.bf16 %v7314, %v7310
        %v7590 = vpack.c.bf16 %v7316, %v7312
        %v7591 = vpack.c.bf16 %v7507, %v7503
        %v7592 = vpack.c.bf16 %v7509, %v7505
        %v7593 = vpack.c.bf16 %v7324, %v7320
        %v7594 = vpack.c.bf16 %v7326, %v7322
        %v7595 = vpack.c.bf16 %v7517, %v7513
        %v7596 = vpack.c.bf16 %v7519, %v7515
        %v7597 = vpack.c.bf16 %v7334, %v7330
        %v7598 = vpack.c.bf16 %v7336, %v7332
        %v7599 = vpack.c.bf16 %v7527, %v7523
        %v7600 = vpack.c.bf16 %v7529, %v7525
        %v7601 = vpack.c.bf16 %v7344, %v7340
        %v7602 = vpack.c.bf16 %v7346, %v7342
        %v7603 = vpack.c.bf16 %v7537, %v7533
        %v7604 = vpack.c.bf16 %v7539, %v7535
        %7605 = vset.pattern.permute.xlu0 5
        %7606 = vperm.xlu0 %7605, %v279
        %v7607 = vpop.permute.xlu0 %7606
        %v7610 = vunpack.c.l.s4 839922192
        %v7611 = vunpack.c.0.s8 %v7610
        %v7612 = vlaneseq
        %v7613 = vshrl.u32 %v7612, 7
        %v7614 = vsub.s32 %v7611, %v7613
        %v7615 = vrot.slane %v7607, %v7614
        %7616 = vset.pattern.permute.xlu0 5
        %7617 = vperm.xlu0 %7616, %v280
        %v7618 = vpop.permute.xlu0 %7617
        %v7621 = vunpack.c.l.s4 839922192
        %v7622 = vunpack.c.0.s8 %v7621
        %v7623 = vlaneseq
        %v7624 = vshrl.u32 %v7623, 7
        %v7625 = vsub.s32 %v7622, %v7624
        %v7626 = vrot.slane %v7618, %v7625
        %7627 = vset.pattern.permute.xlu0 5
        %7628 = vperm.xlu0 %7627, %v281
        %v7629 = vpop.permute.xlu0 %7628
        %v7632 = vunpack.c.l.s4 839922192
        %v7633 = vunpack.c.0.s8 %v7632
        %v7634 = vlaneseq
        %v7635 = vshrl.u32 %v7634, 7
        %v7636 = vsub.s32 %v7633, %v7635
        %v7637 = vrot.slane %v7629, %v7636
        %7638 = vset.pattern.permute.xlu0 5
        %7639 = vperm.xlu0 %7638, %v282
        %v7640 = vpop.permute.xlu0 %7639
        %v7643 = vunpack.c.l.s4 839922192
        %v7644 = vunpack.c.0.s8 %v7643
        %v7645 = vlaneseq
        %v7646 = vshrl.u32 %v7645, 7
        %v7647 = vsub.s32 %v7644, %v7646
        %v7648 = vrot.slane %v7640, %v7647
        %7649 = vset.pattern.permute.xlu0 5
        %7650 = vperm.xlu0 %7649, %v283
        %v7651 = vpop.permute.xlu0 %7650
        %v7654 = vunpack.c.l.s4 839922192
        %v7655 = vunpack.c.0.s8 %v7654
        %v7656 = vlaneseq
        %v7657 = vshrl.u32 %v7656, 7
        %v7658 = vsub.s32 %v7655, %v7657
        %v7659 = vrot.slane %v7651, %v7658
        %7660 = vset.pattern.permute.xlu0 5
        %7661 = vperm.xlu0 %7660, %v284
        %v7662 = vpop.permute.xlu0 %7661
        %v7665 = vunpack.c.l.s4 839922192
        %v7666 = vunpack.c.0.s8 %v7665
        %v7667 = vlaneseq
        %v7668 = vshrl.u32 %v7667, 7
        %v7669 = vsub.s32 %v7666, %v7668
        %v7670 = vrot.slane %v7662, %v7669
        %7671 = vset.pattern.permute.xlu0 5
        %7672 = vperm.xlu0 %7671, %v285
        %v7673 = vpop.permute.xlu0 %7672
        %v7676 = vunpack.c.l.s4 839922192
        %v7677 = vunpack.c.0.s8 %v7676
        %v7678 = vlaneseq
        %v7679 = vshrl.u32 %v7678, 7
        %v7680 = vsub.s32 %v7677, %v7679
        %v7681 = vrot.slane %v7673, %v7680
        %7682 = vset.pattern.permute.xlu0 5
        %7683 = vperm.xlu0 %7682, %v286
        %v7684 = vpop.permute.xlu0 %7683
        %v7687 = vunpack.c.l.s4 839922192
        %v7688 = vunpack.c.0.s8 %v7687
        %v7689 = vlaneseq
        %v7690 = vshrl.u32 %v7689, 7
        %v7691 = vsub.s32 %v7688, %v7690
        %v7692 = vrot.slane %v7684, %v7691
        %7693 = vset.pattern.permute.xlu0 5
        %7694 = vperm.xlu0 %7693, %v287
        %v7695 = vpop.permute.xlu0 %7694
        %v7698 = vunpack.c.l.s4 839922192
        %v7699 = vunpack.c.0.s8 %v7698
        %v7700 = vlaneseq
        %v7701 = vshrl.u32 %v7700, 7
        %v7702 = vsub.s32 %v7699, %v7701
        %v7703 = vrot.slane %v7695, %v7702
        %7704 = vset.pattern.permute.xlu0 5
        %7705 = vperm.xlu0 %7704, %v288
        %v7706 = vpop.permute.xlu0 %7705
        %v7709 = vunpack.c.l.s4 839922192
        %v7710 = vunpack.c.0.s8 %v7709
        %v7711 = vlaneseq
        %v7712 = vshrl.u32 %v7711, 7
        %v7713 = vsub.s32 %v7710, %v7712
        %v7714 = vrot.slane %v7706, %v7713
        %7715 = vset.pattern.permute.xlu0 5
        %7716 = vperm.xlu0 %7715, %v289
        %v7717 = vpop.permute.xlu0 %7716
        %v7720 = vunpack.c.l.s4 839922192
        %v7721 = vunpack.c.0.s8 %v7720
        %v7722 = vlaneseq
        %v7723 = vshrl.u32 %v7722, 7
        %v7724 = vsub.s32 %v7721, %v7723
        %v7725 = vrot.slane %v7717, %v7724
        %7726 = vset.pattern.permute.xlu0 5
        %7727 = vperm.xlu0 %7726, %v290
        %v7728 = vpop.permute.xlu0 %7727
        %v7731 = vunpack.c.l.s4 839922192
        %v7732 = vunpack.c.0.s8 %v7731
        %v7733 = vlaneseq
        %v7734 = vshrl.u32 %v7733, 7
        %v7735 = vsub.s32 %v7732, %v7734
        %v7736 = vrot.slane %v7728, %v7735
        %7737 = vset.pattern.permute.xlu0 5
        %7738 = vperm.xlu0 %7737, %v291
        %v7739 = vpop.permute.xlu0 %7738
        %v7742 = vunpack.c.l.s4 839922192
        %v7743 = vunpack.c.0.s8 %v7742
        %v7744 = vlaneseq
        %v7745 = vshrl.u32 %v7744, 7
        %v7746 = vsub.s32 %v7743, %v7745
        %v7747 = vrot.slane %v7739, %v7746
        %7748 = vset.pattern.permute.xlu0 5
        %7749 = vperm.xlu0 %7748, %v292
        %v7750 = vpop.permute.xlu0 %7749
        %v7753 = vunpack.c.l.s4 839922192
        %v7754 = vunpack.c.0.s8 %v7753
        %v7755 = vlaneseq
        %v7756 = vshrl.u32 %v7755, 7
        %v7757 = vsub.s32 %v7754, %v7756
        %v7758 = vrot.slane %v7750, %v7757
        %7759 = vset.pattern.permute.xlu0 5
        %7760 = vperm.xlu0 %7759, %v293
        %v7761 = vpop.permute.xlu0 %7760
        %v7764 = vunpack.c.l.s4 839922192
        %v7765 = vunpack.c.0.s8 %v7764
        %v7766 = vlaneseq
        %v7767 = vshrl.u32 %v7766, 7
        %v7768 = vsub.s32 %v7765, %v7767
        %v7769 = vrot.slane %v7761, %v7768
        %7770 = vset.pattern.permute.xlu0 5
        %7771 = vperm.xlu0 %7770, %v294
        %v7772 = vpop.permute.xlu0 %7771
        %v7775 = vunpack.c.l.s4 839922192
        %v7776 = vunpack.c.0.s8 %v7775
        %v7777 = vlaneseq
        %v7778 = vshrl.u32 %v7777, 7
        %v7779 = vsub.s32 %v7776, %v7778
        %v7780 = vrot.slane %v7772, %v7779
        %7781 = vset.pattern.permute.xlu0 5
        %7782 = vperm.xlu0 %7781, %v295
        %v7783 = vpop.permute.xlu0 %7782
        %v7786 = vunpack.c.l.s4 839922192
        %v7787 = vunpack.c.0.s8 %v7786
        %v7788 = vlaneseq
        %v7789 = vshrl.u32 %v7788, 7
        %v7790 = vsub.s32 %v7787, %v7789
        %v7791 = vrot.slane %v7783, %v7790
        %7792 = vset.pattern.permute.xlu0 5
        %7793 = vperm.xlu0 %7792, %v296
        %v7794 = vpop.permute.xlu0 %7793
        %v7797 = vunpack.c.l.s4 839922192
        %v7798 = vunpack.c.0.s8 %v7797
        %v7799 = vlaneseq
        %v7800 = vshrl.u32 %v7799, 7
        %v7801 = vsub.s32 %v7798, %v7800
        %v7802 = vrot.slane %v7794, %v7801
        %7803 = vset.pattern.permute.xlu0 5
        %7804 = vperm.xlu0 %7803, %v297
        %v7805 = vpop.permute.xlu0 %7804
        %v7808 = vunpack.c.l.s4 839922192
        %v7809 = vunpack.c.0.s8 %v7808
        %v7810 = vlaneseq
        %v7811 = vshrl.u32 %v7810, 7
        %v7812 = vsub.s32 %v7809, %v7811
        %v7813 = vrot.slane %v7805, %v7812
        %7814 = vset.pattern.permute.xlu0 5
        %7815 = vperm.xlu0 %7814, %v298
        %v7816 = vpop.permute.xlu0 %7815
        %v7819 = vunpack.c.l.s4 839922192
        %v7820 = vunpack.c.0.s8 %v7819
        %v7821 = vlaneseq
        %v7822 = vshrl.u32 %v7821, 7
        %v7823 = vsub.s32 %v7820, %v7822
        %v7824 = vrot.slane %v7816, %v7823
        %7825 = vset.pattern.permute.xlu0 5
        %7826 = vperm.xlu0 %7825, %v299
        %v7827 = vpop.permute.xlu0 %7826
        %v7830 = vunpack.c.l.s4 839922192
        %v7831 = vunpack.c.0.s8 %v7830
        %v7832 = vlaneseq
        %v7833 = vshrl.u32 %v7832, 7
        %v7834 = vsub.s32 %v7831, %v7833
        %v7835 = vrot.slane %v7827, %v7834
        %7836 = vset.pattern.permute.xlu0 5
        %7837 = vperm.xlu0 %7836, %v300
        %v7838 = vpop.permute.xlu0 %7837
        %v7841 = vunpack.c.l.s4 839922192
        %v7842 = vunpack.c.0.s8 %v7841
        %v7843 = vlaneseq
        %v7844 = vshrl.u32 %v7843, 7
        %v7845 = vsub.s32 %v7842, %v7844
        %v7846 = vrot.slane %v7838, %v7845
        %7847 = vset.pattern.permute.xlu0 5
        %7848 = vperm.xlu0 %7847, %v301
        %v7849 = vpop.permute.xlu0 %7848
        %v7852 = vunpack.c.l.s4 839922192
        %v7853 = vunpack.c.0.s8 %v7852
        %v7854 = vlaneseq
        %v7855 = vshrl.u32 %v7854, 7
        %v7856 = vsub.s32 %v7853, %v7855
        %v7857 = vrot.slane %v7849, %v7856
        %7858 = vset.pattern.permute.xlu0 5
        %7859 = vperm.xlu0 %7858, %v302
        %v7860 = vpop.permute.xlu0 %7859
        %v7863 = vunpack.c.l.s4 839922192
        %v7864 = vunpack.c.0.s8 %v7863
        %v7865 = vlaneseq
        %v7866 = vshrl.u32 %v7865, 7
        %v7867 = vsub.s32 %v7864, %v7866
        %v7868 = vrot.slane %v7860, %v7867
        %7869 = vset.pattern.permute.xlu0 5
        %7870 = vperm.xlu0 %7869, %v303
        %v7871 = vpop.permute.xlu0 %7870
        %v7874 = vunpack.c.l.s4 839922192
        %v7875 = vunpack.c.0.s8 %v7874
        %v7876 = vlaneseq
        %v7877 = vshrl.u32 %v7876, 7
        %v7878 = vsub.s32 %v7875, %v7877
        %v7879 = vrot.slane %v7871, %v7878
        %7880 = vset.pattern.permute.xlu0 5
        %7881 = vperm.xlu0 %7880, %v304
        %v7882 = vpop.permute.xlu0 %7881
        %v7885 = vunpack.c.l.s4 839922192
        %v7886 = vunpack.c.0.s8 %v7885
        %v7887 = vlaneseq
        %v7888 = vshrl.u32 %v7887, 7
        %v7889 = vsub.s32 %v7886, %v7888
        %v7890 = vrot.slane %v7882, %v7889
        %7891 = vset.pattern.permute.xlu0 5
        %7892 = vperm.xlu0 %7891, %v305
        %v7893 = vpop.permute.xlu0 %7892
        %v7896 = vunpack.c.l.s4 839922192
        %v7897 = vunpack.c.0.s8 %v7896
        %v7898 = vlaneseq
        %v7899 = vshrl.u32 %v7898, 7
        %v7900 = vsub.s32 %v7897, %v7899
        %v7901 = vrot.slane %v7893, %v7900
        %7902 = vset.pattern.permute.xlu0 5
        %7903 = vperm.xlu0 %7902, %v306
        %v7904 = vpop.permute.xlu0 %7903
        %v7907 = vunpack.c.l.s4 839922192
        %v7908 = vunpack.c.0.s8 %v7907
        %v7909 = vlaneseq
        %v7910 = vshrl.u32 %v7909, 7
        %v7911 = vsub.s32 %v7908, %v7910
        %v7912 = vrot.slane %v7904, %v7911
        %7913 = vset.pattern.permute.xlu0 5
        %7914 = vperm.xlu0 %7913, %v307
        %v7915 = vpop.permute.xlu0 %7914
        %v7918 = vunpack.c.l.s4 839922192
        %v7919 = vunpack.c.0.s8 %v7918
        %v7920 = vlaneseq
        %v7921 = vshrl.u32 %v7920, 7
        %v7922 = vsub.s32 %v7919, %v7921
        %v7923 = vrot.slane %v7915, %v7922
        %7924 = vset.pattern.permute.xlu0 5
        %7925 = vperm.xlu0 %7924, %v308
        %v7926 = vpop.permute.xlu0 %7925
        %v7929 = vunpack.c.l.s4 839922192
        %v7930 = vunpack.c.0.s8 %v7929
        %v7931 = vlaneseq
        %v7932 = vshrl.u32 %v7931, 7
        %v7933 = vsub.s32 %v7930, %v7932
        %v7934 = vrot.slane %v7926, %v7933
        %7935 = vset.pattern.permute.xlu0 5
        %7936 = vperm.xlu0 %7935, %v309
        %v7937 = vpop.permute.xlu0 %7936
        %v7940 = vunpack.c.l.s4 839922192
        %v7941 = vunpack.c.0.s8 %v7940
        %v7942 = vlaneseq
        %v7943 = vshrl.u32 %v7942, 7
        %v7944 = vsub.s32 %v7941, %v7943
        %v7945 = vrot.slane %v7937, %v7944
        %7946 = vset.pattern.permute.xlu0 5
        %7947 = vperm.xlu0 %7946, %v310
        %v7948 = vpop.permute.xlu0 %7947
        %v7951 = vunpack.c.l.s4 839922192
        %v7952 = vunpack.c.0.s8 %v7951
        %v7953 = vlaneseq
        %v7954 = vshrl.u32 %v7953, 7
        %v7955 = vsub.s32 %v7952, %v7954
        %v7956 = vrot.slane %v7948, %v7955
        %v7989 = vunpack.c.l.b16 %v7615
        %v7990 = vunpack.c.l.b16 %v7626
        %v7991 = vunpack.c.l.b16 %v7637
        %v7992 = vunpack.c.l.b16 %v7648
        %v7993 = vunpack.c.l.b16 %v7659
        %v7994 = vunpack.c.l.b16 %v7670
        %v7995 = vunpack.c.l.b16 %v7681
        %v7996 = vunpack.c.l.b16 %v7692
        %v7997 = vunpack.c.l.b16 %v7703
        %v7998 = vunpack.c.l.b16 %v7714
        %v7999 = vunpack.c.l.b16 %v7725
        %v8000 = vunpack.c.l.b16 %v7736
        %v8001 = vunpack.c.l.b16 %v7747
        %v8002 = vunpack.c.l.b16 %v7758
        %v8003 = vunpack.c.l.b16 %v7769
        %v8004 = vunpack.c.l.b16 %v7780
        %v8005 = vunpack.c.l.b16 %v7791
        %v8006 = vunpack.c.l.b16 %v7802
        %v8007 = vunpack.c.l.b16 %v7813
        %v8008 = vunpack.c.l.b16 %v7824
        %v8009 = vunpack.c.l.b16 %v7835
        %v8010 = vunpack.c.l.b16 %v7846
        %v8011 = vunpack.c.l.b16 %v7857
        %v8012 = vunpack.c.l.b16 %v7868
        %v8013 = vunpack.c.l.b16 %v7879
        %v8014 = vunpack.c.l.b16 %v7890
        %v8015 = vunpack.c.l.b16 %v7901
        %v8016 = vunpack.c.l.b16 %v7912
        %v8017 = vunpack.c.l.b16 %v7923
        %v8018 = vunpack.c.l.b16 %v7934
        %v8019 = vunpack.c.l.b16 %v7945
        %v8020 = vunpack.c.l.b16 %v7956
        %v8021 = vpack.c.b16 %v7990, %v7989
        %v8022 = vpack.c.b16 %v7992, %v7991
        %v8023 = vpack.c.b16 %v7994, %v7993
        %v8024 = vpack.c.b16 %v7996, %v7995
        %v8025 = vpack.c.b16 %v7998, %v7997
        %v8026 = vpack.c.b16 %v8000, %v7999
        %v8027 = vpack.c.b16 %v8002, %v8001
        %v8028 = vpack.c.b16 %v8004, %v8003
        %v8029 = vpack.c.b16 %v8006, %v8005
        %v8030 = vpack.c.b16 %v8008, %v8007
        %v8031 = vpack.c.b16 %v8010, %v8009
        %v8032 = vpack.c.b16 %v8012, %v8011
        %v8033 = vpack.c.b16 %v8014, %v8013
        %v8034 = vpack.c.b16 %v8016, %v8015
        %v8035 = vpack.c.b16 %v8018, %v8017
        %v8036 = vpack.c.b16 %v8020, %v8019
        %v8053 = vadd.bf16 %v7541, %v8021
        %v8054 = vadd.bf16 %v7542, %v8021
        %v8055 = vadd.bf16 %v7543, %v8021
        %v8056 = vadd.bf16 %v7544, %v8021
        %v8057 = vadd.bf16 %v7545, %v8022
        %v8058 = vadd.bf16 %v7546, %v8022
        %v8059 = vadd.bf16 %v7547, %v8022
        %v8060 = vadd.bf16 %v7548, %v8022
        %v8061 = vadd.bf16 %v7549, %v8023
        %v8062 = vadd.bf16 %v7550, %v8023
        %v8063 = vadd.bf16 %v7551, %v8023
        %v8064 = vadd.bf16 %v7552, %v8023
        %v8065 = vadd.bf16 %v7553, %v8024
        %v8066 = vadd.bf16 %v7554, %v8024
        %v8067 = vadd.bf16 %v7555, %v8024
        %v8068 = vadd.bf16 %v7556, %v8024
        %v8069 = vadd.bf16 %v7557, %v8025
        %v8070 = vadd.bf16 %v7558, %v8025
        %v8071 = vadd.bf16 %v7559, %v8025
        %v8072 = vadd.bf16 %v7560, %v8025
        %v8073 = vadd.bf16 %v7561, %v8026
        %v8074 = vadd.bf16 %v7562, %v8026
        %v8075 = vadd.bf16 %v7563, %v8026
        %v8076 = vadd.bf16 %v7564, %v8026
        %v8077 = vadd.bf16 %v7565, %v8027
        %v8078 = vadd.bf16 %v7566, %v8027
        %v8079 = vadd.bf16 %v7567, %v8027
        %v8080 = vadd.bf16 %v7568, %v8027
        %v8081 = vadd.bf16 %v7569, %v8028
        %v8082 = vadd.bf16 %v7570, %v8028
        %v8083 = vadd.bf16 %v7571, %v8028
        %v8084 = vadd.bf16 %v7572, %v8028
        %v8085 = vadd.bf16 %v7573, %v8029
        %v8086 = vadd.bf16 %v7574, %v8029
        %v8087 = vadd.bf16 %v7575, %v8029
        %v8088 = vadd.bf16 %v7576, %v8029
        %v8089 = vadd.bf16 %v7577, %v8030
        %v8090 = vadd.bf16 %v7578, %v8030
        %v8091 = vadd.bf16 %v7579, %v8030
        %v8092 = vadd.bf16 %v7580, %v8030
        %v8093 = vadd.bf16 %v7581, %v8031
        %v8094 = vadd.bf16 %v7582, %v8031
        %v8095 = vadd.bf16 %v7583, %v8031
        %v8096 = vadd.bf16 %v7584, %v8031
        %v8097 = vadd.bf16 %v7585, %v8032
        %v8098 = vadd.bf16 %v7586, %v8032
        %v8099 = vadd.bf16 %v7587, %v8032
        %v8100 = vadd.bf16 %v7588, %v8032
        %v8101 = vadd.bf16 %v7589, %v8033
        %v8102 = vadd.bf16 %v7590, %v8033
        %v8103 = vadd.bf16 %v7591, %v8033
        %v8104 = vadd.bf16 %v7592, %v8033
        %v8105 = vadd.bf16 %v7593, %v8034
        %v8106 = vadd.bf16 %v7594, %v8034
        %v8107 = vadd.bf16 %v7595, %v8034
        %v8108 = vadd.bf16 %v7596, %v8034
        %v8109 = vadd.bf16 %v7597, %v8035
        %v8110 = vadd.bf16 %v7598, %v8035
        %v8111 = vadd.bf16 %v7599, %v8035
        %v8112 = vadd.bf16 %v7600, %v8035
        %v8113 = vadd.bf16 %v7601, %v8036
        %v8114 = vadd.bf16 %v7602, %v8036
        %v8115 = vadd.bf16 %v7603, %v8036
        %v8116 = vadd.bf16 %v7604, %v8036
        %v8117 = vadd.bf16 %v8053, %v1351
        %v8118 = vadd.bf16 %v8054, %v1352
        %v8119 = vadd.bf16 %v8055, %v1353
        %v8120 = vadd.bf16 %v8056, %v1354
        %v8121 = vadd.bf16 %v8057, %v1355
        %v8122 = vadd.bf16 %v8058, %v1356
        %v8123 = vadd.bf16 %v8059, %v1357
        %v8124 = vadd.bf16 %v8060, %v1358
        %v8125 = vadd.bf16 %v8061, %v1359
        %v8126 = vadd.bf16 %v8062, %v1360
        %v8127 = vadd.bf16 %v8063, %v1361
        %v8128 = vadd.bf16 %v8064, %v1362
        %v8129 = vadd.bf16 %v8065, %v1363
        %v8130 = vadd.bf16 %v8066, %v1364
        %v8131 = vadd.bf16 %v8067, %v1365
        %v8132 = vadd.bf16 %v8068, %v1366
        %v8133 = vadd.bf16 %v8069, %v1367
        %v8134 = vadd.bf16 %v8070, %v1368
        %v8135 = vadd.bf16 %v8071, %v1369
        %v8136 = vadd.bf16 %v8072, %v1370
        %v8137 = vadd.bf16 %v8073, %v1371
        %v8138 = vadd.bf16 %v8074, %v1372
        %v8139 = vadd.bf16 %v8075, %v1373
        %v8140 = vadd.bf16 %v8076, %v1374
        %v8141 = vadd.bf16 %v8077, %v1375
        %v8142 = vadd.bf16 %v8078, %v1376
        %v8143 = vadd.bf16 %v8079, %v1377
        %v8144 = vadd.bf16 %v8080, %v1378
        %v8145 = vadd.bf16 %v8081, %v1379
        %v8146 = vadd.bf16 %v8082, %v1380
        %v8147 = vadd.bf16 %v8083, %v1381
        %v8148 = vadd.bf16 %v8084, %v1382
        %v8149 = vadd.bf16 %v8085, %v1383
        %v8150 = vadd.bf16 %v8086, %v1384
        %v8151 = vadd.bf16 %v8087, %v1385
        %v8152 = vadd.bf16 %v8088, %v1386
        %v8153 = vadd.bf16 %v8089, %v1387
        %v8154 = vadd.bf16 %v8090, %v1388
        %v8155 = vadd.bf16 %v8091, %v1389
        %v8156 = vadd.bf16 %v8092, %v1390
        %v8157 = vadd.bf16 %v8093, %v1391
        %v8158 = vadd.bf16 %v8094, %v1392
        %v8159 = vadd.bf16 %v8095, %v1393
        %v8160 = vadd.bf16 %v8096, %v1394
        %v8161 = vadd.bf16 %v8097, %v1395
        %v8162 = vadd.bf16 %v8098, %v1396
        %v8163 = vadd.bf16 %v8099, %v1397
        %v8164 = vadd.bf16 %v8100, %v1398
        %v8165 = vadd.bf16 %v8101, %v1399
        %v8166 = vadd.bf16 %v8102, %v1400
        %v8167 = vadd.bf16 %v8103, %v1401
        %v8168 = vadd.bf16 %v8104, %v1402
        %v8169 = vadd.bf16 %v8105, %v1403
        %v8170 = vadd.bf16 %v8106, %v1404
        %v8171 = vadd.bf16 %v8107, %v1405
        %v8172 = vadd.bf16 %v8108, %v1406
        %v8173 = vadd.bf16 %v8109, %v1407
        %v8174 = vadd.bf16 %v8110, %v1408
        %v8175 = vadd.bf16 %v8111, %v1409
        %v8176 = vadd.bf16 %v8112, %v1410
        %v8177 = vadd.bf16 %v8113, %v1411
        %v8178 = vadd.bf16 %v8114, %v1412
        %v8179 = vadd.bf16 %v8115, %v1413
        %v8180 = vadd.bf16 %v8116, %v1414
        %v8181 = vmax.bf16 %v8117, 0
        %v8182 = vmax.bf16 %v8118, 0
        %v8183 = vmax.bf16 %v8119, 0
        %v8184 = vmax.bf16 %v8120, 0
        %v8185 = vmax.bf16 %v8121, 0
        %v8186 = vmax.bf16 %v8122, 0
        %v8187 = vmax.bf16 %v8123, 0
        %v8188 = vmax.bf16 %v8124, 0
        %v8189 = vmax.bf16 %v8125, 0
        %v8190 = vmax.bf16 %v8126, 0
        %v8191 = vmax.bf16 %v8127, 0
        %v8192 = vmax.bf16 %v8128, 0
        %v8193 = vmax.bf16 %v8129, 0
        %v8194 = vmax.bf16 %v8130, 0
        %v8195 = vmax.bf16 %v8131, 0
        %v8196 = vmax.bf16 %v8132, 0
        %v8197 = vmax.bf16 %v8133, 0
        %v8198 = vmax.bf16 %v8134, 0
        %v8199 = vmax.bf16 %v8135, 0
        %v8200 = vmax.bf16 %v8136, 0
        %v8201 = vmax.bf16 %v8137, 0
        %v8202 = vmax.bf16 %v8138, 0
        %v8203 = vmax.bf16 %v8139, 0
        %v8204 = vmax.bf16 %v8140, 0
        %v8205 = vmax.bf16 %v8141, 0
        %v8206 = vmax.bf16 %v8142, 0
        %v8207 = vmax.bf16 %v8143, 0
        %v8208 = vmax.bf16 %v8144, 0
        %v8209 = vmax.bf16 %v8145, 0
        %v8210 = vmax.bf16 %v8146, 0
        %v8211 = vmax.bf16 %v8147, 0
        %v8212 = vmax.bf16 %v8148, 0
        %v8213 = vmax.bf16 %v8149, 0
        %v8214 = vmax.bf16 %v8150, 0
        %v8215 = vmax.bf16 %v8151, 0
        %v8216 = vmax.bf16 %v8152, 0
        %v8217 = vmax.bf16 %v8153, 0
        %v8218 = vmax.bf16 %v8154, 0
        %v8219 = vmax.bf16 %v8155, 0
        %v8220 = vmax.bf16 %v8156, 0
        %v8221 = vmax.bf16 %v8157, 0
        %v8222 = vmax.bf16 %v8158, 0
        %v8223 = vmax.bf16 %v8159, 0
        %v8224 = vmax.bf16 %v8160, 0
        %v8225 = vmax.bf16 %v8161, 0
        %v8226 = vmax.bf16 %v8162, 0
        %v8227 = vmax.bf16 %v8163, 0
        %v8228 = vmax.bf16 %v8164, 0
        %v8229 = vmax.bf16 %v8165, 0
        %v8230 = vmax.bf16 %v8166, 0
        %v8231 = vmax.bf16 %v8167, 0
        %v8232 = vmax.bf16 %v8168, 0
        %v8233 = vmax.bf16 %v8169, 0
        %v8234 = vmax.bf16 %v8170, 0
        %v8235 = vmax.bf16 %v8171, 0
        %v8236 = vmax.bf16 %v8172, 0
        %v8237 = vmax.bf16 %v8173, 0
        %v8238 = vmax.bf16 %v8174, 0
        %v8239 = vmax.bf16 %v8175, 0
        %v8240 = vmax.bf16 %v8176, 0
        %v8241 = vmax.bf16 %v8177, 0
        %v8242 = vmax.bf16 %v8178, 0
        %v8243 = vmax.bf16 %v8179, 0
        %v8244 = vmax.bf16 %v8180, 0
        %s8245 = scalar_lea.vmem [#allocation2], 1280
        %v8246 = vld [vmem:[%s8245] sm:$0xff]
        %v8247 = vld [vmem:[%s8245 + $0x8] sm:$0xff]
        %v8248 = vld [vmem:[%s8245 + $0x10] sm:$0xff]
        %v8249 = vld [vmem:[%s8245 + $0x18] sm:$0xff]
        %v8250 = vld [vmem:[%s8245 + $0x20] sm:$0xff]
        %v8251 = vld [vmem:[%s8245 + $0x28] sm:$0xff]
        %v8252 = vld [vmem:[%s8245 + $0x30] sm:$0xff]
        %v8253 = vld [vmem:[%s8245 + $0x38] sm:$0xff]
        %v8254 = vld [vmem:[%s8245 + $0x40] sm:$0xff]
        %v8255 = vld [vmem:[%s8245 + $0x48] sm:$0xff]
        %v8256 = vld [vmem:[%s8245 + $0x50] sm:$0xff]
        %v8257 = vld [vmem:[%s8245 + $0x58] sm:$0xff]
        %v8258 = vld [vmem:[%s8245 + $0x60] sm:$0xff]
        %v8259 = vld [vmem:[%s8245 + $0x68] sm:$0xff]
        %v8260 = vld [vmem:[%s8245 + $0x70] sm:$0xff]
        %v8261 = vld [vmem:[%s8245 + $0x78] sm:$0xff]
        %v8262 = vld [vmem:[%s8245 + $0x80] sm:$0xff]
        %v8263 = vld [vmem:[%s8245 + $0x88] sm:$0xff]
        %v8264 = vld [vmem:[%s8245 + $0x90] sm:$0xff]
        %v8265 = vld [vmem:[%s8245 + $0x98] sm:$0xff]
        %v8266 = vld [vmem:[%s8245 + $0xa0] sm:$0xff]
        %v8267 = vld [vmem:[%s8245 + $0xa8] sm:$0xff]
        %v8268 = vld [vmem:[%s8245 + $0xb0] sm:$0xff]
        %v8269 = vld [vmem:[%s8245 + $0xb8] sm:$0xff]
        %v8270 = vld [vmem:[%s8245 + $0xc0] sm:$0xff]
        %v8271 = vld [vmem:[%s8245 + $0xc8] sm:$0xff]
        %v8272 = vld [vmem:[%s8245 + $0xd0] sm:$0xff]
        %v8273 = vld [vmem:[%s8245 + $0xd8] sm:$0xff]
        %v8274 = vld [vmem:[%s8245 + $0xe0] sm:$0xff]
        %v8275 = vld [vmem:[%s8245 + $0xe8] sm:$0xff]
        %v8276 = vld [vmem:[%s8245 + $0xf0] sm:$0xff]
        %v8277 = vld [vmem:[%s8245 + $0xf8] sm:$0xff]
        %v8310 = vunpack.c.l.b16 %v8246
        %v8311 = vunpack.c.h.b16 %v8246
        %v8312 = vunpack.c.l.b16 %v8247
        %v8313 = vunpack.c.h.b16 %v8247
        %v8314 = vunpack.c.l.b16 %v8248
        %v8315 = vunpack.c.h.b16 %v8248
        %v8316 = vunpack.c.l.b16 %v8249
        %v8317 = vunpack.c.h.b16 %v8249
        %v8318 = vunpack.c.l.b16 %v8250
        %v8319 = vunpack.c.h.b16 %v8250
        %v8320 = vunpack.c.l.b16 %v8251
        %v8321 = vunpack.c.h.b16 %v8251
        %v8322 = vunpack.c.l.b16 %v8252
        %v8323 = vunpack.c.h.b16 %v8252
        %v8324 = vunpack.c.l.b16 %v8253
        %v8325 = vunpack.c.h.b16 %v8253
        %v8326 = vunpack.c.l.b16 %v8254
        %v8327 = vunpack.c.h.b16 %v8254
        %v8328 = vunpack.c.l.b16 %v8255
        %v8329 = vunpack.c.h.b16 %v8255
        %v8330 = vunpack.c.l.b16 %v8256
        %v8331 = vunpack.c.h.b16 %v8256
        %v8332 = vunpack.c.l.b16 %v8257
        %v8333 = vunpack.c.h.b16 %v8257
        %v8334 = vunpack.c.l.b16 %v8258
        %v8335 = vunpack.c.h.b16 %v8258
        %v8336 = vunpack.c.l.b16 %v8259
        %v8337 = vunpack.c.h.b16 %v8259
        %v8338 = vunpack.c.l.b16 %v8260
        %v8339 = vunpack.c.h.b16 %v8260
        %v8340 = vunpack.c.l.b16 %v8261
        %v8341 = vunpack.c.h.b16 %v8261
        %v8342 = vunpack.c.l.b16 %v8262
        %v8343 = vunpack.c.h.b16 %v8262
        %v8344 = vunpack.c.l.b16 %v8263
        %v8345 = vunpack.c.h.b16 %v8263
        %v8346 = vunpack.c.l.b16 %v8264
        %v8347 = vunpack.c.h.b16 %v8264
        %v8348 = vunpack.c.l.b16 %v8265
        %v8349 = vunpack.c.h.b16 %v8265
        %v8350 = vunpack.c.l.b16 %v8266
        %v8351 = vunpack.c.h.b16 %v8266
        %v8352 = vunpack.c.l.b16 %v8267
        %v8353 = vunpack.c.h.b16 %v8267
        %v8354 = vunpack.c.l.b16 %v8268
        %v8355 = vunpack.c.h.b16 %v8268
        %v8356 = vunpack.c.l.b16 %v8269
        %v8357 = vunpack.c.h.b16 %v8269
        %v8358 = vunpack.c.l.b16 %v8270
        %v8359 = vunpack.c.h.b16 %v8270
        %v8360 = vunpack.c.l.b16 %v8271
        %v8361 = vunpack.c.h.b16 %v8271
        %v8362 = vunpack.c.l.b16 %v8272
        %v8363 = vunpack.c.h.b16 %v8272
        %v8364 = vunpack.c.l.b16 %v8273
        %v8365 = vunpack.c.h.b16 %v8273
        %v8366 = vunpack.c.l.b16 %v8274
        %v8367 = vunpack.c.h.b16 %v8274
        %v8368 = vunpack.c.l.b16 %v8275
        %v8369 = vunpack.c.h.b16 %v8275
        %v8370 = vunpack.c.l.b16 %v8276
        %v8371 = vunpack.c.h.b16 %v8276
        %v8372 = vunpack.c.l.b16 %v8277
        %v8373 = vunpack.c.h.b16 %v8277
        %v8374 = vpack.c.b16 %v8312, %v8310
        %v8375 = vpack.c.b16 %v8313, %v8311
        %v8376 = vpack.c.b16 %v8316, %v8314
        %v8377 = vpack.c.b16 %v8317, %v8315
        %v8378 = vpack.c.b16 %v8320, %v8318
        %v8379 = vpack.c.b16 %v8321, %v8319
        %v8380 = vpack.c.b16 %v8324, %v8322
        %v8381 = vpack.c.b16 %v8325, %v8323
        %v8382 = vpack.c.b16 %v8328, %v8326
        %v8383 = vpack.c.b16 %v8329, %v8327
        %v8384 = vpack.c.b16 %v8332, %v8330
        %v8385 = vpack.c.b16 %v8333, %v8331
        %v8386 = vpack.c.b16 %v8336, %v8334
        %v8387 = vpack.c.b16 %v8337, %v8335
        %v8388 = vpack.c.b16 %v8340, %v8338
        %v8389 = vpack.c.b16 %v8341, %v8339
        %v8390 = vpack.c.b16 %v8344, %v8342
        %v8391 = vpack.c.b16 %v8345, %v8343
        %v8392 = vpack.c.b16 %v8348, %v8346
        %v8393 = vpack.c.b16 %v8349, %v8347
        %v8394 = vpack.c.b16 %v8352, %v8350
        %v8395 = vpack.c.b16 %v8353, %v8351
        %v8396 = vpack.c.b16 %v8356, %v8354
        %v8397 = vpack.c.b16 %v8357, %v8355
        %v8398 = vpack.c.b16 %v8360, %v8358
        %v8399 = vpack.c.b16 %v8361, %v8359
        %v8400 = vpack.c.b16 %v8364, %v8362
        %v8401 = vpack.c.b16 %v8365, %v8363
        %v8402 = vpack.c.b16 %v8368, %v8366
        %v8403 = vpack.c.b16 %v8369, %v8367
        %v8404 = vpack.c.b16 %v8372, %v8370
        %v8405 = vpack.c.b16 %v8373, %v8371
        %8438 = vmatprep.subr.bf16.mxu0 %v8182
        %8439 = vmatpush1.bf16.msra.mxu0 %v8181
        %8440 = vmatprep.subr.bf16.mxu0 %v8186
        %8441 = vmatpush1.bf16.msra.mxu0 %v8185
        %8442 = vmatprep.subr.bf16.mxu0 %v8190
        %8443 = vmatpush1.bf16.msra.mxu0 %v8189
        %8444 = vmatprep.subr.bf16.mxu0 %v8194
        %8445 = vmatpush1.bf16.msra.mxu0 %v8193
        %8446 = vmatprep.subr.bf16.mxu0 %v8198
        %8447 = vmatpush1.bf16.msra.mxu0 %v8197
        %8448 = vmatprep.subr.bf16.mxu0 %v8202
        %8449 = vmatpush1.bf16.msra.mxu0 %v8201
        %8450 = vmatprep.subr.bf16.mxu0 %v8206
        %8451 = vmatpush1.bf16.msra.mxu0 %v8205
        %8452 = vmatprep.subr.bf16.mxu0 %v8210
        %8453 = vmatpush1.bf16.msra.mxu0 %v8209
        %8454 = vmatprep.subr.bf16.mxu0 %v8214
        %8455 = vmatpush1.bf16.msra.mxu0 %v8213
        %8456 = vmatprep.subr.bf16.mxu0 %v8218
        %8457 = vmatpush1.bf16.msra.mxu0 %v8217
        %8458 = vmatprep.subr.bf16.mxu0 %v8222
        %8459 = vmatpush1.bf16.msra.mxu0 %v8221
        %8460 = vmatprep.subr.bf16.mxu0 %v8226
        %8461 = vmatpush1.bf16.msra.mxu0 %v8225
        %8462 = vmatprep.subr.bf16.mxu0 %v8230
        %8463 = vmatpush1.bf16.msra.mxu0 %v8229
        %8464 = vmatprep.subr.bf16.mxu0 %v8234
        %8465 = vmatpush1.bf16.msra.mxu0 %v8233
        %8466 = vmatprep.subr.bf16.mxu0 %v8238
        %8467 = vmatpush1.bf16.msra.mxu0 %v8237
        %8468 = vmatprep.subr.bf16.mxu0 %v8242
        %8469 = vmatpush1.bf16.msra.mxu0 %v8241
        %8470 = vmatprep.mubr.bf16.mxu0 %v8375
        %8471 = vmatmul.mubr.bf16.gmra.mrb[0].mxu0 %v8374
        %v8472 = vpop.f32.mrb[0].mxu0
        %v8473 = vadd.f32 0.0, %v8472
        %v8474 = vpop.f32.mrb[0].mxu0
        %v8475 = vadd.f32 0.0, %v8474
        %v8476 = vpop.f32.mrb[0].mxu0
        %v8477 = vadd.f32 0.0, %v8476
        %v8478 = vpop.f32.mrb[0].mxu0
        %v8479 = vadd.f32 0.0, %v8478
        %8480 = vmatprep.mubr.bf16.mxu0 %v8377
        %8481 = vmatmul.mubr.bf16.gmra.mrb[0].mxu0 %v8376
        %v8482 = vpop.f32.mrb[0].mxu0
        %v8483 = vadd.f32 0.0, %v8482
        %v8484 = vpop.f32.mrb[0].mxu0
        %v8485 = vadd.f32 0.0, %v8484
        %v8486 = vpop.f32.mrb[0].mxu0
        %v8487 = vadd.f32 0.0, %v8486
        %v8488 = vpop.f32.mrb[0].mxu0
        %v8489 = vadd.f32 0.0, %v8488
        %8490 = vmatprep.mubr.bf16.mxu0 %v8379
        %8491 = vmatmul.mubr.bf16.gmra.mrb[0].mxu0 %v8378
        %v8492 = vpop.f32.mrb[0].mxu0
        %v8493 = vadd.f32 0.0, %v8492
        %v8494 = vpop.f32.mrb[0].mxu0
        %v8495 = vadd.f32 0.0, %v8494
        %v8496 = vpop.f32.mrb[0].mxu0
        %v8497 = vadd.f32 0.0, %v8496
        %v8498 = vpop.f32.mrb[0].mxu0
        %v8499 = vadd.f32 0.0, %v8498
        %8500 = vmatprep.mubr.bf16.mxu0 %v8381
        %8501 = vmatmul.mubr.bf16.gmra.mrb[0].mxu0 %v8380
        %v8502 = vpop.f32.mrb[0].mxu0
        %v8503 = vadd.f32 0.0, %v8502
        %v8504 = vpop.f32.mrb[0].mxu0
        %v8505 = vadd.f32 0.0, %v8504
        %v8506 = vpop.f32.mrb[0].mxu0
        %v8507 = vadd.f32 0.0, %v8506
        %v8508 = vpop.f32.mrb[0].mxu0
        %v8509 = vadd.f32 0.0, %v8508
        %8510 = vmatprep.mubr.bf16.mxu0 %v8383
        %8511 = vmatmul.mubr.bf16.gmra.mrb[0].mxu0 %v8382
        %v8512 = vpop.f32.mrb[0].mxu0
        %v8513 = vadd.f32 0.0, %v8512
        %v8514 = vpop.f32.mrb[0].mxu0
        %v8515 = vadd.f32 0.0, %v8514
        %v8516 = vpop.f32.mrb[0].mxu0
        %v8517 = vadd.f32 0.0, %v8516
        %v8518 = vpop.f32.mrb[0].mxu0
        %v8519 = vadd.f32 0.0, %v8518
        %8520 = vmatprep.mubr.bf16.mxu0 %v8385
        %8521 = vmatmul.mubr.bf16.gmra.mrb[0].mxu0 %v8384
        %v8522 = vpop.f32.mrb[0].mxu0
        %v8523 = vadd.f32 0.0, %v8522
        %v8524 = vpop.f32.mrb[0].mxu0
        %v8525 = vadd.f32 0.0, %v8524
        %v8526 = vpop.f32.mrb[0].mxu0
        %v8527 = vadd.f32 0.0, %v8526
        %v8528 = vpop.f32.mrb[0].mxu0
        %v8529 = vadd.f32 0.0, %v8528
        %8530 = vmatprep.mubr.bf16.mxu0 %v8387
        %8531 = vmatmul.mubr.bf16.gmra.mrb[0].mxu0 %v8386
        %v8532 = vpop.f32.mrb[0].mxu0
        %v8533 = vadd.f32 0.0, %v8532
        %v8534 = vpop.f32.mrb[0].mxu0
        %v8535 = vadd.f32 0.0, %v8534
        %v8536 = vpop.f32.mrb[0].mxu0
        %v8537 = vadd.f32 0.0, %v8536
        %v8538 = vpop.f32.mrb[0].mxu0
        %v8539 = vadd.f32 0.0, %v8538
        %8540 = vmatprep.mubr.bf16.mxu0 %v8389
        %8541 = vmatmul.mubr.bf16.gmra.mrb[0].mxu0 %v8388
        %v8542 = vpop.f32.mrb[0].mxu0
        %v8543 = vadd.f32 0.0, %v8542
        %v8544 = vpop.f32.mrb[0].mxu0
        %v8545 = vadd.f32 0.0, %v8544
        %v8546 = vpop.f32.mrb[0].mxu0
        %v8547 = vadd.f32 0.0, %v8546
        %v8548 = vpop.f32.mrb[0].mxu0
        %v8549 = vadd.f32 0.0, %v8548
        %8550 = vmatprep.mubr.bf16.mxu0 %v8391
        %8551 = vmatmul.mubr.bf16.gmra.mrb[0].mxu0 %v8390
        %v8552 = vpop.f32.mrb[0].mxu0
        %v8553 = vadd.f32 0.0, %v8552
        %v8554 = vpop.f32.mrb[0].mxu0
        %v8555 = vadd.f32 0.0, %v8554
        %v8556 = vpop.f32.mrb[0].mxu0
        %v8557 = vadd.f32 0.0, %v8556
        %v8558 = vpop.f32.mrb[0].mxu0
        %v8559 = vadd.f32 0.0, %v8558
        %8560 = vmatprep.mubr.bf16.mxu0 %v8393
        %8561 = vmatmul.mubr.bf16.gmra.mrb[0].mxu0 %v8392
        %v8562 = vpop.f32.mrb[0].mxu0
        %v8563 = vadd.f32 0.0, %v8562
        %v8564 = vpop.f32.mrb[0].mxu0
        %v8565 = vadd.f32 0.0, %v8564
        %v8566 = vpop.f32.mrb[0].mxu0
        %v8567 = vadd.f32 0.0, %v8566
        %v8568 = vpop.f32.mrb[0].mxu0
        %v8569 = vadd.f32 0.0, %v8568
        %8570 = vmatprep.mubr.bf16.mxu0 %v8395
        %8571 = vmatmul.mubr.bf16.gmra.mrb[0].mxu0 %v8394
        %v8572 = vpop.f32.mrb[0].mxu0
        %v8573 = vadd.f32 0.0, %v8572
        %v8574 = vpop.f32.mrb[0].mxu0
        %v8575 = vadd.f32 0.0, %v8574
        %v8576 = vpop.f32.mrb[0].mxu0
        %v8577 = vadd.f32 0.0, %v8576
        %v8578 = vpop.f32.mrb[0].mxu0
        %v8579 = vadd.f32 0.0, %v8578
        %8580 = vmatprep.mubr.bf16.mxu0 %v8397
        %8581 = vmatmul.mubr.bf16.gmra.mrb[0].mxu0 %v8396
        %v8582 = vpop.f32.mrb[0].mxu0
        %v8583 = vadd.f32 0.0, %v8582
        %v8584 = vpop.f32.mrb[0].mxu0
        %v8585 = vadd.f32 0.0, %v8584
        %v8586 = vpop.f32.mrb[0].mxu0
        %v8587 = vadd.f32 0.0, %v8586
        %v8588 = vpop.f32.mrb[0].mxu0
        %v8589 = vadd.f32 0.0, %v8588
        %8590 = vmatprep.mubr.bf16.mxu0 %v8399
        %8591 = vmatmul.mubr.bf16.gmra.mrb[0].mxu0 %v8398
        %v8592 = vpop.f32.mrb[0].mxu0
        %v8593 = vadd.f32 0.0, %v8592
        %v8594 = vpop.f32.mrb[0].mxu0
        %v8595 = vadd.f32 0.0, %v8594
        %v8596 = vpop.f32.mrb[0].mxu0
        %v8597 = vadd.f32 0.0, %v8596
        %v8598 = vpop.f32.mrb[0].mxu0
        %v8599 = vadd.f32 0.0, %v8598
        %8600 = vmatprep.mubr.bf16.mxu0 %v8401
        %8601 = vmatmul.mubr.bf16.gmra.mrb[0].mxu0 %v8400
        %v8602 = vpop.f32.mrb[0].mxu0
        %v8603 = vadd.f32 0.0, %v8602
        %v8604 = vpop.f32.mrb[0].mxu0
        %v8605 = vadd.f32 0.0, %v8604
        %v8606 = vpop.f32.mrb[0].mxu0
        %v8607 = vadd.f32 0.0, %v8606
        %v8608 = vpop.f32.mrb[0].mxu0
        %v8609 = vadd.f32 0.0, %v8608
        %8610 = vmatprep.mubr.bf16.mxu0 %v8403
        %8611 = vmatmul.mubr.bf16.gmra.mrb[0].mxu0 %v8402
        %v8612 = vpop.f32.mrb[0].mxu0
        %v8613 = vadd.f32 0.0, %v8612
        %v8614 = vpop.f32.mrb[0].mxu0
        %v8615 = vadd.f32 0.0, %v8614
        %v8616 = vpop.f32.mrb[0].mxu0
        %v8617 = vadd.f32 0.0, %v8616
        %v8618 = vpop.f32.mrb[0].mxu0
        %v8619 = vadd.f32 0.0, %v8618
        %8620 = vmatprep.mubr.bf16.mxu0 %v8405
        %8621 = vmatmul.mubr.bf16.gmra.mrb[0].mxu0 %v8404
        %v8622 = vpop.f32.mrb[0].mxu0
        %v8623 = vadd.f32 0.0, %v8622
        %v8624 = vpop.f32.mrb[0].mxu0
        %v8625 = vadd.f32 0.0, %v8624
        %v8626 = vpop.f32.mrb[0].mxu0
        %v8627 = vadd.f32 0.0, %v8626
        %v8628 = vpop.f32.mrb[0].mxu0
        %v8629 = vadd.f32 0.0, %v8628
        %8630 = vdwg.mxu0
        %8631 = vmatprep.subr.bf16.mxu0 %v8184
        %8632 = vmatpush1.bf16.msra.mxu0 %v8183
        %8633 = vmatprep.subr.bf16.mxu0 %v8188
        %8634 = vmatpush1.bf16.msra.mxu0 %v8187
        %8635 = vmatprep.subr.bf16.mxu0 %v8192
        %8636 = vmatpush1.bf16.msra.mxu0 %v8191
        %8637 = vmatprep.subr.bf16.mxu0 %v8196
        %8638 = vmatpush1.bf16.msra.mxu0 %v8195
        %8639 = vmatprep.subr.bf16.mxu0 %v8200
        %8640 = vmatpush1.bf16.msra.mxu0 %v8199
        %8641 = vmatprep.subr.bf16.mxu0 %v8204
        %8642 = vmatpush1.bf16.msra.mxu0 %v8203
        %8643 = vmatprep.subr.bf16.mxu0 %v8208
        %8644 = vmatpush1.bf16.msra.mxu0 %v8207
        %8645 = vmatprep.subr.bf16.mxu0 %v8212
        %8646 = vmatpush1.bf16.msra.mxu0 %v8211
        %8647 = vmatprep.subr.bf16.mxu0 %v8216
        %8648 = vmatpush1.bf16.msra.mxu0 %v8215
        %8649 = vmatprep.subr.bf16.mxu0 %v8220
        %8650 = vmatpush1.bf16.msra.mxu0 %v8219
        %8651 = vmatprep.subr.bf16.mxu0 %v8224
        %8652 = vmatpush1.bf16.msra.mxu0 %v8223
        %8653 = vmatprep.subr.bf16.mxu0 %v8228
        %8654 = vmatpush1.bf16.msra.mxu0 %v8227
        %8655 = vmatprep.subr.bf16.mxu0 %v8232
        %8656 = vmatpush1.bf16.msra.mxu0 %v8231
        %8657 = vmatprep.subr.bf16.mxu0 %v8236
        %8658 = vmatpush1.bf16.msra.mxu0 %v8235
        %8659 = vmatprep.subr.bf16.mxu0 %v8240
        %8660 = vmatpush1.bf16.msra.mxu0 %v8239
        %8661 = vmatprep.subr.bf16.mxu0 %v8244
        %8662 = vmatpush1.bf16.msra.mxu0 %v8243
        %8663 = vmatprep.mubr.bf16.mxu0 %v8375
        %8664 = vmatmul.mubr.bf16.gmra.mrb[0].mxu0 %v8374
        %v8665 = vpop.f32.mrb[0].mxu0
        %v8666 = vadd.f32 0.0, %v8665
        %v8667 = vpop.f32.mrb[0].mxu0
        %v8668 = vadd.f32 0.0, %v8667
        %v8669 = vpop.f32.mrb[0].mxu0
        %v8670 = vadd.f32 0.0, %v8669
        %v8671 = vpop.f32.mrb[0].mxu0
        %v8672 = vadd.f32 0.0, %v8671
        %8673 = vmatprep.mubr.bf16.mxu0 %v8377
        %8674 = vmatmul.mubr.bf16.gmra.mrb[0].mxu0 %v8376
        %v8675 = vpop.f32.mrb[0].mxu0
        %v8676 = vadd.f32 0.0, %v8675
        %v8677 = vpop.f32.mrb[0].mxu0
        %v8678 = vadd.f32 0.0, %v8677
        %v8679 = vpop.f32.mrb[0].mxu0
        %v8680 = vadd.f32 0.0, %v8679
        %v8681 = vpop.f32.mrb[0].mxu0
        %v8682 = vadd.f32 0.0, %v8681
        %8683 = vmatprep.mubr.bf16.mxu0 %v8379
        %8684 = vmatmul.mubr.bf16.gmra.mrb[0].mxu0 %v8378
        %v8685 = vpop.f32.mrb[0].mxu0
        %v8686 = vadd.f32 0.0, %v8685
        %v8687 = vpop.f32.mrb[0].mxu0
        %v8688 = vadd.f32 0.0, %v8687
        %v8689 = vpop.f32.mrb[0].mxu0
        %v8690 = vadd.f32 0.0, %v8689
        %v8691 = vpop.f32.mrb[0].mxu0
        %v8692 = vadd.f32 0.0, %v8691
        %8693 = vmatprep.mubr.bf16.mxu0 %v8381
        %8694 = vmatmul.mubr.bf16.gmra.mrb[0].mxu0 %v8380
        %v8695 = vpop.f32.mrb[0].mxu0
        %v8696 = vadd.f32 0.0, %v8695
        %v8697 = vpop.f32.mrb[0].mxu0
        %v8698 = vadd.f32 0.0, %v8697
        %v8699 = vpop.f32.mrb[0].mxu0
        %v8700 = vadd.f32 0.0, %v8699
        %v8701 = vpop.f32.mrb[0].mxu0
        %v8702 = vadd.f32 0.0, %v8701
        %8703 = vmatprep.mubr.bf16.mxu0 %v8383
        %8704 = vmatmul.mubr.bf16.gmra.mrb[0].mxu0 %v8382
        %v8705 = vpop.f32.mrb[0].mxu0
        %v8706 = vadd.f32 0.0, %v8705
        %v8707 = vpop.f32.mrb[0].mxu0
        %v8708 = vadd.f32 0.0, %v8707
        %v8709 = vpop.f32.mrb[0].mxu0
        %v8710 = vadd.f32 0.0, %v8709
        %v8711 = vpop.f32.mrb[0].mxu0
        %v8712 = vadd.f32 0.0, %v8711
        %8713 = vmatprep.mubr.bf16.mxu0 %v8385
        %8714 = vmatmul.mubr.bf16.gmra.mrb[0].mxu0 %v8384
        %v8715 = vpop.f32.mrb[0].mxu0
        %v8716 = vadd.f32 0.0, %v8715
        %v8717 = vpop.f32.mrb[0].mxu0
        %v8718 = vadd.f32 0.0, %v8717
        %v8719 = vpop.f32.mrb[0].mxu0
        %v8720 = vadd.f32 0.0, %v8719
        %v8721 = vpop.f32.mrb[0].mxu0
        %v8722 = vadd.f32 0.0, %v8721
        %8723 = vmatprep.mubr.bf16.mxu0 %v8387
        %8724 = vmatmul.mubr.bf16.gmra.mrb[0].mxu0 %v8386
        %v8725 = vpop.f32.mrb[0].mxu0
        %v8726 = vadd.f32 0.0, %v8725
        %v8727 = vpop.f32.mrb[0].mxu0
        %v8728 = vadd.f32 0.0, %v8727
        %v8729 = vpop.f32.mrb[0].mxu0
        %v8730 = vadd.f32 0.0, %v8729
        %v8731 = vpop.f32.mrb[0].mxu0
        %v8732 = vadd.f32 0.0, %v8731
        %8733 = vmatprep.mubr.bf16.mxu0 %v8389
        %8734 = vmatmul.mubr.bf16.gmra.mrb[0].mxu0 %v8388
        %v8735 = vpop.f32.mrb[0].mxu0
        %v8736 = vadd.f32 0.0, %v8735
        %v8737 = vpop.f32.mrb[0].mxu0
        %v8738 = vadd.f32 0.0, %v8737
        %v8739 = vpop.f32.mrb[0].mxu0
        %v8740 = vadd.f32 0.0, %v8739
        %v8741 = vpop.f32.mrb[0].mxu0
        %v8742 = vadd.f32 0.0, %v8741
        %8743 = vmatprep.mubr.bf16.mxu0 %v8391
        %8744 = vmatmul.mubr.bf16.gmra.mrb[0].mxu0 %v8390
        %v8745 = vpop.f32.mrb[0].mxu0
        %v8746 = vadd.f32 0.0, %v8745
        %v8747 = vpop.f32.mrb[0].mxu0
        %v8748 = vadd.f32 0.0, %v8747
        %v8749 = vpop.f32.mrb[0].mxu0
        %v8750 = vadd.f32 0.0, %v8749
        %v8751 = vpop.f32.mrb[0].mxu0
        %v8752 = vadd.f32 0.0, %v8751
        %8753 = vmatprep.mubr.bf16.mxu0 %v8393
        %8754 = vmatmul.mubr.bf16.gmra.mrb[0].mxu0 %v8392
        %v8755 = vpop.f32.mrb[0].mxu0
        %v8756 = vadd.f32 0.0, %v8755
        %v8757 = vpop.f32.mrb[0].mxu0
        %v8758 = vadd.f32 0.0, %v8757
        %v8759 = vpop.f32.mrb[0].mxu0
        %v8760 = vadd.f32 0.0, %v8759
        %v8761 = vpop.f32.mrb[0].mxu0
        %v8762 = vadd.f32 0.0, %v8761
        %8763 = vmatprep.mubr.bf16.mxu0 %v8395
        %8764 = vmatmul.mubr.bf16.gmra.mrb[0].mxu0 %v8394
        %v8765 = vpop.f32.mrb[0].mxu0
        %v8766 = vadd.f32 0.0, %v8765
        %v8767 = vpop.f32.mrb[0].mxu0
        %v8768 = vadd.f32 0.0, %v8767
        %v8769 = vpop.f32.mrb[0].mxu0
        %v8770 = vadd.f32 0.0, %v8769
        %v8771 = vpop.f32.mrb[0].mxu0
        %v8772 = vadd.f32 0.0, %v8771
        %8773 = vmatprep.mubr.bf16.mxu0 %v8397
        %8774 = vmatmul.mubr.bf16.gmra.mrb[0].mxu0 %v8396
        %v8775 = vpop.f32.mrb[0].mxu0
        %v8776 = vadd.f32 0.0, %v8775
        %v8777 = vpop.f32.mrb[0].mxu0
        %v8778 = vadd.f32 0.0, %v8777
        %v8779 = vpop.f32.mrb[0].mxu0
        %v8780 = vadd.f32 0.0, %v8779
        %v8781 = vpop.f32.mrb[0].mxu0
        %v8782 = vadd.f32 0.0, %v8781
        %8783 = vmatprep.mubr.bf16.mxu0 %v8399
        %8784 = vmatmul.mubr.bf16.gmra.mrb[0].mxu0 %v8398
        %v8785 = vpop.f32.mrb[0].mxu0
        %v8786 = vadd.f32 0.0, %v8785
        %v8787 = vpop.f32.mrb[0].mxu0
        %v8788 = vadd.f32 0.0, %v8787
        %v8789 = vpop.f32.mrb[0].mxu0
        %v8790 = vadd.f32 0.0, %v8789
        %v8791 = vpop.f32.mrb[0].mxu0
        %v8792 = vadd.f32 0.0, %v8791
        %8793 = vmatprep.mubr.bf16.mxu0 %v8401
        %8794 = vmatmul.mubr.bf16.gmra.mrb[0].mxu0 %v8400
        %v8795 = vpop.f32.mrb[0].mxu0
        %v8796 = vadd.f32 0.0, %v8795
        %v8797 = vpop.f32.mrb[0].mxu0
        %v8798 = vadd.f32 0.0, %v8797
        %v8799 = vpop.f32.mrb[0].mxu0
        %v8800 = vadd.f32 0.0, %v8799
        %v8801 = vpop.f32.mrb[0].mxu0
        %v8802 = vadd.f32 0.0, %v8801
        %8803 = vmatprep.mubr.bf16.mxu0 %v8403
        %8804 = vmatmul.mubr.bf16.gmra.mrb[0].mxu0 %v8402
        %v8805 = vpop.f32.mrb[0].mxu0
        %v8806 = vadd.f32 0.0, %v8805
        %v8807 = vpop.f32.mrb[0].mxu0
        %v8808 = vadd.f32 0.0, %v8807
        %v8809 = vpop.f32.mrb[0].mxu0
        %v8810 = vadd.f32 0.0, %v8809
        %v8811 = vpop.f32.mrb[0].mxu0
        %v8812 = vadd.f32 0.0, %v8811
        %8813 = vmatprep.mubr.bf16.mxu0 %v8405
        %8814 = vmatmul.mubr.bf16.gmra.mrb[0].mxu0 %v8404
        %v8815 = vpop.f32.mrb[0].mxu0
        %v8816 = vadd.f32 0.0, %v8815
        %v8817 = vpop.f32.mrb[0].mxu0
        %v8818 = vadd.f32 0.0, %v8817
        %v8819 = vpop.f32.mrb[0].mxu0
        %v8820 = vadd.f32 0.0, %v8819
        %v8821 = vpop.f32.mrb[0].mxu0
        %v8822 = vadd.f32 0.0, %v8821
        %8823 = vdwg.mxu0
        %v8824 = vpack.c.bf16 %v8477, %v8473
        %v8825 = vpack.c.bf16 %v8479, %v8475
        %v8826 = vpack.c.bf16 %v8670, %v8666
        %v8827 = vpack.c.bf16 %v8672, %v8668
        %v8828 = vpack.c.bf16 %v8487, %v8483
        %v8829 = vpack.c.bf16 %v8489, %v8485
        %v8830 = vpack.c.bf16 %v8680, %v8676
        %v8831 = vpack.c.bf16 %v8682, %v8678
        %v8832 = vpack.c.bf16 %v8497, %v8493
        %v8833 = vpack.c.bf16 %v8499, %v8495
        %v8834 = vpack.c.bf16 %v8690, %v8686
        %v8835 = vpack.c.bf16 %v8692, %v8688
        %v8836 = vpack.c.bf16 %v8507, %v8503
        %v8837 = vpack.c.bf16 %v8509, %v8505
        %v8838 = vpack.c.bf16 %v8700, %v8696
        %v8839 = vpack.c.bf16 %v8702, %v8698
        %v8840 = vpack.c.bf16 %v8517, %v8513
        %v8841 = vpack.c.bf16 %v8519, %v8515
        %v8842 = vpack.c.bf16 %v8710, %v8706
        %v8843 = vpack.c.bf16 %v8712, %v8708
        %v8844 = vpack.c.bf16 %v8527, %v8523
        %v8845 = vpack.c.bf16 %v8529, %v8525
        %v8846 = vpack.c.bf16 %v8720, %v8716
        %v8847 = vpack.c.bf16 %v8722, %v8718
        %v8848 = vpack.c.bf16 %v8537, %v8533
        %v8849 = vpack.c.bf16 %v8539, %v8535
        %v8850 = vpack.c.bf16 %v8730, %v8726
        %v8851 = vpack.c.bf16 %v8732, %v8728
        %v8852 = vpack.c.bf16 %v8547, %v8543
        %v8853 = vpack.c.bf16 %v8549, %v8545
        %v8854 = vpack.c.bf16 %v8740, %v8736
        %v8855 = vpack.c.bf16 %v8742, %v8738
        %v8856 = vpack.c.bf16 %v8557, %v8553
        %v8857 = vpack.c.bf16 %v8559, %v8555
        %v8858 = vpack.c.bf16 %v8750, %v8746
        %v8859 = vpack.c.bf16 %v8752, %v8748
        %v8860 = vpack.c.bf16 %v8567, %v8563
        %v8861 = vpack.c.bf16 %v8569, %v8565
        %v8862 = vpack.c.bf16 %v8760, %v8756
        %v8863 = vpack.c.bf16 %v8762, %v8758
        %v8864 = vpack.c.bf16 %v8577, %v8573
        %v8865 = vpack.c.bf16 %v8579, %v8575
        %v8866 = vpack.c.bf16 %v8770, %v8766
        %v8867 = vpack.c.bf16 %v8772, %v8768
        %v8868 = vpack.c.bf16 %v8587, %v8583
        %v8869 = vpack.c.bf16 %v8589, %v8585
        %v8870 = vpack.c.bf16 %v8780, %v8776
        %v8871 = vpack.c.bf16 %v8782, %v8778
        %v8872 = vpack.c.bf16 %v8597, %v8593
        %v8873 = vpack.c.bf16 %v8599, %v8595
        %v8874 = vpack.c.bf16 %v8790, %v8786
        %v8875 = vpack.c.bf16 %v8792, %v8788
        %v8876 = vpack.c.bf16 %v8607, %v8603
        %v8877 = vpack.c.bf16 %v8609, %v8605
        %v8878 = vpack.c.bf16 %v8800, %v8796
        %v8879 = vpack.c.bf16 %v8802, %v8798
        %v8880 = vpack.c.bf16 %v8617, %v8613
        %v8881 = vpack.c.bf16 %v8619, %v8615
        %v8882 = vpack.c.bf16 %v8810, %v8806
        %v8883 = vpack.c.bf16 %v8812, %v8808
        %v8884 = vpack.c.bf16 %v8627, %v8623
        %v8885 = vpack.c.bf16 %v8629, %v8625
        %v8886 = vpack.c.bf16 %v8820, %v8816
        %v8887 = vpack.c.bf16 %v8822, %v8818
        %8888 = vset.pattern.permute.xlu0 6
        %8889 = vperm.xlu0 %8888, %v279
        %v8890 = vpop.permute.xlu0 %8889
        %v8893 = vunpack.c.l.s4 839922192
        %v8894 = vunpack.c.0.s8 %v8893
        %v8895 = vlaneseq
        %v8896 = vshrl.u32 %v8895, 7
        %v8897 = vsub.s32 %v8894, %v8896
        %v8898 = vrot.slane %v8890, %v8897
        %8899 = vset.pattern.permute.xlu0 6
        %8900 = vperm.xlu0 %8899, %v280
        %v8901 = vpop.permute.xlu0 %8900
        %v8904 = vunpack.c.l.s4 839922192
        %v8905 = vunpack.c.0.s8 %v8904
        %v8906 = vlaneseq
        %v8907 = vshrl.u32 %v8906, 7
        %v8908 = vsub.s32 %v8905, %v8907
        %v8909 = vrot.slane %v8901, %v8908
        %8910 = vset.pattern.permute.xlu0 6
        %8911 = vperm.xlu0 %8910, %v281
        %v8912 = vpop.permute.xlu0 %8911
        %v8915 = vunpack.c.l.s4 839922192
        %v8916 = vunpack.c.0.s8 %v8915
        %v8917 = vlaneseq
        %v8918 = vshrl.u32 %v8917, 7
        %v8919 = vsub.s32 %v8916, %v8918
        %v8920 = vrot.slane %v8912, %v8919
        %8921 = vset.pattern.permute.xlu0 6
        %8922 = vperm.xlu0 %8921, %v282
        %v8923 = vpop.permute.xlu0 %8922
        %v8926 = vunpack.c.l.s4 839922192
        %v8927 = vunpack.c.0.s8 %v8926
        %v8928 = vlaneseq
        %v8929 = vshrl.u32 %v8928, 7
        %v8930 = vsub.s32 %v8927, %v8929
        %v8931 = vrot.slane %v8923, %v8930
        %8932 = vset.pattern.permute.xlu0 6
        %8933 = vperm.xlu0 %8932, %v283
        %v8934 = vpop.permute.xlu0 %8933
        %v8937 = vunpack.c.l.s4 839922192
        %v8938 = vunpack.c.0.s8 %v8937
        %v8939 = vlaneseq
        %v8940 = vshrl.u32 %v8939, 7
        %v8941 = vsub.s32 %v8938, %v8940
        %v8942 = vrot.slane %v8934, %v8941
        %8943 = vset.pattern.permute.xlu0 6
        %8944 = vperm.xlu0 %8943, %v284
        %v8945 = vpop.permute.xlu0 %8944
        %v8948 = vunpack.c.l.s4 839922192
        %v8949 = vunpack.c.0.s8 %v8948
        %v8950 = vlaneseq
        %v8951 = vshrl.u32 %v8950, 7
        %v8952 = vsub.s32 %v8949, %v8951
        %v8953 = vrot.slane %v8945, %v8952
        %8954 = vset.pattern.permute.xlu0 6
        %8955 = vperm.xlu0 %8954, %v285
        %v8956 = vpop.permute.xlu0 %8955
        %v8959 = vunpack.c.l.s4 839922192
        %v8960 = vunpack.c.0.s8 %v8959
        %v8961 = vlaneseq
        %v8962 = vshrl.u32 %v8961, 7
        %v8963 = vsub.s32 %v8960, %v8962
        %v8964 = vrot.slane %v8956, %v8963
        %8965 = vset.pattern.permute.xlu0 6
        %8966 = vperm.xlu0 %8965, %v286
        %v8967 = vpop.permute.xlu0 %8966
        %v8970 = vunpack.c.l.s4 839922192
        %v8971 = vunpack.c.0.s8 %v8970
        %v8972 = vlaneseq
        %v8973 = vshrl.u32 %v8972, 7
        %v8974 = vsub.s32 %v8971, %v8973
        %v8975 = vrot.slane %v8967, %v8974
        %8976 = vset.pattern.permute.xlu0 6
        %8977 = vperm.xlu0 %8976, %v287
        %v8978 = vpop.permute.xlu0 %8977
        %v8981 = vunpack.c.l.s4 839922192
        %v8982 = vunpack.c.0.s8 %v8981
        %v8983 = vlaneseq
        %v8984 = vshrl.u32 %v8983, 7
        %v8985 = vsub.s32 %v8982, %v8984
        %v8986 = vrot.slane %v8978, %v8985
        %8987 = vset.pattern.permute.xlu0 6
        %8988 = vperm.xlu0 %8987, %v288
        %v8989 = vpop.permute.xlu0 %8988
        %v8992 = vunpack.c.l.s4 839922192
        %v8993 = vunpack.c.0.s8 %v8992
        %v8994 = vlaneseq
        %v8995 = vshrl.u32 %v8994, 7
        %v8996 = vsub.s32 %v8993, %v8995
        %v8997 = vrot.slane %v8989, %v8996
        %8998 = vset.pattern.permute.xlu0 6
        %8999 = vperm.xlu0 %8998, %v289
        %v9000 = vpop.permute.xlu0 %8999
        %v9003 = vunpack.c.l.s4 839922192
        %v9004 = vunpack.c.0.s8 %v9003
        %v9005 = vlaneseq
        %v9006 = vshrl.u32 %v9005, 7
        %v9007 = vsub.s32 %v9004, %v9006
        %v9008 = vrot.slane %v9000, %v9007
        %9009 = vset.pattern.permute.xlu0 6
        %9010 = vperm.xlu0 %9009, %v290
        %v9011 = vpop.permute.xlu0 %9010
        %v9014 = vunpack.c.l.s4 839922192
        %v9015 = vunpack.c.0.s8 %v9014
        %v9016 = vlaneseq
        %v9017 = vshrl.u32 %v9016, 7
        %v9018 = vsub.s32 %v9015, %v9017
        %v9019 = vrot.slane %v9011, %v9018
        %9020 = vset.pattern.permute.xlu0 6
        %9021 = vperm.xlu0 %9020, %v291
        %v9022 = vpop.permute.xlu0 %9021
        %v9025 = vunpack.c.l.s4 839922192
        %v9026 = vunpack.c.0.s8 %v9025
        %v9027 = vlaneseq
        %v9028 = vshrl.u32 %v9027, 7
        %v9029 = vsub.s32 %v9026, %v9028
        %v9030 = vrot.slane %v9022, %v9029
        %9031 = vset.pattern.permute.xlu0 6
        %9032 = vperm.xlu0 %9031, %v292
        %v9033 = vpop.permute.xlu0 %9032
        %v9036 = vunpack.c.l.s4 839922192
        %v9037 = vunpack.c.0.s8 %v9036
        %v9038 = vlaneseq
        %v9039 = vshrl.u32 %v9038, 7
        %v9040 = vsub.s32 %v9037, %v9039
        %v9041 = vrot.slane %v9033, %v9040
        %9042 = vset.pattern.permute.xlu0 6
        %9043 = vperm.xlu0 %9042, %v293
        %v9044 = vpop.permute.xlu0 %9043
        %v9047 = vunpack.c.l.s4 839922192
        %v9048 = vunpack.c.0.s8 %v9047
        %v9049 = vlaneseq
        %v9050 = vshrl.u32 %v9049, 7
        %v9051 = vsub.s32 %v9048, %v9050
        %v9052 = vrot.slane %v9044, %v9051
        %9053 = vset.pattern.permute.xlu0 6
        %9054 = vperm.xlu0 %9053, %v294
        %v9055 = vpop.permute.xlu0 %9054
        %v9058 = vunpack.c.l.s4 839922192
        %v9059 = vunpack.c.0.s8 %v9058
        %v9060 = vlaneseq
        %v9061 = vshrl.u32 %v9060, 7
        %v9062 = vsub.s32 %v9059, %v9061
        %v9063 = vrot.slane %v9055, %v9062
        %9064 = vset.pattern.permute.xlu0 6
        %9065 = vperm.xlu0 %9064, %v295
        %v9066 = vpop.permute.xlu0 %9065
        %v9069 = vunpack.c.l.s4 839922192
        %v9070 = vunpack.c.0.s8 %v9069
        %v9071 = vlaneseq
        %v9072 = vshrl.u32 %v9071, 7
        %v9073 = vsub.s32 %v9070, %v9072
        %v9074 = vrot.slane %v9066, %v9073
        %9075 = vset.pattern.permute.xlu0 6
        %9076 = vperm.xlu0 %9075, %v296
        %v9077 = vpop.permute.xlu0 %9076
        %v9080 = vunpack.c.l.s4 839922192
        %v9081 = vunpack.c.0.s8 %v9080
        %v9082 = vlaneseq
        %v9083 = vshrl.u32 %v9082, 7
        %v9084 = vsub.s32 %v9081, %v9083
        %v9085 = vrot.slane %v9077, %v9084
        %9086 = vset.pattern.permute.xlu0 6
        %9087 = vperm.xlu0 %9086, %v297
        %v9088 = vpop.permute.xlu0 %9087
        %v9091 = vunpack.c.l.s4 839922192
        %v9092 = vunpack.c.0.s8 %v9091
        %v9093 = vlaneseq
        %v9094 = vshrl.u32 %v9093, 7
        %v9095 = vsub.s32 %v9092, %v9094
        %v9096 = vrot.slane %v9088, %v9095
        %9097 = vset.pattern.permute.xlu0 6
        %9098 = vperm.xlu0 %9097, %v298
        %v9099 = vpop.permute.xlu0 %9098
        %v9102 = vunpack.c.l.s4 839922192
        %v9103 = vunpack.c.0.s8 %v9102
        %v9104 = vlaneseq
        %v9105 = vshrl.u32 %v9104, 7
        %v9106 = vsub.s32 %v9103, %v9105
        %v9107 = vrot.slane %v9099, %v9106
        %9108 = vset.pattern.permute.xlu0 6
        %9109 = vperm.xlu0 %9108, %v299
        %v9110 = vpop.permute.xlu0 %9109
        %v9113 = vunpack.c.l.s4 839922192
        %v9114 = vunpack.c.0.s8 %v9113
        %v9115 = vlaneseq
        %v9116 = vshrl.u32 %v9115, 7
        %v9117 = vsub.s32 %v9114, %v9116
        %v9118 = vrot.slane %v9110, %v9117
        %9119 = vset.pattern.permute.xlu0 6
        %9120 = vperm.xlu0 %9119, %v300
        %v9121 = vpop.permute.xlu0 %9120
        %v9124 = vunpack.c.l.s4 839922192
        %v9125 = vunpack.c.0.s8 %v9124
        %v9126 = vlaneseq
        %v9127 = vshrl.u32 %v9126, 7
        %v9128 = vsub.s32 %v9125, %v9127
        %v9129 = vrot.slane %v9121, %v9128
        %9130 = vset.pattern.permute.xlu0 6
        %9131 = vperm.xlu0 %9130, %v301
        %v9132 = vpop.permute.xlu0 %9131
        %v9135 = vunpack.c.l.s4 839922192
        %v9136 = vunpack.c.0.s8 %v9135
        %v9137 = vlaneseq
        %v9138 = vshrl.u32 %v9137, 7
        %v9139 = vsub.s32 %v9136, %v9138
        %v9140 = vrot.slane %v9132, %v9139
        %9141 = vset.pattern.permute.xlu0 6
        %9142 = vperm.xlu0 %9141, %v302
        %v9143 = vpop.permute.xlu0 %9142
        %v9146 = vunpack.c.l.s4 839922192
        %v9147 = vunpack.c.0.s8 %v9146
        %v9148 = vlaneseq
        %v9149 = vshrl.u32 %v9148, 7
        %v9150 = vsub.s32 %v9147, %v9149
        %v9151 = vrot.slane %v9143, %v9150
        %9152 = vset.pattern.permute.xlu0 6
        %9153 = vperm.xlu0 %9152, %v303
        %v9154 = vpop.permute.xlu0 %9153
        %v9157 = vunpack.c.l.s4 839922192
        %v9158 = vunpack.c.0.s8 %v9157
        %v9159 = vlaneseq
        %v9160 = vshrl.u32 %v9159, 7
        %v9161 = vsub.s32 %v9158, %v9160
        %v9162 = vrot.slane %v9154, %v9161
        %9163 = vset.pattern.permute.xlu0 6
        %9164 = vperm.xlu0 %9163, %v304
        %v9165 = vpop.permute.xlu0 %9164
        %v9168 = vunpack.c.l.s4 839922192
        %v9169 = vunpack.c.0.s8 %v9168
        %v9170 = vlaneseq
        %v9171 = vshrl.u32 %v9170, 7
        %v9172 = vsub.s32 %v9169, %v9171
        %v9173 = vrot.slane %v9165, %v9172
        %9174 = vset.pattern.permute.xlu0 6
        %9175 = vperm.xlu0 %9174, %v305
        %v9176 = vpop.permute.xlu0 %9175
        %v9179 = vunpack.c.l.s4 839922192
        %v9180 = vunpack.c.0.s8 %v9179
        %v9181 = vlaneseq
        %v9182 = vshrl.u32 %v9181, 7
        %v9183 = vsub.s32 %v9180, %v9182
        %v9184 = vrot.slane %v9176, %v9183
        %9185 = vset.pattern.permute.xlu0 6
        %9186 = vperm.xlu0 %9185, %v306
        %v9187 = vpop.permute.xlu0 %9186
        %v9190 = vunpack.c.l.s4 839922192
        %v9191 = vunpack.c.0.s8 %v9190
        %v9192 = vlaneseq
        %v9193 = vshrl.u32 %v9192, 7
        %v9194 = vsub.s32 %v9191, %v9193
        %v9195 = vrot.slane %v9187, %v9194
        %9196 = vset.pattern.permute.xlu0 6
        %9197 = vperm.xlu0 %9196, %v307
        %v9198 = vpop.permute.xlu0 %9197
        %v9201 = vunpack.c.l.s4 839922192
        %v9202 = vunpack.c.0.s8 %v9201
        %v9203 = vlaneseq
        %v9204 = vshrl.u32 %v9203, 7
        %v9205 = vsub.s32 %v9202, %v9204
        %v9206 = vrot.slane %v9198, %v9205
        %9207 = vset.pattern.permute.xlu0 6
        %9208 = vperm.xlu0 %9207, %v308
        %v9209 = vpop.permute.xlu0 %9208
        %v9212 = vunpack.c.l.s4 839922192
        %v9213 = vunpack.c.0.s8 %v9212
        %v9214 = vlaneseq
        %v9215 = vshrl.u32 %v9214, 7
        %v9216 = vsub.s32 %v9213, %v9215
        %v9217 = vrot.slane %v9209, %v9216
        %9218 = vset.pattern.permute.xlu0 6
        %9219 = vperm.xlu0 %9218, %v309
        %v9220 = vpop.permute.xlu0 %9219
        %v9223 = vunpack.c.l.s4 839922192
        %v9224 = vunpack.c.0.s8 %v9223
        %v9225 = vlaneseq
        %v9226 = vshrl.u32 %v9225, 7
        %v9227 = vsub.s32 %v9224, %v9226
        %v9228 = vrot.slane %v9220, %v9227
        %9229 = vset.pattern.permute.xlu0 6
        %9230 = vperm.xlu0 %9229, %v310
        %v9231 = vpop.permute.xlu0 %9230
        %v9234 = vunpack.c.l.s4 839922192
        %v9235 = vunpack.c.0.s8 %v9234
        %v9236 = vlaneseq
        %v9237 = vshrl.u32 %v9236, 7
        %v9238 = vsub.s32 %v9235, %v9237
        %v9239 = vrot.slane %v9231, %v9238
        %v9272 = vunpack.c.l.b16 %v8898
        %v9273 = vunpack.c.l.b16 %v8909
        %v9274 = vunpack.c.l.b16 %v8920
        %v9275 = vunpack.c.l.b16 %v8931
        %v9276 = vunpack.c.l.b16 %v8942
        %v9277 = vunpack.c.l.b16 %v8953
        %v9278 = vunpack.c.l.b16 %v8964
        %v9279 = vunpack.c.l.b16 %v8975
        %v9280 = vunpack.c.l.b16 %v8986
        %v9281 = vunpack.c.l.b16 %v8997
        %v9282 = vunpack.c.l.b16 %v9008
        %v9283 = vunpack.c.l.b16 %v9019
        %v9284 = vunpack.c.l.b16 %v9030
        %v9285 = vunpack.c.l.b16 %v9041
        %v9286 = vunpack.c.l.b16 %v9052
        %v9287 = vunpack.c.l.b16 %v9063
        %v9288 = vunpack.c.l.b16 %v9074
        %v9289 = vunpack.c.l.b16 %v9085
        %v9290 = vunpack.c.l.b16 %v9096
        %v9291 = vunpack.c.l.b16 %v9107
        %v9292 = vunpack.c.l.b16 %v9118
        %v9293 = vunpack.c.l.b16 %v9129
        %v9294 = vunpack.c.l.b16 %v9140
        %v9295 = vunpack.c.l.b16 %v9151
        %v9296 = vunpack.c.l.b16 %v9162
        %v9297 = vunpack.c.l.b16 %v9173
        %v9298 = vunpack.c.l.b16 %v9184
        %v9299 = vunpack.c.l.b16 %v9195
        %v9300 = vunpack.c.l.b16 %v9206
        %v9301 = vunpack.c.l.b16 %v9217
        %v9302 = vunpack.c.l.b16 %v9228
        %v9303 = vunpack.c.l.b16 %v9239
        %v9304 = vpack.c.b16 %v9273, %v9272
        %v9305 = vpack.c.b16 %v9275, %v9274
        %v9306 = vpack.c.b16 %v9277, %v9276
        %v9307 = vpack.c.b16 %v9279, %v9278
        %v9308 = vpack.c.b16 %v9281, %v9280
        %v9309 = vpack.c.b16 %v9283, %v9282
        %v9310 = vpack.c.b16 %v9285, %v9284
        %v9311 = vpack.c.b16 %v9287, %v9286
        %v9312 = vpack.c.b16 %v9289, %v9288
        %v9313 = vpack.c.b16 %v9291, %v9290
        %v9314 = vpack.c.b16 %v9293, %v9292
        %v9315 = vpack.c.b16 %v9295, %v9294
        %v9316 = vpack.c.b16 %v9297, %v9296
        %v9317 = vpack.c.b16 %v9299, %v9298
        %v9318 = vpack.c.b16 %v9301, %v9300
        %v9319 = vpack.c.b16 %v9303, %v9302
        %v9336 = vadd.bf16 %v8824, %v9304
        %v9337 = vadd.bf16 %v8825, %v9304
        %v9338 = vadd.bf16 %v8826, %v9304
        %v9339 = vadd.bf16 %v8827, %v9304
        %v9340 = vadd.bf16 %v8828, %v9305
        %v9341 = vadd.bf16 %v8829, %v9305
        %v9342 = vadd.bf16 %v8830, %v9305
        %v9343 = vadd.bf16 %v8831, %v9305
        %v9344 = vadd.bf16 %v8832, %v9306
        %v9345 = vadd.bf16 %v8833, %v9306
        %v9346 = vadd.bf16 %v8834, %v9306
        %v9347 = vadd.bf16 %v8835, %v9306
        %v9348 = vadd.bf16 %v8836, %v9307
        %v9349 = vadd.bf16 %v8837, %v9307
        %v9350 = vadd.bf16 %v8838, %v9307
        %v9351 = vadd.bf16 %v8839, %v9307
        %v9352 = vadd.bf16 %v8840, %v9308
        %v9353 = vadd.bf16 %v8841, %v9308
        %v9354 = vadd.bf16 %v8842, %v9308
        %v9355 = vadd.bf16 %v8843, %v9308
        %v9356 = vadd.bf16 %v8844, %v9309
        %v9357 = vadd.bf16 %v8845, %v9309
        %v9358 = vadd.bf16 %v8846, %v9309
        %v9359 = vadd.bf16 %v8847, %v9309
        %v9360 = vadd.bf16 %v8848, %v9310
        %v9361 = vadd.bf16 %v8849, %v9310
        %v9362 = vadd.bf16 %v8850, %v9310
        %v9363 = vadd.bf16 %v8851, %v9310
        %v9364 = vadd.bf16 %v8852, %v9311
        %v9365 = vadd.bf16 %v8853, %v9311
        %v9366 = vadd.bf16 %v8854, %v9311
        %v9367 = vadd.bf16 %v8855, %v9311
        %v9368 = vadd.bf16 %v8856, %v9312
        %v9369 = vadd.bf16 %v8857, %v9312
        %v9370 = vadd.bf16 %v8858, %v9312
        %v9371 = vadd.bf16 %v8859, %v9312
        %v9372 = vadd.bf16 %v8860, %v9313
        %v9373 = vadd.bf16 %v8861, %v9313
        %v9374 = vadd.bf16 %v8862, %v9313
        %v9375 = vadd.bf16 %v8863, %v9313
        %v9376 = vadd.bf16 %v8864, %v9314
        %v9377 = vadd.bf16 %v8865, %v9314
        %v9378 = vadd.bf16 %v8866, %v9314
        %v9379 = vadd.bf16 %v8867, %v9314
        %v9380 = vadd.bf16 %v8868, %v9315
        %v9381 = vadd.bf16 %v8869, %v9315
        %v9382 = vadd.bf16 %v8870, %v9315
        %v9383 = vadd.bf16 %v8871, %v9315
        %v9384 = vadd.bf16 %v8872, %v9316
        %v9385 = vadd.bf16 %v8873, %v9316
        %v9386 = vadd.bf16 %v8874, %v9316
        %v9387 = vadd.bf16 %v8875, %v9316
        %v9388 = vadd.bf16 %v8876, %v9317
        %v9389 = vadd.bf16 %v8877, %v9317
        %v9390 = vadd.bf16 %v8878, %v9317
        %v9391 = vadd.bf16 %v8879, %v9317
        %v9392 = vadd.bf16 %v8880, %v9318
        %v9393 = vadd.bf16 %v8881, %v9318
        %v9394 = vadd.bf16 %v8882, %v9318
        %v9395 = vadd.bf16 %v8883, %v9318
        %v9396 = vadd.bf16 %v8884, %v9319
        %v9397 = vadd.bf16 %v8885, %v9319
        %v9398 = vadd.bf16 %v8886, %v9319
        %v9399 = vadd.bf16 %v8887, %v9319
        %v9400 = vmax.bf16 %v9336, 0
        %v9401 = vmax.bf16 %v9337, 0
        %v9402 = vmax.bf16 %v9338, 0
        %v9403 = vmax.bf16 %v9339, 0
        %v9404 = vmax.bf16 %v9340, 0
        %v9405 = vmax.bf16 %v9341, 0
        %v9406 = vmax.bf16 %v9342, 0
        %v9407 = vmax.bf16 %v9343, 0
        %v9408 = vmax.bf16 %v9344, 0
        %v9409 = vmax.bf16 %v9345, 0
        %v9410 = vmax.bf16 %v9346, 0
        %v9411 = vmax.bf16 %v9347, 0
        %v9412 = vmax.bf16 %v9348, 0
        %v9413 = vmax.bf16 %v9349, 0
        %v9414 = vmax.bf16 %v9350, 0
        %v9415 = vmax.bf16 %v9351, 0
        %v9416 = vmax.bf16 %v9352, 0
        %v9417 = vmax.bf16 %v9353, 0
        %v9418 = vmax.bf16 %v9354, 0
        %v9419 = vmax.bf16 %v9355, 0
        %v9420 = vmax.bf16 %v9356, 0
        %v9421 = vmax.bf16 %v9357, 0
        %v9422 = vmax.bf16 %v9358, 0
        %v9423 = vmax.bf16 %v9359, 0
        %v9424 = vmax.bf16 %v9360, 0
        %v9425 = vmax.bf16 %v9361, 0
        %v9426 = vmax.bf16 %v9362, 0
        %v9427 = vmax.bf16 %v9363, 0
        %v9428 = vmax.bf16 %v9364, 0
        %v9429 = vmax.bf16 %v9365, 0
        %v9430 = vmax.bf16 %v9366, 0
        %v9431 = vmax.bf16 %v9367, 0
        %v9432 = vmax.bf16 %v9368, 0
        %v9433 = vmax.bf16 %v9369, 0
        %v9434 = vmax.bf16 %v9370, 0
        %v9435 = vmax.bf16 %v9371, 0
        %v9436 = vmax.bf16 %v9372, 0
        %v9437 = vmax.bf16 %v9373, 0
        %v9438 = vmax.bf16 %v9374, 0
        %v9439 = vmax.bf16 %v9375, 0
        %v9440 = vmax.bf16 %v9376, 0
        %v9441 = vmax.bf16 %v9377, 0
        %v9442 = vmax.bf16 %v9378, 0
        %v9443 = vmax.bf16 %v9379, 0
        %v9444 = vmax.bf16 %v9380, 0
        %v9445 = vmax.bf16 %v9381, 0
        %v9446 = vmax.bf16 %v9382, 0
        %v9447 = vmax.bf16 %v9383, 0
        %v9448 = vmax.bf16 %v9384, 0
        %v9449 = vmax.bf16 %v9385, 0
        %v9450 = vmax.bf16 %v9386, 0
        %v9451 = vmax.bf16 %v9387, 0
        %v9452 = vmax.bf16 %v9388, 0
        %v9453 = vmax.bf16 %v9389, 0
        %v9454 = vmax.bf16 %v9390, 0
        %v9455 = vmax.bf16 %v9391, 0
        %v9456 = vmax.bf16 %v9392, 0
        %v9457 = vmax.bf16 %v9393, 0
        %v9458 = vmax.bf16 %v9394, 0
        %v9459 = vmax.bf16 %v9395, 0
        %v9460 = vmax.bf16 %v9396, 0
        %v9461 = vmax.bf16 %v9397, 0
        %v9462 = vmax.bf16 %v9398, 0
        %v9463 = vmax.bf16 %v9399, 0
        %s9464 = scalar_lea.vmem [#allocation2], 1536
        %v9465 = vld [vmem:[%s9464] sm:$0xff]
        %v9466 = vld [vmem:[%s9464 + $0x8] sm:$0xff]
        %v9467 = vld [vmem:[%s9464 + $0x10] sm:$0xff]
        %v9468 = vld [vmem:[%s9464 + $0x18] sm:$0xff]
        %v9469 = vld [vmem:[%s9464 + $0x20] sm:$0xff]
        %v9470 = vld [vmem:[%s9464 + $0x28] sm:$0xff]
        %v9471 = vld [vmem:[%s9464 + $0x30] sm:$0xff]
        %v9472 = vld [vmem:[%s9464 + $0x38] sm:$0xff]
        %v9473 = vld [vmem:[%s9464 + $0x40] sm:$0xff]
        %v9474 = vld [vmem:[%s9464 + $0x48] sm:$0xff]
        %v9475 = vld [vmem:[%s9464 + $0x50] sm:$0xff]
        %v9476 = vld [vmem:[%s9464 + $0x58] sm:$0xff]
        %v9477 = vld [vmem:[%s9464 + $0x60] sm:$0xff]
        %v9478 = vld [vmem:[%s9464 + $0x68] sm:$0xff]
        %v9479 = vld [vmem:[%s9464 + $0x70] sm:$0xff]
        %v9480 = vld [vmem:[%s9464 + $0x78] sm:$0xff]
        %v9481 = vld [vmem:[%s9464 + $0x80] sm:$0xff]
        %v9482 = vld [vmem:[%s9464 + $0x88] sm:$0xff]
        %v9483 = vld [vmem:[%s9464 + $0x90] sm:$0xff]
        %v9484 = vld [vmem:[%s9464 + $0x98] sm:$0xff]
        %v9485 = vld [vmem:[%s9464 + $0xa0] sm:$0xff]
        %v9486 = vld [vmem:[%s9464 + $0xa8] sm:$0xff]
        %v9487 = vld [vmem:[%s9464 + $0xb0] sm:$0xff]
        %v9488 = vld [vmem:[%s9464 + $0xb8] sm:$0xff]
        %v9489 = vld [vmem:[%s9464 + $0xc0] sm:$0xff]
        %v9490 = vld [vmem:[%s9464 + $0xc8] sm:$0xff]
        %v9491 = vld [vmem:[%s9464 + $0xd0] sm:$0xff]
        %v9492 = vld [vmem:[%s9464 + $0xd8] sm:$0xff]
        %v9493 = vld [vmem:[%s9464 + $0xe0] sm:$0xff]
        %v9494 = vld [vmem:[%s9464 + $0xe8] sm:$0xff]
        %v9495 = vld [vmem:[%s9464 + $0xf0] sm:$0xff]
        %v9496 = vld [vmem:[%s9464 + $0xf8] sm:$0xff]
        %v9529 = vunpack.c.l.b16 %v9465
        %v9530 = vunpack.c.h.b16 %v9465
        %v9531 = vunpack.c.l.b16 %v9466
        %v9532 = vunpack.c.h.b16 %v9466
        %v9533 = vunpack.c.l.b16 %v9467
        %v9534 = vunpack.c.h.b16 %v9467
        %v9535 = vunpack.c.l.b16 %v9468
        %v9536 = vunpack.c.h.b16 %v9468
        %v9537 = vunpack.c.l.b16 %v9469
        %v9538 = vunpack.c.h.b16 %v9469
        %v9539 = vunpack.c.l.b16 %v9470
        %v9540 = vunpack.c.h.b16 %v9470
        %v9541 = vunpack.c.l.b16 %v9471
        %v9542 = vunpack.c.h.b16 %v9471
        %v9543 = vunpack.c.l.b16 %v9472
        %v9544 = vunpack.c.h.b16 %v9472
        %v9545 = vunpack.c.l.b16 %v9473
        %v9546 = vunpack.c.h.b16 %v9473
        %v9547 = vunpack.c.l.b16 %v9474
        %v9548 = vunpack.c.h.b16 %v9474
        %v9549 = vunpack.c.l.b16 %v9475
        %v9550 = vunpack.c.h.b16 %v9475
        %v9551 = vunpack.c.l.b16 %v9476
        %v9552 = vunpack.c.h.b16 %v9476
        %v9553 = vunpack.c.l.b16 %v9477
        %v9554 = vunpack.c.h.b16 %v9477
        %v9555 = vunpack.c.l.b16 %v9478
        %v9556 = vunpack.c.h.b16 %v9478
        %v9557 = vunpack.c.l.b16 %v9479
        %v9558 = vunpack.c.h.b16 %v9479
        %v9559 = vunpack.c.l.b16 %v9480
        %v9560 = vunpack.c.h.b16 %v9480
        %v9561 = vunpack.c.l.b16 %v9481
        %v9562 = vunpack.c.h.b16 %v9481
        %v9563 = vunpack.c.l.b16 %v9482
        %v9564 = vunpack.c.h.b16 %v9482
        %v9565 = vunpack.c.l.b16 %v9483
        %v9566 = vunpack.c.h.b16 %v9483
        %v9567 = vunpack.c.l.b16 %v9484
        %v9568 = vunpack.c.h.b16 %v9484
        %v9569 = vunpack.c.l.b16 %v9485
        %v9570 = vunpack.c.h.b16 %v9485
        %v9571 = vunpack.c.l.b16 %v9486
        %v9572 = vunpack.c.h.b16 %v9486
        %v9573 = vunpack.c.l.b16 %v9487
        %v9574 = vunpack.c.h.b16 %v9487
        %v9575 = vunpack.c.l.b16 %v9488
        %v9576 = vunpack.c.h.b16 %v9488
        %v9577 = vunpack.c.l.b16 %v9489
        %v9578 = vunpack.c.h.b16 %v9489
        %v9579 = vunpack.c.l.b16 %v9490
        %v9580 = vunpack.c.h.b16 %v9490
        %v9581 = vunpack.c.l.b16 %v9491
        %v9582 = vunpack.c.h.b16 %v9491
        %v9583 = vunpack.c.l.b16 %v9492
        %v9584 = vunpack.c.h.b16 %v9492
        %v9585 = vunpack.c.l.b16 %v9493
        %v9586 = vunpack.c.h.b16 %v9493
        %v9587 = vunpack.c.l.b16 %v9494
        %v9588 = vunpack.c.h.b16 %v9494
        %v9589 = vunpack.c.l.b16 %v9495
        %v9590 = vunpack.c.h.b16 %v9495
        %v9591 = vunpack.c.l.b16 %v9496
        %v9592 = vunpack.c.h.b16 %v9496
        %v9593 = vpack.c.b16 %v9531, %v9529
        %v9594 = vpack.c.b16 %v9532, %v9530
        %v9595 = vpack.c.b16 %v9535, %v9533
        %v9596 = vpack.c.b16 %v9536, %v9534
        %v9597 = vpack.c.b16 %v9539, %v9537
        %v9598 = vpack.c.b16 %v9540, %v9538
        %v9599 = vpack.c.b16 %v9543, %v9541
        %v9600 = vpack.c.b16 %v9544, %v9542
        %v9601 = vpack.c.b16 %v9547, %v9545
        %v9602 = vpack.c.b16 %v9548, %v9546
        %v9603 = vpack.c.b16 %v9551, %v9549
        %v9604 = vpack.c.b16 %v9552, %v9550
        %v9605 = vpack.c.b16 %v9555, %v9553
        %v9606 = vpack.c.b16 %v9556, %v9554
        %v9607 = vpack.c.b16 %v9559, %v9557
        %v9608 = vpack.c.b16 %v9560, %v9558
        %v9609 = vpack.c.b16 %v9563, %v9561
        %v9610 = vpack.c.b16 %v9564, %v9562
        %v9611 = vpack.c.b16 %v9567, %v9565
        %v9612 = vpack.c.b16 %v9568, %v9566
        %v9613 = vpack.c.b16 %v9571, %v9569
        %v9614 = vpack.c.b16 %v9572, %v9570
        %v9615 = vpack.c.b16 %v9575, %v9573
        %v9616 = vpack.c.b16 %v9576, %v9574
        %v9617 = vpack.c.b16 %v9579, %v9577
        %v9618 = vpack.c.b16 %v9580, %v9578
        %v9619 = vpack.c.b16 %v9583, %v9581
        %v9620 = vpack.c.b16 %v9584, %v9582
        %v9621 = vpack.c.b16 %v9587, %v9585
        %v9622 = vpack.c.b16 %v9588, %v9586
        %v9623 = vpack.c.b16 %v9591, %v9589
        %v9624 = vpack.c.b16 %v9592, %v9590
        %9657 = vmatprep.subr.bf16.mxu0 %v9401
        %9658 = vmatpush1.bf16.msra.mxu0 %v9400
        %9659 = vmatprep.subr.bf16.mxu0 %v9405
        %9660 = vmatpush1.bf16.msra.mxu0 %v9404
        %9661 = vmatprep.subr.bf16.mxu0 %v9409
        %9662 = vmatpush1.bf16.msra.mxu0 %v9408
        %9663 = vmatprep.subr.bf16.mxu0 %v9413
        %9664 = vmatpush1.bf16.msra.mxu0 %v9412
        %9665 = vmatprep.subr.bf16.mxu0 %v9417
        %9666 = vmatpush1.bf16.msra.mxu0 %v9416
        %9667 = vmatprep.subr.bf16.mxu0 %v9421
        %9668 = vmatpush1.bf16.msra.mxu0 %v9420
        %9669 = vmatprep.subr.bf16.mxu0 %v9425
        %9670 = vmatpush1.bf16.msra.mxu0 %v9424
        %9671 = vmatprep.subr.bf16.mxu0 %v9429
        %9672 = vmatpush1.bf16.msra.mxu0 %v9428
        %9673 = vmatprep.subr.bf16.mxu0 %v9433
        %9674 = vmatpush1.bf16.msra.mxu0 %v9432
        %9675 = vmatprep.subr.bf16.mxu0 %v9437
        %9676 = vmatpush1.bf16.msra.mxu0 %v9436
        %9677 = vmatprep.subr.bf16.mxu0 %v9441
        %9678 = vmatpush1.bf16.msra.mxu0 %v9440
        %9679 = vmatprep.subr.bf16.mxu0 %v9445
        %9680 = vmatpush1.bf16.msra.mxu0 %v9444
        %9681 = vmatprep.subr.bf16.mxu0 %v9449
        %9682 = vmatpush1.bf16.msra.mxu0 %v9448
        %9683 = vmatprep.subr.bf16.mxu0 %v9453
        %9684 = vmatpush1.bf16.msra.mxu0 %v9452
        %9685 = vmatprep.subr.bf16.mxu0 %v9457
        %9686 = vmatpush1.bf16.msra.mxu0 %v9456
        %9687 = vmatprep.subr.bf16.mxu0 %v9461
        %9688 = vmatpush1.bf16.msra.mxu0 %v9460
        %9689 = vmatprep.mubr.bf16.mxu0 %v9594
        %9690 = vmatmul.mubr.bf16.gmra.mrb[0].mxu0 %v9593
        %v9691 = vpop.f32.mrb[0].mxu0
        %v9692 = vadd.f32 0.0, %v9691
        %v9693 = vpop.f32.mrb[0].mxu0
        %v9694 = vadd.f32 0.0, %v9693
        %v9695 = vpop.f32.mrb[0].mxu0
        %v9696 = vadd.f32 0.0, %v9695
        %v9697 = vpop.f32.mrb[0].mxu0
        %v9698 = vadd.f32 0.0, %v9697
        %9699 = vmatprep.mubr.bf16.mxu0 %v9596
        %9700 = vmatmul.mubr.bf16.gmra.mrb[0].mxu0 %v9595
        %v9701 = vpop.f32.mrb[0].mxu0
        %v9702 = vadd.f32 0.0, %v9701
        %v9703 = vpop.f32.mrb[0].mxu0
        %v9704 = vadd.f32 0.0, %v9703
        %v9705 = vpop.f32.mrb[0].mxu0
        %v9706 = vadd.f32 0.0, %v9705
        %v9707 = vpop.f32.mrb[0].mxu0
        %v9708 = vadd.f32 0.0, %v9707
        %9709 = vmatprep.mubr.bf16.mxu0 %v9598
        %9710 = vmatmul.mubr.bf16.gmra.mrb[0].mxu0 %v9597
        %v9711 = vpop.f32.mrb[0].mxu0
        %v9712 = vadd.f32 0.0, %v9711
        %v9713 = vpop.f32.mrb[0].mxu0
        %v9714 = vadd.f32 0.0, %v9713
        %v9715 = vpop.f32.mrb[0].mxu0
        %v9716 = vadd.f32 0.0, %v9715
        %v9717 = vpop.f32.mrb[0].mxu0
        %v9718 = vadd.f32 0.0, %v9717
        %9719 = vmatprep.mubr.bf16.mxu0 %v9600
        %9720 = vmatmul.mubr.bf16.gmra.mrb[0].mxu0 %v9599
        %v9721 = vpop.f32.mrb[0].mxu0
        %v9722 = vadd.f32 0.0, %v9721
        %v9723 = vpop.f32.mrb[0].mxu0
        %v9724 = vadd.f32 0.0, %v9723
        %v9725 = vpop.f32.mrb[0].mxu0
        %v9726 = vadd.f32 0.0, %v9725
        %v9727 = vpop.f32.mrb[0].mxu0
        %v9728 = vadd.f32 0.0, %v9727
        %9729 = vmatprep.mubr.bf16.mxu0 %v9602
        %9730 = vmatmul.mubr.bf16.gmra.mrb[0].mxu0 %v9601
        %v9731 = vpop.f32.mrb[0].mxu0
        %v9732 = vadd.f32 0.0, %v9731
        %v9733 = vpop.f32.mrb[0].mxu0
        %v9734 = vadd.f32 0.0, %v9733
        %v9735 = vpop.f32.mrb[0].mxu0
        %v9736 = vadd.f32 0.0, %v9735
        %v9737 = vpop.f32.mrb[0].mxu0
        %v9738 = vadd.f32 0.0, %v9737
        %9739 = vmatprep.mubr.bf16.mxu0 %v9604
        %9740 = vmatmul.mubr.bf16.gmra.mrb[0].mxu0 %v9603
        %v9741 = vpop.f32.mrb[0].mxu0
        %v9742 = vadd.f32 0.0, %v9741
        %v9743 = vpop.f32.mrb[0].mxu0
        %v9744 = vadd.f32 0.0, %v9743
        %v9745 = vpop.f32.mrb[0].mxu0
        %v9746 = vadd.f32 0.0, %v9745
        %v9747 = vpop.f32.mrb[0].mxu0
        %v9748 = vadd.f32 0.0, %v9747
        %9749 = vmatprep.mubr.bf16.mxu0 %v9606
        %9750 = vmatmul.mubr.bf16.gmra.mrb[0].mxu0 %v9605
        %v9751 = vpop.f32.mrb[0].mxu0
        %v9752 = vadd.f32 0.0, %v9751
        %v9753 = vpop.f32.mrb[0].mxu0
        %v9754 = vadd.f32 0.0, %v9753
        %v9755 = vpop.f32.mrb[0].mxu0
        %v9756 = vadd.f32 0.0, %v9755
        %v9757 = vpop.f32.mrb[0].mxu0
        %v9758 = vadd.f32 0.0, %v9757
        %9759 = vmatprep.mubr.bf16.mxu0 %v9608
        %9760 = vmatmul.mubr.bf16.gmra.mrb[0].mxu0 %v9607
        %v9761 = vpop.f32.mrb[0].mxu0
        %v9762 = vadd.f32 0.0, %v9761
        %v9763 = vpop.f32.mrb[0].mxu0
        %v9764 = vadd.f32 0.0, %v9763
        %v9765 = vpop.f32.mrb[0].mxu0
        %v9766 = vadd.f32 0.0, %v9765
        %v9767 = vpop.f32.mrb[0].mxu0
        %v9768 = vadd.f32 0.0, %v9767
        %9769 = vmatprep.mubr.bf16.mxu0 %v9610
        %9770 = vmatmul.mubr.bf16.gmra.mrb[0].mxu0 %v9609
        %v9771 = vpop.f32.mrb[0].mxu0
        %v9772 = vadd.f32 0.0, %v9771
        %v9773 = vpop.f32.mrb[0].mxu0
        %v9774 = vadd.f32 0.0, %v9773
        %v9775 = vpop.f32.mrb[0].mxu0
        %v9776 = vadd.f32 0.0, %v9775
        %v9777 = vpop.f32.mrb[0].mxu0
        %v9778 = vadd.f32 0.0, %v9777
        %9779 = vmatprep.mubr.bf16.mxu0 %v9612
        %9780 = vmatmul.mubr.bf16.gmra.mrb[0].mxu0 %v9611
        %v9781 = vpop.f32.mrb[0].mxu0
        %v9782 = vadd.f32 0.0, %v9781
        %v9783 = vpop.f32.mrb[0].mxu0
        %v9784 = vadd.f32 0.0, %v9783
        %v9785 = vpop.f32.mrb[0].mxu0
        %v9786 = vadd.f32 0.0, %v9785
        %v9787 = vpop.f32.mrb[0].mxu0
        %v9788 = vadd.f32 0.0, %v9787
        %9789 = vmatprep.mubr.bf16.mxu0 %v9614
        %9790 = vmatmul.mubr.bf16.gmra.mrb[0].mxu0 %v9613
        %v9791 = vpop.f32.mrb[0].mxu0
        %v9792 = vadd.f32 0.0, %v9791
        %v9793 = vpop.f32.mrb[0].mxu0
        %v9794 = vadd.f32 0.0, %v9793
        %v9795 = vpop.f32.mrb[0].mxu0
        %v9796 = vadd.f32 0.0, %v9795
        %v9797 = vpop.f32.mrb[0].mxu0
        %v9798 = vadd.f32 0.0, %v9797
        %9799 = vmatprep.mubr.bf16.mxu0 %v9616
        %9800 = vmatmul.mubr.bf16.gmra.mrb[0].mxu0 %v9615
        %v9801 = vpop.f32.mrb[0].mxu0
        %v9802 = vadd.f32 0.0, %v9801
        %v9803 = vpop.f32.mrb[0].mxu0
        %v9804 = vadd.f32 0.0, %v9803
        %v9805 = vpop.f32.mrb[0].mxu0
        %v9806 = vadd.f32 0.0, %v9805
        %v9807 = vpop.f32.mrb[0].mxu0
        %v9808 = vadd.f32 0.0, %v9807
        %9809 = vmatprep.mubr.bf16.mxu0 %v9618
        %9810 = vmatmul.mubr.bf16.gmra.mrb[0].mxu0 %v9617
        %v9811 = vpop.f32.mrb[0].mxu0
        %v9812 = vadd.f32 0.0, %v9811
        %v9813 = vpop.f32.mrb[0].mxu0
        %v9814 = vadd.f32 0.0, %v9813
        %v9815 = vpop.f32.mrb[0].mxu0
        %v9816 = vadd.f32 0.0, %v9815
        %v9817 = vpop.f32.mrb[0].mxu0
        %v9818 = vadd.f32 0.0, %v9817
        %9819 = vmatprep.mubr.bf16.mxu0 %v9620
        %9820 = vmatmul.mubr.bf16.gmra.mrb[0].mxu0 %v9619
        %v9821 = vpop.f32.mrb[0].mxu0
        %v9822 = vadd.f32 0.0, %v9821
        %v9823 = vpop.f32.mrb[0].mxu0
        %v9824 = vadd.f32 0.0, %v9823
        %v9825 = vpop.f32.mrb[0].mxu0
        %v9826 = vadd.f32 0.0, %v9825
        %v9827 = vpop.f32.mrb[0].mxu0
        %v9828 = vadd.f32 0.0, %v9827
        %9829 = vmatprep.mubr.bf16.mxu0 %v9622
        %9830 = vmatmul.mubr.bf16.gmra.mrb[0].mxu0 %v9621
        %v9831 = vpop.f32.mrb[0].mxu0
        %v9832 = vadd.f32 0.0, %v9831
        %v9833 = vpop.f32.mrb[0].mxu0
        %v9834 = vadd.f32 0.0, %v9833
        %v9835 = vpop.f32.mrb[0].mxu0
        %v9836 = vadd.f32 0.0, %v9835
        %v9837 = vpop.f32.mrb[0].mxu0
        %v9838 = vadd.f32 0.0, %v9837
        %9839 = vmatprep.mubr.bf16.mxu0 %v9624
        %9840 = vmatmul.mubr.bf16.gmra.mrb[0].mxu0 %v9623
        %v9841 = vpop.f32.mrb[0].mxu0
        %v9842 = vadd.f32 0.0, %v9841
        %v9843 = vpop.f32.mrb[0].mxu0
        %v9844 = vadd.f32 0.0, %v9843
        %v9845 = vpop.f32.mrb[0].mxu0
        %v9846 = vadd.f32 0.0, %v9845
        %v9847 = vpop.f32.mrb[0].mxu0
        %v9848 = vadd.f32 0.0, %v9847
        %9849 = vdwg.mxu0
        %9850 = vmatprep.subr.bf16.mxu0 %v9403
        %9851 = vmatpush1.bf16.msra.mxu0 %v9402
        %9852 = vmatprep.subr.bf16.mxu0 %v9407
        %9853 = vmatpush1.bf16.msra.mxu0 %v9406
        %9854 = vmatprep.subr.bf16.mxu0 %v9411
        %9855 = vmatpush1.bf16.msra.mxu0 %v9410
        %9856 = vmatprep.subr.bf16.mxu0 %v9415
        %9857 = vmatpush1.bf16.msra.mxu0 %v9414
        %9858 = vmatprep.subr.bf16.mxu0 %v9419
        %9859 = vmatpush1.bf16.msra.mxu0 %v9418
        %9860 = vmatprep.subr.bf16.mxu0 %v9423
        %9861 = vmatpush1.bf16.msra.mxu0 %v9422
        %9862 = vmatprep.subr.bf16.mxu0 %v9427
        %9863 = vmatpush1.bf16.msra.mxu0 %v9426
        %9864 = vmatprep.subr.bf16.mxu0 %v9431
        %9865 = vmatpush1.bf16.msra.mxu0 %v9430
        %9866 = vmatprep.subr.bf16.mxu0 %v9435
        %9867 = vmatpush1.bf16.msra.mxu0 %v9434
        %9868 = vmatprep.subr.bf16.mxu0 %v9439
        %9869 = vmatpush1.bf16.msra.mxu0 %v9438
        %9870 = vmatprep.subr.bf16.mxu0 %v9443
        %9871 = vmatpush1.bf16.msra.mxu0 %v9442
        %9872 = vmatprep.subr.bf16.mxu0 %v9447
        %9873 = vmatpush1.bf16.msra.mxu0 %v9446
        %9874 = vmatprep.subr.bf16.mxu0 %v9451
        %9875 = vmatpush1.bf16.msra.mxu0 %v9450
        %9876 = vmatprep.subr.bf16.mxu0 %v9455
        %9877 = vmatpush1.bf16.msra.mxu0 %v9454
        %9878 = vmatprep.subr.bf16.mxu0 %v9459
        %9879 = vmatpush1.bf16.msra.mxu0 %v9458
        %9880 = vmatprep.subr.bf16.mxu0 %v9463
        %9881 = vmatpush1.bf16.msra.mxu0 %v9462
        %9882 = vmatprep.mubr.bf16.mxu0 %v9594
        %9883 = vmatmul.mubr.bf16.gmra.mrb[0].mxu0 %v9593
        %v9884 = vpop.f32.mrb[0].mxu0
        %v9885 = vadd.f32 0.0, %v9884
        %v9886 = vpop.f32.mrb[0].mxu0
        %v9887 = vadd.f32 0.0, %v9886
        %v9888 = vpop.f32.mrb[0].mxu0
        %v9889 = vadd.f32 0.0, %v9888
        %v9890 = vpop.f32.mrb[0].mxu0
        %v9891 = vadd.f32 0.0, %v9890
        %9892 = vmatprep.mubr.bf16.mxu0 %v9596
        %9893 = vmatmul.mubr.bf16.gmra.mrb[0].mxu0 %v9595
        %v9894 = vpop.f32.mrb[0].mxu0
        %v9895 = vadd.f32 0.0, %v9894
        %v9896 = vpop.f32.mrb[0].mxu0
        %v9897 = vadd.f32 0.0, %v9896
        %v9898 = vpop.f32.mrb[0].mxu0
        %v9899 = vadd.f32 0.0, %v9898
        %v9900 = vpop.f32.mrb[0].mxu0
        %v9901 = vadd.f32 0.0, %v9900
        %9902 = vmatprep.mubr.bf16.mxu0 %v9598
        %9903 = vmatmul.mubr.bf16.gmra.mrb[0].mxu0 %v9597
        %v9904 = vpop.f32.mrb[0].mxu0
        %v9905 = vadd.f32 0.0, %v9904
        %v9906 = vpop.f32.mrb[0].mxu0
        %v9907 = vadd.f32 0.0, %v9906
        %v9908 = vpop.f32.mrb[0].mxu0
        %v9909 = vadd.f32 0.0, %v9908
        %v9910 = vpop.f32.mrb[0].mxu0
        %v9911 = vadd.f32 0.0, %v9910
        %9912 = vmatprep.mubr.bf16.mxu0 %v9600
        %9913 = vmatmul.mubr.bf16.gmra.mrb[0].mxu0 %v9599
        %v9914 = vpop.f32.mrb[0].mxu0
        %v9915 = vadd.f32 0.0, %v9914
        %v9916 = vpop.f32.mrb[0].mxu0
        %v9917 = vadd.f32 0.0, %v9916
        %v9918 = vpop.f32.mrb[0].mxu0
        %v9919 = vadd.f32 0.0, %v9918
        %v9920 = vpop.f32.mrb[0].mxu0
        %v9921 = vadd.f32 0.0, %v9920
        %9922 = vmatprep.mubr.bf16.mxu0 %v9602
        %9923 = vmatmul.mubr.bf16.gmra.mrb[0].mxu0 %v9601
        %v9924 = vpop.f32.mrb[0].mxu0
        %v9925 = vadd.f32 0.0, %v9924
        %v9926 = vpop.f32.mrb[0].mxu0
        %v9927 = vadd.f32 0.0, %v9926
        %v9928 = vpop.f32.mrb[0].mxu0
        %v9929 = vadd.f32 0.0, %v9928
        %v9930 = vpop.f32.mrb[0].mxu0
        %v9931 = vadd.f32 0.0, %v9930
        %9932 = vmatprep.mubr.bf16.mxu0 %v9604
        %9933 = vmatmul.mubr.bf16.gmra.mrb[0].mxu0 %v9603
        %v9934 = vpop.f32.mrb[0].mxu0
        %v9935 = vadd.f32 0.0, %v9934
        %v9936 = vpop.f32.mrb[0].mxu0
        %v9937 = vadd.f32 0.0, %v9936
        %v9938 = vpop.f32.mrb[0].mxu0
        %v9939 = vadd.f32 0.0, %v9938
        %v9940 = vpop.f32.mrb[0].mxu0
        %v9941 = vadd.f32 0.0, %v9940
        %9942 = vmatprep.mubr.bf16.mxu0 %v9606
        %9943 = vmatmul.mubr.bf16.gmra.mrb[0].mxu0 %v9605
        %v9944 = vpop.f32.mrb[0].mxu0
        %v9945 = vadd.f32 0.0, %v9944
        %v9946 = vpop.f32.mrb[0].mxu0
        %v9947 = vadd.f32 0.0, %v9946
        %v9948 = vpop.f32.mrb[0].mxu0
        %v9949 = vadd.f32 0.0, %v9948
        %v9950 = vpop.f32.mrb[0].mxu0
        %v9951 = vadd.f32 0.0, %v9950
        %9952 = vmatprep.mubr.bf16.mxu0 %v9608
        %9953 = vmatmul.mubr.bf16.gmra.mrb[0].mxu0 %v9607
        %v9954 = vpop.f32.mrb[0].mxu0
        %v9955 = vadd.f32 0.0, %v9954
        %v9956 = vpop.f32.mrb[0].mxu0
        %v9957 = vadd.f32 0.0, %v9956
        %v9958 = vpop.f32.mrb[0].mxu0
        %v9959 = vadd.f32 0.0, %v9958
        %v9960 = vpop.f32.mrb[0].mxu0
        %v9961 = vadd.f32 0.0, %v9960
        %9962 = vmatprep.mubr.bf16.mxu0 %v9610
        %9963 = vmatmul.mubr.bf16.gmra.mrb[0].mxu0 %v9609
        %v9964 = vpop.f32.mrb[0].mxu0
        %v9965 = vadd.f32 0.0, %v9964
        %v9966 = vpop.f32.mrb[0].mxu0
        %v9967 = vadd.f32 0.0, %v9966
        %v9968 = vpop.f32.mrb[0].mxu0
        %v9969 = vadd.f32 0.0, %v9968
        %v9970 = vpop.f32.mrb[0].mxu0
        %v9971 = vadd.f32 0.0, %v9970
        %9972 = vmatprep.mubr.bf16.mxu0 %v9612
        %9973 = vmatmul.mubr.bf16.gmra.mrb[0].mxu0 %v9611
        %v9974 = vpop.f32.mrb[0].mxu0
        %v9975 = vadd.f32 0.0, %v9974
        %v9976 = vpop.f32.mrb[0].mxu0
        %v9977 = vadd.f32 0.0, %v9976
        %v9978 = vpop.f32.mrb[0].mxu0
        %v9979 = vadd.f32 0.0, %v9978
        %v9980 = vpop.f32.mrb[0].mxu0
        %v9981 = vadd.f32 0.0, %v9980
        %9982 = vmatprep.mubr.bf16.mxu0 %v9614
        %9983 = vmatmul.mubr.bf16.gmra.mrb[0].mxu0 %v9613
        %v9984 = vpop.f32.mrb[0].mxu0
        %v9985 = vadd.f32 0.0, %v9984
        %v9986 = vpop.f32.mrb[0].mxu0
        %v9987 = vadd.f32 0.0, %v9986
        %v9988 = vpop.f32.mrb[0].mxu0
        %v9989 = vadd.f32 0.0, %v9988
        %v9990 = vpop.f32.mrb[0].mxu0
        %v9991 = vadd.f32 0.0, %v9990
        %9992 = vmatprep.mubr.bf16.mxu0 %v9616
        %9993 = vmatmul.mubr.bf16.gmra.mrb[0].mxu0 %v9615
        %v9994 = vpop.f32.mrb[0].mxu0
        %v9995 = vadd.f32 0.0, %v9994
        %v9996 = vpop.f32.mrb[0].mxu0
        %v9997 = vadd.f32 0.0, %v9996
        %v9998 = vpop.f32.mrb[0].mxu0
        %v9999 = vadd.f32 0.0, %v9998
        %v10000 = vpop.f32.mrb[0].mxu0
        %v10001 = vadd.f32 0.0, %v10000
        %10002 = vmatprep.mubr.bf16.mxu0 %v9618
        %10003 = vmatmul.mubr.bf16.gmra.mrb[0].mxu0 %v9617
        %v10004 = vpop.f32.mrb[0].mxu0
        %v10005 = vadd.f32 0.0, %v10004
        %v10006 = vpop.f32.mrb[0].mxu0
        %v10007 = vadd.f32 0.0, %v10006
        %v10008 = vpop.f32.mrb[0].mxu0
        %v10009 = vadd.f32 0.0, %v10008
        %v10010 = vpop.f32.mrb[0].mxu0
        %v10011 = vadd.f32 0.0, %v10010
        %10012 = vmatprep.mubr.bf16.mxu0 %v9620
        %10013 = vmatmul.mubr.bf16.gmra.mrb[0].mxu0 %v9619
        %v10014 = vpop.f32.mrb[0].mxu0
        %v10015 = vadd.f32 0.0, %v10014
        %v10016 = vpop.f32.mrb[0].mxu0
        %v10017 = vadd.f32 0.0, %v10016
        %v10018 = vpop.f32.mrb[0].mxu0
        %v10019 = vadd.f32 0.0, %v10018
        %v10020 = vpop.f32.mrb[0].mxu0
        %v10021 = vadd.f32 0.0, %v10020
        %10022 = vmatprep.mubr.bf16.mxu0 %v9622
        %10023 = vmatmul.mubr.bf16.gmra.mrb[0].mxu0 %v9621
        %v10024 = vpop.f32.mrb[0].mxu0
        %v10025 = vadd.f32 0.0, %v10024
        %v10026 = vpop.f32.mrb[0].mxu0
        %v10027 = vadd.f32 0.0, %v10026
        %v10028 = vpop.f32.mrb[0].mxu0
        %v10029 = vadd.f32 0.0, %v10028
        %v10030 = vpop.f32.mrb[0].mxu0
        %v10031 = vadd.f32 0.0, %v10030
        %10032 = vmatprep.mubr.bf16.mxu0 %v9624
        %10033 = vmatmul.mubr.bf16.gmra.mrb[0].mxu0 %v9623
        %v10034 = vpop.f32.mrb[0].mxu0
        %v10035 = vadd.f32 0.0, %v10034
        %v10036 = vpop.f32.mrb[0].mxu0
        %v10037 = vadd.f32 0.0, %v10036
        %v10038 = vpop.f32.mrb[0].mxu0
        %v10039 = vadd.f32 0.0, %v10038
        %v10040 = vpop.f32.mrb[0].mxu0
        %v10041 = vadd.f32 0.0, %v10040
        %10042 = vdwg.mxu0
        %v10043 = vpack.c.bf16 %v9696, %v9692
        %v10044 = vpack.c.bf16 %v9698, %v9694
        %v10045 = vpack.c.bf16 %v9889, %v9885
        %v10046 = vpack.c.bf16 %v9891, %v9887
        %v10047 = vpack.c.bf16 %v9706, %v9702
        %v10048 = vpack.c.bf16 %v9708, %v9704
        %v10049 = vpack.c.bf16 %v9899, %v9895
        %v10050 = vpack.c.bf16 %v9901, %v9897
        %v10051 = vpack.c.bf16 %v9716, %v9712
        %v10052 = vpack.c.bf16 %v9718, %v9714
        %v10053 = vpack.c.bf16 %v9909, %v9905
        %v10054 = vpack.c.bf16 %v9911, %v9907
        %v10055 = vpack.c.bf16 %v9726, %v9722
        %v10056 = vpack.c.bf16 %v9728, %v9724
        %v10057 = vpack.c.bf16 %v9919, %v9915
        %v10058 = vpack.c.bf16 %v9921, %v9917
        %v10059 = vpack.c.bf16 %v9736, %v9732
        %v10060 = vpack.c.bf16 %v9738, %v9734
        %v10061 = vpack.c.bf16 %v9929, %v9925
        %v10062 = vpack.c.bf16 %v9931, %v9927
        %v10063 = vpack.c.bf16 %v9746, %v9742
        %v10064 = vpack.c.bf16 %v9748, %v9744
        %v10065 = vpack.c.bf16 %v9939, %v9935
        %v10066 = vpack.c.bf16 %v9941, %v9937
        %v10067 = vpack.c.bf16 %v9756, %v9752
        %v10068 = vpack.c.bf16 %v9758, %v9754
        %v10069 = vpack.c.bf16 %v9949, %v9945
        %v10070 = vpack.c.bf16 %v9951, %v9947
        %v10071 = vpack.c.bf16 %v9766, %v9762
        %v10072 = vpack.c.bf16 %v9768, %v9764
        %v10073 = vpack.c.bf16 %v9959, %v9955
        %v10074 = vpack.c.bf16 %v9961, %v9957
        %v10075 = vpack.c.bf16 %v9776, %v9772
        %v10076 = vpack.c.bf16 %v9778, %v9774
        %v10077 = vpack.c.bf16 %v9969, %v9965
        %v10078 = vpack.c.bf16 %v9971, %v9967
        %v10079 = vpack.c.bf16 %v9786, %v9782
        %v10080 = vpack.c.bf16 %v9788, %v9784
        %v10081 = vpack.c.bf16 %v9979, %v9975
        %v10082 = vpack.c.bf16 %v9981, %v9977
        %v10083 = vpack.c.bf16 %v9796, %v9792
        %v10084 = vpack.c.bf16 %v9798, %v9794
        %v10085 = vpack.c.bf16 %v9989, %v9985
        %v10086 = vpack.c.bf16 %v9991, %v9987
        %v10087 = vpack.c.bf16 %v9806, %v9802
        %v10088 = vpack.c.bf16 %v9808, %v9804
        %v10089 = vpack.c.bf16 %v9999, %v9995
        %v10090 = vpack.c.bf16 %v10001, %v9997
        %v10091 = vpack.c.bf16 %v9816, %v9812
        %v10092 = vpack.c.bf16 %v9818, %v9814
        %v10093 = vpack.c.bf16 %v10009, %v10005
        %v10094 = vpack.c.bf16 %v10011, %v10007
        %v10095 = vpack.c.bf16 %v9826, %v9822
        %v10096 = vpack.c.bf16 %v9828, %v9824
        %v10097 = vpack.c.bf16 %v10019, %v10015
        %v10098 = vpack.c.bf16 %v10021, %v10017
        %v10099 = vpack.c.bf16 %v9836, %v9832
        %v10100 = vpack.c.bf16 %v9838, %v9834
        %v10101 = vpack.c.bf16 %v10029, %v10025
        %v10102 = vpack.c.bf16 %v10031, %v10027
        %v10103 = vpack.c.bf16 %v9846, %v9842
        %v10104 = vpack.c.bf16 %v9848, %v9844
        %v10105 = vpack.c.bf16 %v10039, %v10035
        %v10106 = vpack.c.bf16 %v10041, %v10037
        %10107 = vset.pattern.permute.xlu0 7
        %10108 = vperm.xlu0 %10107, %v279
        %v10109 = vpop.permute.xlu0 %10108
        %v10112 = vunpack.c.l.s4 839922192
        %v10113 = vunpack.c.0.s8 %v10112
        %v10114 = vlaneseq
        %v10115 = vshrl.u32 %v10114, 7
        %v10116 = vsub.s32 %v10113, %v10115
        %v10117 = vrot.slane %v10109, %v10116
        %10118 = vset.pattern.permute.xlu0 7
        %10119 = vperm.xlu0 %10118, %v280
        %v10120 = vpop.permute.xlu0 %10119
        %v10123 = vunpack.c.l.s4 839922192
        %v10124 = vunpack.c.0.s8 %v10123
        %v10125 = vlaneseq
        %v10126 = vshrl.u32 %v10125, 7
        %v10127 = vsub.s32 %v10124, %v10126
        %v10128 = vrot.slane %v10120, %v10127
        %10129 = vset.pattern.permute.xlu0 7
        %10130 = vperm.xlu0 %10129, %v281
        %v10131 = vpop.permute.xlu0 %10130
        %v10134 = vunpack.c.l.s4 839922192
        %v10135 = vunpack.c.0.s8 %v10134
        %v10136 = vlaneseq
        %v10137 = vshrl.u32 %v10136, 7
        %v10138 = vsub.s32 %v10135, %v10137
        %v10139 = vrot.slane %v10131, %v10138
        %10140 = vset.pattern.permute.xlu0 7
        %10141 = vperm.xlu0 %10140, %v282
        %v10142 = vpop.permute.xlu0 %10141
        %v10145 = vunpack.c.l.s4 839922192
        %v10146 = vunpack.c.0.s8 %v10145
        %v10147 = vlaneseq
        %v10148 = vshrl.u32 %v10147, 7
        %v10149 = vsub.s32 %v10146, %v10148
        %v10150 = vrot.slane %v10142, %v10149
        %10151 = vset.pattern.permute.xlu0 7
        %10152 = vperm.xlu0 %10151, %v283
        %v10153 = vpop.permute.xlu0 %10152
        %v10156 = vunpack.c.l.s4 839922192
        %v10157 = vunpack.c.0.s8 %v10156
        %v10158 = vlaneseq
        %v10159 = vshrl.u32 %v10158, 7
        %v10160 = vsub.s32 %v10157, %v10159
        %v10161 = vrot.slane %v10153, %v10160
        %10162 = vset.pattern.permute.xlu0 7
        %10163 = vperm.xlu0 %10162, %v284
        %v10164 = vpop.permute.xlu0 %10163
        %v10167 = vunpack.c.l.s4 839922192
        %v10168 = vunpack.c.0.s8 %v10167
        %v10169 = vlaneseq
        %v10170 = vshrl.u32 %v10169, 7
        %v10171 = vsub.s32 %v10168, %v10170
        %v10172 = vrot.slane %v10164, %v10171
        %10173 = vset.pattern.permute.xlu0 7
        %10174 = vperm.xlu0 %10173, %v285
        %v10175 = vpop.permute.xlu0 %10174
        %v10178 = vunpack.c.l.s4 839922192
        %v10179 = vunpack.c.0.s8 %v10178
        %v10180 = vlaneseq
        %v10181 = vshrl.u32 %v10180, 7
        %v10182 = vsub.s32 %v10179, %v10181
        %v10183 = vrot.slane %v10175, %v10182
        %10184 = vset.pattern.permute.xlu0 7
        %10185 = vperm.xlu0 %10184, %v286
        %v10186 = vpop.permute.xlu0 %10185
        %v10189 = vunpack.c.l.s4 839922192
        %v10190 = vunpack.c.0.s8 %v10189
        %v10191 = vlaneseq
        %v10192 = vshrl.u32 %v10191, 7
        %v10193 = vsub.s32 %v10190, %v10192
        %v10194 = vrot.slane %v10186, %v10193
        %10195 = vset.pattern.permute.xlu0 7
        %10196 = vperm.xlu0 %10195, %v287
        %v10197 = vpop.permute.xlu0 %10196
        %v10200 = vunpack.c.l.s4 839922192
        %v10201 = vunpack.c.0.s8 %v10200
        %v10202 = vlaneseq
        %v10203 = vshrl.u32 %v10202, 7
        %v10204 = vsub.s32 %v10201, %v10203
        %v10205 = vrot.slane %v10197, %v10204
        %10206 = vset.pattern.permute.xlu0 7
        %10207 = vperm.xlu0 %10206, %v288
        %v10208 = vpop.permute.xlu0 %10207
        %v10211 = vunpack.c.l.s4 839922192
        %v10212 = vunpack.c.0.s8 %v10211
        %v10213 = vlaneseq
        %v10214 = vshrl.u32 %v10213, 7
        %v10215 = vsub.s32 %v10212, %v10214
        %v10216 = vrot.slane %v10208, %v10215
        %10217 = vset.pattern.permute.xlu0 7
        %10218 = vperm.xlu0 %10217, %v289
        %v10219 = vpop.permute.xlu0 %10218
        %v10222 = vunpack.c.l.s4 839922192
        %v10223 = vunpack.c.0.s8 %v10222
        %v10224 = vlaneseq
        %v10225 = vshrl.u32 %v10224, 7
        %v10226 = vsub.s32 %v10223, %v10225
        %v10227 = vrot.slane %v10219, %v10226
        %10228 = vset.pattern.permute.xlu0 7
        %10229 = vperm.xlu0 %10228, %v290
        %v10230 = vpop.permute.xlu0 %10229
        %v10233 = vunpack.c.l.s4 839922192
        %v10234 = vunpack.c.0.s8 %v10233
        %v10235 = vlaneseq
        %v10236 = vshrl.u32 %v10235, 7
        %v10237 = vsub.s32 %v10234, %v10236
        %v10238 = vrot.slane %v10230, %v10237
        %10239 = vset.pattern.permute.xlu0 7
        %10240 = vperm.xlu0 %10239, %v291
        %v10241 = vpop.permute.xlu0 %10240
        %v10244 = vunpack.c.l.s4 839922192
        %v10245 = vunpack.c.0.s8 %v10244
        %v10246 = vlaneseq
        %v10247 = vshrl.u32 %v10246, 7
        %v10248 = vsub.s32 %v10245, %v10247
        %v10249 = vrot.slane %v10241, %v10248
        %10250 = vset.pattern.permute.xlu0 7
        %10251 = vperm.xlu0 %10250, %v292
        %v10252 = vpop.permute.xlu0 %10251
        %v10255 = vunpack.c.l.s4 839922192
        %v10256 = vunpack.c.0.s8 %v10255
        %v10257 = vlaneseq
        %v10258 = vshrl.u32 %v10257, 7
        %v10259 = vsub.s32 %v10256, %v10258
        %v10260 = vrot.slane %v10252, %v10259
        %10261 = vset.pattern.permute.xlu0 7
        %10262 = vperm.xlu0 %10261, %v293
        %v10263 = vpop.permute.xlu0 %10262
        %v10266 = vunpack.c.l.s4 839922192
        %v10267 = vunpack.c.0.s8 %v10266
        %v10268 = vlaneseq
        %v10269 = vshrl.u32 %v10268, 7
        %v10270 = vsub.s32 %v10267, %v10269
        %v10271 = vrot.slane %v10263, %v10270
        %10272 = vset.pattern.permute.xlu0 7
        %10273 = vperm.xlu0 %10272, %v294
        %v10274 = vpop.permute.xlu0 %10273
        %v10277 = vunpack.c.l.s4 839922192
        %v10278 = vunpack.c.0.s8 %v10277
        %v10279 = vlaneseq
        %v10280 = vshrl.u32 %v10279, 7
        %v10281 = vsub.s32 %v10278, %v10280
        %v10282 = vrot.slane %v10274, %v10281
        %10283 = vset.pattern.permute.xlu0 7
        %10284 = vperm.xlu0 %10283, %v295
        %v10285 = vpop.permute.xlu0 %10284
        %v10288 = vunpack.c.l.s4 839922192
        %v10289 = vunpack.c.0.s8 %v10288
        %v10290 = vlaneseq
        %v10291 = vshrl.u32 %v10290, 7
        %v10292 = vsub.s32 %v10289, %v10291
        %v10293 = vrot.slane %v10285, %v10292
        %10294 = vset.pattern.permute.xlu0 7
        %10295 = vperm.xlu0 %10294, %v296
        %v10296 = vpop.permute.xlu0 %10295
        %v10299 = vunpack.c.l.s4 839922192
        %v10300 = vunpack.c.0.s8 %v10299
        %v10301 = vlaneseq
        %v10302 = vshrl.u32 %v10301, 7
        %v10303 = vsub.s32 %v10300, %v10302
        %v10304 = vrot.slane %v10296, %v10303
        %10305 = vset.pattern.permute.xlu0 7
        %10306 = vperm.xlu0 %10305, %v297
        %v10307 = vpop.permute.xlu0 %10306
        %v10310 = vunpack.c.l.s4 839922192
        %v10311 = vunpack.c.0.s8 %v10310
        %v10312 = vlaneseq
        %v10313 = vshrl.u32 %v10312, 7
        %v10314 = vsub.s32 %v10311, %v10313
        %v10315 = vrot.slane %v10307, %v10314
        %10316 = vset.pattern.permute.xlu0 7
        %10317 = vperm.xlu0 %10316, %v298
        %v10318 = vpop.permute.xlu0 %10317
        %v10321 = vunpack.c.l.s4 839922192
        %v10322 = vunpack.c.0.s8 %v10321
        %v10323 = vlaneseq
        %v10324 = vshrl.u32 %v10323, 7
        %v10325 = vsub.s32 %v10322, %v10324
        %v10326 = vrot.slane %v10318, %v10325
        %10327 = vset.pattern.permute.xlu0 7
        %10328 = vperm.xlu0 %10327, %v299
        %v10329 = vpop.permute.xlu0 %10328
        %v10332 = vunpack.c.l.s4 839922192
        %v10333 = vunpack.c.0.s8 %v10332
        %v10334 = vlaneseq
        %v10335 = vshrl.u32 %v10334, 7
        %v10336 = vsub.s32 %v10333, %v10335
        %v10337 = vrot.slane %v10329, %v10336
        %10338 = vset.pattern.permute.xlu0 7
        %10339 = vperm.xlu0 %10338, %v300
        %v10340 = vpop.permute.xlu0 %10339
        %v10343 = vunpack.c.l.s4 839922192
        %v10344 = vunpack.c.0.s8 %v10343
        %v10345 = vlaneseq
        %v10346 = vshrl.u32 %v10345, 7
        %v10347 = vsub.s32 %v10344, %v10346
        %v10348 = vrot.slane %v10340, %v10347
        %10349 = vset.pattern.permute.xlu0 7
        %10350 = vperm.xlu0 %10349, %v301
        %v10351 = vpop.permute.xlu0 %10350
        %v10354 = vunpack.c.l.s4 839922192
        %v10355 = vunpack.c.0.s8 %v10354
        %v10356 = vlaneseq
        %v10357 = vshrl.u32 %v10356, 7
        %v10358 = vsub.s32 %v10355, %v10357
        %v10359 = vrot.slane %v10351, %v10358
        %10360 = vset.pattern.permute.xlu0 7
        %10361 = vperm.xlu0 %10360, %v302
        %v10362 = vpop.permute.xlu0 %10361
        %v10365 = vunpack.c.l.s4 839922192
        %v10366 = vunpack.c.0.s8 %v10365
        %v10367 = vlaneseq
        %v10368 = vshrl.u32 %v10367, 7
        %v10369 = vsub.s32 %v10366, %v10368
        %v10370 = vrot.slane %v10362, %v10369
        %10371 = vset.pattern.permute.xlu0 7
        %10372 = vperm.xlu0 %10371, %v303
        %v10373 = vpop.permute.xlu0 %10372
        %v10376 = vunpack.c.l.s4 839922192
        %v10377 = vunpack.c.0.s8 %v10376
        %v10378 = vlaneseq
        %v10379 = vshrl.u32 %v10378, 7
        %v10380 = vsub.s32 %v10377, %v10379
        %v10381 = vrot.slane %v10373, %v10380
        %10382 = vset.pattern.permute.xlu0 7
        %10383 = vperm.xlu0 %10382, %v304
        %v10384 = vpop.permute.xlu0 %10383
        %v10387 = vunpack.c.l.s4 839922192
        %v10388 = vunpack.c.0.s8 %v10387
        %v10389 = vlaneseq
        %v10390 = vshrl.u32 %v10389, 7
        %v10391 = vsub.s32 %v10388, %v10390
        %v10392 = vrot.slane %v10384, %v10391
        %10393 = vset.pattern.permute.xlu0 7
        %10394 = vperm.xlu0 %10393, %v305
        %v10395 = vpop.permute.xlu0 %10394
        %v10398 = vunpack.c.l.s4 839922192
        %v10399 = vunpack.c.0.s8 %v10398
        %v10400 = vlaneseq
        %v10401 = vshrl.u32 %v10400, 7
        %v10402 = vsub.s32 %v10399, %v10401
        %v10403 = vrot.slane %v10395, %v10402
        %10404 = vset.pattern.permute.xlu0 7
        %10405 = vperm.xlu0 %10404, %v306
        %v10406 = vpop.permute.xlu0 %10405
        %v10409 = vunpack.c.l.s4 839922192
        %v10410 = vunpack.c.0.s8 %v10409
        %v10411 = vlaneseq
        %v10412 = vshrl.u32 %v10411, 7
        %v10413 = vsub.s32 %v10410, %v10412
        %v10414 = vrot.slane %v10406, %v10413
        %10415 = vset.pattern.permute.xlu0 7
        %10416 = vperm.xlu0 %10415, %v307
        %v10417 = vpop.permute.xlu0 %10416
        %v10420 = vunpack.c.l.s4 839922192
        %v10421 = vunpack.c.0.s8 %v10420
        %v10422 = vlaneseq
        %v10423 = vshrl.u32 %v10422, 7
        %v10424 = vsub.s32 %v10421, %v10423
        %v10425 = vrot.slane %v10417, %v10424
        %10426 = vset.pattern.permute.xlu0 7
        %10427 = vperm.xlu0 %10426, %v308
        %v10428 = vpop.permute.xlu0 %10427
        %v10431 = vunpack.c.l.s4 839922192
        %v10432 = vunpack.c.0.s8 %v10431
        %v10433 = vlaneseq
        %v10434 = vshrl.u32 %v10433, 7
        %v10435 = vsub.s32 %v10432, %v10434
        %v10436 = vrot.slane %v10428, %v10435
        %10437 = vset.pattern.permute.xlu0 7
        %10438 = vperm.xlu0 %10437, %v309
        %v10439 = vpop.permute.xlu0 %10438
        %v10442 = vunpack.c.l.s4 839922192
        %v10443 = vunpack.c.0.s8 %v10442
        %v10444 = vlaneseq
        %v10445 = vshrl.u32 %v10444, 7
        %v10446 = vsub.s32 %v10443, %v10445
        %v10447 = vrot.slane %v10439, %v10446
        %10448 = vset.pattern.permute.xlu0 7
        %10449 = vperm.xlu0 %10448, %v310
        %v10450 = vpop.permute.xlu0 %10449
        %v10453 = vunpack.c.l.s4 839922192
        %v10454 = vunpack.c.0.s8 %v10453
        %v10455 = vlaneseq
        %v10456 = vshrl.u32 %v10455, 7
        %v10457 = vsub.s32 %v10454, %v10456
        %v10458 = vrot.slane %v10450, %v10457
        %v10491 = vunpack.c.l.b16 %v10117
        %v10492 = vunpack.c.l.b16 %v10128
        %v10493 = vunpack.c.l.b16 %v10139
        %v10494 = vunpack.c.l.b16 %v10150
        %v10495 = vunpack.c.l.b16 %v10161
        %v10496 = vunpack.c.l.b16 %v10172
        %v10497 = vunpack.c.l.b16 %v10183
        %v10498 = vunpack.c.l.b16 %v10194
        %v10499 = vunpack.c.l.b16 %v10205
        %v10500 = vunpack.c.l.b16 %v10216
        %v10501 = vunpack.c.l.b16 %v10227
        %v10502 = vunpack.c.l.b16 %v10238
        %v10503 = vunpack.c.l.b16 %v10249
        %v10504 = vunpack.c.l.b16 %v10260
        %v10505 = vunpack.c.l.b16 %v10271
        %v10506 = vunpack.c.l.b16 %v10282
        %v10507 = vunpack.c.l.b16 %v10293
        %v10508 = vunpack.c.l.b16 %v10304
        %v10509 = vunpack.c.l.b16 %v10315
        %v10510 = vunpack.c.l.b16 %v10326
        %v10511 = vunpack.c.l.b16 %v10337
        %v10512 = vunpack.c.l.b16 %v10348
        %v10513 = vunpack.c.l.b16 %v10359
        %v10514 = vunpack.c.l.b16 %v10370
        %v10515 = vunpack.c.l.b16 %v10381
        %v10516 = vunpack.c.l.b16 %v10392
        %v10517 = vunpack.c.l.b16 %v10403
        %v10518 = vunpack.c.l.b16 %v10414
        %v10519 = vunpack.c.l.b16 %v10425
        %v10520 = vunpack.c.l.b16 %v10436
        %v10521 = vunpack.c.l.b16 %v10447
        %v10522 = vunpack.c.l.b16 %v10458
        %v10523 = vpack.c.b16 %v10492, %v10491
        %v10524 = vpack.c.b16 %v10494, %v10493
        %v10525 = vpack.c.b16 %v10496, %v10495
        %v10526 = vpack.c.b16 %v10498, %v10497
        %v10527 = vpack.c.b16 %v10500, %v10499
        %v10528 = vpack.c.b16 %v10502, %v10501
        %v10529 = vpack.c.b16 %v10504, %v10503
        %v10530 = vpack.c.b16 %v10506, %v10505
        %v10531 = vpack.c.b16 %v10508, %v10507
        %v10532 = vpack.c.b16 %v10510, %v10509
        %v10533 = vpack.c.b16 %v10512, %v10511
        %v10534 = vpack.c.b16 %v10514, %v10513
        %v10535 = vpack.c.b16 %v10516, %v10515
        %v10536 = vpack.c.b16 %v10518, %v10517
        %v10537 = vpack.c.b16 %v10520, %v10519
        %v10538 = vpack.c.b16 %v10522, %v10521
        %v10555 = vadd.bf16 %v10043, %v10523
        %v10556 = vadd.bf16 %v10044, %v10523
        %v10557 = vadd.bf16 %v10045, %v10523
        %v10558 = vadd.bf16 %v10046, %v10523
        %v10559 = vadd.bf16 %v10047, %v10524
        %v10560 = vadd.bf16 %v10048, %v10524
        %v10561 = vadd.bf16 %v10049, %v10524
        %v10562 = vadd.bf16 %v10050, %v10524
        %v10563 = vadd.bf16 %v10051, %v10525
        %v10564 = vadd.bf16 %v10052, %v10525
        %v10565 = vadd.bf16 %v10053, %v10525
        %v10566 = vadd.bf16 %v10054, %v10525
        %v10567 = vadd.bf16 %v10055, %v10526
        %v10568 = vadd.bf16 %v10056, %v10526
        %v10569 = vadd.bf16 %v10057, %v10526
        %v10570 = vadd.bf16 %v10058, %v10526
        %v10571 = vadd.bf16 %v10059, %v10527
        %v10572 = vadd.bf16 %v10060, %v10527
        %v10573 = vadd.bf16 %v10061, %v10527
        %v10574 = vadd.bf16 %v10062, %v10527
        %v10575 = vadd.bf16 %v10063, %v10528
        %v10576 = vadd.bf16 %v10064, %v10528
        %v10577 = vadd.bf16 %v10065, %v10528
        %v10578 = vadd.bf16 %v10066, %v10528
        %v10579 = vadd.bf16 %v10067, %v10529
        %v10580 = vadd.bf16 %v10068, %v10529
        %v10581 = vadd.bf16 %v10069, %v10529
        %v10582 = vadd.bf16 %v10070, %v10529
        %v10583 = vadd.bf16 %v10071, %v10530
        %v10584 = vadd.bf16 %v10072, %v10530
        %v10585 = vadd.bf16 %v10073, %v10530
        %v10586 = vadd.bf16 %v10074, %v10530
        %v10587 = vadd.bf16 %v10075, %v10531
        %v10588 = vadd.bf16 %v10076, %v10531
        %v10589 = vadd.bf16 %v10077, %v10531
        %v10590 = vadd.bf16 %v10078, %v10531
        %v10591 = vadd.bf16 %v10079, %v10532
        %v10592 = vadd.bf16 %v10080, %v10532
        %v10593 = vadd.bf16 %v10081, %v10532
        %v10594 = vadd.bf16 %v10082, %v10532
        %v10595 = vadd.bf16 %v10083, %v10533
        %v10596 = vadd.bf16 %v10084, %v10533
        %v10597 = vadd.bf16 %v10085, %v10533
        %v10598 = vadd.bf16 %v10086, %v10533
        %v10599 = vadd.bf16 %v10087, %v10534
        %v10600 = vadd.bf16 %v10088, %v10534
        %v10601 = vadd.bf16 %v10089, %v10534
        %v10602 = vadd.bf16 %v10090, %v10534
        %v10603 = vadd.bf16 %v10091, %v10535
        %v10604 = vadd.bf16 %v10092, %v10535
        %v10605 = vadd.bf16 %v10093, %v10535
        %v10606 = vadd.bf16 %v10094, %v10535
        %v10607 = vadd.bf16 %v10095, %v10536
        %v10608 = vadd.bf16 %v10096, %v10536
        %v10609 = vadd.bf16 %v10097, %v10536
        %v10610 = vadd.bf16 %v10098, %v10536
        %v10611 = vadd.bf16 %v10099, %v10537
        %v10612 = vadd.bf16 %v10100, %v10537
        %v10613 = vadd.bf16 %v10101, %v10537
        %v10614 = vadd.bf16 %v10102, %v10537
        %v10615 = vadd.bf16 %v10103, %v10538
        %v10616 = vadd.bf16 %v10104, %v10538
        %v10617 = vadd.bf16 %v10105, %v10538
        %v10618 = vadd.bf16 %v10106, %v10538
        %v10619 = vmax.bf16 %v10555, 0
        %v10620 = vmax.bf16 %v10556, 0
        %v10621 = vmax.bf16 %v10557, 0
        %v10622 = vmax.bf16 %v10558, 0
        %v10623 = vmax.bf16 %v10559, 0
        %v10624 = vmax.bf16 %v10560, 0
        %v10625 = vmax.bf16 %v10561, 0
        %v10626 = vmax.bf16 %v10562, 0
        %v10627 = vmax.bf16 %v10563, 0
        %v10628 = vmax.bf16 %v10564, 0
        %v10629 = vmax.bf16 %v10565, 0
        %v10630 = vmax.bf16 %v10566, 0
        %v10631 = vmax.bf16 %v10567, 0
        %v10632 = vmax.bf16 %v10568, 0
        %v10633 = vmax.bf16 %v10569, 0
        %v10634 = vmax.bf16 %v10570, 0
        %v10635 = vmax.bf16 %v10571, 0
        %v10636 = vmax.bf16 %v10572, 0
        %v10637 = vmax.bf16 %v10573, 0
        %v10638 = vmax.bf16 %v10574, 0
        %v10639 = vmax.bf16 %v10575, 0
        %v10640 = vmax.bf16 %v10576, 0
        %v10641 = vmax.bf16 %v10577, 0
        %v10642 = vmax.bf16 %v10578, 0
        %v10643 = vmax.bf16 %v10579, 0
        %v10644 = vmax.bf16 %v10580, 0
        %v10645 = vmax.bf16 %v10581, 0
        %v10646 = vmax.bf16 %v10582, 0
        %v10647 = vmax.bf16 %v10583, 0
        %v10648 = vmax.bf16 %v10584, 0
        %v10649 = vmax.bf16 %v10585, 0
        %v10650 = vmax.bf16 %v10586, 0
        %v10651 = vmax.bf16 %v10587, 0
        %v10652 = vmax.bf16 %v10588, 0
        %v10653 = vmax.bf16 %v10589, 0
        %v10654 = vmax.bf16 %v10590, 0
        %v10655 = vmax.bf16 %v10591, 0
        %v10656 = vmax.bf16 %v10592, 0
        %v10657 = vmax.bf16 %v10593, 0
        %v10658 = vmax.bf16 %v10594, 0
        %v10659 = vmax.bf16 %v10595, 0
        %v10660 = vmax.bf16 %v10596, 0
        %v10661 = vmax.bf16 %v10597, 0
        %v10662 = vmax.bf16 %v10598, 0
        %v10663 = vmax.bf16 %v10599, 0
        %v10664 = vmax.bf16 %v10600, 0
        %v10665 = vmax.bf16 %v10601, 0
        %v10666 = vmax.bf16 %v10602, 0
        %v10667 = vmax.bf16 %v10603, 0
        %v10668 = vmax.bf16 %v10604, 0
        %v10669 = vmax.bf16 %v10605, 0
        %v10670 = vmax.bf16 %v10606, 0
        %v10671 = vmax.bf16 %v10607, 0
        %v10672 = vmax.bf16 %v10608, 0
        %v10673 = vmax.bf16 %v10609, 0
        %v10674 = vmax.bf16 %v10610, 0
        %v10675 = vmax.bf16 %v10611, 0
        %v10676 = vmax.bf16 %v10612, 0
        %v10677 = vmax.bf16 %v10613, 0
        %v10678 = vmax.bf16 %v10614, 0
        %v10679 = vmax.bf16 %v10615, 0
        %v10680 = vmax.bf16 %v10616, 0
        %v10681 = vmax.bf16 %v10617, 0
        %v10682 = vmax.bf16 %v10618, 0
        %v10683 = vld [vmem:[%s4] sm:$0xff]
        %v10684 = vld [vmem:[%s5] sm:$0xff]
        %10686 = vset.pattern.permute.xlu0 0
        %10687 = vperm.xlu0 %10686, %v10684
        %v10688 = vpop.permute.xlu0 %10687
        %v10691 = vunpack.c.l.b16 %v10683
        %v10692 = vunpack.c.h.b16 %v10683
        %v10693 = vpack.c.b16 %v10691, %v10691
        %v10694 = vpack.c.b16 %v10692, %v10692
        %10697 = vmatprep.subr.bf16.mxu0 %v10620
        %10698 = vmatpush1.bf16.msra.mxu0 %v10619
        %10699 = vmatprep.subr.bf16.mxu0 %v10624
        %10700 = vmatpush1.bf16.msra.mxu0 %v10623
        %10701 = vmatprep.subr.bf16.mxu0 %v10628
        %10702 = vmatpush1.bf16.msra.mxu0 %v10627
        %10703 = vmatprep.subr.bf16.mxu0 %v10632
        %10704 = vmatpush1.bf16.msra.mxu0 %v10631
        %10705 = vmatprep.subr.bf16.mxu0 %v10636
        %10706 = vmatpush1.bf16.msra.mxu0 %v10635
        %10707 = vmatprep.subr.bf16.mxu0 %v10640
        %10708 = vmatpush1.bf16.msra.mxu0 %v10639
        %10709 = vmatprep.subr.bf16.mxu0 %v10644
        %10710 = vmatpush1.bf16.msra.mxu0 %v10643
        %10711 = vmatprep.subr.bf16.mxu0 %v10648
        %10712 = vmatpush1.bf16.msra.mxu0 %v10647
        %10713 = vmatprep.subr.bf16.mxu0 %v10652
        %10714 = vmatpush1.bf16.msra.mxu0 %v10651
        %10715 = vmatprep.subr.bf16.mxu0 %v10656
        %10716 = vmatpush1.bf16.msra.mxu0 %v10655
        %10717 = vmatprep.subr.bf16.mxu0 %v10660
        %10718 = vmatpush1.bf16.msra.mxu0 %v10659
        %10719 = vmatprep.subr.bf16.mxu0 %v10664
        %10720 = vmatpush1.bf16.msra.mxu0 %v10663
        %10721 = vmatprep.subr.bf16.mxu0 %v10668
        %10722 = vmatpush1.bf16.msra.mxu0 %v10667
        %10723 = vmatprep.subr.bf16.mxu0 %v10672
        %10724 = vmatpush1.bf16.msra.mxu0 %v10671
        %10725 = vmatprep.subr.bf16.mxu0 %v10676
        %10726 = vmatpush1.bf16.msra.mxu0 %v10675
        %10727 = vmatprep.subr.bf16.mxu0 %v10680
        %10728 = vmatpush1.bf16.msra.mxu0 %v10679
        %10729 = vmatprep.mubr.bf16.mxu0 %v10694
        %10730 = vmatmul.mubr.bf16.gmra.mrb[0].mxu0 %v10693
        %v10731 = vpop.f32.mrb[0].mxu0
        %v10732 = vadd.f32 %v10688, %v10731
        %v10733 = vpop.f32.mrb[0].mxu0
        %v10734 = vadd.f32 %v10688, %v10733
        %v10735 = vpop.f32.mrb[0].mxu0
        %v10736 = vpop.f32.mrb[0].mxu0
        %10737 = vdwg.mxu0
        %10738 = vmatprep.subr.bf16.mxu0 %v10622
        %10739 = vmatpush1.bf16.msra.mxu0 %v10621
        %10740 = vmatprep.subr.bf16.mxu0 %v10626
        %10741 = vmatpush1.bf16.msra.mxu0 %v10625
        %10742 = vmatprep.subr.bf16.mxu0 %v10630
        %10743 = vmatpush1.bf16.msra.mxu0 %v10629
        %10744 = vmatprep.subr.bf16.mxu0 %v10634
        %10745 = vmatpush1.bf16.msra.mxu0 %v10633
        %10746 = vmatprep.subr.bf16.mxu0 %v10638
        %10747 = vmatpush1.bf16.msra.mxu0 %v10637
        %10748 = vmatprep.subr.bf16.mxu0 %v10642
        %10749 = vmatpush1.bf16.msra.mxu0 %v10641
        %10750 = vmatprep.subr.bf16.mxu0 %v10646
        %10751 = vmatpush1.bf16.msra.mxu0 %v10645
        %10752 = vmatprep.subr.bf16.mxu0 %v10650
        %10753 = vmatpush1.bf16.msra.mxu0 %v10649
        %10754 = vmatprep.subr.bf16.mxu0 %v10654
        %10755 = vmatpush1.bf16.msra.mxu0 %v10653
        %10756 = vmatprep.subr.bf16.mxu0 %v10658
        %10757 = vmatpush1.bf16.msra.mxu0 %v10657
        %10758 = vmatprep.subr.bf16.mxu0 %v10662
        %10759 = vmatpush1.bf16.msra.mxu0 %v10661
        %10760 = vmatprep.subr.bf16.mxu0 %v10666
        %10761 = vmatpush1.bf16.msra.mxu0 %v10665
        %10762 = vmatprep.subr.bf16.mxu0 %v10670
        %10763 = vmatpush1.bf16.msra.mxu0 %v10669
        %10764 = vmatprep.subr.bf16.mxu0 %v10674
        %10765 = vmatpush1.bf16.msra.mxu0 %v10673
        %10766 = vmatprep.subr.bf16.mxu0 %v10678
        %10767 = vmatpush1.bf16.msra.mxu0 %v10677
        %10768 = vmatprep.subr.bf16.mxu0 %v10682
        %10769 = vmatpush1.bf16.msra.mxu0 %v10681
        %10770 = vmatprep.mubr.bf16.mxu0 %v10694
        %10771 = vmatmul.mubr.bf16.gmra.mrb[0].mxu0 %v10693
        %v10772 = vpop.f32.mrb[0].mxu0
        %v10773 = vadd.f32 %v10688, %v10772
        %v10774 = vpop.f32.mrb[0].mxu0
        %v10775 = vadd.f32 %v10688, %v10774
        %v10776 = vpop.f32.mrb[0].mxu0
        %v10777 = vpop.f32.mrb[0].mxu0
        %10778 = vdwg.mxu0
        %10779 = vst [vmem:[%s268] sm:$0xff] %v10732
        %10780 = vst [vmem:[%s268 + $0x8] sm:$0xff] %v10734
        %10781 = vst [vmem:[%s268 + $0x10] sm:$0xff] %v10773
        %10782 = vst [vmem:[%s268 + $0x18] sm:$0xff] %v10775
        %s10783 = smul.u32 4, %s18
        %p10784 = scmp.lt.s32.totalorder %s10783, 7
        %s10785 = scalar_select %p10784, %s10783, 7
        %s10786 = smul.addr %s10785, 8
        %s10787 = scalar_lea.vmem %s6, %s10786
        // Predicated region
        $region49: #{_augnerf_forward.1} parent=43 // pred_check
          %p10788 = pneg %p167
        $region50: #{_augnerf_forward.1} parent=43 // pred_check_branch
          %10790 = sbr.rel (%p10788) target = $region52
        $region51: #{_augnerf_forward.1} parent=43 // pred_region
          %s10791 = smul.u32 4, %s18
        $region52: #{_augnerf_forward.1} parent=43 // pred_fallthru
          _
      $region44: #{_augnerf_forward.1} parent=5 // pred_fallthru
        _
      %p10792 = scmp.le.s32.totalorder 2, %s13
      // Predicated region
      $region53: #{_augnerf_forward.1} parent=5 // pred_check
        %p10793 = pneg %p10792
      $region54: #{_augnerf_forward.1} parent=5 // pred_check_branch
        %10795 = sbr.rel (%p10793) target = $region56
      $region55: #{_augnerf_forward.1} parent=5 // pred_region
        %s10796 = ssub.s32 %s13, 2
        // Predicated region
        $region57: #{_augnerf_forward.1} parent=55 // pred_check
          %p10797 = pneg %p173
        $region58: #{_augnerf_forward.1} parent=55 // pred_check_branch
          %10799 = sbr.rel (%p10797) target = $region60
        $region59: #{_augnerf_forward.1} parent=55 // pred_region
          %s10800 = smul.u32 4, %s19
          %p10801 = scmp.lt.s32.totalorder %s10800, 7
          %s10802 = scalar_select %p10801, %s10800, 7
          %s10803 = smul.addr %s10802, 8
          %s10804 = scalar_lea.vmem %s6, %s10803
        $region60: #{_augnerf_forward.1} parent=55 // pred_fallthru
          _
      $region56: #{_augnerf_forward.1} parent=5 // pred_fallthru
        _
    $region6: #{_augnerf_forward.1} parent=1 // loop_footer
      %s17 = sadd.s32 1, %s13
    $region7: #{_augnerf_forward.1} parent=1 // loop_footer_branch
      %12 = sbr.rel target = $region3
    $region8: #{_augnerf_forward.1} parent=1 // loop_exit
      _
    %10805 = vsyncpa [#allocation3], 1
    %s10806 = scalar_lea.sflag [#allocation3], 1
    %10807 = vsyncpa %s10806, 1

</llo_original>
